<compile_context>
chip_gen: v5e
topology: v5e:2x2
jax: 0.10.0
libtpu: 0.0.40
codegen_flags: <defaults>
</compile_context>

<pallas_src>
import math
from functools import partial

import jax
import jax.numpy as jnp
from jax.experimental import pallas as pl
from jax.experimental.pallas import tpu as pltpu


# ----------------------------------------------------------------------------
# Fused C2f kernel (one grid step = one batch element, everything in VMEM)
# ----------------------------------------------------------------------------
def c2f_kernel(*refs, H, W, c1, c2, c, n, adds):
    # ---- unpack refs -------------------------------------------------------
    x_ref = refs[0]
    w_cv1, b_cv1 = refs[1], refs[2]                  # cv1 (1x1), fused (c1, 2c)
    m_refs = [refs[3 + 4 * i: 7 + 4 * i] for i in range(n)]
    base = 3 + 4 * n
    cv2_w = refs[base: base + 2 + n]                 # cv2 (1x1) weight, split by in-chunk
    cv2_b = refs[base + 2 + n]
    o_ref = refs[base + 3 + n]
    pad_ref = refs[base + 4 + n]                     # (H+2, W+2, c) bf16 halo scratch

    f32, bf16 = jnp.float32, jnp.bfloat16

    def mm(a, w_ref):                                # bf16 operands, f32 accumulate
        return jnp.dot(a.astype(bf16), w_ref[...], preferred_element_type=f32)

    def silu(z):
        return z * jax.nn.sigmoid(z)

    # Zero ONLY the 1-pixel halo border each step; the interior is always fully
    # overwritten by conv3x3. Per-step (not program_id==0-gated) because the
    # "parallel" batch axis gives each TensorCore its own scratch instance.
    zrow = jnp.zeros((1, W + 2, c), bf16)
    zcol = jnp.zeros((H + 2, 1, c), bf16)
    pad_ref[0:1] = zrow
    pad_ref[H + 1:H + 2] = zrow
    pad_ref[:, 0:1, :] = zcol
    pad_ref[:, W + 1:W + 2, :] = zcol

    x2d = x_ref[0].reshape(H * W, c1)                # (H*W, c1) f32

    def conv3x3(a2d, w_ref, b_ref):
        # 'same'-padded 3x3 conv as a single im2col matmul on the MXU;
        # halo buffer and im2col patch live in bf16.
        pad_ref[1:H + 1, 1:W + 1, :] = a2d.reshape(H, W, c).astype(bf16)
        cols = [pad_ref[kh:kh + H, kw:kw + W, :].reshape(H * W, c)
                for kh in range(3) for kw in range(3)]
        patch = jnp.concatenate(cols, axis=-1)       # (H*W, 9c) bf16
        return silu(mm(patch, w_ref) + b_ref[...])

    # cv1 (1x1 fast path): ONE matmul; the channel split is a free lane slice.
    y = silu(mm(x2d, w_cv1) + b_cv1[...])            # (H*W, 2c)
    prev = y[:, c:]                                  # y[1] feeds the bottlenecks

    # cv2 over the virtual concat [y0 | y1 | m1 | ... | mn], accumulated
    # EAGERLY so only {prev, acc} stay live (no chunks list materialized).
    acc = mm(y[:, :c], cv2_w[0]) + mm(prev, cv2_w[1])

    for i in range(n):                               # Bottleneck(c, c, k=(3,3), e=1.0)
        w1, b1, w2, b2 = m_refs[i]
        t = conv3x3(prev, w1, b1)
        t = conv3x3(t, w2, b2)
        if adds[i]:                                  # shortcut (after activation)
            t = prev + t
        acc = acc + mm(t, cv2_w[2 + i])
        prev = t

    out = silu(acc + cv2_b[...])
    o_ref[...] = out.reshape(1, H, W, c2).astype(o_ref.dtype)


def c2f_pallas(x_nhwc, p):
    """x_nhwc: (N,H,W,c1) f32; p: folded C2f params. Returns (N,H,W,c2) f32."""
    N, H, W, c1 = x_nhwc.shape
    c = p["c"]
    n = len(p["m"])
    c2 = p["cv2"][0].shape[-1]
    adds = tuple(bool(bp["add"]) for bp in p["m"])

    def w2d(w):                                      # HWIO -> (K*K*Cin, Cout) bf16
        K, _, Cin, Cout = w.shape
        return w.reshape(K * K * Cin, Cout).astype(jnp.bfloat16)

    def brow(b):                                     # (Cout,) -> (1, Cout) f32
        return b.reshape(1, -1).astype(jnp.float32)

    w_inputs = [w2d(p["cv1"][0]), brow(p["cv1"][1])]           # cv1 fused (c1, 2c)
    for bp in p["m"]:
        w_inputs += [w2d(bp["cv1"][0]), brow(bp["cv1"][1]),
                     w2d(bp["cv2"][0]), brow(bp["cv2"][1])]
    w_cv2 = w2d(p["cv2"][0])                                   # ((2+n)c, c2)
    for j in range(2 + n):                                     # split along Cin
        w_inputs.append(w_cv2[j * c:(j + 1) * c, :])
    w_inputs.append(brow(p["cv2"][1]))

    inputs = [x_nhwc.astype(jnp.float32)] + w_inputs

    in_specs = [pl.BlockSpec((1, H, W, c1), lambda b: (b, 0, 0, 0))]
    in_specs += [pl.BlockSpec(a.shape, lambda b: (0, 0)) for a in w_inputs]
    out_spec = pl.BlockSpec((1, H, W, c2), lambda b: (b, 0, 0, 0))

    # Explicit scoped-VMEM budget: per-step I/O blocks (x2 double buffering) +
    # weights (x2) + bf16 halo scratch + headroom for in-flight activations.
    blk_bytes = (H * W * c1 + H * W * c2) * 4
    w_bytes = sum(int(a.size) * a.dtype.itemsize for a in w_inputs)
    scratch_bytes = (H + 2) * (W + 2) * c * 2
    work_bytes = 16 * H * W * max(9 * c, 2 * c, c1, c2) * 4
    vmem_limit = 2 * (blk_bytes + w_bytes) + scratch_bytes + work_bytes
    vmem_limit = int(min(max(vmem_limit, 32 << 20), 64 << 20))

    kernel = partial(c2f_kernel, H=H, W=W, c1=c1, c2=c2, c=c, n=n, adds=adds)
    return pl.pallas_call(
        kernel,
        out_shape=jax.ShapeDtypeStruct((N, H, W, c2), jnp.float32),
        grid_spec=pltpu.PrefetchScalarGridSpec(
            num_scalar_prefetch=0,
            grid=(N,),
            in_specs=in_specs,
            out_specs=out_spec,
            scratch_shapes=[pltpu.VMEM((H + 2, W + 2, c), jnp.bfloat16)]),
        compiler_params=pltpu.CompilerParams(
            dimension_semantics=("parallel",),
            vmem_limit_bytes=vmem_limit),
    )(*inputs)


# ----------------------------------------------------------------------------
# Deterministic parameter init + BatchNorm folding (eval-mode running stats)
# ----------------------------------------------------------------------------
def _fold_bn(w, gamma, beta, mean, var, eps=1e-5):
    scale = gamma / jnp.sqrt(var + eps)
    return w * scale, beta - mean * scale


def init_conv(key, cin, cout, k):
    """Conv2d(no bias) + BatchNorm2d folded into (weight HWIO, bias)."""
    kw, kg, kb, km, kv = jax.random.split(key, 5)
    w = jax.random.normal(kw, (k, k, cin, cout), jnp.float32) / math.sqrt(cin * k * k)
    gamma = jax.random.uniform(kg, (cout,), jnp.float32, minval=0.5, maxval=1.5)
    beta = jax.random.normal(kb, (cout,), jnp.float32) * 0.1
    mean = jax.random.normal(km, (cout,), jnp.float32) * 0.1
    var = jax.random.uniform(kv, (cout,), jnp.float32, minval=0.5, maxval=1.5)
    # TODO(synk): training-mode BatchNorm (batch statistics) is not modeled;
    # BN is folded with running stats, i.e. eval/inference semantics.
    return _fold_bn(w, gamma, beta, mean, var)


def init_c2f(key, c1, c2, n=1, shortcut=False, e=0.5):
    c = int(c2 * e)
    keys = jax.random.split(key, 2 + 2 * n)
    m = [{"cv1": init_conv(keys[2 + 2 * i], c, c, 3),
          "cv2": init_conv(keys[3 + 2 * i], c, c, 3),
          "add": bool(shortcut)}                     # Bottleneck: c1 == c2 == c
         for i in range(n)]
    return {"c": c,
            "cv1": init_conv(keys[0], c1, 2 * c, 1),
            "cv2": init_conv(keys[1], (2 + n) * c, c2, 1),
            "m": m}


# ----------------------------------------------------------------------------
# Pure-JAX reference (same folded params, same bf16-operand matmul numerics)
# ----------------------------------------------------------------------------
def conv_ref(x, w, b, act=True):
    out = jax.lax.conv_general_dilated(
        x.astype(jnp.bfloat16), w.astype(jnp.bfloat16),
        window_strides=(1, 1), padding="SAME",
        dimension_numbers=("NHWC", "HWIO", "NHWC"),
        preferred_element_type=jnp.float32)
    out = out + b.astype(jnp.float32)
    if act:
        out = out * jax.nn.sigmoid(out)
    return out


def c2f_ref(x, p):
    c = p["c"]
    y0 = conv_ref(x, *p["cv1"])
    ys = [y0[..., :c], y0[..., c:]]
    for bp in p["m"]:
        t = conv_ref(ys[-1], *bp["cv1"])
        t = conv_ref(t, *bp["cv2"])
        if bp["add"]:
            t = ys[-1] + t
        ys.append(t)
    return conv_ref(jnp.concatenate(ys, axis=-1), *p["cv2"])


# ----------------------------------------------------------------------------
if __name__ == "__main__":
    key = jax.random.PRNGKey(0)
    kx, kp = jax.random.split(key)

    # C2f(c1=4, c2=8, n=1, shortcut=True); input NCHW (2, 4, 16, 16)
    N, c1, H, W = 2, 4, 16, 16
    c2, n, shortcut = 8, 1, True

    x_nchw = jax.random.normal(kx, (N, c1, H, W), jnp.float32)
    x_nhwc = jnp.transpose(x_nchw, (0, 2, 3, 1))      # NCHW -> NHWC

    params = init_c2f(kp, c1, c2, n=n, shortcut=shortcut)

    out_nhwc = jax.block_until_ready(c2f_pallas(x_nhwc, params))
    out_nchw = jnp.transpose(out_nhwc, (0, 3, 1, 2))  # back to PyTorch NCHW
    assert out_nchw.shape == (N, c2, H, W), out_nchw.shape

    ref_nhwc = c2f_ref(x_nhwc, params)
    max_err = float(jnp.max(jnp.abs(out_nhwc - ref_nhwc)))
    assert jnp.allclose(out_nhwc, ref_nhwc, rtol=2e-2, atol=2e-2), max_err

    print("KERNEL_OK")
</pallas_src>

<mosaic_0001>
module attributes {stable_mosaic.version = 11 : i64} {
  func.func @c2f_kernel(%arg0: i32, %arg1: memref<1x16x16x4xf32, #tpu.memory_space<vmem>>, %arg2: memref<4x8xbf16, #tpu.memory_space<vmem>>, %arg3: memref<1x8xf32, #tpu.memory_space<vmem>>, %arg4: memref<36x4xbf16, #tpu.memory_space<vmem>>, %arg5: memref<1x4xf32, #tpu.memory_space<vmem>>, %arg6: memref<36x4xbf16, #tpu.memory_space<vmem>>, %arg7: memref<1x4xf32, #tpu.memory_space<vmem>>, %arg8: memref<4x8xbf16, #tpu.memory_space<vmem>>, %arg9: memref<4x8xbf16, #tpu.memory_space<vmem>>, %arg10: memref<4x8xbf16, #tpu.memory_space<vmem>>, %arg11: memref<1x8xf32, #tpu.memory_space<vmem>>, %arg12: memref<1x16x16x8xf32, #tpu.memory_space<vmem>>, %arg13: memref<18x18x4xbf16, #tpu.memory_space<vmem>>) attributes {dimension_semantics = [#tpu.dimension_semantics<parallel>], iteration_bounds = array<i64: 2>, scalar_prefetch = 0 : i64, scratch_operands = 1 : i64, tpu.core_type = #tpu.core_type<tc>, window_params = [{transform_indices = @transform_0, window_bounds = array<i64: 1, 16, 16, 4>}, {pipeline_mode = #tpu.pipeline_mode<synchronous>, transform_indices = @transform_1, window_bounds = array<i64: 4, 8>}, {pipeline_mode = #tpu.pipeline_mode<synchronous>, transform_indices = @transform_2, window_bounds = array<i64: 1, 8>}, {pipeline_mode = #tpu.pipeline_mode<synchronous>, transform_indices = @transform_3, window_bounds = array<i64: 36, 4>}, {pipeline_mode = #tpu.pipeline_mode<synchronous>, transform_indices = @transform_4, window_bounds = array<i64: 1, 4>}, {pipeline_mode = #tpu.pipeline_mode<synchronous>, transform_indices = @transform_5, window_bounds = array<i64: 36, 4>}, {pipeline_mode = #tpu.pipeline_mode<synchronous>, transform_indices = @transform_6, window_bounds = array<i64: 1, 4>}, {pipeline_mode = #tpu.pipeline_mode<synchronous>, transform_indices = @transform_7, window_bounds = array<i64: 4, 8>}, {pipeline_mode = #tpu.pipeline_mode<synchronous>, transform_indices = @transform_8, window_bounds = array<i64: 4, 8>}, {pipeline_mode = #tpu.pipeline_mode<synchronous>, transform_indices = @transform_9, window_bounds = array<i64: 4, 8>}, {pipeline_mode = #tpu.pipeline_mode<synchronous>, transform_indices = @transform_10, window_bounds = array<i64: 1, 8>}, {transform_indices = @transform_11, window_bounds = array<i64: 1, 16, 16, 8>}]} {
    %cst = arith.constant 0.000000e+00 : bf16
    %0 = vector.broadcast %cst : bf16 to vector<1x18x4xbf16>
    %cst_0 = arith.constant 0.000000e+00 : bf16
    %1 = vector.broadcast %cst_0 : bf16 to vector<18x1x4xbf16>
    %c0 = arith.constant 0 : index
    %c0_1 = arith.constant 0 : index
    %c0_2 = arith.constant 0 : index
    %2 = vector.load %arg13[%c0, %c0_1, %c0_2] : memref<18x18x4xbf16, #tpu.memory_space<vmem>>, vector<1x18x4xbf16>
    tpu.vector_store %arg13[%c0, %c0_1, %c0_2], %0 {strides = array<i32>} : memref<18x18x4xbf16, #tpu.memory_space<vmem>>, vector<1x18x4xbf16>,
    %c17 = arith.constant 17 : index
    %c0_3 = arith.constant 0 : index
    %c0_4 = arith.constant 0 : index
    %3 = vector.load %arg13[%c17, %c0_3, %c0_4] : memref<18x18x4xbf16, #tpu.memory_space<vmem>>, vector<1x18x4xbf16>
    tpu.vector_store %arg13[%c17, %c0_3, %c0_4], %0 {strides = array<i32>} : memref<18x18x4xbf16, #tpu.memory_space<vmem>>, vector<1x18x4xbf16>,
    %c0_5 = arith.constant 0 : index
    %c0_6 = arith.constant 0 : index
    %c0_7 = arith.constant 0 : index
    %4 = vector.load %arg13[%c0_5, %c0_6, %c0_7] : memref<18x18x4xbf16, #tpu.memory_space<vmem>>, vector<18x1x4xbf16>
    tpu.vector_store %arg13[%c0_5, %c0_6, %c0_7], %1 {strides = array<i32>} : memref<18x18x4xbf16, #tpu.memory_space<vmem>>, vector<18x1x4xbf16>,
    %c0_8 = arith.constant 0 : index
    %c17_9 = arith.constant 17 : index
    %c0_10 = arith.constant 0 : index
    %5 = vector.load %arg13[%c0_8, %c17_9, %c0_10] : memref<18x18x4xbf16, #tpu.memory_space<vmem>>, vector<18x1x4xbf16>
    tpu.vector_store %arg13[%c0_8, %c17_9, %c0_10], %1 {strides = array<i32>} : memref<18x18x4xbf16, #tpu.memory_space<vmem>>, vector<18x1x4xbf16>,
    %c0_11 = arith.constant 0 : index
    %c0_12 = arith.constant 0 : index
    %c0_13 = arith.constant 0 : index
    %c0_14 = arith.constant 0 : index
    %6 = vector.load %arg1[%c0_11, %c0_12, %c0_13, %c0_14] : memref<1x16x16x4xf32, #tpu.memory_space<vmem>>, vector<1x16x16x4xf32>
    %7 = vector.shape_cast %6 : vector<1x16x16x4xf32> to vector<16x16x4xf32>
    %8 = vector.shape_cast %7 : vector<16x16x4xf32> to vector<256x4xf32>
    %9 = arith.truncf %8 : vector<256x4xf32> to vector<256x4xbf16>
    %c0_15 = arith.constant 0 : index
    %c0_16 = arith.constant 0 : index
    %10 = vector.load %arg2[%c0_15, %c0_16] : memref<4x8xbf16, #tpu.memory_space<vmem>>, vector<4x8xbf16>
    %cst_17 = arith.constant dense<0.000000e+00> : vector<256x8xf32>
    %11 = tpu.matmul %9, %10, %cst_17 {dimension_numbers = #tpu.dot_dimension_numbers<[1], [0], [0], [1], [0, 0, 1, 1], [], []>} : vector<256x4xbf16>, vector<4x8xbf16>, vector<256x8xf32> -> vector<256x8xf32>
    %c0_18 = arith.constant 0 : index
    %c0_19 = arith.constant 0 : index
    %12 = vector.load %arg3[%c0_18, %c0_19] : memref<1x8xf32, #tpu.memory_space<vmem>>, vector<1x8xf32>
    %13 = vector.broadcast %12 : vector<1x8xf32> to vector<256x8xf32>
    %14 = arith.addf %11, %13 : vector<256x8xf32>
    %15 = arith.negf %14 : vector<256x8xf32>
    %16 = math.exp %15 : vector<256x8xf32>
    %cst_20 = arith.constant 1.000000e+00 : f32
    %17 = vector.broadcast %cst_20 : f32 to vector<256x8xf32>
    %18 = arith.addf %17, %16 : vector<256x8xf32>
    %19 = arith.divf %17, %18 : vector<256x8xf32>
    %20 = arith.mulf %14, %19 : vector<256x8xf32>
    %21 = vector.extract_strided_slice %20 {offsets = [0, 4], sizes = [256, 4], strides = [1, 1]} : vector<256x8xf32> to vector<256x4xf32>
    %22 = vector.extract_strided_slice %20 {offsets = [0, 0], sizes = [256, 4], strides = [1, 1]} : vector<256x8xf32> to vector<256x4xf32>
    %23 = arith.truncf %22 : vector<256x4xf32> to vector<256x4xbf16>
    %c0_21 = arith.constant 0 : index
    %c0_22 = arith.constant 0 : index
    %24 = vector.load %arg8[%c0_21, %c0_22] : memref<4x8xbf16, #tpu.memory_space<vmem>>, vector<4x8xbf16>
    %cst_23 = arith.constant dense<0.000000e+00> : vector<256x8xf32>
    %25 = tpu.matmul %23, %24, %cst_23 {dimension_numbers = #tpu.dot_dimension_numbers<[1], [0], [0], [1], [0, 0, 1, 1], [], []>} : vector<256x4xbf16>, vector<4x8xbf16>, vector<256x8xf32> -> vector<256x8xf32>
    %26 = arith.truncf %21 : vector<256x4xf32> to vector<256x4xbf16>
    %c0_24 = arith.constant 0 : index
    %c0_25 = arith.constant 0 : index
    %27 = vector.load %arg9[%c0_24, %c0_25] : memref<4x8xbf16, #tpu.memory_space<vmem>>, vector<4x8xbf16>
    %cst_26 = arith.constant dense<0.000000e+00> : vector<256x8xf32>
    %28 = tpu.matmul %26, %27, %cst_26 {dimension_numbers = #tpu.dot_dimension_numbers<[1], [0], [0], [1], [0, 0, 1, 1], [], []>} : vector<256x4xbf16>, vector<4x8xbf16>, vector<256x8xf32> -> vector<256x8xf32>
    %29 = arith.addf %25, %28 : vector<256x8xf32>
    %30 = vector.shape_cast %21 : vector<256x4xf32> to vector<16x16x4xf32>
    %31 = arith.truncf %30 : vector<16x16x4xf32> to vector<16x16x4xbf16>
    %c1 = arith.constant 1 : index
    %c1_27 = arith.constant 1 : index
    %c0_28 = arith.constant 0 : index
    %32 = vector.load %arg13[%c1, %c1_27, %c0_28] : memref<18x18x4xbf16, #tpu.memory_space<vmem>>, vector<16x16x4xbf16>
    tpu.vector_store %arg13[%c1, %c1_27, %c0_28], %31 {strides = array<i32>} : memref<18x18x4xbf16, #tpu.memory_space<vmem>>, vector<16x16x4xbf16>,
    %c0_29 = arith.constant 0 : index
    %c0_30 = arith.constant 0 : index
    %c0_31 = arith.constant 0 : index
    %33 = vector.load %arg13[%c0_29, %c0_30, %c0_31] : memref<18x18x4xbf16, #tpu.memory_space<vmem>>, vector<16x16x4xbf16>
    %34 = vector.shape_cast %33 : vector<16x16x4xbf16> to vector<256x4xbf16>
    %c0_32 = arith.constant 0 : index
    %c1_33 = arith.constant 1 : index
    %c0_34 = arith.constant 0 : index
    %35 = vector.load %arg13[%c0_32, %c1_33, %c0_34] : memref<18x18x4xbf16, #tpu.memory_space<vmem>>, vector<16x16x4xbf16>
    %36 = vector.shape_cast %35 : vector<16x16x4xbf16> to vector<256x4xbf16>
    %c0_35 = arith.constant 0 : index
    %c2 = arith.constant 2 : index
    %c0_36 = arith.constant 0 : index
    %37 = vector.load %arg13[%c0_35, %c2, %c0_36] : memref<18x18x4xbf16, #tpu.memory_space<vmem>>, vector<16x16x4xbf16>
    %38 = vector.shape_cast %37 : vector<16x16x4xbf16> to vector<256x4xbf16>
    %c1_37 = arith.constant 1 : index
    %c0_38 = arith.constant 0 : index
    %c0_39 = arith.constant 0 : index
    %39 = vector.load %arg13[%c1_37, %c0_38, %c0_39] : memref<18x18x4xbf16, #tpu.memory_space<vmem>>, vector<16x16x4xbf16>
    %40 = vector.shape_cast %39 : vector<16x16x4xbf16> to vector<256x4xbf16>
    %c1_40 = arith.constant 1 : index
    %c1_41 = arith.constant 1 : index
    %c0_42 = arith.constant 0 : index
    %41 = vector.load %arg13[%c1_40, %c1_41, %c0_42] : memref<18x18x4xbf16, #tpu.memory_space<vmem>>, vector<16x16x4xbf16>
    %42 = vector.shape_cast %41 : vector<16x16x4xbf16> to vector<256x4xbf16>
    %c1_43 = arith.constant 1 : index
    %c2_44 = arith.constant 2 : index
    %c0_45 = arith.constant 0 : index
    %43 = vector.load %arg13[%c1_43, %c2_44, %c0_45] : memref<18x18x4xbf16, #tpu.memory_space<vmem>>, vector<16x16x4xbf16>
    %44 = vector.shape_cast %43 : vector<16x16x4xbf16> to vector<256x4xbf16>
    %c2_46 = arith.constant 2 : index
    %c0_47 = arith.constant 0 : index
    %c0_48 = arith.constant 0 : index
    %45 = vector.load %arg13[%c2_46, %c0_47, %c0_48] : memref<18x18x4xbf16, #tpu.memory_space<vmem>>, vector<16x16x4xbf16>
    %46 = vector.shape_cast %45 : vector<16x16x4xbf16> to vector<256x4xbf16>
    %c2_49 = arith.constant 2 : index
    %c1_50 = arith.constant 1 : index
    %c0_51 = arith.constant 0 : index
    %47 = vector.load %arg13[%c2_49, %c1_50, %c0_51] : memref<18x18x4xbf16, #tpu.memory_space<vmem>>, vector<16x16x4xbf16>
    %48 = vector.shape_cast %47 : vector<16x16x4xbf16> to vector<256x4xbf16>
    %c2_52 = arith.constant 2 : index
    %c2_53 = arith.constant 2 : index
    %c0_54 = arith.constant 0 : index
    %49 = vector.load %arg13[%c2_52, %c2_53, %c0_54] : memref<18x18x4xbf16, #tpu.memory_space<vmem>>, vector<16x16x4xbf16>
    %50 = vector.shape_cast %49 : vector<16x16x4xbf16> to vector<256x4xbf16>
    %51 = tpu.concatenate %34, %36, %38, %40, %42, %44, %46, %48, %50 in 1 : vector<256x4xbf16>, vector<256x4xbf16>, vector<256x4xbf16>, vector<256x4xbf16>, vector<256x4xbf16>, vector<256x4xbf16>, vector<256x4xbf16>, vector<256x4xbf16>, vector<256x4xbf16> -> vector<256x36xbf16>
    %c0_55 = arith.constant 0 : index
    %c0_56 = arith.constant 0 : index
    %52 = vector.load %arg4[%c0_55, %c0_56] : memref<36x4xbf16, #tpu.memory_space<vmem>>, vector<36x4xbf16>
    %cst_57 = arith.constant dense<0.000000e+00> : vector<256x4xf32>
    %53 = tpu.matmul %51, %52, %cst_57 {dimension_numbers = #tpu.dot_dimension_numbers<[1], [0], [0], [1], [0, 0, 1, 1], [], []>} : vector<256x36xbf16>, vector<36x4xbf16>, vector<256x4xf32> -> vector<256x4xf32>
    %c0_58 = arith.constant 0 : index
    %c0_59 = arith.constant 0 : index
    %54 = vector.load %arg5[%c0_58, %c0_59] : memref<1x4xf32, #tpu.memory_space<vmem>>, vector<1x4xf32>
    %55 = vector.broadcast %54 : vector<1x4xf32> to vector<256x4xf32>
    %56 = arith.addf %53, %55 : vector<256x4xf32>
    %57 = arith.negf %56 : vector<256x4xf32>
    %58 = math.exp %57 : vector<256x4xf32>
    %cst_60 = arith.constant 1.000000e+00 : f32
    %59 = vector.broadcast %cst_60 : f32 to vector<256x4xf32>
    %60 = arith.addf %59, %58 : vector<256x4xf32>
    %61 = arith.divf %59, %60 : vector<256x4xf32>
    %62 = arith.mulf %56, %61 : vector<256x4xf32>
    %63 = vector.shape_cast %62 : vector<256x4xf32> to vector<16x16x4xf32>
    %64 = arith.truncf %63 : vector<16x16x4xf32> to vector<16x16x4xbf16>
    %c1_61 = arith.constant 1 : index
    %c1_62 = arith.constant 1 : index
    %c0_63 = arith.constant 0 : index
    %65 = vector.load %arg13[%c1_61, %c1_62, %c0_63] : memref<18x18x4xbf16, #tpu.memory_space<vmem>>, vector<16x16x4xbf16>
    tpu.vector_store %arg13[%c1_61, %c1_62, %c0_63], %64 {strides = array<i32>} : memref<18x18x4xbf16, #tpu.memory_space<vmem>>, vector<16x16x4xbf16>,
    %c0_64 = arith.constant 0 : index
    %c0_65 = arith.constant 0 : index
    %c0_66 = arith.constant 0 : index
    %66 = vector.load %arg13[%c0_64, %c0_65, %c0_66] : memref<18x18x4xbf16, #tpu.memory_space<vmem>>, vector<16x16x4xbf16>
    %67 = vector.shape_cast %66 : vector<16x16x4xbf16> to vector<256x4xbf16>
    %c0_67 = arith.constant 0 : index
    %c1_68 = arith.constant 1 : index
    %c0_69 = arith.constant 0 : index
    %68 = vector.load %arg13[%c0_67, %c1_68, %c0_69] : memref<18x18x4xbf16, #tpu.memory_space<vmem>>, vector<16x16x4xbf16>
    %69 = vector.shape_cast %68 : vector<16x16x4xbf16> to vector<256x4xbf16>
    %c0_70 = arith.constant 0 : index
    %c2_71 = arith.constant 2 : index
    %c0_72 = arith.constant 0 : index
    %70 = vector.load %arg13[%c0_70, %c2_71, %c0_72] : memref<18x18x4xbf16, #tpu.memory_space<vmem>>, vector<16x16x4xbf16>
    %71 = vector.shape_cast %70 : vector<16x16x4xbf16> to vector<256x4xbf16>
    %c1_73 = arith.constant 1 : index
    %c0_74 = arith.constant 0 : index
    %c0_75 = arith.constant 0 : index
    %72 = vector.load %arg13[%c1_73, %c0_74, %c0_75] : memref<18x18x4xbf16, #tpu.memory_space<vmem>>, vector<16x16x4xbf16>
    %73 = vector.shape_cast %72 : vector<16x16x4xbf16> to vector<256x4xbf16>
    %c1_76 = arith.constant 1 : index
    %c1_77 = arith.constant 1 : index
    %c0_78 = arith.constant 0 : index
    %74 = vector.load %arg13[%c1_76, %c1_77, %c0_78] : memref<18x18x4xbf16, #tpu.memory_space<vmem>>, vector<16x16x4xbf16>
    %75 = vector.shape_cast %74 : vector<16x16x4xbf16> to vector<256x4xbf16>
    %c1_79 = arith.constant 1 : index
    %c2_80 = arith.constant 2 : index
    %c0_81 = arith.constant 0 : index
    %76 = vector.load %arg13[%c1_79, %c2_80, %c0_81] : memref<18x18x4xbf16, #tpu.memory_space<vmem>>, vector<16x16x4xbf16>
    %77 = vector.shape_cast %76 : vector<16x16x4xbf16> to vector<256x4xbf16>
    %c2_82 = arith.constant 2 : index
    %c0_83 = arith.constant 0 : index
    %c0_84 = arith.constant 0 : index
    %78 = vector.load %arg13[%c2_82, %c0_83, %c0_84] : memref<18x18x4xbf16, #tpu.memory_space<vmem>>, vector<16x16x4xbf16>
    %79 = vector.shape_cast %78 : vector<16x16x4xbf16> to vector<256x4xbf16>
    %c2_85 = arith.constant 2 : index
    %c1_86 = arith.constant 1 : index
    %c0_87 = arith.constant 0 : index
    %80 = vector.load %arg13[%c2_85, %c1_86, %c0_87] : memref<18x18x4xbf16, #tpu.memory_space<vmem>>, vector<16x16x4xbf16>
    %81 = vector.shape_cast %80 : vector<16x16x4xbf16> to vector<256x4xbf16>
    %c2_88 = arith.constant 2 : index
    %c2_89 = arith.constant 2 : index
    %c0_90 = arith.constant 0 : index
    %82 = vector.load %arg13[%c2_88, %c2_89, %c0_90] : memref<18x18x4xbf16, #tpu.memory_space<vmem>>, vector<16x16x4xbf16>
    %83 = vector.shape_cast %82 : vector<16x16x4xbf16> to vector<256x4xbf16>
    %84 = tpu.concatenate %67, %69, %71, %73, %75, %77, %79, %81, %83 in 1 : vector<256x4xbf16>, vector<256x4xbf16>, vector<256x4xbf16>, vector<256x4xbf16>, vector<256x4xbf16>, vector<256x4xbf16>, vector<256x4xbf16>, vector<256x4xbf16>, vector<256x4xbf16> -> vector<256x36xbf16>
    %c0_91 = arith.constant 0 : index
    %c0_92 = arith.constant 0 : index
    %85 = vector.load %arg6[%c0_91, %c0_92] : memref<36x4xbf16, #tpu.memory_space<vmem>>, vector<36x4xbf16>
    %cst_93 = arith.constant dense<0.000000e+00> : vector<256x4xf32>
    %86 = tpu.matmul %84, %85, %cst_93 {dimension_numbers = #tpu.dot_dimension_numbers<[1], [0], [0], [1], [0, 0, 1, 1], [], []>} : vector<256x36xbf16>, vector<36x4xbf16>, vector<256x4xf32> -> vector<256x4xf32>
    %c0_94 = arith.constant 0 : index
    %c0_95 = arith.constant 0 : index
    %87 = vector.load %arg7[%c0_94, %c0_95] : memref<1x4xf32, #tpu.memory_space<vmem>>, vector<1x4xf32>
    %88 = vector.broadcast %87 : vector<1x4xf32> to vector<256x4xf32>
    %89 = arith.addf %86, %88 : vector<256x4xf32>
    %90 = arith.negf %89 : vector<256x4xf32>
    %91 = math.exp %90 : vector<256x4xf32>
    %cst_96 = arith.constant 1.000000e+00 : f32
    %92 = vector.broadcast %cst_96 : f32 to vector<256x4xf32>
    %93 = arith.addf %92, %91 : vector<256x4xf32>
    %94 = arith.divf %92, %93 : vector<256x4xf32>
    %95 = arith.mulf %89, %94 : vector<256x4xf32>
    %96 = arith.addf %21, %95 : vector<256x4xf32>
    %97 = arith.truncf %96 : vector<256x4xf32> to vector<256x4xbf16>
    %c0_97 = arith.constant 0 : index
    %c0_98 = arith.constant 0 : index
    %98 = vector.load %arg10[%c0_97, %c0_98] : memref<4x8xbf16, #tpu.memory_space<vmem>>, vector<4x8xbf16>
    %cst_99 = arith.constant dense<0.000000e+00> : vector<256x8xf32>
    %99 = tpu.matmul %97, %98, %cst_99 {dimension_numbers = #tpu.dot_dimension_numbers<[1], [0], [0], [1], [0, 0, 1, 1], [], []>} : vector<256x4xbf16>, vector<4x8xbf16>, vector<256x8xf32> -> vector<256x8xf32>
    %100 = arith.addf %29, %99 : vector<256x8xf32>
    %c0_100 = arith.constant 0 : index
    %c0_101 = arith.constant 0 : index
    %101 = vector.load %arg11[%c0_100, %c0_101] : memref<1x8xf32, #tpu.memory_space<vmem>>, vector<1x8xf32>
    %102 = vector.broadcast %101 : vector<1x8xf32> to vector<256x8xf32>
    %103 = arith.addf %100, %102 : vector<256x8xf32>
    %104 = arith.negf %103 : vector<256x8xf32>
    %105 = math.exp %104 : vector<256x8xf32>
    %cst_102 = arith.constant 1.000000e+00 : f32
    %106 = vector.broadcast %cst_102 : f32 to vector<256x8xf32>
    %107 = arith.addf %106, %105 : vector<256x8xf32>
    %108 = arith.divf %106, %107 : vector<256x8xf32>
    %109 = arith.mulf %103, %108 : vector<256x8xf32>
    %110 = vector.shape_cast %109 : vector<256x8xf32> to vector<1x16x16x8xf32>
    %c0_103 = arith.constant 0 : index
    %c0_104 = arith.constant 0 : index
    %c0_105 = arith.constant 0 : index
    %c0_106 = arith.constant 0 : index
    %111 = vector.load %arg12[%c0_103, %c0_104, %c0_105, %c0_106] : memref<1x16x16x8xf32, #tpu.memory_space<vmem>>, vector<1x16x16x8xf32>
    tpu.vector_store %arg12[%c0_103, %c0_104, %c0_105, %c0_106], %110 {strides = array<i32>} : memref<1x16x16x8xf32, #tpu.memory_space<vmem>>, vector<1x16x16x8xf32>,
    return
  }
  func.func @transform_0(%arg0: i32) -> (i32, i32, i32, i32) {
    %c0_i32 = arith.constant 0 : i32
    %c0_i32_0 = arith.constant 0 : i32
    %c0_i32_1 = arith.constant 0 : i32
    %c0_i32_2 = arith.constant 0 : i32
    return %arg0, %c0_i32, %c0_i32_0, %c0_i32_1 : i32, i32, i32, i32
  }
  func.func @transform_1(%arg0: i32) -> (i32, i32) {
    %c0_i32 = arith.constant 0 : i32
    %c0_i32_0 = arith.constant 0 : i32
    %c0_i32_1 = arith.constant 0 : i32
    return %c0_i32, %c0_i32_0 : i32, i32
  }
  func.func @transform_2(%arg0: i32) -> (i32, i32) {
    %c0_i32 = arith.constant 0 : i32
    %c0_i32_0 = arith.constant 0 : i32
    %c0_i32_1 = arith.constant 0 : i32
    return %c0_i32, %c0_i32_0 : i32, i32
  }
  func.func @transform_3(%arg0: i32) -> (i32, i32) {
    %c0_i32 = arith.constant 0 : i32
    %c0_i32_0 = arith.constant 0 : i32
    %c0_i32_1 = arith.constant 0 : i32
    return %c0_i32, %c0_i32_0 : i32, i32
  }
  func.func @transform_4(%arg0: i32) -> (i32, i32) {
    %c0_i32 = arith.constant 0 : i32
    %c0_i32_0 = arith.constant 0 : i32
    %c0_i32_1 = arith.constant 0 : i32
    return %c0_i32, %c0_i32_0 : i32, i32
  }
  func.func @transform_5(%arg0: i32) -> (i32, i32) {
    %c0_i32 = arith.constant 0 : i32
    %c0_i32_0 = arith.constant 0 : i32
    %c0_i32_1 = arith.constant 0 : i32
    return %c0_i32, %c0_i32_0 : i32, i32
  }
  func.func @transform_6(%arg0: i32) -> (i32, i32) {
    %c0_i32 = arith.constant 0 : i32
    %c0_i32_0 = arith.constant 0 : i32
    %c0_i32_1 = arith.constant 0 : i32
    return %c0_i32, %c0_i32_0 : i32, i32
  }
  func.func @transform_7(%arg0: i32) -> (i32, i32) {
    %c0_i32 = arith.constant 0 : i32
    %c0_i32_0 = arith.constant 0 : i32
    %c0_i32_1 = arith.constant 0 : i32
    return %c0_i32, %c0_i32_0 : i32, i32
  }
  func.func @transform_8(%arg0: i32) -> (i32, i32) {
    %c0_i32 = arith.constant 0 : i32
    %c0_i32_0 = arith.constant 0 : i32
    %c0_i32_1 = arith.constant 0 : i32
    return %c0_i32, %c0_i32_0 : i32, i32
  }
  func.func @transform_9(%arg0: i32) -> (i32, i32) {
    %c0_i32 = arith.constant 0 : i32
    %c0_i32_0 = arith.constant 0 : i32
    %c0_i32_1 = arith.constant 0 : i32
    return %c0_i32, %c0_i32_0 : i32, i32
  }
  func.func @transform_10(%arg0: i32) -> (i32, i32) {
    %c0_i32 = arith.constant 0 : i32
    %c0_i32_0 = arith.constant 0 : i32
    %c0_i32_1 = arith.constant 0 : i32
    return %c0_i32, %c0_i32_0 : i32, i32
  }
  func.func @transform_11(%arg0: i32) -> (i32, i32, i32, i32) {
    %c0_i32 = arith.constant 0 : i32
    %c0_i32_0 = arith.constant 0 : i32
    %c0_i32_1 = arith.constant 0 : i32
    %c0_i32_2 = arith.constant 0 : i32
    return %arg0, %c0_i32, %c0_i32_0, %c0_i32_1 : i32, i32, i32, i32
  }
}

</mosaic_0001>

<llo_original>
// kernel: tpu_custom_call.1
$region0: #{tpu_custom_call.1}
  #allocation0 [shape = 'u32[]', space=smem, size = 0x4, offset = 0x4, fixed_abs, tag = 'smem constant byte address 0x4 - core index']
  #allocation1 [shape = 'u32[72,128]{1,0:T(1,128)}', space=vmem, size = 0x9000, scoped, tag = 'internal scratch']
  #allocation2 [shape = 'bf16[18,18,4]{2,1,0:T(8,128)(2,1)}', space=vmem, size = 0x1b000, scoped, tag = 'scratch operand']
  %s0 = inlined_call_operand.vmem [shape: f32[2,16,16,4], index: 0, kind: input, shape index: {}]
  %s1 = inlined_call_operand.vmem [shape: bf16[4,8], index: 1, kind: input, shape index: {}]
  %s2 = inlined_call_operand.vmem [shape: f32[1,8], index: 2, kind: input, shape index: {}]
  %s3 = inlined_call_operand.vmem [shape: bf16[36,4], index: 3, kind: input, shape index: {}]
  %s4 = inlined_call_operand.vmem [shape: f32[1,4], index: 4, kind: input, shape index: {}]
  %s5 = inlined_call_operand.vmem [shape: bf16[36,4], index: 5, kind: input, shape index: {}]
  %s6 = inlined_call_operand.vmem [shape: f32[1,4], index: 6, kind: input, shape index: {}]
  %s7 = inlined_call_operand.vmem [shape: bf16[4,8], index: 7, kind: input, shape index: {}]
  %s8 = inlined_call_operand.vmem [shape: bf16[4,8], index: 8, kind: input, shape index: {}]
  %s9 = inlined_call_operand.vmem [shape: bf16[4,8], index: 9, kind: input, shape index: {}]
  %s10 = inlined_call_operand.vmem [shape: f32[1,8], index: 10, kind: input, shape index: {}]
  %s11 = inlined_call_operand.vmem [shape: f32[2,16,16,8], index: 11, kind: output, shape index: {}]
  %s12 = sld [smem:[#allocation0]]
  $region77: #{tpu_custom_call.1} parent=0
    _
  %s14 = ssub.s32 1, %s12
  %s15 = scalar_select 0, %s14, %s12
  loop: start=0, step=1, limit=4
  $region2: #{tpu_custom_call.1} parent=0 // loop_pre_header
    _
  $region3: #{tpu_custom_call.1} parent=0 // loop_header
    %s17 = sphi 0, %s21
    %p18 = scmp.ge.s32.totalorder %s17, 4
    %s27 = sphi 0, %s29
    %s30 = sphi 0, %s27
    %s31 = sphi 0, %s30
    %s47 = sphi 0, %s31
    %s51 = sphi 0, %s51
    %s53 = sphi 0, %s51
    %s54 = sphi 0, %s53
    %s68 = sphi 0, %s54
    %s72 = sphi 0, %s72
    %s74 = sphi 0, %s72
    %s75 = sphi 0, %s74
    %s89 = sphi 0, %s75
    %s93 = sphi 0, %s93
    %s95 = sphi 0, %s93
    %s96 = sphi 0, %s95
    %s110 = sphi 0, %s96
    %s114 = sphi 0, %s114
    %s116 = sphi 0, %s114
    %s117 = sphi 0, %s116
    %s131 = sphi 0, %s117
    %s135 = sphi 0, %s135
    %s137 = sphi 0, %s135
    %s138 = sphi 0, %s137
    %s152 = sphi 0, %s138
    %s156 = sphi 0, %s156
    %s158 = sphi 0, %s156
    %s159 = sphi 0, %s158
    %s173 = sphi 0, %s159
    %s177 = sphi 0, %s177
    %s179 = sphi 0, %s177
    %s180 = sphi 0, %s179
    %s194 = sphi 0, %s180
    %s198 = sphi 0, %s198
    %s200 = sphi 0, %s198
    %s201 = sphi 0, %s200
    %s215 = sphi 0, %s201
    %s219 = sphi 0, %s219
    %s221 = sphi 0, %s219
    %s222 = sphi 0, %s221
    %s236 = sphi 0, %s222
    %s240 = sphi 0, %s240
    %s242 = sphi 0, %s240
    %s243 = sphi 0, %s242
    %s257 = sphi 0, %s243
    %s263 = sphi 0, %s265
    %s266 = sphi 0, %s263
    %s267 = sphi 0, %s266
    %s283 = sphi 0, %s267
  $region4: #{tpu_custom_call.1} parent=0 // loop_header_branch
    %20 = sbr.rel (%p18) target = $region8
  $region5: #{tpu_custom_call.1} parent=0 // loop_body
    %s22 = ssub.s32 %s17, 1
    %s23 = ssub.s32 %s17, 2
    %s24 = sadd.s32 %s17, 1
    %s25 = ssub.s32 %s17, %s24
    %p26 = scmp.eq.s32.totalorder %s25, 0
    %s28 = sadd.s32 %s27, 1
    %s29 = scalar_select %p26, %s27, %s28
    %p32 = pneg %p26
    %p33 = scmp.eq.s32.totalorder %s17, 1
    %p34 = por %p32, %p33
    %p35 = scmp.ne.s32.totalorder %s27, %s30
    %p36 = scmp.eq.s32.totalorder %s17, 0
    %p37 = por %p35, %p36
    %p38 = scmp.ne.s32.totalorder %s27, %s30
    %p39 = scmp.eq.s32.totalorder %s22, 1
    %p40 = por %p38, %p39
    %p41 = scmp.ne.s32.totalorder %s30, %s31
    %p42 = scmp.eq.s32.totalorder %s22, 0
    %p43 = por %p41, %p42
    %p44 = scmp.ne.s32.totalorder %s30, %s31
    %p45 = scmp.eq.s32.totalorder %s23, 1
    %p46 = por %p44, %p45
    %p48 = scmp.ne.s32.totalorder %s31, %s47
    %p49 = scmp.eq.s32.totalorder %s23, 0
    %p50 = por %p48, %p49
    %s52 = sadd.s32 %s51, 1
    %p55 = scmp.eq.s32.totalorder %s17, 1
    %p56 = scmp.ne.s32.totalorder %s51, %s53
    %p57 = scmp.eq.s32.totalorder %s17, 0
    %p58 = por %p56, %p57
    %p59 = scmp.ne.s32.totalorder %s51, %s53
    %p60 = scmp.eq.s32.totalorder %s22, 1
    %p61 = por %p59, %p60
    %p62 = scmp.ne.s32.totalorder %s53, %s54
    %p63 = scmp.eq.s32.totalorder %s22, 0
    %p64 = por %p62, %p63
    %p65 = scmp.ne.s32.totalorder %s53, %s54
    %p66 = scmp.eq.s32.totalorder %s23, 1
    %p67 = por %p65, %p66
    %p69 = scmp.ne.s32.totalorder %s54, %s68
    %p70 = scmp.eq.s32.totalorder %s23, 0
    %p71 = por %p69, %p70
    %s73 = sadd.s32 %s72, 1
    %p76 = scmp.eq.s32.totalorder %s17, 1
    %p77 = scmp.ne.s32.totalorder %s72, %s74
    %p78 = scmp.eq.s32.totalorder %s17, 0
    %p79 = por %p77, %p78
    %p80 = scmp.ne.s32.totalorder %s72, %s74
    %p81 = scmp.eq.s32.totalorder %s22, 1
    %p82 = por %p80, %p81
    %p83 = scmp.ne.s32.totalorder %s74, %s75
    %p84 = scmp.eq.s32.totalorder %s22, 0
    %p85 = por %p83, %p84
    %p86 = scmp.ne.s32.totalorder %s74, %s75
    %p87 = scmp.eq.s32.totalorder %s23, 1
    %p88 = por %p86, %p87
    %p90 = scmp.ne.s32.totalorder %s75, %s89
    %p91 = scmp.eq.s32.totalorder %s23, 0
    %p92 = por %p90, %p91
    %s94 = sadd.s32 %s93, 1
    %p97 = scmp.eq.s32.totalorder %s17, 1
    %p98 = scmp.ne.s32.totalorder %s93, %s95
    %p99 = scmp.eq.s32.totalorder %s17, 0
    %p100 = por %p98, %p99
    %p101 = scmp.ne.s32.totalorder %s93, %s95
    %p102 = scmp.eq.s32.totalorder %s22, 1
    %p103 = por %p101, %p102
    %p104 = scmp.ne.s32.totalorder %s95, %s96
    %p105 = scmp.eq.s32.totalorder %s22, 0
    %p106 = por %p104, %p105
    %p107 = scmp.ne.s32.totalorder %s95, %s96
    %p108 = scmp.eq.s32.totalorder %s23, 1
    %p109 = por %p107, %p108
    %p111 = scmp.ne.s32.totalorder %s96, %s110
    %p112 = scmp.eq.s32.totalorder %s23, 0
    %p113 = por %p111, %p112
    %s115 = sadd.s32 %s114, 1
    %p118 = scmp.eq.s32.totalorder %s17, 1
    %p119 = scmp.ne.s32.totalorder %s114, %s116
    %p120 = scmp.eq.s32.totalorder %s17, 0
    %p121 = por %p119, %p120
    %p122 = scmp.ne.s32.totalorder %s114, %s116
    %p123 = scmp.eq.s32.totalorder %s22, 1
    %p124 = por %p122, %p123
    %p125 = scmp.ne.s32.totalorder %s116, %s117
    %p126 = scmp.eq.s32.totalorder %s22, 0
    %p127 = por %p125, %p126
    %p128 = scmp.ne.s32.totalorder %s116, %s117
    %p129 = scmp.eq.s32.totalorder %s23, 1
    %p130 = por %p128, %p129
    %p132 = scmp.ne.s32.totalorder %s117, %s131
    %p133 = scmp.eq.s32.totalorder %s23, 0
    %p134 = por %p132, %p133
    %s136 = sadd.s32 %s135, 1
    %p139 = scmp.eq.s32.totalorder %s17, 1
    %p140 = scmp.ne.s32.totalorder %s135, %s137
    %p141 = scmp.eq.s32.totalorder %s17, 0
    %p142 = por %p140, %p141
    %p143 = scmp.ne.s32.totalorder %s135, %s137
    %p144 = scmp.eq.s32.totalorder %s22, 1
    %p145 = por %p143, %p144
    %p146 = scmp.ne.s32.totalorder %s137, %s138
    %p147 = scmp.eq.s32.totalorder %s22, 0
    %p148 = por %p146, %p147
    %p149 = scmp.ne.s32.totalorder %s137, %s138
    %p150 = scmp.eq.s32.totalorder %s23, 1
    %p151 = por %p149, %p150
    %p153 = scmp.ne.s32.totalorder %s138, %s152
    %p154 = scmp.eq.s32.totalorder %s23, 0
    %p155 = por %p153, %p154
    %s157 = sadd.s32 %s156, 1
    %p160 = scmp.eq.s32.totalorder %s17, 1
    %p161 = scmp.ne.s32.totalorder %s156, %s158
    %p162 = scmp.eq.s32.totalorder %s17, 0
    %p163 = por %p161, %p162
    %p164 = scmp.ne.s32.totalorder %s156, %s158
    %p165 = scmp.eq.s32.totalorder %s22, 1
    %p166 = por %p164, %p165
    %p167 = scmp.ne.s32.totalorder %s158, %s159
    %p168 = scmp.eq.s32.totalorder %s22, 0
    %p169 = por %p167, %p168
    %p170 = scmp.ne.s32.totalorder %s158, %s159
    %p171 = scmp.eq.s32.totalorder %s23, 1
    %p172 = por %p170, %p171
    %p174 = scmp.ne.s32.totalorder %s159, %s173
    %p175 = scmp.eq.s32.totalorder %s23, 0
    %p176 = por %p174, %p175
    %s178 = sadd.s32 %s177, 1
    %p181 = scmp.eq.s32.totalorder %s17, 1
    %p182 = scmp.ne.s32.totalorder %s177, %s179
    %p183 = scmp.eq.s32.totalorder %s17, 0
    %p184 = por %p182, %p183
    %p185 = scmp.ne.s32.totalorder %s177, %s179
    %p186 = scmp.eq.s32.totalorder %s22, 1
    %p187 = por %p185, %p186
    %p188 = scmp.ne.s32.totalorder %s179, %s180
    %p189 = scmp.eq.s32.totalorder %s22, 0
    %p190 = por %p188, %p189
    %p191 = scmp.ne.s32.totalorder %s179, %s180
    %p192 = scmp.eq.s32.totalorder %s23, 1
    %p193 = por %p191, %p192
    %p195 = scmp.ne.s32.totalorder %s180, %s194
    %p196 = scmp.eq.s32.totalorder %s23, 0
    %p197 = por %p195, %p196
    %s199 = sadd.s32 %s198, 1
    %p202 = scmp.eq.s32.totalorder %s17, 1
    %p203 = scmp.ne.s32.totalorder %s198, %s200
    %p204 = scmp.eq.s32.totalorder %s17, 0
    %p205 = por %p203, %p204
    %p206 = scmp.ne.s32.totalorder %s198, %s200
    %p207 = scmp.eq.s32.totalorder %s22, 1
    %p208 = por %p206, %p207
    %p209 = scmp.ne.s32.totalorder %s200, %s201
    %p210 = scmp.eq.s32.totalorder %s22, 0
    %p211 = por %p209, %p210
    %p212 = scmp.ne.s32.totalorder %s200, %s201
    %p213 = scmp.eq.s32.totalorder %s23, 1
    %p214 = por %p212, %p213
    %p216 = scmp.ne.s32.totalorder %s201, %s215
    %p217 = scmp.eq.s32.totalorder %s23, 0
    %p218 = por %p216, %p217
    %s220 = sadd.s32 %s219, 1
    %p223 = scmp.eq.s32.totalorder %s17, 1
    %p224 = scmp.ne.s32.totalorder %s219, %s221
    %p225 = scmp.eq.s32.totalorder %s17, 0
    %p226 = por %p224, %p225
    %p227 = scmp.ne.s32.totalorder %s219, %s221
    %p228 = scmp.eq.s32.totalorder %s22, 1
    %p229 = por %p227, %p228
    %p230 = scmp.ne.s32.totalorder %s221, %s222
    %p231 = scmp.eq.s32.totalorder %s22, 0
    %p232 = por %p230, %p231
    %p233 = scmp.ne.s32.totalorder %s221, %s222
    %p234 = scmp.eq.s32.totalorder %s23, 1
    %p235 = por %p233, %p234
    %p237 = scmp.ne.s32.totalorder %s222, %s236
    %p238 = scmp.eq.s32.totalorder %s23, 0
    %p239 = por %p237, %p238
    %s241 = sadd.s32 %s240, 1
    %p244 = scmp.eq.s32.totalorder %s17, 1
    %p245 = scmp.ne.s32.totalorder %s240, %s242
    %p246 = scmp.eq.s32.totalorder %s17, 0
    %p247 = por %p245, %p246
    %p248 = scmp.ne.s32.totalorder %s240, %s242
    %p249 = scmp.eq.s32.totalorder %s22, 1
    %p250 = por %p248, %p249
    %p251 = scmp.ne.s32.totalorder %s242, %s243
    %p252 = scmp.eq.s32.totalorder %s22, 0
    %p253 = por %p251, %p252
    %p254 = scmp.ne.s32.totalorder %s242, %s243
    %p255 = scmp.eq.s32.totalorder %s23, 1
    %p256 = por %p254, %p255
    %p258 = scmp.ne.s32.totalorder %s243, %s257
    %p259 = scmp.eq.s32.totalorder %s23, 0
    %p260 = por %p258, %p259
    %s261 = ssub.s32 %s17, %s24
    %p262 = scmp.eq.s32.totalorder %s261, 0
    %s264 = sadd.s32 %s263, 1
    %s265 = scalar_select %p262, %s263, %s264
    %p268 = pneg %p262
    %p269 = scmp.eq.s32.totalorder %s17, 1
    %p270 = por %p268, %p269
    %p271 = scmp.ne.s32.totalorder %s263, %s266
    %p272 = scmp.eq.s32.totalorder %s17, 0
    %p273 = por %p271, %p272
    %p274 = scmp.ne.s32.totalorder %s263, %s266
    %p275 = scmp.eq.s32.totalorder %s22, 1
    %p276 = por %p274, %p275
    %p277 = scmp.ne.s32.totalorder %s266, %s267
    %p278 = scmp.eq.s32.totalorder %s22, 0
    %p279 = por %p277, %p278
    %p280 = scmp.ne.s32.totalorder %s266, %s267
    %p281 = scmp.eq.s32.totalorder %s23, 1
    %p282 = por %p280, %p281
    %p284 = scmp.ne.s32.totalorder %s267, %s283
    %p285 = scmp.eq.s32.totalorder %s23, 0
    %p286 = por %p284, %p285
    %p287 = scmp.le.s32.totalorder 1, %s17
    %p288 = scmp.lt.s32.totalorder %s17, 3
    %p289 = pnand %p287, %p288
    %p290 = pneg %p289
    // Predicated region
    $region9: #{tpu_custom_call.1} parent=5 // pred_check
      _
    $region10: #{tpu_custom_call.1} parent=5 // pred_check_branch
      %292 = sbr.rel (%p289) target = $region12
    $region11: #{tpu_custom_call.1} parent=5 // pred_region
      %s293 = ssub.s32 %s17, 1
      // Predicated region
      $region13: #{tpu_custom_call.1} parent=11 // pred_check
        %p294 = pneg %p64
      $region14: #{tpu_custom_call.1} parent=11 // pred_check_branch
        %296 = sbr.rel (%p294) target = $region16
      $region15: #{tpu_custom_call.1} parent=11 // pred_region
        _
      $region16: #{tpu_custom_call.1} parent=11 // pred_fallthru
        _
      // Predicated region
      $region17: #{tpu_custom_call.1} parent=11 // pred_check
        %p297 = pneg %p85
      $region18: #{tpu_custom_call.1} parent=11 // pred_check_branch
        %299 = sbr.rel (%p297) target = $region20
      $region19: #{tpu_custom_call.1} parent=11 // pred_region
        _
      $region20: #{tpu_custom_call.1} parent=11 // pred_fallthru
        _
      // Predicated region
      $region21: #{tpu_custom_call.1} parent=11 // pred_check
        %p300 = pneg %p106
      $region22: #{tpu_custom_call.1} parent=11 // pred_check_branch
        %302 = sbr.rel (%p300) target = $region24
      $region23: #{tpu_custom_call.1} parent=11 // pred_region
        _
      $region24: #{tpu_custom_call.1} parent=11 // pred_fallthru
        _
      // Predicated region
      $region25: #{tpu_custom_call.1} parent=11 // pred_check
        %p303 = pneg %p127
      $region26: #{tpu_custom_call.1} parent=11 // pred_check_branch
        %305 = sbr.rel (%p303) target = $region28
      $region27: #{tpu_custom_call.1} parent=11 // pred_region
        _
      $region28: #{tpu_custom_call.1} parent=11 // pred_fallthru
        _
      // Predicated region
      $region29: #{tpu_custom_call.1} parent=11 // pred_check
        %p306 = pneg %p148
      $region30: #{tpu_custom_call.1} parent=11 // pred_check_branch
        %308 = sbr.rel (%p306) target = $region32
      $region31: #{tpu_custom_call.1} parent=11 // pred_region
        _
      $region32: #{tpu_custom_call.1} parent=11 // pred_fallthru
        _
      // Predicated region
      $region33: #{tpu_custom_call.1} parent=11 // pred_check
        %p309 = pneg %p169
      $region34: #{tpu_custom_call.1} parent=11 // pred_check_branch
        %311 = sbr.rel (%p309) target = $region36
      $region35: #{tpu_custom_call.1} parent=11 // pred_region
        _
      $region36: #{tpu_custom_call.1} parent=11 // pred_fallthru
        _
      // Predicated region
      $region37: #{tpu_custom_call.1} parent=11 // pred_check
        %p312 = pneg %p190
      $region38: #{tpu_custom_call.1} parent=11 // pred_check_branch
        %314 = sbr.rel (%p312) target = $region40
      $region39: #{tpu_custom_call.1} parent=11 // pred_region
        _
      $region40: #{tpu_custom_call.1} parent=11 // pred_fallthru
        _
      // Predicated region
      $region41: #{tpu_custom_call.1} parent=11 // pred_check
        %p315 = pneg %p211
      $region42: #{tpu_custom_call.1} parent=11 // pred_check_branch
        %317 = sbr.rel (%p315) target = $region44
      $region43: #{tpu_custom_call.1} parent=11 // pred_region
        _
      $region44: #{tpu_custom_call.1} parent=11 // pred_fallthru
        _
      // Predicated region
      $region45: #{tpu_custom_call.1} parent=11 // pred_check
        %p318 = pneg %p232
      $region46: #{tpu_custom_call.1} parent=11 // pred_check_branch
        %320 = sbr.rel (%p318) target = $region48
      $region47: #{tpu_custom_call.1} parent=11 // pred_region
        _
      $region48: #{tpu_custom_call.1} parent=11 // pred_fallthru
        _
      // Predicated region
      $region49: #{tpu_custom_call.1} parent=11 // pred_check
        %p321 = pneg %p253
      $region50: #{tpu_custom_call.1} parent=11 // pred_check_branch
        %323 = sbr.rel (%p321) target = $region52
      $region51: #{tpu_custom_call.1} parent=11 // pred_region
        _
      $region52: #{tpu_custom_call.1} parent=11 // pred_fallthru
        _
    $region12: #{tpu_custom_call.1} parent=5 // pred_fallthru
      _
    %p324 = scmp.lt.s32.totalorder %s17, 2
    // Predicated region
    $region53: #{tpu_custom_call.1} parent=5 // pred_check
      %p325 = pneg %p324
    $region54: #{tpu_custom_call.1} parent=5 // pred_check_branch
      %327 = sbr.rel (%p325) target = $region56
    $region55: #{tpu_custom_call.1} parent=5 // pred_region
      // Predicated region
      $region57: #{tpu_custom_call.1} parent=55 // pred_check
        %p328 = pneg %p37
      $region58: #{tpu_custom_call.1} parent=55 // pred_check_branch
        %330 = sbr.rel (%p328) target = $region60
      $region59: #{tpu_custom_call.1} parent=55 // pred_region
        %p331 = scmp.lt.s32.totalorder %s17, 1
        %s332 = scalar_select %p331, %s17, 1
        %s333 = smul.addr %s332, 32
        %s334 = smul.addr %s333, 8
        %s335 = scalar_lea.vmem %s0, %s334
      $region60: #{tpu_custom_call.1} parent=55 // pred_fallthru
        _
    $region56: #{tpu_custom_call.1} parent=5 // pred_fallthru
      _
    %p336 = scmp.le.s32.totalorder 1, %s17
    %p337 = scmp.lt.s32.totalorder %s17, 3
    %p338 = pnand %p336, %p337
    %p339 = pneg %p338
    // Predicated region
    $region61: #{tpu_custom_call.1} parent=5 // pred_check
      _
    $region62: #{tpu_custom_call.1} parent=5 // pred_check_branch
      %341 = sbr.rel (%p338) target = $region64
    $region63: #{tpu_custom_call.1} parent=5 // pred_region
      %s342 = ssub.s32 %s17, 1
      %p343 = scmp.lt.s32.totalorder %s22, 1
      %s344 = scalar_select %p343, %s22, 1
      %s345 = smul.addr %s344, 32
      %s346 = smul.addr %s345, 8
      %s347 = scalar_lea.vmem %s0, %s346
      %p348 = pneg %p43
      %p349 = pneg %p40
      %p350 = pneg %p64
      %p351 = pneg %p61
      %p352 = pneg %p85
      %p353 = pneg %p82
      %p354 = pneg %p106
      %p355 = pneg %p103
      %p356 = pneg %p127
      %p357 = pneg %p124
      %p358 = pneg %p148
      %p359 = pneg %p145
      %p360 = pneg %p169
      %p361 = pneg %p166
      %p362 = pneg %p190
      %p363 = pneg %p187
      %p364 = pneg %p211
      %p365 = pneg %p208
      %p366 = pneg %p232
      %p367 = pneg %p229
      %p368 = pneg %p253
      %p369 = pneg %p250
      %p370 = pneg %p279
      %p371 = pneg %p276
      %p372 = scmp.lt.s32.totalorder %s22, 1
      %s373 = scalar_select %p372, %s22, 1
      %s374 = smul.addr %s373, 32
      %s375 = smul.addr %s374, 8
      %s376 = scalar_lea.vmem %s11, %s375
      %p377 = scmp.lt.s32.totalorder %s22, 1
      %s378 = scalar_select %p377, %s22, 1
      %s379 = smul.addr %s378, 32
      %s380 = smul.addr %s379, 8
      %s381 = scalar_lea.vmem %s0, %s380
      %p382 = scmp.lt.s32.totalorder %s22, 1
      %s383 = scalar_select %p382, %s22, 1
      %s384 = smul.addr %s383, 32
      %s385 = smul.addr %s384, 8
      %s386 = scalar_lea.vmem %s11, %s385
      %vm388 = vcmask 27648
      %389 = vst.msk [vmem:[#allocation2] sm:$0xf] %vm388, 0
      %390 = vst.msk [vmem:[#allocation2 + $0x4] sm:$0xf] %vm388, 0
      %vm391 = vcmask 24576
      %392 = vst.msk [vmem:[#allocation2 + $0x8] sm:$0x1] %vm391, 0
      %s393 = scalar_lea.vmem [#allocation2], 204
      %394 = vst.msk [vmem:[%s393] sm:$0xf] %vm388, 0
      %395 = vst.msk [vmem:[%s393 + $0x4] sm:$0xf] %vm388, 0
      %396 = vst.msk [vmem:[%s393 + $0x8] sm:$0x1] %vm391, 0
      %vm397 = vcmask 24576
      %vm398 = vsmask.f32 256
      %vm399 = vmand %vm397, %vm398
      %v400 = vld [vmem:[#allocation2] sm:$0x1]
      %v401 = vsel %vm399, 0, %v400
      %402 = vst [vmem:[#allocation2] sm:$0x1] %v401
      %v403 = vld [vmem:[#allocation2 + $0xc] sm:$0x1]
      %v404 = vsel %vm399, 0, %v403
      %405 = vst [vmem:[#allocation2 + $0xc] sm:$0x1] %v404
      %v406 = vld [vmem:[#allocation2 + $0x18] sm:$0x1]
      %v407 = vsel %vm399, 0, %v406
      %408 = vst [vmem:[#allocation2 + $0x18] sm:$0x1] %v407
      %v409 = vld [vmem:[#allocation2 + $0x24] sm:$0x1]
      %v410 = vsel %vm399, 0, %v409
      %411 = vst [vmem:[#allocation2 + $0x24] sm:$0x1] %v410
      %v412 = vld [vmem:[#allocation2 + $0x30] sm:$0x1]
      %v413 = vsel %vm399, 0, %v412
      %414 = vst [vmem:[#allocation2 + $0x30] sm:$0x1] %v413
      %v415 = vld [vmem:[#allocation2 + $0x3c] sm:$0x1]
      %v416 = vsel %vm399, 0, %v415
      %417 = vst [vmem:[#allocation2 + $0x3c] sm:$0x1] %v416
      %v418 = vld [vmem:[#allocation2 + $0x48] sm:$0x1]
      %v419 = vsel %vm399, 0, %v418
      %420 = vst [vmem:[#allocation2 + $0x48] sm:$0x1] %v419
      %v421 = vld [vmem:[#allocation2 + $0x54] sm:$0x1]
      %v422 = vsel %vm399, 0, %v421
      %423 = vst [vmem:[#allocation2 + $0x54] sm:$0x1] %v422
      %v424 = vld [vmem:[#allocation2 + $0x60] sm:$0x1]
      %v425 = vsel %vm399, 0, %v424
      %426 = vst [vmem:[#allocation2 + $0x60] sm:$0x1] %v425
      %v427 = vld [vmem:[#allocation2 + $0x6c] sm:$0x1]
      %v428 = vsel %vm399, 0, %v427
      %429 = vst [vmem:[#allocation2 + $0x6c] sm:$0x1] %v428
      %v430 = vld [vmem:[#allocation2 + $0x78] sm:$0x1]
      %v431 = vsel %vm399, 0, %v430
      %432 = vst [vmem:[#allocation2 + $0x78] sm:$0x1] %v431
      %v433 = vld [vmem:[#allocation2 + $0x84] sm:$0x1]
      %v434 = vsel %vm399, 0, %v433
      %435 = vst [vmem:[#allocation2 + $0x84] sm:$0x1] %v434
      %v436 = vld [vmem:[#allocation2 + $0x90] sm:$0x1]
      %v437 = vsel %vm399, 0, %v436
      %438 = vst [vmem:[#allocation2 + $0x90] sm:$0x1] %v437
      %v439 = vld [vmem:[#allocation2 + $0x9c] sm:$0x1]
      %v440 = vsel %vm399, 0, %v439
      %441 = vst [vmem:[#allocation2 + $0x9c] sm:$0x1] %v440
      %v442 = vld [vmem:[#allocation2 + $0xa8] sm:$0x1]
      %v443 = vsel %vm399, 0, %v442
      %444 = vst [vmem:[#allocation2 + $0xa8] sm:$0x1] %v443
      %v445 = vld [vmem:[#allocation2 + $0xb4] sm:$0x1]
      %v446 = vsel %vm399, 0, %v445
      %447 = vst [vmem:[#allocation2 + $0xb4] sm:$0x1] %v446
      %v448 = vld [vmem:[#allocation2 + $0xc0] sm:$0x1]
      %v449 = vsel %vm399, 0, %v448
      %450 = vst [vmem:[#allocation2 + $0xc0] sm:$0x1] %v449
      %v451 = vld [vmem:[#allocation2 + $0xcc] sm:$0x1]
      %v452 = vsel %vm399, 0, %v451
      %453 = vst [vmem:[#allocation2 + $0xcc] sm:$0x1] %v452
      %vm454 = vsmask.f32 7938
      %vm455 = vmand %vm397, %vm454
      %v456 = vld [vmem:[#allocation2 + $0x8] sm:$0x1]
      %v457 = vsel %vm455, 0, %v456
      %458 = vst [vmem:[#allocation2 + $0x8] sm:$0x1] %v457
      %v459 = vld [vmem:[#allocation2 + $0x14] sm:$0x1]
      %v460 = vsel %vm455, 0, %v459
      %461 = vst [vmem:[#allocation2 + $0x14] sm:$0x1] %v460
      %v462 = vld [vmem:[#allocation2 + $0x20] sm:$0x1]
      %v463 = vsel %vm455, 0, %v462
      %464 = vst [vmem:[#allocation2 + $0x20] sm:$0x1] %v463
      %v465 = vld [vmem:[#allocation2 + $0x2c] sm:$0x1]
      %v466 = vsel %vm455, 0, %v465
      %467 = vst [vmem:[#allocation2 + $0x2c] sm:$0x1] %v466
      %v468 = vld [vmem:[#allocation2 + $0x38] sm:$0x1]
      %v469 = vsel %vm455, 0, %v468
      %470 = vst [vmem:[#allocation2 + $0x38] sm:$0x1] %v469
      %v471 = vld [vmem:[#allocation2 + $0x44] sm:$0x1]
      %v472 = vsel %vm455, 0, %v471
      %473 = vst [vmem:[#allocation2 + $0x44] sm:$0x1] %v472
      %v474 = vld [vmem:[#allocation2 + $0x50] sm:$0x1]
      %v475 = vsel %vm455, 0, %v474
      %476 = vst [vmem:[#allocation2 + $0x50] sm:$0x1] %v475
      %v477 = vld [vmem:[#allocation2 + $0x5c] sm:$0x1]
      %v478 = vsel %vm455, 0, %v477
      %479 = vst [vmem:[#allocation2 + $0x5c] sm:$0x1] %v478
      %v480 = vld [vmem:[#allocation2 + $0x68] sm:$0x1]
      %v481 = vsel %vm455, 0, %v480
      %482 = vst [vmem:[#allocation2 + $0x68] sm:$0x1] %v481
      %v483 = vld [vmem:[#allocation2 + $0x74] sm:$0x1]
      %v484 = vsel %vm455, 0, %v483
      %485 = vst [vmem:[#allocation2 + $0x74] sm:$0x1] %v484
      %v486 = vld [vmem:[#allocation2 + $0x80] sm:$0x1]
      %v487 = vsel %vm455, 0, %v486
      %488 = vst [vmem:[#allocation2 + $0x80] sm:$0x1] %v487
      %v489 = vld [vmem:[#allocation2 + $0x8c] sm:$0x1]
      %v490 = vsel %vm455, 0, %v489
      %491 = vst [vmem:[#allocation2 + $0x8c] sm:$0x1] %v490
      %v492 = vld [vmem:[#allocation2 + $0x98] sm:$0x1]
      %v493 = vsel %vm455, 0, %v492
      %494 = vst [vmem:[#allocation2 + $0x98] sm:$0x1] %v493
      %v495 = vld [vmem:[#allocation2 + $0xa4] sm:$0x1]
      %v496 = vsel %vm455, 0, %v495
      %497 = vst [vmem:[#allocation2 + $0xa4] sm:$0x1] %v496
      %v498 = vld [vmem:[#allocation2 + $0xb0] sm:$0x1]
      %v499 = vsel %vm455, 0, %v498
      %500 = vst [vmem:[#allocation2 + $0xb0] sm:$0x1] %v499
      %v501 = vld [vmem:[#allocation2 + $0xbc] sm:$0x1]
      %v502 = vsel %vm455, 0, %v501
      %503 = vst [vmem:[#allocation2 + $0xbc] sm:$0x1] %v502
      %v504 = vld [vmem:[#allocation2 + $0xc8] sm:$0x1]
      %v505 = vsel %vm455, 0, %v504
      %506 = vst [vmem:[#allocation2 + $0xc8] sm:$0x1] %v505
      %v507 = vld [vmem:[#allocation2 + $0xd4] sm:$0x1]
      %v508 = vsel %vm455, 0, %v507
      %509 = vst [vmem:[#allocation2 + $0xd4] sm:$0x1] %v508
      %v510 = vld [vmem:[%s381] sm:$0xff]
      %v511 = vld [vmem:[%s381 + $0x8] sm:$0xff]
      %v512 = vld [vmem:[%s381 + $0x10] sm:$0xff]
      %v513 = vld [vmem:[%s381 + $0x18] sm:$0xff]
      %v514 = vld [vmem:[%s381 + $0x20] sm:$0xff]
      %v515 = vld [vmem:[%s381 + $0x28] sm:$0xff]
      %v516 = vld [vmem:[%s381 + $0x30] sm:$0xff]
      %v517 = vld [vmem:[%s381 + $0x38] sm:$0xff]
      %v518 = vld [vmem:[%s381 + $0x40] sm:$0xff]
      %v519 = vld [vmem:[%s381 + $0x48] sm:$0xff]
      %v520 = vld [vmem:[%s381 + $0x50] sm:$0xff]
      %v521 = vld [vmem:[%s381 + $0x58] sm:$0xff]
      %v522 = vld [vmem:[%s381 + $0x60] sm:$0xff]
      %v523 = vld [vmem:[%s381 + $0x68] sm:$0xff]
      %v524 = vld [vmem:[%s381 + $0x70] sm:$0xff]
      %v525 = vld [vmem:[%s381 + $0x78] sm:$0xff]
      %v526 = vld [vmem:[%s381 + $0x80] sm:$0xff]
      %v527 = vld [vmem:[%s381 + $0x88] sm:$0xff]
      %v528 = vld [vmem:[%s381 + $0x90] sm:$0xff]
      %v529 = vld [vmem:[%s381 + $0x98] sm:$0xff]
      %v530 = vld [vmem:[%s381 + $0xa0] sm:$0xff]
      %v531 = vld [vmem:[%s381 + $0xa8] sm:$0xff]
      %v532 = vld [vmem:[%s381 + $0xb0] sm:$0xff]
      %v533 = vld [vmem:[%s381 + $0xb8] sm:$0xff]
      %v534 = vld [vmem:[%s381 + $0xc0] sm:$0xff]
      %v535 = vld [vmem:[%s381 + $0xc8] sm:$0xff]
      %v536 = vld [vmem:[%s381 + $0xd0] sm:$0xff]
      %v537 = vld [vmem:[%s381 + $0xd8] sm:$0xff]
      %v538 = vld [vmem:[%s381 + $0xe0] sm:$0xff]
      %v539 = vld [vmem:[%s381 + $0xe8] sm:$0xff]
      %v540 = vld [vmem:[%s381 + $0xf0] sm:$0xff]
      %v541 = vld [vmem:[%s381 + $0xf8] sm:$0xff]
      %v542 = vpack.c.bf16 %v511, %v510
      %v543 = vpack.c.bf16 %v513, %v512
      %v544 = vpack.c.bf16 %v515, %v514
      %v545 = vpack.c.bf16 %v517, %v516
      %v546 = vpack.c.bf16 %v519, %v518
      %v547 = vpack.c.bf16 %v521, %v520
      %v548 = vpack.c.bf16 %v523, %v522
      %v549 = vpack.c.bf16 %v525, %v524
      %v550 = vpack.c.bf16 %v527, %v526
      %v551 = vpack.c.bf16 %v529, %v528
      %v552 = vpack.c.bf16 %v531, %v530
      %v553 = vpack.c.bf16 %v533, %v532
      %v554 = vpack.c.bf16 %v535, %v534
      %v555 = vpack.c.bf16 %v537, %v536
      %v556 = vpack.c.bf16 %v539, %v538
      %v557 = vpack.c.bf16 %v541, %v540
      %v558 = vld [vmem:[%s1] sm:$0x3]
      %v559 = vld [vmem:[%s2] sm:$0x1]
      %v561 = vperm.slane %v559, 0
      %vm563 = vcmask 31744
      %v565 = vsel %vm563, %v542, 0
      %v568 = vsel %vm563, %v543, 0
      %v571 = vsel %vm563, %v544, 0
      %v574 = vsel %vm563, %v545, 0
      %v577 = vsel %vm563, %v546, 0
      %v580 = vsel %vm563, %v547, 0
      %v583 = vsel %vm563, %v548, 0
      %v586 = vsel %vm563, %v549, 0
      %v589 = vsel %vm563, %v550, 0
      %v592 = vsel %vm563, %v551, 0
      %v595 = vsel %vm563, %v552, 0
      %v598 = vsel %vm563, %v553, 0
      %v601 = vsel %vm563, %v554, 0
      %v604 = vsel %vm563, %v555, 0
      %v607 = vsel %vm563, %v556, 0
      %v610 = vsel %vm563, %v557, 0
      %vm612 = vcmask 1041408
      %v614 = vsel %vm612, %v558, 0
      %616 = vmatpush.bf16.msra.mxu0 0
      %617 = vmatpush.bf16.msra.mxu0 0
      %618 = vmatpush.bf16.msra.mxu0 0
      %619 = vmatpush.bf16.msra.mxu0 0
      %620 = vmatpush.bf16.msra.mxu0 0
      %621 = vmatpush.bf16.msra.mxu0 0
      %622 = vmatpush.bf16.msra.mxu0 0
      %623 = vmatpush.bf16.msra.mxu0 %v614
      %624 = vmatmul.bf16.gmra.mxu0 %v565
      %v625 = vpop.f32.mrf.mxu0
      %v626 = vadd.f32 %v561, %v625
      %v627 = vpop.f32.mrf.mxu0
      %v628 = vadd.f32 %v561, %v627
      %629 = vmatmul.bf16.gmra.mxu0 %v568
      %v630 = vpop.f32.mrf.mxu0
      %v631 = vadd.f32 %v561, %v630
      %v632 = vpop.f32.mrf.mxu0
      %v633 = vadd.f32 %v561, %v632
      %634 = vmatmul.bf16.gmra.mxu0 %v571
      %v635 = vpop.f32.mrf.mxu0
      %v636 = vadd.f32 %v561, %v635
      %v637 = vpop.f32.mrf.mxu0
      %v638 = vadd.f32 %v561, %v637
      %639 = vmatmul.bf16.gmra.mxu0 %v574
      %v640 = vpop.f32.mrf.mxu0
      %v641 = vadd.f32 %v561, %v640
      %v642 = vpop.f32.mrf.mxu0
      %v643 = vadd.f32 %v561, %v642
      %644 = vmatmul.bf16.gmra.mxu0 %v577
      %v645 = vpop.f32.mrf.mxu0
      %v646 = vadd.f32 %v561, %v645
      %v647 = vpop.f32.mrf.mxu0
      %v648 = vadd.f32 %v561, %v647
      %649 = vmatmul.bf16.gmra.mxu0 %v580
      %v650 = vpop.f32.mrf.mxu0
      %v651 = vadd.f32 %v561, %v650
      %v652 = vpop.f32.mrf.mxu0
      %v653 = vadd.f32 %v561, %v652
      %654 = vmatmul.bf16.gmra.mxu0 %v583
      %v655 = vpop.f32.mrf.mxu0
      %v656 = vadd.f32 %v561, %v655
      %v657 = vpop.f32.mrf.mxu0
      %v658 = vadd.f32 %v561, %v657
      %659 = vmatmul.bf16.gmra.mxu0 %v586
      %v660 = vpop.f32.mrf.mxu0
      %v661 = vadd.f32 %v561, %v660
      %v662 = vpop.f32.mrf.mxu0
      %v663 = vadd.f32 %v561, %v662
      %664 = vmatmul.bf16.gmra.mxu0 %v589
      %v665 = vpop.f32.mrf.mxu0
      %v666 = vadd.f32 %v561, %v665
      %v667 = vpop.f32.mrf.mxu0
      %v668 = vadd.f32 %v561, %v667
      %669 = vmatmul.bf16.gmra.mxu0 %v592
      %v670 = vpop.f32.mrf.mxu0
      %v671 = vadd.f32 %v561, %v670
      %v672 = vpop.f32.mrf.mxu0
      %v673 = vadd.f32 %v561, %v672
      %674 = vmatmul.bf16.gmra.mxu0 %v595
      %v675 = vpop.f32.mrf.mxu0
      %v676 = vadd.f32 %v561, %v675
      %v677 = vpop.f32.mrf.mxu0
      %v678 = vadd.f32 %v561, %v677
      %679 = vmatmul.bf16.gmra.mxu0 %v598
      %v680 = vpop.f32.mrf.mxu0
      %v681 = vadd.f32 %v561, %v680
      %v682 = vpop.f32.mrf.mxu0
      %v683 = vadd.f32 %v561, %v682
      %684 = vmatmul.bf16.gmra.mxu0 %v601
      %v685 = vpop.f32.mrf.mxu0
      %v686 = vadd.f32 %v561, %v685
      %v687 = vpop.f32.mrf.mxu0
      %v688 = vadd.f32 %v561, %v687
      %689 = vmatmul.bf16.gmra.mxu0 %v604
      %v690 = vpop.f32.mrf.mxu0
      %v691 = vadd.f32 %v561, %v690
      %v692 = vpop.f32.mrf.mxu0
      %v693 = vadd.f32 %v561, %v692
      %694 = vmatmul.bf16.gmra.mxu0 %v607
      %v695 = vpop.f32.mrf.mxu0
      %v696 = vadd.f32 %v561, %v695
      %v697 = vpop.f32.mrf.mxu0
      %v698 = vadd.f32 %v561, %v697
      %699 = vmatmul.bf16.gmra.mxu0 %v610
      %v700 = vpop.f32.mrf.mxu0
      %v701 = vadd.f32 %v561, %v700
      %v702 = vpop.f32.mrf.mxu0
      %v703 = vadd.f32 %v561, %v702
      %704 = vdwg.mxu0
      %v705 = vxor.u32 %v626, 2147483648
      %v706 = vxor.u32 %v628, 2147483648
      %v707 = vxor.u32 %v631, 2147483648
      %v708 = vxor.u32 %v633, 2147483648
      %v709 = vxor.u32 %v636, 2147483648
      %v710 = vxor.u32 %v638, 2147483648
      %v711 = vxor.u32 %v641, 2147483648
      %v712 = vxor.u32 %v643, 2147483648
      %v713 = vxor.u32 %v646, 2147483648
      %v714 = vxor.u32 %v648, 2147483648
      %v715 = vxor.u32 %v651, 2147483648
      %v716 = vxor.u32 %v653, 2147483648
      %v717 = vxor.u32 %v656, 2147483648
      %v718 = vxor.u32 %v658, 2147483648
      %v719 = vxor.u32 %v661, 2147483648
      %v720 = vxor.u32 %v663, 2147483648
      %v721 = vxor.u32 %v666, 2147483648
      %v722 = vxor.u32 %v668, 2147483648
      %v723 = vxor.u32 %v671, 2147483648
      %v724 = vxor.u32 %v673, 2147483648
      %v725 = vxor.u32 %v676, 2147483648
      %v726 = vxor.u32 %v678, 2147483648
      %v727 = vxor.u32 %v681, 2147483648
      %v728 = vxor.u32 %v683, 2147483648
      %v729 = vxor.u32 %v686, 2147483648
      %v730 = vxor.u32 %v688, 2147483648
      %v731 = vxor.u32 %v691, 2147483648
      %v732 = vxor.u32 %v693, 2147483648
      %v733 = vxor.u32 %v696, 2147483648
      %v734 = vxor.u32 %v698, 2147483648
      %v735 = vxor.u32 %v701, 2147483648
      %v736 = vxor.u32 %v703, 2147483648
      %v737 = vmul.f32 %v705, 1.442695
      %v738 = vpow.pop %v737
      %v739 = vmul.f32 %v706, 1.442695
      %v740 = vpow.pop %v739
      %v741 = vmul.f32 %v707, 1.442695
      %v742 = vpow.pop %v741
      %v743 = vmul.f32 %v708, 1.442695
      %v744 = vpow.pop %v743
      %v745 = vmul.f32 %v709, 1.442695
      %v746 = vpow.pop %v745
      %v747 = vmul.f32 %v710, 1.442695
      %v748 = vpow.pop %v747
      %v749 = vmul.f32 %v711, 1.442695
      %v750 = vpow.pop %v749
      %v751 = vmul.f32 %v712, 1.442695
      %v752 = vpow.pop %v751
      %v753 = vmul.f32 %v713, 1.442695
      %v754 = vpow.pop %v753
      %v755 = vmul.f32 %v714, 1.442695
      %v756 = vpow.pop %v755
      %v757 = vmul.f32 %v715, 1.442695
      %v758 = vpow.pop %v757
      %v759 = vmul.f32 %v716, 1.442695
      %v760 = vpow.pop %v759
      %v761 = vmul.f32 %v717, 1.442695
      %v762 = vpow.pop %v761
      %v763 = vmul.f32 %v718, 1.442695
      %v764 = vpow.pop %v763
      %v765 = vmul.f32 %v719, 1.442695
      %v766 = vpow.pop %v765
      %v767 = vmul.f32 %v720, 1.442695
      %v768 = vpow.pop %v767
      %v769 = vmul.f32 %v721, 1.442695
      %v770 = vpow.pop %v769
      %v771 = vmul.f32 %v722, 1.442695
      %v772 = vpow.pop %v771
      %v773 = vmul.f32 %v723, 1.442695
      %v774 = vpow.pop %v773
      %v775 = vmul.f32 %v724, 1.442695
      %v776 = vpow.pop %v775
      %v777 = vmul.f32 %v725, 1.442695
      %v778 = vpow.pop %v777
      %v779 = vmul.f32 %v726, 1.442695
      %v780 = vpow.pop %v779
      %v781 = vmul.f32 %v727, 1.442695
      %v782 = vpow.pop %v781
      %v783 = vmul.f32 %v728, 1.442695
      %v784 = vpow.pop %v783
      %v785 = vmul.f32 %v729, 1.442695
      %v786 = vpow.pop %v785
      %v787 = vmul.f32 %v730, 1.442695
      %v788 = vpow.pop %v787
      %v789 = vmul.f32 %v731, 1.442695
      %v790 = vpow.pop %v789
      %v791 = vmul.f32 %v732, 1.442695
      %v792 = vpow.pop %v791
      %v793 = vmul.f32 %v733, 1.442695
      %v794 = vpow.pop %v793
      %v795 = vmul.f32 %v734, 1.442695
      %v796 = vpow.pop %v795
      %v797 = vmul.f32 %v735, 1.442695
      %v798 = vpow.pop %v797
      %v799 = vmul.f32 %v736, 1.442695
      %v800 = vpow.pop %v799
      %v801 = vadd.f32 %v738, 1.0
      %v802 = vadd.f32 %v740, 1.0
      %v803 = vadd.f32 %v742, 1.0
      %v804 = vadd.f32 %v744, 1.0
      %v805 = vadd.f32 %v746, 1.0
      %v806 = vadd.f32 %v748, 1.0
      %v807 = vadd.f32 %v750, 1.0
      %v808 = vadd.f32 %v752, 1.0
      %v809 = vadd.f32 %v754, 1.0
      %v810 = vadd.f32 %v756, 1.0
      %v811 = vadd.f32 %v758, 1.0
      %v812 = vadd.f32 %v760, 1.0
      %v813 = vadd.f32 %v762, 1.0
      %v814 = vadd.f32 %v764, 1.0
      %v815 = vadd.f32 %v766, 1.0
      %v816 = vadd.f32 %v768, 1.0
      %v817 = vadd.f32 %v770, 1.0
      %v818 = vadd.f32 %v772, 1.0
      %v819 = vadd.f32 %v774, 1.0
      %v820 = vadd.f32 %v776, 1.0
      %v821 = vadd.f32 %v778, 1.0
      %v822 = vadd.f32 %v780, 1.0
      %v823 = vadd.f32 %v782, 1.0
      %v824 = vadd.f32 %v784, 1.0
      %v825 = vadd.f32 %v786, 1.0
      %v826 = vadd.f32 %v788, 1.0
      %v827 = vadd.f32 %v790, 1.0
      %v828 = vadd.f32 %v792, 1.0
      %v829 = vadd.f32 %v794, 1.0
      %v830 = vadd.f32 %v796, 1.0
      %v831 = vadd.f32 %v798, 1.0
      %v832 = vadd.f32 %v800, 1.0
      %v833 = vrcp.pop %v801
      %v834 = vmul.f32 %v801, %v833
      %v835 = vsub.f32 1.0, %v834
      %v836 = vmul.f32 %v833, %v835
      %v837 = vadd.f32 %v833, %v836
      %vm838 = vweird.f32 %v801
      %vm839 = vweird.f32 %v833
      %vm840 = vmor %vm838, %vm839
      %v841 = vsel %vm840, %v833, %v837
      %v842 = vand.u32 2147483647, %v801
      %vm843 = vcmp.eq.f32.partialorder %v842, 8.507059e+37
      %v844 = vand.u32 %v801, 2147483648
      %v845 = vor.u32 1.1754944e-38, %v844
      %v846 = vsel %vm843, %v845, %v841
      %v847 = vmul.f32 1.0, %v846
      %v848 = vrcp.pop %v802
      %v849 = vmul.f32 %v802, %v848
      %v850 = vsub.f32 1.0, %v849
      %v851 = vmul.f32 %v848, %v850
      %v852 = vadd.f32 %v848, %v851
      %vm853 = vweird.f32 %v802
      %vm854 = vweird.f32 %v848
      %vm855 = vmor %vm853, %vm854
      %v856 = vsel %vm855, %v848, %v852
      %v857 = vand.u32 2147483647, %v802
      %vm858 = vcmp.eq.f32.partialorder %v857, 8.507059e+37
      %v859 = vand.u32 %v802, 2147483648
      %v860 = vor.u32 1.1754944e-38, %v859
      %v861 = vsel %vm858, %v860, %v856
      %v862 = vmul.f32 1.0, %v861
      %v863 = vrcp.pop %v803
      %v864 = vmul.f32 %v803, %v863
      %v865 = vsub.f32 1.0, %v864
      %v866 = vmul.f32 %v863, %v865
      %v867 = vadd.f32 %v863, %v866
      %vm868 = vweird.f32 %v803
      %vm869 = vweird.f32 %v863
      %vm870 = vmor %vm868, %vm869
      %v871 = vsel %vm870, %v863, %v867
      %v872 = vand.u32 2147483647, %v803
      %vm873 = vcmp.eq.f32.partialorder %v872, 8.507059e+37
      %v874 = vand.u32 %v803, 2147483648
      %v875 = vor.u32 1.1754944e-38, %v874
      %v876 = vsel %vm873, %v875, %v871
      %v877 = vmul.f32 1.0, %v876
      %v878 = vrcp.pop %v804
      %v879 = vmul.f32 %v804, %v878
      %v880 = vsub.f32 1.0, %v879
      %v881 = vmul.f32 %v878, %v880
      %v882 = vadd.f32 %v878, %v881
      %vm883 = vweird.f32 %v804
      %vm884 = vweird.f32 %v878
      %vm885 = vmor %vm883, %vm884
      %v886 = vsel %vm885, %v878, %v882
      %v887 = vand.u32 2147483647, %v804
      %vm888 = vcmp.eq.f32.partialorder %v887, 8.507059e+37
      %v889 = vand.u32 %v804, 2147483648
      %v890 = vor.u32 1.1754944e-38, %v889
      %v891 = vsel %vm888, %v890, %v886
      %v892 = vmul.f32 1.0, %v891
      %v893 = vrcp.pop %v805
      %v894 = vmul.f32 %v805, %v893
      %v895 = vsub.f32 1.0, %v894
      %v896 = vmul.f32 %v893, %v895
      %v897 = vadd.f32 %v893, %v896
      %vm898 = vweird.f32 %v805
      %vm899 = vweird.f32 %v893
      %vm900 = vmor %vm898, %vm899
      %v901 = vsel %vm900, %v893, %v897
      %v902 = vand.u32 2147483647, %v805
      %vm903 = vcmp.eq.f32.partialorder %v902, 8.507059e+37
      %v904 = vand.u32 %v805, 2147483648
      %v905 = vor.u32 1.1754944e-38, %v904
      %v906 = vsel %vm903, %v905, %v901
      %v907 = vmul.f32 1.0, %v906
      %v908 = vrcp.pop %v806
      %v909 = vmul.f32 %v806, %v908
      %v910 = vsub.f32 1.0, %v909
      %v911 = vmul.f32 %v908, %v910
      %v912 = vadd.f32 %v908, %v911
      %vm913 = vweird.f32 %v806
      %vm914 = vweird.f32 %v908
      %vm915 = vmor %vm913, %vm914
      %v916 = vsel %vm915, %v908, %v912
      %v917 = vand.u32 2147483647, %v806
      %vm918 = vcmp.eq.f32.partialorder %v917, 8.507059e+37
      %v919 = vand.u32 %v806, 2147483648
      %v920 = vor.u32 1.1754944e-38, %v919
      %v921 = vsel %vm918, %v920, %v916
      %v922 = vmul.f32 1.0, %v921
      %v923 = vrcp.pop %v807
      %v924 = vmul.f32 %v807, %v923
      %v925 = vsub.f32 1.0, %v924
      %v926 = vmul.f32 %v923, %v925
      %v927 = vadd.f32 %v923, %v926
      %vm928 = vweird.f32 %v807
      %vm929 = vweird.f32 %v923
      %vm930 = vmor %vm928, %vm929
      %v931 = vsel %vm930, %v923, %v927
      %v932 = vand.u32 2147483647, %v807
      %vm933 = vcmp.eq.f32.partialorder %v932, 8.507059e+37
      %v934 = vand.u32 %v807, 2147483648
      %v935 = vor.u32 1.1754944e-38, %v934
      %v936 = vsel %vm933, %v935, %v931
      %v937 = vmul.f32 1.0, %v936
      %v938 = vrcp.pop %v808
      %v939 = vmul.f32 %v808, %v938
      %v940 = vsub.f32 1.0, %v939
      %v941 = vmul.f32 %v938, %v940
      %v942 = vadd.f32 %v938, %v941
      %vm943 = vweird.f32 %v808
      %vm944 = vweird.f32 %v938
      %vm945 = vmor %vm943, %vm944
      %v946 = vsel %vm945, %v938, %v942
      %v947 = vand.u32 2147483647, %v808
      %vm948 = vcmp.eq.f32.partialorder %v947, 8.507059e+37
      %v949 = vand.u32 %v808, 2147483648
      %v950 = vor.u32 1.1754944e-38, %v949
      %v951 = vsel %vm948, %v950, %v946
      %v952 = vmul.f32 1.0, %v951
      %v953 = vrcp.pop %v809
      %v954 = vmul.f32 %v809, %v953
      %v955 = vsub.f32 1.0, %v954
      %v956 = vmul.f32 %v953, %v955
      %v957 = vadd.f32 %v953, %v956
      %vm958 = vweird.f32 %v809
      %vm959 = vweird.f32 %v953
      %vm960 = vmor %vm958, %vm959
      %v961 = vsel %vm960, %v953, %v957
      %v962 = vand.u32 2147483647, %v809
      %vm963 = vcmp.eq.f32.partialorder %v962, 8.507059e+37
      %v964 = vand.u32 %v809, 2147483648
      %v965 = vor.u32 1.1754944e-38, %v964
      %v966 = vsel %vm963, %v965, %v961
      %v967 = vmul.f32 1.0, %v966
      %v968 = vrcp.pop %v810
      %v969 = vmul.f32 %v810, %v968
      %v970 = vsub.f32 1.0, %v969
      %v971 = vmul.f32 %v968, %v970
      %v972 = vadd.f32 %v968, %v971
      %vm973 = vweird.f32 %v810
      %vm974 = vweird.f32 %v968
      %vm975 = vmor %vm973, %vm974
      %v976 = vsel %vm975, %v968, %v972
      %v977 = vand.u32 2147483647, %v810
      %vm978 = vcmp.eq.f32.partialorder %v977, 8.507059e+37
      %v979 = vand.u32 %v810, 2147483648
      %v980 = vor.u32 1.1754944e-38, %v979
      %v981 = vsel %vm978, %v980, %v976
      %v982 = vmul.f32 1.0, %v981
      %v983 = vrcp.pop %v811
      %v984 = vmul.f32 %v811, %v983
      %v985 = vsub.f32 1.0, %v984
      %v986 = vmul.f32 %v983, %v985
      %v987 = vadd.f32 %v983, %v986
      %vm988 = vweird.f32 %v811
      %vm989 = vweird.f32 %v983
      %vm990 = vmor %vm988, %vm989
      %v991 = vsel %vm990, %v983, %v987
      %v992 = vand.u32 2147483647, %v811
      %vm993 = vcmp.eq.f32.partialorder %v992, 8.507059e+37
      %v994 = vand.u32 %v811, 2147483648
      %v995 = vor.u32 1.1754944e-38, %v994
      %v996 = vsel %vm993, %v995, %v991
      %v997 = vmul.f32 1.0, %v996
      %v998 = vrcp.pop %v812
      %v999 = vmul.f32 %v812, %v998
      %v1000 = vsub.f32 1.0, %v999
      %v1001 = vmul.f32 %v998, %v1000
      %v1002 = vadd.f32 %v998, %v1001
      %vm1003 = vweird.f32 %v812
      %vm1004 = vweird.f32 %v998
      %vm1005 = vmor %vm1003, %vm1004
      %v1006 = vsel %vm1005, %v998, %v1002
      %v1007 = vand.u32 2147483647, %v812
      %vm1008 = vcmp.eq.f32.partialorder %v1007, 8.507059e+37
      %v1009 = vand.u32 %v812, 2147483648
      %v1010 = vor.u32 1.1754944e-38, %v1009
      %v1011 = vsel %vm1008, %v1010, %v1006
      %v1012 = vmul.f32 1.0, %v1011
      %v1013 = vrcp.pop %v813
      %v1014 = vmul.f32 %v813, %v1013
      %v1015 = vsub.f32 1.0, %v1014
      %v1016 = vmul.f32 %v1013, %v1015
      %v1017 = vadd.f32 %v1013, %v1016
      %vm1018 = vweird.f32 %v813
      %vm1019 = vweird.f32 %v1013
      %vm1020 = vmor %vm1018, %vm1019
      %v1021 = vsel %vm1020, %v1013, %v1017
      %v1022 = vand.u32 2147483647, %v813
      %vm1023 = vcmp.eq.f32.partialorder %v1022, 8.507059e+37
      %v1024 = vand.u32 %v813, 2147483648
      %v1025 = vor.u32 1.1754944e-38, %v1024
      %v1026 = vsel %vm1023, %v1025, %v1021
      %v1027 = vmul.f32 1.0, %v1026
      %v1028 = vrcp.pop %v814
      %v1029 = vmul.f32 %v814, %v1028
      %v1030 = vsub.f32 1.0, %v1029
      %v1031 = vmul.f32 %v1028, %v1030
      %v1032 = vadd.f32 %v1028, %v1031
      %vm1033 = vweird.f32 %v814
      %vm1034 = vweird.f32 %v1028
      %vm1035 = vmor %vm1033, %vm1034
      %v1036 = vsel %vm1035, %v1028, %v1032
      %v1037 = vand.u32 2147483647, %v814
      %vm1038 = vcmp.eq.f32.partialorder %v1037, 8.507059e+37
      %v1039 = vand.u32 %v814, 2147483648
      %v1040 = vor.u32 1.1754944e-38, %v1039
      %v1041 = vsel %vm1038, %v1040, %v1036
      %v1042 = vmul.f32 1.0, %v1041
      %v1043 = vrcp.pop %v815
      %v1044 = vmul.f32 %v815, %v1043
      %v1045 = vsub.f32 1.0, %v1044
      %v1046 = vmul.f32 %v1043, %v1045
      %v1047 = vadd.f32 %v1043, %v1046
      %vm1048 = vweird.f32 %v815
      %vm1049 = vweird.f32 %v1043
      %vm1050 = vmor %vm1048, %vm1049
      %v1051 = vsel %vm1050, %v1043, %v1047
      %v1052 = vand.u32 2147483647, %v815
      %vm1053 = vcmp.eq.f32.partialorder %v1052, 8.507059e+37
      %v1054 = vand.u32 %v815, 2147483648
      %v1055 = vor.u32 1.1754944e-38, %v1054
      %v1056 = vsel %vm1053, %v1055, %v1051
      %v1057 = vmul.f32 1.0, %v1056
      %v1058 = vrcp.pop %v816
      %v1059 = vmul.f32 %v816, %v1058
      %v1060 = vsub.f32 1.0, %v1059
      %v1061 = vmul.f32 %v1058, %v1060
      %v1062 = vadd.f32 %v1058, %v1061
      %vm1063 = vweird.f32 %v816
      %vm1064 = vweird.f32 %v1058
      %vm1065 = vmor %vm1063, %vm1064
      %v1066 = vsel %vm1065, %v1058, %v1062
      %v1067 = vand.u32 2147483647, %v816
      %vm1068 = vcmp.eq.f32.partialorder %v1067, 8.507059e+37
      %v1069 = vand.u32 %v816, 2147483648
      %v1070 = vor.u32 1.1754944e-38, %v1069
      %v1071 = vsel %vm1068, %v1070, %v1066
      %v1072 = vmul.f32 1.0, %v1071
      %v1073 = vrcp.pop %v817
      %v1074 = vmul.f32 %v817, %v1073
      %v1075 = vsub.f32 1.0, %v1074
      %v1076 = vmul.f32 %v1073, %v1075
      %v1077 = vadd.f32 %v1073, %v1076
      %vm1078 = vweird.f32 %v817
      %vm1079 = vweird.f32 %v1073
      %vm1080 = vmor %vm1078, %vm1079
      %v1081 = vsel %vm1080, %v1073, %v1077
      %v1082 = vand.u32 2147483647, %v817
      %vm1083 = vcmp.eq.f32.partialorder %v1082, 8.507059e+37
      %v1084 = vand.u32 %v817, 2147483648
      %v1085 = vor.u32 1.1754944e-38, %v1084
      %v1086 = vsel %vm1083, %v1085, %v1081
      %v1087 = vmul.f32 1.0, %v1086
      %v1088 = vrcp.pop %v818
      %v1089 = vmul.f32 %v818, %v1088
      %v1090 = vsub.f32 1.0, %v1089
      %v1091 = vmul.f32 %v1088, %v1090
      %v1092 = vadd.f32 %v1088, %v1091
      %vm1093 = vweird.f32 %v818
      %vm1094 = vweird.f32 %v1088
      %vm1095 = vmor %vm1093, %vm1094
      %v1096 = vsel %vm1095, %v1088, %v1092
      %v1097 = vand.u32 2147483647, %v818
      %vm1098 = vcmp.eq.f32.partialorder %v1097, 8.507059e+37
      %v1099 = vand.u32 %v818, 2147483648
      %v1100 = vor.u32 1.1754944e-38, %v1099
      %v1101 = vsel %vm1098, %v1100, %v1096
      %v1102 = vmul.f32 1.0, %v1101
      %v1103 = vrcp.pop %v819
      %v1104 = vmul.f32 %v819, %v1103
      %v1105 = vsub.f32 1.0, %v1104
      %v1106 = vmul.f32 %v1103, %v1105
      %v1107 = vadd.f32 %v1103, %v1106
      %vm1108 = vweird.f32 %v819
      %vm1109 = vweird.f32 %v1103
      %vm1110 = vmor %vm1108, %vm1109
      %v1111 = vsel %vm1110, %v1103, %v1107
      %v1112 = vand.u32 2147483647, %v819
      %vm1113 = vcmp.eq.f32.partialorder %v1112, 8.507059e+37
      %v1114 = vand.u32 %v819, 2147483648
      %v1115 = vor.u32 1.1754944e-38, %v1114
      %v1116 = vsel %vm1113, %v1115, %v1111
      %v1117 = vmul.f32 1.0, %v1116
      %v1118 = vrcp.pop %v820
      %v1119 = vmul.f32 %v820, %v1118
      %v1120 = vsub.f32 1.0, %v1119
      %v1121 = vmul.f32 %v1118, %v1120
      %v1122 = vadd.f32 %v1118, %v1121
      %vm1123 = vweird.f32 %v820
      %vm1124 = vweird.f32 %v1118
      %vm1125 = vmor %vm1123, %vm1124
      %v1126 = vsel %vm1125, %v1118, %v1122
      %v1127 = vand.u32 2147483647, %v820
      %vm1128 = vcmp.eq.f32.partialorder %v1127, 8.507059e+37
      %v1129 = vand.u32 %v820, 2147483648
      %v1130 = vor.u32 1.1754944e-38, %v1129
      %v1131 = vsel %vm1128, %v1130, %v1126
      %v1132 = vmul.f32 1.0, %v1131
      %v1133 = vrcp.pop %v821
      %v1134 = vmul.f32 %v821, %v1133
      %v1135 = vsub.f32 1.0, %v1134
      %v1136 = vmul.f32 %v1133, %v1135
      %v1137 = vadd.f32 %v1133, %v1136
      %vm1138 = vweird.f32 %v821
      %vm1139 = vweird.f32 %v1133
      %vm1140 = vmor %vm1138, %vm1139
      %v1141 = vsel %vm1140, %v1133, %v1137
      %v1142 = vand.u32 2147483647, %v821
      %vm1143 = vcmp.eq.f32.partialorder %v1142, 8.507059e+37
      %v1144 = vand.u32 %v821, 2147483648
      %v1145 = vor.u32 1.1754944e-38, %v1144
      %v1146 = vsel %vm1143, %v1145, %v1141
      %v1147 = vmul.f32 1.0, %v1146
      %v1148 = vrcp.pop %v822
      %v1149 = vmul.f32 %v822, %v1148
      %v1150 = vsub.f32 1.0, %v1149
      %v1151 = vmul.f32 %v1148, %v1150
      %v1152 = vadd.f32 %v1148, %v1151
      %vm1153 = vweird.f32 %v822
      %vm1154 = vweird.f32 %v1148
      %vm1155 = vmor %vm1153, %vm1154
      %v1156 = vsel %vm1155, %v1148, %v1152
      %v1157 = vand.u32 2147483647, %v822
      %vm1158 = vcmp.eq.f32.partialorder %v1157, 8.507059e+37
      %v1159 = vand.u32 %v822, 2147483648
      %v1160 = vor.u32 1.1754944e-38, %v1159
      %v1161 = vsel %vm1158, %v1160, %v1156
      %v1162 = vmul.f32 1.0, %v1161
      %v1163 = vrcp.pop %v823
      %v1164 = vmul.f32 %v823, %v1163
      %v1165 = vsub.f32 1.0, %v1164
      %v1166 = vmul.f32 %v1163, %v1165
      %v1167 = vadd.f32 %v1163, %v1166
      %vm1168 = vweird.f32 %v823
      %vm1169 = vweird.f32 %v1163
      %vm1170 = vmor %vm1168, %vm1169
      %v1171 = vsel %vm1170, %v1163, %v1167
      %v1172 = vand.u32 2147483647, %v823
      %vm1173 = vcmp.eq.f32.partialorder %v1172, 8.507059e+37
      %v1174 = vand.u32 %v823, 2147483648
      %v1175 = vor.u32 1.1754944e-38, %v1174
      %v1176 = vsel %vm1173, %v1175, %v1171
      %v1177 = vmul.f32 1.0, %v1176
      %v1178 = vrcp.pop %v824
      %v1179 = vmul.f32 %v824, %v1178
      %v1180 = vsub.f32 1.0, %v1179
      %v1181 = vmul.f32 %v1178, %v1180
      %v1182 = vadd.f32 %v1178, %v1181
      %vm1183 = vweird.f32 %v824
      %vm1184 = vweird.f32 %v1178
      %vm1185 = vmor %vm1183, %vm1184
      %v1186 = vsel %vm1185, %v1178, %v1182
      %v1187 = vand.u32 2147483647, %v824
      %vm1188 = vcmp.eq.f32.partialorder %v1187, 8.507059e+37
      %v1189 = vand.u32 %v824, 2147483648
      %v1190 = vor.u32 1.1754944e-38, %v1189
      %v1191 = vsel %vm1188, %v1190, %v1186
      %v1192 = vmul.f32 1.0, %v1191
      %v1193 = vrcp.pop %v825
      %v1194 = vmul.f32 %v825, %v1193
      %v1195 = vsub.f32 1.0, %v1194
      %v1196 = vmul.f32 %v1193, %v1195
      %v1197 = vadd.f32 %v1193, %v1196
      %vm1198 = vweird.f32 %v825
      %vm1199 = vweird.f32 %v1193
      %vm1200 = vmor %vm1198, %vm1199
      %v1201 = vsel %vm1200, %v1193, %v1197
      %v1202 = vand.u32 2147483647, %v825
      %vm1203 = vcmp.eq.f32.partialorder %v1202, 8.507059e+37
      %v1204 = vand.u32 %v825, 2147483648
      %v1205 = vor.u32 1.1754944e-38, %v1204
      %v1206 = vsel %vm1203, %v1205, %v1201
      %v1207 = vmul.f32 1.0, %v1206
      %v1208 = vrcp.pop %v826
      %v1209 = vmul.f32 %v826, %v1208
      %v1210 = vsub.f32 1.0, %v1209
      %v1211 = vmul.f32 %v1208, %v1210
      %v1212 = vadd.f32 %v1208, %v1211
      %vm1213 = vweird.f32 %v826
      %vm1214 = vweird.f32 %v1208
      %vm1215 = vmor %vm1213, %vm1214
      %v1216 = vsel %vm1215, %v1208, %v1212
      %v1217 = vand.u32 2147483647, %v826
      %vm1218 = vcmp.eq.f32.partialorder %v1217, 8.507059e+37
      %v1219 = vand.u32 %v826, 2147483648
      %v1220 = vor.u32 1.1754944e-38, %v1219
      %v1221 = vsel %vm1218, %v1220, %v1216
      %v1222 = vmul.f32 1.0, %v1221
      %v1223 = vrcp.pop %v827
      %v1224 = vmul.f32 %v827, %v1223
      %v1225 = vsub.f32 1.0, %v1224
      %v1226 = vmul.f32 %v1223, %v1225
      %v1227 = vadd.f32 %v1223, %v1226
      %vm1228 = vweird.f32 %v827
      %vm1229 = vweird.f32 %v1223
      %vm1230 = vmor %vm1228, %vm1229
      %v1231 = vsel %vm1230, %v1223, %v1227
      %v1232 = vand.u32 2147483647, %v827
      %vm1233 = vcmp.eq.f32.partialorder %v1232, 8.507059e+37
      %v1234 = vand.u32 %v827, 2147483648
      %v1235 = vor.u32 1.1754944e-38, %v1234
      %v1236 = vsel %vm1233, %v1235, %v1231
      %v1237 = vmul.f32 1.0, %v1236
      %v1238 = vrcp.pop %v828
      %v1239 = vmul.f32 %v828, %v1238
      %v1240 = vsub.f32 1.0, %v1239
      %v1241 = vmul.f32 %v1238, %v1240
      %v1242 = vadd.f32 %v1238, %v1241
      %vm1243 = vweird.f32 %v828
      %vm1244 = vweird.f32 %v1238
      %vm1245 = vmor %vm1243, %vm1244
      %v1246 = vsel %vm1245, %v1238, %v1242
      %v1247 = vand.u32 2147483647, %v828
      %vm1248 = vcmp.eq.f32.partialorder %v1247, 8.507059e+37
      %v1249 = vand.u32 %v828, 2147483648
      %v1250 = vor.u32 1.1754944e-38, %v1249
      %v1251 = vsel %vm1248, %v1250, %v1246
      %v1252 = vmul.f32 1.0, %v1251
      %v1253 = vrcp.pop %v829
      %v1254 = vmul.f32 %v829, %v1253
      %v1255 = vsub.f32 1.0, %v1254
      %v1256 = vmul.f32 %v1253, %v1255
      %v1257 = vadd.f32 %v1253, %v1256
      %vm1258 = vweird.f32 %v829
      %vm1259 = vweird.f32 %v1253
      %vm1260 = vmor %vm1258, %vm1259
      %v1261 = vsel %vm1260, %v1253, %v1257
      %v1262 = vand.u32 2147483647, %v829
      %vm1263 = vcmp.eq.f32.partialorder %v1262, 8.507059e+37
      %v1264 = vand.u32 %v829, 2147483648
      %v1265 = vor.u32 1.1754944e-38, %v1264
      %v1266 = vsel %vm1263, %v1265, %v1261
      %v1267 = vmul.f32 1.0, %v1266
      %v1268 = vrcp.pop %v830
      %v1269 = vmul.f32 %v830, %v1268
      %v1270 = vsub.f32 1.0, %v1269
      %v1271 = vmul.f32 %v1268, %v1270
      %v1272 = vadd.f32 %v1268, %v1271
      %vm1273 = vweird.f32 %v830
      %vm1274 = vweird.f32 %v1268
      %vm1275 = vmor %vm1273, %vm1274
      %v1276 = vsel %vm1275, %v1268, %v1272
      %v1277 = vand.u32 2147483647, %v830
      %vm1278 = vcmp.eq.f32.partialorder %v1277, 8.507059e+37
      %v1279 = vand.u32 %v830, 2147483648
      %v1280 = vor.u32 1.1754944e-38, %v1279
      %v1281 = vsel %vm1278, %v1280, %v1276
      %v1282 = vmul.f32 1.0, %v1281
      %v1283 = vrcp.pop %v831
      %v1284 = vmul.f32 %v831, %v1283
      %v1285 = vsub.f32 1.0, %v1284
      %v1286 = vmul.f32 %v1283, %v1285
      %v1287 = vadd.f32 %v1283, %v1286
      %vm1288 = vweird.f32 %v831
      %vm1289 = vweird.f32 %v1283
      %vm1290 = vmor %vm1288, %vm1289
      %v1291 = vsel %vm1290, %v1283, %v1287
      %v1292 = vand.u32 2147483647, %v831
      %vm1293 = vcmp.eq.f32.partialorder %v1292, 8.507059e+37
      %v1294 = vand.u32 %v831, 2147483648
      %v1295 = vor.u32 1.1754944e-38, %v1294
      %v1296 = vsel %vm1293, %v1295, %v1291
      %v1297 = vmul.f32 1.0, %v1296
      %v1298 = vrcp.pop %v832
      %v1299 = vmul.f32 %v832, %v1298
      %v1300 = vsub.f32 1.0, %v1299
      %v1301 = vmul.f32 %v1298, %v1300
      %v1302 = vadd.f32 %v1298, %v1301
      %vm1303 = vweird.f32 %v832
      %vm1304 = vweird.f32 %v1298
      %vm1305 = vmor %vm1303, %vm1304
      %v1306 = vsel %vm1305, %v1298, %v1302
      %v1307 = vand.u32 2147483647, %v832
      %vm1308 = vcmp.eq.f32.partialorder %v1307, 8.507059e+37
      %v1309 = vand.u32 %v832, 2147483648
      %v1310 = vor.u32 1.1754944e-38, %v1309
      %v1311 = vsel %vm1308, %v1310, %v1306
      %v1312 = vmul.f32 1.0, %v1311
      %v1313 = vmul.f32 %v626, %v847
      %v1314 = vmul.f32 %v628, %v862
      %v1315 = vmul.f32 %v631, %v877
      %v1316 = vmul.f32 %v633, %v892
      %v1317 = vmul.f32 %v636, %v907
      %v1318 = vmul.f32 %v638, %v922
      %v1319 = vmul.f32 %v641, %v937
      %v1320 = vmul.f32 %v643, %v952
      %v1321 = vmul.f32 %v646, %v967
      %v1322 = vmul.f32 %v648, %v982
      %v1323 = vmul.f32 %v651, %v997
      %v1324 = vmul.f32 %v653, %v1012
      %v1325 = vmul.f32 %v656, %v1027
      %v1326 = vmul.f32 %v658, %v1042
      %v1327 = vmul.f32 %v661, %v1057
      %v1328 = vmul.f32 %v663, %v1072
      %v1329 = vmul.f32 %v666, %v1087
      %v1330 = vmul.f32 %v668, %v1102
      %v1331 = vmul.f32 %v671, %v1117
      %v1332 = vmul.f32 %v673, %v1132
      %v1333 = vmul.f32 %v676, %v1147
      %v1334 = vmul.f32 %v678, %v1162
      %v1335 = vmul.f32 %v681, %v1177
      %v1336 = vmul.f32 %v683, %v1192
      %v1337 = vmul.f32 %v686, %v1207
      %v1338 = vmul.f32 %v688, %v1222
      %v1339 = vmul.f32 %v691, %v1237
      %v1340 = vmul.f32 %v693, %v1252
      %v1341 = vmul.f32 %v696, %v1267
      %v1342 = vmul.f32 %v698, %v1282
      %v1343 = vmul.f32 %v701, %v1297
      %v1344 = vmul.f32 %v703, %v1312
      %v1345 = vpack.c.bf16 %v1314, %v1313
      %v1346 = vpack.c.bf16 %v1316, %v1315
      %v1347 = vpack.c.bf16 %v1318, %v1317
      %v1348 = vpack.c.bf16 %v1320, %v1319
      %v1349 = vpack.c.bf16 %v1322, %v1321
      %v1350 = vpack.c.bf16 %v1324, %v1323
      %v1351 = vpack.c.bf16 %v1326, %v1325
      %v1352 = vpack.c.bf16 %v1328, %v1327
      %v1353 = vpack.c.bf16 %v1330, %v1329
      %v1354 = vpack.c.bf16 %v1332, %v1331
      %v1355 = vpack.c.bf16 %v1334, %v1333
      %v1356 = vpack.c.bf16 %v1336, %v1335
      %v1357 = vpack.c.bf16 %v1338, %v1337
      %v1358 = vpack.c.bf16 %v1340, %v1339
      %v1359 = vpack.c.bf16 %v1342, %v1341
      %v1360 = vpack.c.bf16 %v1344, %v1343
      %v1361 = vld [vmem:[%s7] sm:$0x3]
      %v1362 = vld [vmem:[%s8] sm:$0x3]
      %1379 = vrot.lane.b32.xlu0 %v1345, 124
      %v1380 = vpop.permute.xlu0 %1379
      %1381 = vrot.lane.b32.xlu0 %v1346, 124
      %v1382 = vpop.permute.xlu0 %1381
      %1383 = vrot.lane.b32.xlu0 %v1347, 124
      %v1384 = vpop.permute.xlu0 %1383
      %1385 = vrot.lane.b32.xlu0 %v1348, 124
      %v1386 = vpop.permute.xlu0 %1385
      %1387 = vrot.lane.b32.xlu0 %v1349, 124
      %v1388 = vpop.permute.xlu0 %1387
      %1389 = vrot.lane.b32.xlu0 %v1350, 124
      %v1390 = vpop.permute.xlu0 %1389
      %1391 = vrot.lane.b32.xlu0 %v1351, 124
      %v1392 = vpop.permute.xlu0 %1391
      %1393 = vrot.lane.b32.xlu0 %v1352, 124
      %v1394 = vpop.permute.xlu0 %1393
      %1395 = vrot.lane.b32.xlu0 %v1353, 124
      %v1396 = vpop.permute.xlu0 %1395
      %1397 = vrot.lane.b32.xlu0 %v1354, 124
      %v1398 = vpop.permute.xlu0 %1397
      %1399 = vrot.lane.b32.xlu0 %v1355, 124
      %v1400 = vpop.permute.xlu0 %1399
      %1401 = vrot.lane.b32.xlu0 %v1356, 124
      %v1402 = vpop.permute.xlu0 %1401
      %1403 = vrot.lane.b32.xlu0 %v1357, 124
      %v1404 = vpop.permute.xlu0 %1403
      %1405 = vrot.lane.b32.xlu0 %v1358, 124
      %v1406 = vpop.permute.xlu0 %1405
      %1407 = vrot.lane.b32.xlu0 %v1359, 124
      %v1408 = vpop.permute.xlu0 %1407
      %1409 = vrot.lane.b32.xlu0 %v1360, 124
      %v1410 = vpop.permute.xlu0 %1409
      %v1412 = vsel %vm563, %v1380, 0
      %v1415 = vsel %vm563, %v1382, 0
      %v1418 = vsel %vm563, %v1384, 0
      %v1421 = vsel %vm563, %v1386, 0
      %v1424 = vsel %vm563, %v1388, 0
      %v1427 = vsel %vm563, %v1390, 0
      %v1430 = vsel %vm563, %v1392, 0
      %v1433 = vsel %vm563, %v1394, 0
      %v1436 = vsel %vm563, %v1396, 0
      %v1439 = vsel %vm563, %v1398, 0
      %v1442 = vsel %vm563, %v1400, 0
      %v1445 = vsel %vm563, %v1402, 0
      %v1448 = vsel %vm563, %v1404, 0
      %v1451 = vsel %vm563, %v1406, 0
      %v1454 = vsel %vm563, %v1408, 0
      %v1457 = vsel %vm563, %v1410, 0
      %v1460 = vsel %vm612, %v1362, 0
      %1462 = vmatpush.bf16.msra.mxu0 0
      %1463 = vmatpush.bf16.msra.mxu0 0
      %1464 = vmatpush.bf16.msra.mxu0 0
      %1465 = vmatpush.bf16.msra.mxu0 0
      %1466 = vmatpush.bf16.msra.mxu0 0
      %1467 = vmatpush.bf16.msra.mxu0 0
      %1468 = vmatpush.bf16.msra.mxu0 0
      %1469 = vmatpush.bf16.msra.mxu0 %v1460
      %1470 = vmatmul.bf16.gmra.mxu0 %v1412
      %v1471 = vpop.f32.mrf.mxu0
      %v1472 = vadd.f32 0.0, %v1471
      %v1473 = vpop.f32.mrf.mxu0
      %v1474 = vadd.f32 0.0, %v1473
      %1475 = vmatmul.bf16.gmra.mxu0 %v1415
      %v1476 = vpop.f32.mrf.mxu0
      %v1477 = vadd.f32 0.0, %v1476
      %v1478 = vpop.f32.mrf.mxu0
      %v1479 = vadd.f32 0.0, %v1478
      %1480 = vmatmul.bf16.gmra.mxu0 %v1418
      %v1481 = vpop.f32.mrf.mxu0
      %v1482 = vadd.f32 0.0, %v1481
      %v1483 = vpop.f32.mrf.mxu0
      %v1484 = vadd.f32 0.0, %v1483
      %1485 = vmatmul.bf16.gmra.mxu0 %v1421
      %v1486 = vpop.f32.mrf.mxu0
      %v1487 = vadd.f32 0.0, %v1486
      %v1488 = vpop.f32.mrf.mxu0
      %v1489 = vadd.f32 0.0, %v1488
      %1490 = vmatmul.bf16.gmra.mxu0 %v1424
      %v1491 = vpop.f32.mrf.mxu0
      %v1492 = vadd.f32 0.0, %v1491
      %v1493 = vpop.f32.mrf.mxu0
      %v1494 = vadd.f32 0.0, %v1493
      %1495 = vmatmul.bf16.gmra.mxu0 %v1427
      %v1496 = vpop.f32.mrf.mxu0
      %v1497 = vadd.f32 0.0, %v1496
      %v1498 = vpop.f32.mrf.mxu0
      %v1499 = vadd.f32 0.0, %v1498
      %1500 = vmatmul.bf16.gmra.mxu0 %v1430
      %v1501 = vpop.f32.mrf.mxu0
      %v1502 = vadd.f32 0.0, %v1501
      %v1503 = vpop.f32.mrf.mxu0
      %v1504 = vadd.f32 0.0, %v1503
      %1505 = vmatmul.bf16.gmra.mxu0 %v1433
      %v1506 = vpop.f32.mrf.mxu0
      %v1507 = vadd.f32 0.0, %v1506
      %v1508 = vpop.f32.mrf.mxu0
      %v1509 = vadd.f32 0.0, %v1508
      %1510 = vmatmul.bf16.gmra.mxu0 %v1436
      %v1511 = vpop.f32.mrf.mxu0
      %v1512 = vadd.f32 0.0, %v1511
      %v1513 = vpop.f32.mrf.mxu0
      %v1514 = vadd.f32 0.0, %v1513
      %1515 = vmatmul.bf16.gmra.mxu0 %v1439
      %v1516 = vpop.f32.mrf.mxu0
      %v1517 = vadd.f32 0.0, %v1516
      %v1518 = vpop.f32.mrf.mxu0
      %v1519 = vadd.f32 0.0, %v1518
      %1520 = vmatmul.bf16.gmra.mxu0 %v1442
      %v1521 = vpop.f32.mrf.mxu0
      %v1522 = vadd.f32 0.0, %v1521
      %v1523 = vpop.f32.mrf.mxu0
      %v1524 = vadd.f32 0.0, %v1523
      %1525 = vmatmul.bf16.gmra.mxu0 %v1445
      %v1526 = vpop.f32.mrf.mxu0
      %v1527 = vadd.f32 0.0, %v1526
      %v1528 = vpop.f32.mrf.mxu0
      %v1529 = vadd.f32 0.0, %v1528
      %1530 = vmatmul.bf16.gmra.mxu0 %v1448
      %v1531 = vpop.f32.mrf.mxu0
      %v1532 = vadd.f32 0.0, %v1531
      %v1533 = vpop.f32.mrf.mxu0
      %v1534 = vadd.f32 0.0, %v1533
      %1535 = vmatmul.bf16.gmra.mxu0 %v1451
      %v1536 = vpop.f32.mrf.mxu0
      %v1537 = vadd.f32 0.0, %v1536
      %v1538 = vpop.f32.mrf.mxu0
      %v1539 = vadd.f32 0.0, %v1538
      %1540 = vmatmul.bf16.gmra.mxu0 %v1454
      %v1541 = vpop.f32.mrf.mxu0
      %v1542 = vadd.f32 0.0, %v1541
      %v1543 = vpop.f32.mrf.mxu0
      %v1544 = vadd.f32 0.0, %v1543
      %1545 = vmatmul.bf16.gmra.mxu0 %v1457
      %v1546 = vpop.f32.mrf.mxu0
      %v1547 = vadd.f32 0.0, %v1546
      %v1548 = vpop.f32.mrf.mxu0
      %v1549 = vadd.f32 0.0, %v1548
      %1550 = vdwg.mxu0
      %v1552 = vsel %vm563, %v1345, 0
      %v1555 = vsel %vm563, %v1346, 0
      %v1558 = vsel %vm563, %v1347, 0
      %v1561 = vsel %vm563, %v1348, 0
      %v1564 = vsel %vm563, %v1349, 0
      %v1567 = vsel %vm563, %v1350, 0
      %v1570 = vsel %vm563, %v1351, 0
      %v1573 = vsel %vm563, %v1352, 0
      %v1576 = vsel %vm563, %v1353, 0
      %v1579 = vsel %vm563, %v1354, 0
      %v1582 = vsel %vm563, %v1355, 0
      %v1585 = vsel %vm563, %v1356, 0
      %v1588 = vsel %vm563, %v1357, 0
      %v1591 = vsel %vm563, %v1358, 0
      %v1594 = vsel %vm563, %v1359, 0
      %v1597 = vsel %vm563, %v1360, 0
      %v1600 = vsel %vm612, %v1361, 0
      %1602 = vmatpush.bf16.msra.mxu0 0
      %1603 = vmatpush.bf16.msra.mxu0 0
      %1604 = vmatpush.bf16.msra.mxu0 0
      %1605 = vmatpush.bf16.msra.mxu0 0
      %1606 = vmatpush.bf16.msra.mxu0 0
      %1607 = vmatpush.bf16.msra.mxu0 0
      %1608 = vmatpush.bf16.msra.mxu0 0
      %1609 = vmatpush.bf16.msra.mxu0 %v1600
      %1610 = vmatmul.bf16.gmra.mxu0 %v1552
      %v1611 = vpop.f32.mrf.mxu0
      %v1612 = vadd.f32 %v1472, %v1611
      %v1613 = vpop.f32.mrf.mxu0
      %v1614 = vadd.f32 %v1474, %v1613
      %1615 = vmatmul.bf16.gmra.mxu0 %v1555
      %v1616 = vpop.f32.mrf.mxu0
      %v1617 = vadd.f32 %v1477, %v1616
      %v1618 = vpop.f32.mrf.mxu0
      %v1619 = vadd.f32 %v1479, %v1618
      %1620 = vmatmul.bf16.gmra.mxu0 %v1558
      %v1621 = vpop.f32.mrf.mxu0
      %v1622 = vadd.f32 %v1482, %v1621
      %v1623 = vpop.f32.mrf.mxu0
      %v1624 = vadd.f32 %v1484, %v1623
      %1625 = vmatmul.bf16.gmra.mxu0 %v1561
      %v1626 = vpop.f32.mrf.mxu0
      %v1627 = vadd.f32 %v1487, %v1626
      %v1628 = vpop.f32.mrf.mxu0
      %v1629 = vadd.f32 %v1489, %v1628
      %1630 = vmatmul.bf16.gmra.mxu0 %v1564
      %v1631 = vpop.f32.mrf.mxu0
      %v1632 = vadd.f32 %v1492, %v1631
      %v1633 = vpop.f32.mrf.mxu0
      %v1634 = vadd.f32 %v1494, %v1633
      %1635 = vmatmul.bf16.gmra.mxu0 %v1567
      %v1636 = vpop.f32.mrf.mxu0
      %v1637 = vadd.f32 %v1497, %v1636
      %v1638 = vpop.f32.mrf.mxu0
      %v1639 = vadd.f32 %v1499, %v1638
      %1640 = vmatmul.bf16.gmra.mxu0 %v1570
      %v1641 = vpop.f32.mrf.mxu0
      %v1642 = vadd.f32 %v1502, %v1641
      %v1643 = vpop.f32.mrf.mxu0
      %v1644 = vadd.f32 %v1504, %v1643
      %1645 = vmatmul.bf16.gmra.mxu0 %v1573
      %v1646 = vpop.f32.mrf.mxu0
      %v1647 = vadd.f32 %v1507, %v1646
      %v1648 = vpop.f32.mrf.mxu0
      %v1649 = vadd.f32 %v1509, %v1648
      %1650 = vmatmul.bf16.gmra.mxu0 %v1576
      %v1651 = vpop.f32.mrf.mxu0
      %v1652 = vadd.f32 %v1512, %v1651
      %v1653 = vpop.f32.mrf.mxu0
      %v1654 = vadd.f32 %v1514, %v1653
      %1655 = vmatmul.bf16.gmra.mxu0 %v1579
      %v1656 = vpop.f32.mrf.mxu0
      %v1657 = vadd.f32 %v1517, %v1656
      %v1658 = vpop.f32.mrf.mxu0
      %v1659 = vadd.f32 %v1519, %v1658
      %1660 = vmatmul.bf16.gmra.mxu0 %v1582
      %v1661 = vpop.f32.mrf.mxu0
      %v1662 = vadd.f32 %v1522, %v1661
      %v1663 = vpop.f32.mrf.mxu0
      %v1664 = vadd.f32 %v1524, %v1663
      %1665 = vmatmul.bf16.gmra.mxu0 %v1585
      %v1666 = vpop.f32.mrf.mxu0
      %v1667 = vadd.f32 %v1527, %v1666
      %v1668 = vpop.f32.mrf.mxu0
      %v1669 = vadd.f32 %v1529, %v1668
      %1670 = vmatmul.bf16.gmra.mxu0 %v1588
      %v1671 = vpop.f32.mrf.mxu0
      %v1672 = vadd.f32 %v1532, %v1671
      %v1673 = vpop.f32.mrf.mxu0
      %v1674 = vadd.f32 %v1534, %v1673
      %1675 = vmatmul.bf16.gmra.mxu0 %v1591
      %v1676 = vpop.f32.mrf.mxu0
      %v1677 = vadd.f32 %v1537, %v1676
      %v1678 = vpop.f32.mrf.mxu0
      %v1679 = vadd.f32 %v1539, %v1678
      %1680 = vmatmul.bf16.gmra.mxu0 %v1594
      %v1681 = vpop.f32.mrf.mxu0
      %v1682 = vadd.f32 %v1542, %v1681
      %v1683 = vpop.f32.mrf.mxu0
      %v1684 = vadd.f32 %v1544, %v1683
      %1685 = vmatmul.bf16.gmra.mxu0 %v1597
      %v1686 = vpop.f32.mrf.mxu0
      %v1687 = vadd.f32 %v1547, %v1686
      %v1688 = vpop.f32.mrf.mxu0
      %v1689 = vadd.f32 %v1549, %v1688
      %1690 = vdwg.mxu0
      %v1691 = vpack.c.bf16 %v1313, %v1313
      %v1692 = vpack.c.bf16 %v1314, %v1314
      %v1693 = vpack.c.bf16 %v1315, %v1315
      %v1694 = vpack.c.bf16 %v1316, %v1316
      %v1695 = vpack.c.bf16 %v1317, %v1317
      %v1696 = vpack.c.bf16 %v1318, %v1318
      %v1697 = vpack.c.bf16 %v1319, %v1319
      %v1698 = vpack.c.bf16 %v1320, %v1320
      %v1699 = vpack.c.bf16 %v1321, %v1321
      %v1700 = vpack.c.bf16 %v1322, %v1322
      %v1701 = vpack.c.bf16 %v1323, %v1323
      %v1702 = vpack.c.bf16 %v1324, %v1324
      %v1703 = vpack.c.bf16 %v1325, %v1325
      %v1704 = vpack.c.bf16 %v1326, %v1326
      %v1705 = vpack.c.bf16 %v1327, %v1327
      %v1706 = vpack.c.bf16 %v1328, %v1328
      %v1707 = vpack.c.bf16 %v1329, %v1329
      %v1708 = vpack.c.bf16 %v1330, %v1330
      %v1709 = vpack.c.bf16 %v1331, %v1331
      %v1710 = vpack.c.bf16 %v1332, %v1332
      %v1711 = vpack.c.bf16 %v1333, %v1333
      %v1712 = vpack.c.bf16 %v1334, %v1334
      %v1713 = vpack.c.bf16 %v1335, %v1335
      %v1714 = vpack.c.bf16 %v1336, %v1336
      %v1715 = vpack.c.bf16 %v1337, %v1337
      %v1716 = vpack.c.bf16 %v1338, %v1338
      %v1717 = vpack.c.bf16 %v1339, %v1339
      %v1718 = vpack.c.bf16 %v1340, %v1340
      %v1719 = vpack.c.bf16 %v1341, %v1341
      %v1720 = vpack.c.bf16 %v1342, %v1342
      %v1721 = vpack.c.bf16 %v1343, %v1343
      %v1722 = vpack.c.bf16 %v1344, %v1344
      %vm1723 = vsmask.f32 4368
      %vm1724 = vmor %vm398, %vm1723
      %v1726 = vshrl.u32 %v1691, 16
      %v1728 = vrot.slane %v1726, 7
      %v1729 = vshll.u32 %v1691, 16
      %v1731 = vor.u32 %v1728, %v1729
      %v1732 = vrot.slane %v1728, 4
      %v1734 = vshrl.u32 %v1692, 16
      %v1736 = vrot.slane %v1734, 7
      %v1737 = vshll.u32 %v1692, 16
      %v1739 = vor.u32 %v1736, %v1737
      %v1740 = vsel %vm1724, %v1732, %v1739
      %v1741 = vrot.slane %v1736, 4
      %v1743 = vshrl.u32 %v1693, 16
      %v1745 = vrot.slane %v1743, 7
      %v1746 = vshll.u32 %v1693, 16
      %v1748 = vor.u32 %v1745, %v1746
      %v1749 = vrot.slane %v1745, 4
      %v1751 = vshrl.u32 %v1694, 16
      %v1753 = vrot.slane %v1751, 7
      %v1754 = vshll.u32 %v1694, 16
      %v1756 = vor.u32 %v1753, %v1754
      %v1757 = vsel %vm1724, %v1749, %v1756
      %v1758 = vrot.slane %v1753, 4
      %v1760 = vshrl.u32 %v1695, 16
      %v1762 = vrot.slane %v1760, 7
      %v1763 = vshll.u32 %v1695, 16
      %v1765 = vor.u32 %v1762, %v1763
      %v1766 = vrot.slane %v1762, 4
      %v1768 = vshrl.u32 %v1696, 16
      %v1770 = vrot.slane %v1768, 7
      %v1771 = vshll.u32 %v1696, 16
      %v1773 = vor.u32 %v1770, %v1771
      %v1774 = vsel %vm1724, %v1766, %v1773
      %v1775 = vrot.slane %v1770, 4
      %v1777 = vshrl.u32 %v1697, 16
      %v1779 = vrot.slane %v1777, 7
      %v1780 = vshll.u32 %v1697, 16
      %v1782 = vor.u32 %v1779, %v1780
      %v1783 = vrot.slane %v1779, 4
      %v1785 = vshrl.u32 %v1698, 16
      %v1787 = vrot.slane %v1785, 7
      %v1788 = vshll.u32 %v1698, 16
      %v1790 = vor.u32 %v1787, %v1788
      %v1791 = vsel %vm1724, %v1783, %v1790
      %v1792 = vrot.slane %v1787, 4
      %v1794 = vshrl.u32 %v1699, 16
      %v1796 = vrot.slane %v1794, 7
      %v1797 = vshll.u32 %v1699, 16
      %v1799 = vor.u32 %v1796, %v1797
      %v1800 = vrot.slane %v1796, 4
      %v1802 = vshrl.u32 %v1700, 16
      %v1804 = vrot.slane %v1802, 7
      %v1805 = vshll.u32 %v1700, 16
      %v1807 = vor.u32 %v1804, %v1805
      %v1808 = vsel %vm1724, %v1800, %v1807
      %v1809 = vrot.slane %v1804, 4
      %v1811 = vshrl.u32 %v1701, 16
      %v1813 = vrot.slane %v1811, 7
      %v1814 = vshll.u32 %v1701, 16
      %v1816 = vor.u32 %v1813, %v1814
      %v1817 = vrot.slane %v1813, 4
      %v1819 = vshrl.u32 %v1702, 16
      %v1821 = vrot.slane %v1819, 7
      %v1822 = vshll.u32 %v1702, 16
      %v1824 = vor.u32 %v1821, %v1822
      %v1825 = vsel %vm1724, %v1817, %v1824
      %v1826 = vrot.slane %v1821, 4
      %v1828 = vshrl.u32 %v1703, 16
      %v1830 = vrot.slane %v1828, 7
      %v1831 = vshll.u32 %v1703, 16
      %v1833 = vor.u32 %v1830, %v1831
      %v1834 = vrot.slane %v1830, 4
      %v1836 = vshrl.u32 %v1704, 16
      %v1838 = vrot.slane %v1836, 7
      %v1839 = vshll.u32 %v1704, 16
      %v1841 = vor.u32 %v1838, %v1839
      %v1842 = vsel %vm1724, %v1834, %v1841
      %v1843 = vrot.slane %v1838, 4
      %v1845 = vshrl.u32 %v1705, 16
      %v1847 = vrot.slane %v1845, 7
      %v1848 = vshll.u32 %v1705, 16
      %v1850 = vor.u32 %v1847, %v1848
      %v1851 = vrot.slane %v1847, 4
      %v1853 = vshrl.u32 %v1706, 16
      %v1855 = vrot.slane %v1853, 7
      %v1856 = vshll.u32 %v1706, 16
      %v1858 = vor.u32 %v1855, %v1856
      %v1859 = vsel %vm1724, %v1851, %v1858
      %v1860 = vrot.slane %v1855, 4
      %v1862 = vshrl.u32 %v1707, 16
      %v1864 = vrot.slane %v1862, 7
      %v1865 = vshll.u32 %v1707, 16
      %v1867 = vor.u32 %v1864, %v1865
      %v1868 = vrot.slane %v1864, 4
      %v1870 = vshrl.u32 %v1708, 16
      %v1872 = vrot.slane %v1870, 7
      %v1873 = vshll.u32 %v1708, 16
      %v1875 = vor.u32 %v1872, %v1873
      %v1876 = vsel %vm1724, %v1868, %v1875
      %v1877 = vrot.slane %v1872, 4
      %v1879 = vshrl.u32 %v1709, 16
      %v1881 = vrot.slane %v1879, 7
      %v1882 = vshll.u32 %v1709, 16
      %v1884 = vor.u32 %v1881, %v1882
      %v1885 = vrot.slane %v1881, 4
      %v1887 = vshrl.u32 %v1710, 16
      %v1889 = vrot.slane %v1887, 7
      %v1890 = vshll.u32 %v1710, 16
      %v1892 = vor.u32 %v1889, %v1890
      %v1893 = vsel %vm1724, %v1885, %v1892
      %v1894 = vrot.slane %v1889, 4
      %v1896 = vshrl.u32 %v1711, 16
      %v1898 = vrot.slane %v1896, 7
      %v1899 = vshll.u32 %v1711, 16
      %v1901 = vor.u32 %v1898, %v1899
      %v1902 = vrot.slane %v1898, 4
      %v1904 = vshrl.u32 %v1712, 16
      %v1906 = vrot.slane %v1904, 7
      %v1907 = vshll.u32 %v1712, 16
      %v1909 = vor.u32 %v1906, %v1907
      %v1910 = vsel %vm1724, %v1902, %v1909
      %v1911 = vrot.slane %v1906, 4
      %v1913 = vshrl.u32 %v1713, 16
      %v1915 = vrot.slane %v1913, 7
      %v1916 = vshll.u32 %v1713, 16
      %v1918 = vor.u32 %v1915, %v1916
      %v1919 = vrot.slane %v1915, 4
      %v1921 = vshrl.u32 %v1714, 16
      %v1923 = vrot.slane %v1921, 7
      %v1924 = vshll.u32 %v1714, 16
      %v1926 = vor.u32 %v1923, %v1924
      %v1927 = vsel %vm1724, %v1919, %v1926
      %v1928 = vrot.slane %v1923, 4
      %v1930 = vshrl.u32 %v1715, 16
      %v1932 = vrot.slane %v1930, 7
      %v1933 = vshll.u32 %v1715, 16
      %v1935 = vor.u32 %v1932, %v1933
      %v1936 = vrot.slane %v1932, 4
      %v1938 = vshrl.u32 %v1716, 16
      %v1940 = vrot.slane %v1938, 7
      %v1941 = vshll.u32 %v1716, 16
      %v1943 = vor.u32 %v1940, %v1941
      %v1944 = vsel %vm1724, %v1936, %v1943
      %v1945 = vrot.slane %v1940, 4
      %v1947 = vshrl.u32 %v1717, 16
      %v1949 = vrot.slane %v1947, 7
      %v1950 = vshll.u32 %v1717, 16
      %v1952 = vor.u32 %v1949, %v1950
      %v1953 = vrot.slane %v1949, 4
      %v1955 = vshrl.u32 %v1718, 16
      %v1957 = vrot.slane %v1955, 7
      %v1958 = vshll.u32 %v1718, 16
      %v1960 = vor.u32 %v1957, %v1958
      %v1961 = vsel %vm1724, %v1953, %v1960
      %v1962 = vrot.slane %v1957, 4
      %v1964 = vshrl.u32 %v1719, 16
      %v1966 = vrot.slane %v1964, 7
      %v1967 = vshll.u32 %v1719, 16
      %v1969 = vor.u32 %v1966, %v1967
      %v1970 = vrot.slane %v1966, 4
      %v1972 = vshrl.u32 %v1720, 16
      %v1974 = vrot.slane %v1972, 7
      %v1975 = vshll.u32 %v1720, 16
      %v1977 = vor.u32 %v1974, %v1975
      %v1978 = vsel %vm1724, %v1970, %v1977
      %v1979 = vrot.slane %v1974, 4
      %v1981 = vshrl.u32 %v1721, 16
      %v1983 = vrot.slane %v1981, 7
      %v1984 = vshll.u32 %v1721, 16
      %v1986 = vor.u32 %v1983, %v1984
      %v1987 = vrot.slane %v1983, 4
      %v1989 = vshrl.u32 %v1722, 16
      %v1991 = vrot.slane %v1989, 7
      %v1992 = vshll.u32 %v1722, 16
      %v1994 = vor.u32 %v1991, %v1992
      %v1995 = vsel %vm1724, %v1987, %v1994
      %v1996 = vrot.slane %v1991, 4
      %1997 = vrot.lane.b32.xlu0 %v1731, 124
      %v1998 = vpop.permute.xlu0 %1997
      %1999 = vrot.lane.b32.xlu0 %v1740, 124
      %v2000 = vpop.permute.xlu0 %1999
      %2001 = vrot.lane.b32.xlu0 %v1741, 124
      %v2002 = vpop.permute.xlu0 %2001
      %2003 = vrot.lane.b32.xlu0 %v1748, 124
      %v2004 = vpop.permute.xlu0 %2003
      %2005 = vrot.lane.b32.xlu0 %v1757, 124
      %v2006 = vpop.permute.xlu0 %2005
      %2007 = vrot.lane.b32.xlu0 %v1758, 124
      %v2008 = vpop.permute.xlu0 %2007
      %2009 = vrot.lane.b32.xlu0 %v1765, 124
      %v2010 = vpop.permute.xlu0 %2009
      %2011 = vrot.lane.b32.xlu0 %v1774, 124
      %v2012 = vpop.permute.xlu0 %2011
      %2013 = vrot.lane.b32.xlu0 %v1775, 124
      %v2014 = vpop.permute.xlu0 %2013
      %2015 = vrot.lane.b32.xlu0 %v1782, 124
      %v2016 = vpop.permute.xlu0 %2015
      %2017 = vrot.lane.b32.xlu0 %v1791, 124
      %v2018 = vpop.permute.xlu0 %2017
      %2019 = vrot.lane.b32.xlu0 %v1792, 124
      %v2020 = vpop.permute.xlu0 %2019
      %2021 = vrot.lane.b32.xlu0 %v1799, 124
      %v2022 = vpop.permute.xlu0 %2021
      %2023 = vrot.lane.b32.xlu0 %v1808, 124
      %v2024 = vpop.permute.xlu0 %2023
      %2025 = vrot.lane.b32.xlu0 %v1809, 124
      %v2026 = vpop.permute.xlu0 %2025
      %2027 = vrot.lane.b32.xlu0 %v1816, 124
      %v2028 = vpop.permute.xlu0 %2027
      %2029 = vrot.lane.b32.xlu0 %v1825, 124
      %v2030 = vpop.permute.xlu0 %2029
      %2031 = vrot.lane.b32.xlu0 %v1826, 124
      %v2032 = vpop.permute.xlu0 %2031
      %2033 = vrot.lane.b32.xlu0 %v1833, 124
      %v2034 = vpop.permute.xlu0 %2033
      %2035 = vrot.lane.b32.xlu0 %v1842, 124
      %v2036 = vpop.permute.xlu0 %2035
      %2037 = vrot.lane.b32.xlu0 %v1843, 124
      %v2038 = vpop.permute.xlu0 %2037
      %2039 = vrot.lane.b32.xlu0 %v1850, 124
      %v2040 = vpop.permute.xlu0 %2039
      %2041 = vrot.lane.b32.xlu0 %v1859, 124
      %v2042 = vpop.permute.xlu0 %2041
      %2043 = vrot.lane.b32.xlu0 %v1860, 124
      %v2044 = vpop.permute.xlu0 %2043
      %2045 = vrot.lane.b32.xlu0 %v1867, 124
      %v2046 = vpop.permute.xlu0 %2045
      %2047 = vrot.lane.b32.xlu0 %v1876, 124
      %v2048 = vpop.permute.xlu0 %2047
      %2049 = vrot.lane.b32.xlu0 %v1877, 124
      %v2050 = vpop.permute.xlu0 %2049
      %2051 = vrot.lane.b32.xlu0 %v1884, 124
      %v2052 = vpop.permute.xlu0 %2051
      %2053 = vrot.lane.b32.xlu0 %v1893, 124
      %v2054 = vpop.permute.xlu0 %2053
      %2055 = vrot.lane.b32.xlu0 %v1894, 124
      %v2056 = vpop.permute.xlu0 %2055
      %2057 = vrot.lane.b32.xlu0 %v1901, 124
      %v2058 = vpop.permute.xlu0 %2057
      %2059 = vrot.lane.b32.xlu0 %v1910, 124
      %v2060 = vpop.permute.xlu0 %2059
      %2061 = vrot.lane.b32.xlu0 %v1911, 124
      %v2062 = vpop.permute.xlu0 %2061
      %2063 = vrot.lane.b32.xlu0 %v1918, 124
      %v2064 = vpop.permute.xlu0 %2063
      %2065 = vrot.lane.b32.xlu0 %v1927, 124
      %v2066 = vpop.permute.xlu0 %2065
      %2067 = vrot.lane.b32.xlu0 %v1928, 124
      %v2068 = vpop.permute.xlu0 %2067
      %2069 = vrot.lane.b32.xlu0 %v1935, 124
      %v2070 = vpop.permute.xlu0 %2069
      %2071 = vrot.lane.b32.xlu0 %v1944, 124
      %v2072 = vpop.permute.xlu0 %2071
      %2073 = vrot.lane.b32.xlu0 %v1945, 124
      %v2074 = vpop.permute.xlu0 %2073
      %2075 = vrot.lane.b32.xlu0 %v1952, 124
      %v2076 = vpop.permute.xlu0 %2075
      %2077 = vrot.lane.b32.xlu0 %v1961, 124
      %v2078 = vpop.permute.xlu0 %2077
      %2079 = vrot.lane.b32.xlu0 %v1962, 124
      %v2080 = vpop.permute.xlu0 %2079
      %2081 = vrot.lane.b32.xlu0 %v1969, 124
      %v2082 = vpop.permute.xlu0 %2081
      %2083 = vrot.lane.b32.xlu0 %v1978, 124
      %v2084 = vpop.permute.xlu0 %2083
      %2085 = vrot.lane.b32.xlu0 %v1979, 124
      %v2086 = vpop.permute.xlu0 %2085
      %2087 = vrot.lane.b32.xlu0 %v1986, 124
      %v2088 = vpop.permute.xlu0 %2087
      %2089 = vrot.lane.b32.xlu0 %v1995, 124
      %v2090 = vpop.permute.xlu0 %2089
      %2091 = vrot.lane.b32.xlu0 %v1996, 124
      %v2092 = vpop.permute.xlu0 %2091
      %s2141 = scalar_lea.vmem [#allocation2], 12
      %vm2142 = vcmask 27648
      %vm2143 = vmand %vm2142, %vm454
      %v2144 = vld [vmem:[%s2141] sm:$0xf]
      %v2145 = vsel %vm2143, %v1998, %v2144
      %2146 = vst [vmem:[%s2141] sm:$0xf] %v2145
      %2147 = vst.msk [vmem:[%s2141 + $0x4] sm:$0xf] %vm388, %v2000
      %v2148 = vld [vmem:[%s2141 + $0x8] sm:$0x1]
      %v2149 = vsel %vm399, %v2002, %v2148
      %2150 = vst [vmem:[%s2141 + $0x8] sm:$0x1] %v2149
      %v2151 = vld [vmem:[%s2141 + $0xc] sm:$0xf]
      %v2152 = vsel %vm2143, %v2004, %v2151
      %2153 = vst [vmem:[%s2141 + $0xc] sm:$0xf] %v2152
      %2154 = vst.msk [vmem:[%s2141 + $0x10] sm:$0xf] %vm388, %v2006
      %v2155 = vld [vmem:[%s2141 + $0x14] sm:$0x1]
      %v2156 = vsel %vm399, %v2008, %v2155
      %2157 = vst [vmem:[%s2141 + $0x14] sm:$0x1] %v2156
      %v2158 = vld [vmem:[%s2141 + $0x18] sm:$0xf]
      %v2159 = vsel %vm2143, %v2010, %v2158
      %2160 = vst [vmem:[%s2141 + $0x18] sm:$0xf] %v2159
      %2161 = vst.msk [vmem:[%s2141 + $0x1c] sm:$0xf] %vm388, %v2012
      %v2162 = vld [vmem:[%s2141 + $0x20] sm:$0x1]
      %v2163 = vsel %vm399, %v2014, %v2162
      %2164 = vst [vmem:[%s2141 + $0x20] sm:$0x1] %v2163
      %v2165 = vld [vmem:[%s2141 + $0x24] sm:$0xf]
      %v2166 = vsel %vm2143, %v2016, %v2165
      %2167 = vst [vmem:[%s2141 + $0x24] sm:$0xf] %v2166
      %2168 = vst.msk [vmem:[%s2141 + $0x28] sm:$0xf] %vm388, %v2018
      %v2169 = vld [vmem:[%s2141 + $0x2c] sm:$0x1]
      %v2170 = vsel %vm399, %v2020, %v2169
      %2171 = vst [vmem:[%s2141 + $0x2c] sm:$0x1] %v2170
      %v2172 = vld [vmem:[%s2141 + $0x30] sm:$0xf]
      %v2173 = vsel %vm2143, %v2022, %v2172
      %2174 = vst [vmem:[%s2141 + $0x30] sm:$0xf] %v2173
      %2175 = vst.msk [vmem:[%s2141 + $0x34] sm:$0xf] %vm388, %v2024
      %v2176 = vld [vmem:[%s2141 + $0x38] sm:$0x1]
      %v2177 = vsel %vm399, %v2026, %v2176
      %2178 = vst [vmem:[%s2141 + $0x38] sm:$0x1] %v2177
      %v2179 = vld [vmem:[%s2141 + $0x3c] sm:$0xf]
      %v2180 = vsel %vm2143, %v2028, %v2179
      %2181 = vst [vmem:[%s2141 + $0x3c] sm:$0xf] %v2180
      %2182 = vst.msk [vmem:[%s2141 + $0x40] sm:$0xf] %vm388, %v2030
      %v2183 = vld [vmem:[%s2141 + $0x44] sm:$0x1]
      %v2184 = vsel %vm399, %v2032, %v2183
      %2185 = vst [vmem:[%s2141 + $0x44] sm:$0x1] %v2184
      %v2186 = vld [vmem:[%s2141 + $0x48] sm:$0xf]
      %v2187 = vsel %vm2143, %v2034, %v2186
      %2188 = vst [vmem:[%s2141 + $0x48] sm:$0xf] %v2187
      %2189 = vst.msk [vmem:[%s2141 + $0x4c] sm:$0xf] %vm388, %v2036
      %v2190 = vld [vmem:[%s2141 + $0x50] sm:$0x1]
      %v2191 = vsel %vm399, %v2038, %v2190
      %2192 = vst [vmem:[%s2141 + $0x50] sm:$0x1] %v2191
      %v2193 = vld [vmem:[%s2141 + $0x54] sm:$0xf]
      %v2194 = vsel %vm2143, %v2040, %v2193
      %2195 = vst [vmem:[%s2141 + $0x54] sm:$0xf] %v2194
      %2196 = vst.msk [vmem:[%s2141 + $0x58] sm:$0xf] %vm388, %v2042
      %v2197 = vld [vmem:[%s2141 + $0x5c] sm:$0x1]
      %v2198 = vsel %vm399, %v2044, %v2197
      %2199 = vst [vmem:[%s2141 + $0x5c] sm:$0x1] %v2198
      %v2200 = vld [vmem:[%s2141 + $0x60] sm:$0xf]
      %v2201 = vsel %vm2143, %v2046, %v2200
      %2202 = vst [vmem:[%s2141 + $0x60] sm:$0xf] %v2201
      %2203 = vst.msk [vmem:[%s2141 + $0x64] sm:$0xf] %vm388, %v2048
      %v2204 = vld [vmem:[%s2141 + $0x68] sm:$0x1]
      %v2205 = vsel %vm399, %v2050, %v2204
      %2206 = vst [vmem:[%s2141 + $0x68] sm:$0x1] %v2205
      %v2207 = vld [vmem:[%s2141 + $0x6c] sm:$0xf]
      %v2208 = vsel %vm2143, %v2052, %v2207
      %2209 = vst [vmem:[%s2141 + $0x6c] sm:$0xf] %v2208
      %2210 = vst.msk [vmem:[%s2141 + $0x70] sm:$0xf] %vm388, %v2054
      %v2211 = vld [vmem:[%s2141 + $0x74] sm:$0x1]
      %v2212 = vsel %vm399, %v2056, %v2211
      %2213 = vst [vmem:[%s2141 + $0x74] sm:$0x1] %v2212
      %v2214 = vld [vmem:[%s2141 + $0x78] sm:$0xf]
      %v2215 = vsel %vm2143, %v2058, %v2214
      %2216 = vst [vmem:[%s2141 + $0x78] sm:$0xf] %v2215
      %2217 = vst.msk [vmem:[%s2141 + $0x7c] sm:$0xf] %vm388, %v2060
      %v2218 = vld [vmem:[%s2141 + $0x80] sm:$0x1]
      %v2219 = vsel %vm399, %v2062, %v2218
      %2220 = vst [vmem:[%s2141 + $0x80] sm:$0x1] %v2219
      %v2221 = vld [vmem:[%s2141 + $0x84] sm:$0xf]
      %v2222 = vsel %vm2143, %v2064, %v2221
      %2223 = vst [vmem:[%s2141 + $0x84] sm:$0xf] %v2222
      %2224 = vst.msk [vmem:[%s2141 + $0x88] sm:$0xf] %vm388, %v2066
      %v2225 = vld [vmem:[%s2141 + $0x8c] sm:$0x1]
      %v2226 = vsel %vm399, %v2068, %v2225
      %2227 = vst [vmem:[%s2141 + $0x8c] sm:$0x1] %v2226
      %v2228 = vld [vmem:[%s2141 + $0x90] sm:$0xf]
      %v2229 = vsel %vm2143, %v2070, %v2228
      %2230 = vst [vmem:[%s2141 + $0x90] sm:$0xf] %v2229
      %2231 = vst.msk [vmem:[%s2141 + $0x94] sm:$0xf] %vm388, %v2072
      %v2232 = vld [vmem:[%s2141 + $0x98] sm:$0x1]
      %v2233 = vsel %vm399, %v2074, %v2232
      %2234 = vst [vmem:[%s2141 + $0x98] sm:$0x1] %v2233
      %v2235 = vld [vmem:[%s2141 + $0x9c] sm:$0xf]
      %v2236 = vsel %vm2143, %v2076, %v2235
      %2237 = vst [vmem:[%s2141 + $0x9c] sm:$0xf] %v2236
      %2238 = vst.msk [vmem:[%s2141 + $0xa0] sm:$0xf] %vm388, %v2078
      %v2239 = vld [vmem:[%s2141 + $0xa4] sm:$0x1]
      %v2240 = vsel %vm399, %v2080, %v2239
      %2241 = vst [vmem:[%s2141 + $0xa4] sm:$0x1] %v2240
      %v2242 = vld [vmem:[%s2141 + $0xa8] sm:$0xf]
      %v2243 = vsel %vm2143, %v2082, %v2242
      %2244 = vst [vmem:[%s2141 + $0xa8] sm:$0xf] %v2243
      %2245 = vst.msk [vmem:[%s2141 + $0xac] sm:$0xf] %vm388, %v2084
      %v2246 = vld [vmem:[%s2141 + $0xb0] sm:$0x1]
      %v2247 = vsel %vm399, %v2086, %v2246
      %2248 = vst [vmem:[%s2141 + $0xb0] sm:$0x1] %v2247
      %v2249 = vld [vmem:[%s2141 + $0xb4] sm:$0xf]
      %v2250 = vsel %vm2143, %v2088, %v2249
      %2251 = vst [vmem:[%s2141 + $0xb4] sm:$0xf] %v2250
      %2252 = vst.msk [vmem:[%s2141 + $0xb8] sm:$0xf] %vm388, %v2090
      %v2253 = vld [vmem:[%s2141 + $0xbc] sm:$0x1]
      %v2254 = vsel %vm399, %v2092, %v2253
      %2255 = vst [vmem:[%s2141 + $0xbc] sm:$0x1] %v2254
      %v2256 = vld [vmem:[#allocation2] sm:$0xf]
      %v2257 = vld [vmem:[#allocation2 + $0x4] sm:$0xf]
      %v2258 = vld [vmem:[#allocation2 + $0xc] sm:$0xf]
      %v2259 = vld [vmem:[#allocation2 + $0x10] sm:$0xf]
      %v2260 = vld [vmem:[#allocation2 + $0x18] sm:$0xf]
      %v2261 = vld [vmem:[#allocation2 + $0x1c] sm:$0xf]
      %v2262 = vld [vmem:[#allocation2 + $0x24] sm:$0xf]
      %v2263 = vld [vmem:[#allocation2 + $0x28] sm:$0xf]
      %v2264 = vld [vmem:[#allocation2 + $0x30] sm:$0xf]
      %v2265 = vld [vmem:[#allocation2 + $0x34] sm:$0xf]
      %v2266 = vld [vmem:[#allocation2 + $0x3c] sm:$0xf]
      %v2267 = vld [vmem:[#allocation2 + $0x40] sm:$0xf]
      %v2268 = vld [vmem:[#allocation2 + $0x48] sm:$0xf]
      %v2269 = vld [vmem:[#allocation2 + $0x4c] sm:$0xf]
      %v2270 = vld [vmem:[#allocation2 + $0x54] sm:$0xf]
      %v2271 = vld [vmem:[#allocation2 + $0x58] sm:$0xf]
      %v2272 = vld [vmem:[#allocation2 + $0x60] sm:$0xf]
      %v2273 = vld [vmem:[#allocation2 + $0x64] sm:$0xf]
      %v2274 = vld [vmem:[#allocation2 + $0x6c] sm:$0xf]
      %v2275 = vld [vmem:[#allocation2 + $0x70] sm:$0xf]
      %v2276 = vld [vmem:[#allocation2 + $0x78] sm:$0xf]
      %v2277 = vld [vmem:[#allocation2 + $0x7c] sm:$0xf]
      %v2278 = vld [vmem:[#allocation2 + $0x84] sm:$0xf]
      %v2279 = vld [vmem:[#allocation2 + $0x88] sm:$0xf]
      %v2280 = vld [vmem:[#allocation2 + $0x90] sm:$0xf]
      %v2281 = vld [vmem:[#allocation2 + $0x94] sm:$0xf]
      %v2282 = vld [vmem:[#allocation2 + $0x9c] sm:$0xf]
      %v2283 = vld [vmem:[#allocation2 + $0xa0] sm:$0xf]
      %v2284 = vld [vmem:[#allocation2 + $0xa8] sm:$0xf]
      %v2285 = vld [vmem:[#allocation2 + $0xac] sm:$0xf]
      %v2286 = vld [vmem:[#allocation2 + $0xb4] sm:$0xf]
      %v2287 = vld [vmem:[#allocation2 + $0xb8] sm:$0xf]
      %v2288 = vld [vmem:[#allocation2 + $0x8] sm:$0x1]
      %v2289 = vld [vmem:[#allocation2 + $0x14] sm:$0x1]
      %v2290 = vld [vmem:[#allocation2 + $0x20] sm:$0x1]
      %v2291 = vld [vmem:[#allocation2 + $0x2c] sm:$0x1]
      %v2292 = vld [vmem:[#allocation2 + $0x38] sm:$0x1]
      %v2293 = vld [vmem:[#allocation2 + $0x44] sm:$0x1]
      %v2294 = vld [vmem:[#allocation2 + $0x50] sm:$0x1]
      %v2295 = vld [vmem:[#allocation2 + $0x5c] sm:$0x1]
      %v2296 = vld [vmem:[#allocation2 + $0x68] sm:$0x1]
      %v2297 = vld [vmem:[#allocation2 + $0x74] sm:$0x1]
      %v2298 = vld [vmem:[#allocation2 + $0x80] sm:$0x1]
      %v2299 = vld [vmem:[#allocation2 + $0x8c] sm:$0x1]
      %v2300 = vld [vmem:[#allocation2 + $0x98] sm:$0x1]
      %v2301 = vld [vmem:[#allocation2 + $0xa4] sm:$0x1]
      %v2302 = vld [vmem:[#allocation2 + $0xb0] sm:$0x1]
      %v2303 = vld [vmem:[#allocation2 + $0xbc] sm:$0x1]
      %vm2304 = vsmask.f32 3328
      %vm2305 = vsmask.f32 7440
      %vm2306 = vmor %vm2304, %vm2305
      %v2308 = vshrl.u32 %v2256, 16
      %v2310 = vrot.slane %v2308, 4
      %v2311 = vshll.u32 %v2256, 16
      %v2313 = vrot.slane %v2311, 5
      %v2314 = vor.u32 %v2310, %v2313
      %v2315 = vrot.slane %v2314, 4
      %v2317 = vshll.u32 %v2257, 16
      %v2319 = vrot.slane %v2317, 5
      %v2320 = vsel %vm2306, %v2315, %v2319
      %v2321 = vshrl.u32 %v2257, 16
      %v2323 = vrot.slane %v2321, 4
      %v2324 = vor.u32 %v2323, %v2319
      %v2325 = vrot.slane %v2324, 4
      %v2327 = vshll.u32 %v2288, 16
      %v2329 = vrot.slane %v2327, 5
      %v2330 = vsel %vm2306, %v2325, %v2329
      %v2332 = vshrl.u32 %v2258, 16
      %v2334 = vrot.slane %v2332, 4
      %v2335 = vshll.u32 %v2258, 16
      %v2337 = vrot.slane %v2335, 5
      %v2338 = vor.u32 %v2334, %v2337
      %v2339 = vrot.slane %v2338, 4
      %v2341 = vshll.u32 %v2259, 16
      %v2343 = vrot.slane %v2341, 5
      %v2344 = vsel %vm2306, %v2339, %v2343
      %v2345 = vshrl.u32 %v2259, 16
      %v2347 = vrot.slane %v2345, 4
      %v2348 = vor.u32 %v2347, %v2343
      %v2349 = vrot.slane %v2348, 4
      %v2351 = vshll.u32 %v2289, 16
      %v2353 = vrot.slane %v2351, 5
      %v2354 = vsel %vm2306, %v2349, %v2353
      %v2356 = vshrl.u32 %v2260, 16
      %v2358 = vrot.slane %v2356, 4
      %v2359 = vshll.u32 %v2260, 16
      %v2361 = vrot.slane %v2359, 5
      %v2362 = vor.u32 %v2358, %v2361
      %v2363 = vrot.slane %v2362, 4
      %v2365 = vshll.u32 %v2261, 16
      %v2367 = vrot.slane %v2365, 5
      %v2368 = vsel %vm2306, %v2363, %v2367
      %v2369 = vshrl.u32 %v2261, 16
      %v2371 = vrot.slane %v2369, 4
      %v2372 = vor.u32 %v2371, %v2367
      %v2373 = vrot.slane %v2372, 4
      %v2375 = vshll.u32 %v2290, 16
      %v2377 = vrot.slane %v2375, 5
      %v2378 = vsel %vm2306, %v2373, %v2377
      %v2380 = vshrl.u32 %v2262, 16
      %v2382 = vrot.slane %v2380, 4
      %v2383 = vshll.u32 %v2262, 16
      %v2385 = vrot.slane %v2383, 5
      %v2386 = vor.u32 %v2382, %v2385
      %v2387 = vrot.slane %v2386, 4
      %v2389 = vshll.u32 %v2263, 16
      %v2391 = vrot.slane %v2389, 5
      %v2392 = vsel %vm2306, %v2387, %v2391
      %v2393 = vshrl.u32 %v2263, 16
      %v2395 = vrot.slane %v2393, 4
      %v2396 = vor.u32 %v2395, %v2391
      %v2397 = vrot.slane %v2396, 4
      %v2399 = vshll.u32 %v2291, 16
      %v2401 = vrot.slane %v2399, 5
      %v2402 = vsel %vm2306, %v2397, %v2401
      %v2404 = vshrl.u32 %v2264, 16
      %v2406 = vrot.slane %v2404, 4
      %v2407 = vshll.u32 %v2264, 16
      %v2409 = vrot.slane %v2407, 5
      %v2410 = vor.u32 %v2406, %v2409
      %v2411 = vrot.slane %v2410, 4
      %v2413 = vshll.u32 %v2265, 16
      %v2415 = vrot.slane %v2413, 5
      %v2416 = vsel %vm2306, %v2411, %v2415
      %v2417 = vshrl.u32 %v2265, 16
      %v2419 = vrot.slane %v2417, 4
      %v2420 = vor.u32 %v2419, %v2415
      %v2421 = vrot.slane %v2420, 4
      %v2423 = vshll.u32 %v2292, 16
      %v2425 = vrot.slane %v2423, 5
      %v2426 = vsel %vm2306, %v2421, %v2425
      %v2428 = vshrl.u32 %v2266, 16
      %v2430 = vrot.slane %v2428, 4
      %v2431 = vshll.u32 %v2266, 16
      %v2433 = vrot.slane %v2431, 5
      %v2434 = vor.u32 %v2430, %v2433
      %v2435 = vrot.slane %v2434, 4
      %v2437 = vshll.u32 %v2267, 16
      %v2439 = vrot.slane %v2437, 5
      %v2440 = vsel %vm2306, %v2435, %v2439
      %v2441 = vshrl.u32 %v2267, 16
      %v2443 = vrot.slane %v2441, 4
      %v2444 = vor.u32 %v2443, %v2439
      %v2445 = vrot.slane %v2444, 4
      %v2447 = vshll.u32 %v2293, 16
      %v2449 = vrot.slane %v2447, 5
      %v2450 = vsel %vm2306, %v2445, %v2449
      %v2452 = vshrl.u32 %v2268, 16
      %v2454 = vrot.slane %v2452, 4
      %v2455 = vshll.u32 %v2268, 16
      %v2457 = vrot.slane %v2455, 5
      %v2458 = vor.u32 %v2454, %v2457
      %v2459 = vrot.slane %v2458, 4
      %v2461 = vshll.u32 %v2269, 16
      %v2463 = vrot.slane %v2461, 5
      %v2464 = vsel %vm2306, %v2459, %v2463
      %v2465 = vshrl.u32 %v2269, 16
      %v2467 = vrot.slane %v2465, 4
      %v2468 = vor.u32 %v2467, %v2463
      %v2469 = vrot.slane %v2468, 4
      %v2471 = vshll.u32 %v2294, 16
      %v2473 = vrot.slane %v2471, 5
      %v2474 = vsel %vm2306, %v2469, %v2473
      %v2476 = vshrl.u32 %v2270, 16
      %v2478 = vrot.slane %v2476, 4
      %v2479 = vshll.u32 %v2270, 16
      %v2481 = vrot.slane %v2479, 5
      %v2482 = vor.u32 %v2478, %v2481
      %v2483 = vrot.slane %v2482, 4
      %v2485 = vshll.u32 %v2271, 16
      %v2487 = vrot.slane %v2485, 5
      %v2488 = vsel %vm2306, %v2483, %v2487
      %v2489 = vshrl.u32 %v2271, 16
      %v2491 = vrot.slane %v2489, 4
      %v2492 = vor.u32 %v2491, %v2487
      %v2493 = vrot.slane %v2492, 4
      %v2495 = vshll.u32 %v2295, 16
      %v2497 = vrot.slane %v2495, 5
      %v2498 = vsel %vm2306, %v2493, %v2497
      %v2500 = vshrl.u32 %v2272, 16
      %v2502 = vrot.slane %v2500, 4
      %v2503 = vshll.u32 %v2272, 16
      %v2505 = vrot.slane %v2503, 5
      %v2506 = vor.u32 %v2502, %v2505
      %v2507 = vrot.slane %v2506, 4
      %v2509 = vshll.u32 %v2273, 16
      %v2511 = vrot.slane %v2509, 5
      %v2512 = vsel %vm2306, %v2507, %v2511
      %v2513 = vshrl.u32 %v2273, 16
      %v2515 = vrot.slane %v2513, 4
      %v2516 = vor.u32 %v2515, %v2511
      %v2517 = vrot.slane %v2516, 4
      %v2519 = vshll.u32 %v2296, 16
      %v2521 = vrot.slane %v2519, 5
      %v2522 = vsel %vm2306, %v2517, %v2521
      %v2524 = vshrl.u32 %v2274, 16
      %v2526 = vrot.slane %v2524, 4
      %v2527 = vshll.u32 %v2274, 16
      %v2529 = vrot.slane %v2527, 5
      %v2530 = vor.u32 %v2526, %v2529
      %v2531 = vrot.slane %v2530, 4
      %v2533 = vshll.u32 %v2275, 16
      %v2535 = vrot.slane %v2533, 5
      %v2536 = vsel %vm2306, %v2531, %v2535
      %v2537 = vshrl.u32 %v2275, 16
      %v2539 = vrot.slane %v2537, 4
      %v2540 = vor.u32 %v2539, %v2535
      %v2541 = vrot.slane %v2540, 4
      %v2543 = vshll.u32 %v2297, 16
      %v2545 = vrot.slane %v2543, 5
      %v2546 = vsel %vm2306, %v2541, %v2545
      %v2548 = vshrl.u32 %v2276, 16
      %v2550 = vrot.slane %v2548, 4
      %v2551 = vshll.u32 %v2276, 16
      %v2553 = vrot.slane %v2551, 5
      %v2554 = vor.u32 %v2550, %v2553
      %v2555 = vrot.slane %v2554, 4
      %v2557 = vshll.u32 %v2277, 16
      %v2559 = vrot.slane %v2557, 5
      %v2560 = vsel %vm2306, %v2555, %v2559
      %v2561 = vshrl.u32 %v2277, 16
      %v2563 = vrot.slane %v2561, 4
      %v2564 = vor.u32 %v2563, %v2559
      %v2565 = vrot.slane %v2564, 4
      %v2567 = vshll.u32 %v2298, 16
      %v2569 = vrot.slane %v2567, 5
      %v2570 = vsel %vm2306, %v2565, %v2569
      %v2572 = vshrl.u32 %v2278, 16
      %v2574 = vrot.slane %v2572, 4
      %v2575 = vshll.u32 %v2278, 16
      %v2577 = vrot.slane %v2575, 5
      %v2578 = vor.u32 %v2574, %v2577
      %v2579 = vrot.slane %v2578, 4
      %v2581 = vshll.u32 %v2279, 16
      %v2583 = vrot.slane %v2581, 5
      %v2584 = vsel %vm2306, %v2579, %v2583
      %v2585 = vshrl.u32 %v2279, 16
      %v2587 = vrot.slane %v2585, 4
      %v2588 = vor.u32 %v2587, %v2583
      %v2589 = vrot.slane %v2588, 4
      %v2591 = vshll.u32 %v2299, 16
      %v2593 = vrot.slane %v2591, 5
      %v2594 = vsel %vm2306, %v2589, %v2593
      %v2596 = vshrl.u32 %v2280, 16
      %v2598 = vrot.slane %v2596, 4
      %v2599 = vshll.u32 %v2280, 16
      %v2601 = vrot.slane %v2599, 5
      %v2602 = vor.u32 %v2598, %v2601
      %v2603 = vrot.slane %v2602, 4
      %v2605 = vshll.u32 %v2281, 16
      %v2607 = vrot.slane %v2605, 5
      %v2608 = vsel %vm2306, %v2603, %v2607
      %v2609 = vshrl.u32 %v2281, 16
      %v2611 = vrot.slane %v2609, 4
      %v2612 = vor.u32 %v2611, %v2607
      %v2613 = vrot.slane %v2612, 4
      %v2615 = vshll.u32 %v2300, 16
      %v2617 = vrot.slane %v2615, 5
      %v2618 = vsel %vm2306, %v2613, %v2617
      %v2620 = vshrl.u32 %v2282, 16
      %v2622 = vrot.slane %v2620, 4
      %v2623 = vshll.u32 %v2282, 16
      %v2625 = vrot.slane %v2623, 5
      %v2626 = vor.u32 %v2622, %v2625
      %v2627 = vrot.slane %v2626, 4
      %v2629 = vshll.u32 %v2283, 16
      %v2631 = vrot.slane %v2629, 5
      %v2632 = vsel %vm2306, %v2627, %v2631
      %v2633 = vshrl.u32 %v2283, 16
      %v2635 = vrot.slane %v2633, 4
      %v2636 = vor.u32 %v2635, %v2631
      %v2637 = vrot.slane %v2636, 4
      %v2639 = vshll.u32 %v2301, 16
      %v2641 = vrot.slane %v2639, 5
      %v2642 = vsel %vm2306, %v2637, %v2641
      %v2644 = vshrl.u32 %v2284, 16
      %v2646 = vrot.slane %v2644, 4
      %v2647 = vshll.u32 %v2284, 16
      %v2649 = vrot.slane %v2647, 5
      %v2650 = vor.u32 %v2646, %v2649
      %v2651 = vrot.slane %v2650, 4
      %v2653 = vshll.u32 %v2285, 16
      %v2655 = vrot.slane %v2653, 5
      %v2656 = vsel %vm2306, %v2651, %v2655
      %v2657 = vshrl.u32 %v2285, 16
      %v2659 = vrot.slane %v2657, 4
      %v2660 = vor.u32 %v2659, %v2655
      %v2661 = vrot.slane %v2660, 4
      %v2663 = vshll.u32 %v2302, 16
      %v2665 = vrot.slane %v2663, 5
      %v2666 = vsel %vm2306, %v2661, %v2665
      %v2668 = vshrl.u32 %v2286, 16
      %v2670 = vrot.slane %v2668, 4
      %v2671 = vshll.u32 %v2286, 16
      %v2673 = vrot.slane %v2671, 5
      %v2674 = vor.u32 %v2670, %v2673
      %v2675 = vrot.slane %v2674, 4
      %v2677 = vshll.u32 %v2287, 16
      %v2679 = vrot.slane %v2677, 5
      %v2680 = vsel %vm2306, %v2675, %v2679
      %v2681 = vshrl.u32 %v2287, 16
      %v2683 = vrot.slane %v2681, 4
      %v2684 = vor.u32 %v2683, %v2679
      %v2685 = vrot.slane %v2684, 4
      %v2687 = vshll.u32 %v2303, 16
      %v2689 = vrot.slane %v2687, 5
      %v2690 = vsel %vm2306, %v2685, %v2689
      %v2691 = vld [vmem:[#allocation2] sm:$0xe]
      %v2692 = vld [vmem:[#allocation2 + $0xc] sm:$0xe]
      %v2693 = vld [vmem:[#allocation2 + $0x18] sm:$0xe]
      %v2694 = vld [vmem:[#allocation2 + $0x24] sm:$0xe]
      %v2695 = vld [vmem:[#allocation2 + $0x30] sm:$0xe]
      %v2696 = vld [vmem:[#allocation2 + $0x3c] sm:$0xe]
      %v2697 = vld [vmem:[#allocation2 + $0x48] sm:$0xe]
      %v2698 = vld [vmem:[#allocation2 + $0x54] sm:$0xe]
      %v2699 = vld [vmem:[#allocation2 + $0x60] sm:$0xe]
      %v2700 = vld [vmem:[#allocation2 + $0x6c] sm:$0xe]
      %v2701 = vld [vmem:[#allocation2 + $0x78] sm:$0xe]
      %v2702 = vld [vmem:[#allocation2 + $0x84] sm:$0xe]
      %v2703 = vld [vmem:[#allocation2 + $0x90] sm:$0xe]
      %v2704 = vld [vmem:[#allocation2 + $0x9c] sm:$0xe]
      %v2705 = vld [vmem:[#allocation2 + $0xa8] sm:$0xe]
      %v2706 = vld [vmem:[#allocation2 + $0xb4] sm:$0xe]
      %vm2755 = vcmask 1042432
      %vm2756 = vcmask 1046532
      %vm2757 = vmor %vm2755, %vm2756
      %v2758 = vrot.slane %v2691, 5
      %v2759 = vrot.slane %v2758, 4
      %v2760 = vrot.slane %v2257, 5
      %v2761 = vsel %vm2757, %v2759, %v2760
      %v2762 = vrot.slane %v2760, 4
      %v2763 = vrot.slane %v2288, 5
      %v2764 = vsel %vm2757, %v2762, %v2763
      %v2765 = vrot.slane %v2692, 5
      %v2766 = vrot.slane %v2765, 4
      %v2767 = vrot.slane %v2259, 5
      %v2768 = vsel %vm2757, %v2766, %v2767
      %v2769 = vrot.slane %v2767, 4
      %v2770 = vrot.slane %v2289, 5
      %v2771 = vsel %vm2757, %v2769, %v2770
      %v2772 = vrot.slane %v2693, 5
      %v2773 = vrot.slane %v2772, 4
      %v2774 = vrot.slane %v2261, 5
      %v2775 = vsel %vm2757, %v2773, %v2774
      %v2776 = vrot.slane %v2774, 4
      %v2777 = vrot.slane %v2290, 5
      %v2778 = vsel %vm2757, %v2776, %v2777
      %v2779 = vrot.slane %v2694, 5
      %v2780 = vrot.slane %v2779, 4
      %v2781 = vrot.slane %v2263, 5
      %v2782 = vsel %vm2757, %v2780, %v2781
      %v2783 = vrot.slane %v2781, 4
      %v2784 = vrot.slane %v2291, 5
      %v2785 = vsel %vm2757, %v2783, %v2784
      %v2786 = vrot.slane %v2695, 5
      %v2787 = vrot.slane %v2786, 4
      %v2788 = vrot.slane %v2265, 5
      %v2789 = vsel %vm2757, %v2787, %v2788
      %v2790 = vrot.slane %v2788, 4
      %v2791 = vrot.slane %v2292, 5
      %v2792 = vsel %vm2757, %v2790, %v2791
      %v2793 = vrot.slane %v2696, 5
      %v2794 = vrot.slane %v2793, 4
      %v2795 = vrot.slane %v2267, 5
      %v2796 = vsel %vm2757, %v2794, %v2795
      %v2797 = vrot.slane %v2795, 4
      %v2798 = vrot.slane %v2293, 5
      %v2799 = vsel %vm2757, %v2797, %v2798
      %v2800 = vrot.slane %v2697, 5
      %v2801 = vrot.slane %v2800, 4
      %v2802 = vrot.slane %v2269, 5
      %v2803 = vsel %vm2757, %v2801, %v2802
      %v2804 = vrot.slane %v2802, 4
      %v2805 = vrot.slane %v2294, 5
      %v2806 = vsel %vm2757, %v2804, %v2805
      %v2807 = vrot.slane %v2698, 5
      %v2808 = vrot.slane %v2807, 4
      %v2809 = vrot.slane %v2271, 5
      %v2810 = vsel %vm2757, %v2808, %v2809
      %v2811 = vrot.slane %v2809, 4
      %v2812 = vrot.slane %v2295, 5
      %v2813 = vsel %vm2757, %v2811, %v2812
      %v2814 = vrot.slane %v2699, 5
      %v2815 = vrot.slane %v2814, 4
      %v2816 = vrot.slane %v2273, 5
      %v2817 = vsel %vm2757, %v2815, %v2816
      %v2818 = vrot.slane %v2816, 4
      %v2819 = vrot.slane %v2296, 5
      %v2820 = vsel %vm2757, %v2818, %v2819
      %v2821 = vrot.slane %v2700, 5
      %v2822 = vrot.slane %v2821, 4
      %v2823 = vrot.slane %v2275, 5
      %v2824 = vsel %vm2757, %v2822, %v2823
      %v2825 = vrot.slane %v2823, 4
      %v2826 = vrot.slane %v2297, 5
      %v2827 = vsel %vm2757, %v2825, %v2826
      %v2828 = vrot.slane %v2701, 5
      %v2829 = vrot.slane %v2828, 4
      %v2830 = vrot.slane %v2277, 5
      %v2831 = vsel %vm2757, %v2829, %v2830
      %v2832 = vrot.slane %v2830, 4
      %v2833 = vrot.slane %v2298, 5
      %v2834 = vsel %vm2757, %v2832, %v2833
      %v2835 = vrot.slane %v2702, 5
      %v2836 = vrot.slane %v2835, 4
      %v2837 = vrot.slane %v2279, 5
      %v2838 = vsel %vm2757, %v2836, %v2837
      %v2839 = vrot.slane %v2837, 4
      %v2840 = vrot.slane %v2299, 5
      %v2841 = vsel %vm2757, %v2839, %v2840
      %v2842 = vrot.slane %v2703, 5
      %v2843 = vrot.slane %v2842, 4
      %v2844 = vrot.slane %v2281, 5
      %v2845 = vsel %vm2757, %v2843, %v2844
      %v2846 = vrot.slane %v2844, 4
      %v2847 = vrot.slane %v2300, 5
      %v2848 = vsel %vm2757, %v2846, %v2847
      %v2849 = vrot.slane %v2704, 5
      %v2850 = vrot.slane %v2849, 4
      %v2851 = vrot.slane %v2283, 5
      %v2852 = vsel %vm2757, %v2850, %v2851
      %v2853 = vrot.slane %v2851, 4
      %v2854 = vrot.slane %v2301, 5
      %v2855 = vsel %vm2757, %v2853, %v2854
      %v2856 = vrot.slane %v2705, 5
      %v2857 = vrot.slane %v2856, 4
      %v2858 = vrot.slane %v2285, 5
      %v2859 = vsel %vm2757, %v2857, %v2858
      %v2860 = vrot.slane %v2858, 4
      %v2861 = vrot.slane %v2302, 5
      %v2862 = vsel %vm2757, %v2860, %v2861
      %v2863 = vrot.slane %v2706, 5
      %v2864 = vrot.slane %v2863, 4
      %v2865 = vrot.slane %v2287, 5
      %v2866 = vsel %vm2757, %v2864, %v2865
      %v2867 = vrot.slane %v2865, 4
      %v2868 = vrot.slane %v2303, 5
      %v2869 = vsel %vm2757, %v2867, %v2868
      %v2870 = vld [vmem:[%s2141] sm:$0xf]
      %v2871 = vld [vmem:[%s2141 + $0x4] sm:$0xf]
      %v2872 = vld [vmem:[%s2141 + $0xc] sm:$0xf]
      %v2873 = vld [vmem:[%s2141 + $0x10] sm:$0xf]
      %v2874 = vld [vmem:[%s2141 + $0x18] sm:$0xf]
      %v2875 = vld [vmem:[%s2141 + $0x1c] sm:$0xf]
      %v2876 = vld [vmem:[%s2141 + $0x24] sm:$0xf]
      %v2877 = vld [vmem:[%s2141 + $0x28] sm:$0xf]
      %v2878 = vld [vmem:[%s2141 + $0x30] sm:$0xf]
      %v2879 = vld [vmem:[%s2141 + $0x34] sm:$0xf]
      %v2880 = vld [vmem:[%s2141 + $0x3c] sm:$0xf]
      %v2881 = vld [vmem:[%s2141 + $0x40] sm:$0xf]
      %v2882 = vld [vmem:[%s2141 + $0x48] sm:$0xf]
      %v2883 = vld [vmem:[%s2141 + $0x4c] sm:$0xf]
      %v2884 = vld [vmem:[%s2141 + $0x54] sm:$0xf]
      %v2885 = vld [vmem:[%s2141 + $0x58] sm:$0xf]
      %v2886 = vld [vmem:[%s2141 + $0x60] sm:$0xf]
      %v2887 = vld [vmem:[%s2141 + $0x64] sm:$0xf]
      %v2888 = vld [vmem:[%s2141 + $0x6c] sm:$0xf]
      %v2889 = vld [vmem:[%s2141 + $0x70] sm:$0xf]
      %v2890 = vld [vmem:[%s2141 + $0x78] sm:$0xf]
      %v2891 = vld [vmem:[%s2141 + $0x7c] sm:$0xf]
      %v2892 = vld [vmem:[%s2141 + $0x84] sm:$0xf]
      %v2893 = vld [vmem:[%s2141 + $0x88] sm:$0xf]
      %v2894 = vld [vmem:[%s2141 + $0x90] sm:$0xf]
      %v2895 = vld [vmem:[%s2141 + $0x94] sm:$0xf]
      %v2896 = vld [vmem:[%s2141 + $0x9c] sm:$0xf]
      %v2897 = vld [vmem:[%s2141 + $0xa0] sm:$0xf]
      %v2898 = vld [vmem:[%s2141 + $0xa8] sm:$0xf]
      %v2899 = vld [vmem:[%s2141 + $0xac] sm:$0xf]
      %v2900 = vld [vmem:[%s2141 + $0xb4] sm:$0xf]
      %v2901 = vld [vmem:[%s2141 + $0xb8] sm:$0xf]
      %v2902 = vld [vmem:[%s2141 + $0x8] sm:$0x1]
      %v2903 = vld [vmem:[%s2141 + $0x14] sm:$0x1]
      %v2904 = vld [vmem:[%s2141 + $0x20] sm:$0x1]
      %v2905 = vld [vmem:[%s2141 + $0x2c] sm:$0x1]
      %v2906 = vld [vmem:[%s2141 + $0x38] sm:$0x1]
      %v2907 = vld [vmem:[%s2141 + $0x44] sm:$0x1]
      %v2908 = vld [vmem:[%s2141 + $0x50] sm:$0x1]
      %v2909 = vld [vmem:[%s2141 + $0x5c] sm:$0x1]
      %v2910 = vld [vmem:[%s2141 + $0x68] sm:$0x1]
      %v2911 = vld [vmem:[%s2141 + $0x74] sm:$0x1]
      %v2912 = vld [vmem:[%s2141 + $0x80] sm:$0x1]
      %v2913 = vld [vmem:[%s2141 + $0x8c] sm:$0x1]
      %v2914 = vld [vmem:[%s2141 + $0x98] sm:$0x1]
      %v2915 = vld [vmem:[%s2141 + $0xa4] sm:$0x1]
      %v2916 = vld [vmem:[%s2141 + $0xb0] sm:$0x1]
      %v2917 = vld [vmem:[%s2141 + $0xbc] sm:$0x1]
      %v2919 = vshrl.u32 %v2870, 16
      %v2921 = vrot.slane %v2919, 4
      %v2922 = vshll.u32 %v2870, 16
      %v2924 = vrot.slane %v2922, 5
      %v2925 = vor.u32 %v2921, %v2924
      %v2926 = vrot.slane %v2925, 4
      %v2928 = vshll.u32 %v2871, 16
      %v2930 = vrot.slane %v2928, 5
      %v2931 = vsel %vm2306, %v2926, %v2930
      %v2932 = vshrl.u32 %v2871, 16
      %v2934 = vrot.slane %v2932, 4
      %v2935 = vor.u32 %v2934, %v2930
      %v2936 = vrot.slane %v2935, 4
      %v2938 = vshll.u32 %v2902, 16
      %v2940 = vrot.slane %v2938, 5
      %v2941 = vsel %vm2306, %v2936, %v2940
      %v2943 = vshrl.u32 %v2872, 16
      %v2945 = vrot.slane %v2943, 4
      %v2946 = vshll.u32 %v2872, 16
      %v2948 = vrot.slane %v2946, 5
      %v2949 = vor.u32 %v2945, %v2948
      %v2950 = vrot.slane %v2949, 4
      %v2952 = vshll.u32 %v2873, 16
      %v2954 = vrot.slane %v2952, 5
      %v2955 = vsel %vm2306, %v2950, %v2954
      %v2956 = vshrl.u32 %v2873, 16
      %v2958 = vrot.slane %v2956, 4
      %v2959 = vor.u32 %v2958, %v2954
      %v2960 = vrot.slane %v2959, 4
      %v2962 = vshll.u32 %v2903, 16
      %v2964 = vrot.slane %v2962, 5
      %v2965 = vsel %vm2306, %v2960, %v2964
      %v2967 = vshrl.u32 %v2874, 16
      %v2969 = vrot.slane %v2967, 4
      %v2970 = vshll.u32 %v2874, 16
      %v2972 = vrot.slane %v2970, 5
      %v2973 = vor.u32 %v2969, %v2972
      %v2974 = vrot.slane %v2973, 4
      %v2976 = vshll.u32 %v2875, 16
      %v2978 = vrot.slane %v2976, 5
      %v2979 = vsel %vm2306, %v2974, %v2978
      %v2980 = vshrl.u32 %v2875, 16
      %v2982 = vrot.slane %v2980, 4
      %v2983 = vor.u32 %v2982, %v2978
      %v2984 = vrot.slane %v2983, 4
      %v2986 = vshll.u32 %v2904, 16
      %v2988 = vrot.slane %v2986, 5
      %v2989 = vsel %vm2306, %v2984, %v2988
      %v2991 = vshrl.u32 %v2876, 16
      %v2993 = vrot.slane %v2991, 4
      %v2994 = vshll.u32 %v2876, 16
      %v2996 = vrot.slane %v2994, 5
      %v2997 = vor.u32 %v2993, %v2996
      %v2998 = vrot.slane %v2997, 4
      %v3000 = vshll.u32 %v2877, 16
      %v3002 = vrot.slane %v3000, 5
      %v3003 = vsel %vm2306, %v2998, %v3002
      %v3004 = vshrl.u32 %v2877, 16
      %v3006 = vrot.slane %v3004, 4
      %v3007 = vor.u32 %v3006, %v3002
      %v3008 = vrot.slane %v3007, 4
      %v3010 = vshll.u32 %v2905, 16
      %v3012 = vrot.slane %v3010, 5
      %v3013 = vsel %vm2306, %v3008, %v3012
      %v3015 = vshrl.u32 %v2878, 16
      %v3017 = vrot.slane %v3015, 4
      %v3018 = vshll.u32 %v2878, 16
      %v3020 = vrot.slane %v3018, 5
      %v3021 = vor.u32 %v3017, %v3020
      %v3022 = vrot.slane %v3021, 4
      %v3024 = vshll.u32 %v2879, 16
      %v3026 = vrot.slane %v3024, 5
      %v3027 = vsel %vm2306, %v3022, %v3026
      %v3028 = vshrl.u32 %v2879, 16
      %v3030 = vrot.slane %v3028, 4
      %v3031 = vor.u32 %v3030, %v3026
      %v3032 = vrot.slane %v3031, 4
      %v3034 = vshll.u32 %v2906, 16
      %v3036 = vrot.slane %v3034, 5
      %v3037 = vsel %vm2306, %v3032, %v3036
      %v3039 = vshrl.u32 %v2880, 16
      %v3041 = vrot.slane %v3039, 4
      %v3042 = vshll.u32 %v2880, 16
      %v3044 = vrot.slane %v3042, 5
      %v3045 = vor.u32 %v3041, %v3044
      %v3046 = vrot.slane %v3045, 4
      %v3048 = vshll.u32 %v2881, 16
      %v3050 = vrot.slane %v3048, 5
      %v3051 = vsel %vm2306, %v3046, %v3050
      %v3052 = vshrl.u32 %v2881, 16
      %v3054 = vrot.slane %v3052, 4
      %v3055 = vor.u32 %v3054, %v3050
      %v3056 = vrot.slane %v3055, 4
      %v3058 = vshll.u32 %v2907, 16
      %v3060 = vrot.slane %v3058, 5
      %v3061 = vsel %vm2306, %v3056, %v3060
      %v3063 = vshrl.u32 %v2882, 16
      %v3065 = vrot.slane %v3063, 4
      %v3066 = vshll.u32 %v2882, 16
      %v3068 = vrot.slane %v3066, 5
      %v3069 = vor.u32 %v3065, %v3068
      %v3070 = vrot.slane %v3069, 4
      %v3072 = vshll.u32 %v2883, 16
      %v3074 = vrot.slane %v3072, 5
      %v3075 = vsel %vm2306, %v3070, %v3074
      %v3076 = vshrl.u32 %v2883, 16
      %v3078 = vrot.slane %v3076, 4
      %v3079 = vor.u32 %v3078, %v3074
      %v3080 = vrot.slane %v3079, 4
      %v3082 = vshll.u32 %v2908, 16
      %v3084 = vrot.slane %v3082, 5
      %v3085 = vsel %vm2306, %v3080, %v3084
      %v3087 = vshrl.u32 %v2884, 16
      %v3089 = vrot.slane %v3087, 4
      %v3090 = vshll.u32 %v2884, 16
      %v3092 = vrot.slane %v3090, 5
      %v3093 = vor.u32 %v3089, %v3092
      %v3094 = vrot.slane %v3093, 4
      %v3096 = vshll.u32 %v2885, 16
      %v3098 = vrot.slane %v3096, 5
      %v3099 = vsel %vm2306, %v3094, %v3098
      %v3100 = vshrl.u32 %v2885, 16
      %v3102 = vrot.slane %v3100, 4
      %v3103 = vor.u32 %v3102, %v3098
      %v3104 = vrot.slane %v3103, 4
      %v3106 = vshll.u32 %v2909, 16
      %v3108 = vrot.slane %v3106, 5
      %v3109 = vsel %vm2306, %v3104, %v3108
      %v3111 = vshrl.u32 %v2886, 16
      %v3113 = vrot.slane %v3111, 4
      %v3114 = vshll.u32 %v2886, 16
      %v3116 = vrot.slane %v3114, 5
      %v3117 = vor.u32 %v3113, %v3116
      %v3118 = vrot.slane %v3117, 4
      %v3120 = vshll.u32 %v2887, 16
      %v3122 = vrot.slane %v3120, 5
      %v3123 = vsel %vm2306, %v3118, %v3122
      %v3124 = vshrl.u32 %v2887, 16
      %v3126 = vrot.slane %v3124, 4
      %v3127 = vor.u32 %v3126, %v3122
      %v3128 = vrot.slane %v3127, 4
      %v3130 = vshll.u32 %v2910, 16
      %v3132 = vrot.slane %v3130, 5
      %v3133 = vsel %vm2306, %v3128, %v3132
      %v3135 = vshrl.u32 %v2888, 16
      %v3137 = vrot.slane %v3135, 4
      %v3138 = vshll.u32 %v2888, 16
      %v3140 = vrot.slane %v3138, 5
      %v3141 = vor.u32 %v3137, %v3140
      %v3142 = vrot.slane %v3141, 4
      %v3144 = vshll.u32 %v2889, 16
      %v3146 = vrot.slane %v3144, 5
      %v3147 = vsel %vm2306, %v3142, %v3146
      %v3148 = vshrl.u32 %v2889, 16
      %v3150 = vrot.slane %v3148, 4
      %v3151 = vor.u32 %v3150, %v3146
      %v3152 = vrot.slane %v3151, 4
      %v3154 = vshll.u32 %v2911, 16
      %v3156 = vrot.slane %v3154, 5
      %v3157 = vsel %vm2306, %v3152, %v3156
      %v3159 = vshrl.u32 %v2890, 16
      %v3161 = vrot.slane %v3159, 4
      %v3162 = vshll.u32 %v2890, 16
      %v3164 = vrot.slane %v3162, 5
      %v3165 = vor.u32 %v3161, %v3164
      %v3166 = vrot.slane %v3165, 4
      %v3168 = vshll.u32 %v2891, 16
      %v3170 = vrot.slane %v3168, 5
      %v3171 = vsel %vm2306, %v3166, %v3170
      %v3172 = vshrl.u32 %v2891, 16
      %v3174 = vrot.slane %v3172, 4
      %v3175 = vor.u32 %v3174, %v3170
      %v3176 = vrot.slane %v3175, 4
      %v3178 = vshll.u32 %v2912, 16
      %v3180 = vrot.slane %v3178, 5
      %v3181 = vsel %vm2306, %v3176, %v3180
      %v3183 = vshrl.u32 %v2892, 16
      %v3185 = vrot.slane %v3183, 4
      %v3186 = vshll.u32 %v2892, 16
      %v3188 = vrot.slane %v3186, 5
      %v3189 = vor.u32 %v3185, %v3188
      %v3190 = vrot.slane %v3189, 4
      %v3192 = vshll.u32 %v2893, 16
      %v3194 = vrot.slane %v3192, 5
      %v3195 = vsel %vm2306, %v3190, %v3194
      %v3196 = vshrl.u32 %v2893, 16
      %v3198 = vrot.slane %v3196, 4
      %v3199 = vor.u32 %v3198, %v3194
      %v3200 = vrot.slane %v3199, 4
      %v3202 = vshll.u32 %v2913, 16
      %v3204 = vrot.slane %v3202, 5
      %v3205 = vsel %vm2306, %v3200, %v3204
      %v3207 = vshrl.u32 %v2894, 16
      %v3209 = vrot.slane %v3207, 4
      %v3210 = vshll.u32 %v2894, 16
      %v3212 = vrot.slane %v3210, 5
      %v3213 = vor.u32 %v3209, %v3212
      %v3214 = vrot.slane %v3213, 4
      %v3216 = vshll.u32 %v2895, 16
      %v3218 = vrot.slane %v3216, 5
      %v3219 = vsel %vm2306, %v3214, %v3218
      %v3220 = vshrl.u32 %v2895, 16
      %v3222 = vrot.slane %v3220, 4
      %v3223 = vor.u32 %v3222, %v3218
      %v3224 = vrot.slane %v3223, 4
      %v3226 = vshll.u32 %v2914, 16
      %v3228 = vrot.slane %v3226, 5
      %v3229 = vsel %vm2306, %v3224, %v3228
      %v3231 = vshrl.u32 %v2896, 16
      %v3233 = vrot.slane %v3231, 4
      %v3234 = vshll.u32 %v2896, 16
      %v3236 = vrot.slane %v3234, 5
      %v3237 = vor.u32 %v3233, %v3236
      %v3238 = vrot.slane %v3237, 4
      %v3240 = vshll.u32 %v2897, 16
      %v3242 = vrot.slane %v3240, 5
      %v3243 = vsel %vm2306, %v3238, %v3242
      %v3244 = vshrl.u32 %v2897, 16
      %v3246 = vrot.slane %v3244, 4
      %v3247 = vor.u32 %v3246, %v3242
      %v3248 = vrot.slane %v3247, 4
      %v3250 = vshll.u32 %v2915, 16
      %v3252 = vrot.slane %v3250, 5
      %v3253 = vsel %vm2306, %v3248, %v3252
      %v3255 = vshrl.u32 %v2898, 16
      %v3257 = vrot.slane %v3255, 4
      %v3258 = vshll.u32 %v2898, 16
      %v3260 = vrot.slane %v3258, 5
      %v3261 = vor.u32 %v3257, %v3260
      %v3262 = vrot.slane %v3261, 4
      %v3264 = vshll.u32 %v2899, 16
      %v3266 = vrot.slane %v3264, 5
      %v3267 = vsel %vm2306, %v3262, %v3266
      %v3268 = vshrl.u32 %v2899, 16
      %v3270 = vrot.slane %v3268, 4
      %v3271 = vor.u32 %v3270, %v3266
      %v3272 = vrot.slane %v3271, 4
      %v3274 = vshll.u32 %v2916, 16
      %v3276 = vrot.slane %v3274, 5
      %v3277 = vsel %vm2306, %v3272, %v3276
      %v3279 = vshrl.u32 %v2900, 16
      %v3281 = vrot.slane %v3279, 4
      %v3282 = vshll.u32 %v2900, 16
      %v3284 = vrot.slane %v3282, 5
      %v3285 = vor.u32 %v3281, %v3284
      %v3286 = vrot.slane %v3285, 4
      %v3288 = vshll.u32 %v2901, 16
      %v3290 = vrot.slane %v3288, 5
      %v3291 = vsel %vm2306, %v3286, %v3290
      %v3292 = vshrl.u32 %v2901, 16
      %v3294 = vrot.slane %v3292, 4
      %v3295 = vor.u32 %v3294, %v3290
      %v3296 = vrot.slane %v3295, 4
      %v3298 = vshll.u32 %v2917, 16
      %v3300 = vrot.slane %v3298, 5
      %v3301 = vsel %vm2306, %v3296, %v3300
      %v3302 = vld [vmem:[%s2141] sm:$0xe]
      %v3303 = vld [vmem:[%s2141 + $0xc] sm:$0xe]
      %v3304 = vld [vmem:[%s2141 + $0x18] sm:$0xe]
      %v3305 = vld [vmem:[%s2141 + $0x24] sm:$0xe]
      %v3306 = vld [vmem:[%s2141 + $0x30] sm:$0xe]
      %v3307 = vld [vmem:[%s2141 + $0x3c] sm:$0xe]
      %v3308 = vld [vmem:[%s2141 + $0x48] sm:$0xe]
      %v3309 = vld [vmem:[%s2141 + $0x54] sm:$0xe]
      %v3310 = vld [vmem:[%s2141 + $0x60] sm:$0xe]
      %v3311 = vld [vmem:[%s2141 + $0x6c] sm:$0xe]
      %v3312 = vld [vmem:[%s2141 + $0x78] sm:$0xe]
      %v3313 = vld [vmem:[%s2141 + $0x84] sm:$0xe]
      %v3314 = vld [vmem:[%s2141 + $0x90] sm:$0xe]
      %v3315 = vld [vmem:[%s2141 + $0x9c] sm:$0xe]
      %v3316 = vld [vmem:[%s2141 + $0xa8] sm:$0xe]
      %v3317 = vld [vmem:[%s2141 + $0xb4] sm:$0xe]
      %v3366 = vrot.slane %v3302, 5
      %v3367 = vrot.slane %v3366, 4
      %v3368 = vrot.slane %v2871, 5
      %v3369 = vsel %vm2757, %v3367, %v3368
      %v3370 = vrot.slane %v3368, 4
      %v3371 = vrot.slane %v2902, 5
      %v3372 = vsel %vm2757, %v3370, %v3371
      %v3373 = vrot.slane %v3303, 5
      %v3374 = vrot.slane %v3373, 4
      %v3375 = vrot.slane %v2873, 5
      %v3376 = vsel %vm2757, %v3374, %v3375
      %v3377 = vrot.slane %v3375, 4
      %v3378 = vrot.slane %v2903, 5
      %v3379 = vsel %vm2757, %v3377, %v3378
      %v3380 = vrot.slane %v3304, 5
      %v3381 = vrot.slane %v3380, 4
      %v3382 = vrot.slane %v2875, 5
      %v3383 = vsel %vm2757, %v3381, %v3382
      %v3384 = vrot.slane %v3382, 4
      %v3385 = vrot.slane %v2904, 5
      %v3386 = vsel %vm2757, %v3384, %v3385
      %v3387 = vrot.slane %v3305, 5
      %v3388 = vrot.slane %v3387, 4
      %v3389 = vrot.slane %v2877, 5
      %v3390 = vsel %vm2757, %v3388, %v3389
      %v3391 = vrot.slane %v3389, 4
      %v3392 = vrot.slane %v2905, 5
      %v3393 = vsel %vm2757, %v3391, %v3392
      %v3394 = vrot.slane %v3306, 5
      %v3395 = vrot.slane %v3394, 4
      %v3396 = vrot.slane %v2879, 5
      %v3397 = vsel %vm2757, %v3395, %v3396
      %v3398 = vrot.slane %v3396, 4
      %v3399 = vrot.slane %v2906, 5
      %v3400 = vsel %vm2757, %v3398, %v3399
      %v3401 = vrot.slane %v3307, 5
      %v3402 = vrot.slane %v3401, 4
      %v3403 = vrot.slane %v2881, 5
      %v3404 = vsel %vm2757, %v3402, %v3403
      %v3405 = vrot.slane %v3403, 4
      %v3406 = vrot.slane %v2907, 5
      %v3407 = vsel %vm2757, %v3405, %v3406
      %v3408 = vrot.slane %v3308, 5
      %v3409 = vrot.slane %v3408, 4
      %v3410 = vrot.slane %v2883, 5
      %v3411 = vsel %vm2757, %v3409, %v3410
      %v3412 = vrot.slane %v3410, 4
      %v3413 = vrot.slane %v2908, 5
      %v3414 = vsel %vm2757, %v3412, %v3413
      %v3415 = vrot.slane %v3309, 5
      %v3416 = vrot.slane %v3415, 4
      %v3417 = vrot.slane %v2885, 5
      %v3418 = vsel %vm2757, %v3416, %v3417
      %v3419 = vrot.slane %v3417, 4
      %v3420 = vrot.slane %v2909, 5
      %v3421 = vsel %vm2757, %v3419, %v3420
      %v3422 = vrot.slane %v3310, 5
      %v3423 = vrot.slane %v3422, 4
      %v3424 = vrot.slane %v2887, 5
      %v3425 = vsel %vm2757, %v3423, %v3424
      %v3426 = vrot.slane %v3424, 4
      %v3427 = vrot.slane %v2910, 5
      %v3428 = vsel %vm2757, %v3426, %v3427
      %v3429 = vrot.slane %v3311, 5
      %v3430 = vrot.slane %v3429, 4
      %v3431 = vrot.slane %v2889, 5
      %v3432 = vsel %vm2757, %v3430, %v3431
      %v3433 = vrot.slane %v3431, 4
      %v3434 = vrot.slane %v2911, 5
      %v3435 = vsel %vm2757, %v3433, %v3434
      %v3436 = vrot.slane %v3312, 5
      %v3437 = vrot.slane %v3436, 4
      %v3438 = vrot.slane %v2891, 5
      %v3439 = vsel %vm2757, %v3437, %v3438
      %v3440 = vrot.slane %v3438, 4
      %v3441 = vrot.slane %v2912, 5
      %v3442 = vsel %vm2757, %v3440, %v3441
      %v3443 = vrot.slane %v3313, 5
      %v3444 = vrot.slane %v3443, 4
      %v3445 = vrot.slane %v2893, 5
      %v3446 = vsel %vm2757, %v3444, %v3445
      %v3447 = vrot.slane %v3445, 4
      %v3448 = vrot.slane %v2913, 5
      %v3449 = vsel %vm2757, %v3447, %v3448
      %v3450 = vrot.slane %v3314, 5
      %v3451 = vrot.slane %v3450, 4
      %v3452 = vrot.slane %v2895, 5
      %v3453 = vsel %vm2757, %v3451, %v3452
      %v3454 = vrot.slane %v3452, 4
      %v3455 = vrot.slane %v2914, 5
      %v3456 = vsel %vm2757, %v3454, %v3455
      %v3457 = vrot.slane %v3315, 5
      %v3458 = vrot.slane %v3457, 4
      %v3459 = vrot.slane %v2897, 5
      %v3460 = vsel %vm2757, %v3458, %v3459
      %v3461 = vrot.slane %v3459, 4
      %v3462 = vrot.slane %v2915, 5
      %v3463 = vsel %vm2757, %v3461, %v3462
      %v3464 = vrot.slane %v3316, 5
      %v3465 = vrot.slane %v3464, 4
      %v3466 = vrot.slane %v2899, 5
      %v3467 = vsel %vm2757, %v3465, %v3466
      %v3468 = vrot.slane %v3466, 4
      %v3469 = vrot.slane %v2916, 5
      %v3470 = vsel %vm2757, %v3468, %v3469
      %v3471 = vrot.slane %v3317, 5
      %v3472 = vrot.slane %v3471, 4
      %v3473 = vrot.slane %v2901, 5
      %v3474 = vsel %vm2757, %v3472, %v3473
      %v3475 = vrot.slane %v3473, 4
      %v3476 = vrot.slane %v2917, 5
      %v3477 = vsel %vm2757, %v3475, %v3476
      %s3478 = scalar_lea.vmem [#allocation2], 24
      %v3479 = vld [vmem:[%s3478] sm:$0xf]
      %v3480 = vld [vmem:[%s3478 + $0x4] sm:$0xf]
      %v3481 = vld [vmem:[%s3478 + $0xc] sm:$0xf]
      %v3482 = vld [vmem:[%s3478 + $0x10] sm:$0xf]
      %v3483 = vld [vmem:[%s3478 + $0x18] sm:$0xf]
      %v3484 = vld [vmem:[%s3478 + $0x1c] sm:$0xf]
      %v3485 = vld [vmem:[%s3478 + $0x24] sm:$0xf]
      %v3486 = vld [vmem:[%s3478 + $0x28] sm:$0xf]
      %v3487 = vld [vmem:[%s3478 + $0x30] sm:$0xf]
      %v3488 = vld [vmem:[%s3478 + $0x34] sm:$0xf]
      %v3489 = vld [vmem:[%s3478 + $0x3c] sm:$0xf]
      %v3490 = vld [vmem:[%s3478 + $0x40] sm:$0xf]
      %v3491 = vld [vmem:[%s3478 + $0x48] sm:$0xf]
      %v3492 = vld [vmem:[%s3478 + $0x4c] sm:$0xf]
      %v3493 = vld [vmem:[%s3478 + $0x54] sm:$0xf]
      %v3494 = vld [vmem:[%s3478 + $0x58] sm:$0xf]
      %v3495 = vld [vmem:[%s3478 + $0x60] sm:$0xf]
      %v3496 = vld [vmem:[%s3478 + $0x64] sm:$0xf]
      %v3497 = vld [vmem:[%s3478 + $0x6c] sm:$0xf]
      %v3498 = vld [vmem:[%s3478 + $0x70] sm:$0xf]
      %v3499 = vld [vmem:[%s3478 + $0x78] sm:$0xf]
      %v3500 = vld [vmem:[%s3478 + $0x7c] sm:$0xf]
      %v3501 = vld [vmem:[%s3478 + $0x84] sm:$0xf]
      %v3502 = vld [vmem:[%s3478 + $0x88] sm:$0xf]
      %v3503 = vld [vmem:[%s3478 + $0x90] sm:$0xf]
      %v3504 = vld [vmem:[%s3478 + $0x94] sm:$0xf]
      %v3505 = vld [vmem:[%s3478 + $0x9c] sm:$0xf]
      %v3506 = vld [vmem:[%s3478 + $0xa0] sm:$0xf]
      %v3507 = vld [vmem:[%s3478 + $0xa8] sm:$0xf]
      %v3508 = vld [vmem:[%s3478 + $0xac] sm:$0xf]
      %v3509 = vld [vmem:[%s3478 + $0xb4] sm:$0xf]
      %v3510 = vld [vmem:[%s3478 + $0xb8] sm:$0xf]
      %v3511 = vld [vmem:[%s3478 + $0x8] sm:$0x1]
      %v3512 = vld [vmem:[%s3478 + $0x14] sm:$0x1]
      %v3513 = vld [vmem:[%s3478 + $0x20] sm:$0x1]
      %v3514 = vld [vmem:[%s3478 + $0x2c] sm:$0x1]
      %v3515 = vld [vmem:[%s3478 + $0x38] sm:$0x1]
      %v3516 = vld [vmem:[%s3478 + $0x44] sm:$0x1]
      %v3517 = vld [vmem:[%s3478 + $0x50] sm:$0x1]
      %v3518 = vld [vmem:[%s3478 + $0x5c] sm:$0x1]
      %v3519 = vld [vmem:[%s3478 + $0x68] sm:$0x1]
      %v3520 = vld [vmem:[%s3478 + $0x74] sm:$0x1]
      %v3521 = vld [vmem:[%s3478 + $0x80] sm:$0x1]
      %v3522 = vld [vmem:[%s3478 + $0x8c] sm:$0x1]
      %v3523 = vld [vmem:[%s3478 + $0x98] sm:$0x1]
      %v3524 = vld [vmem:[%s3478 + $0xa4] sm:$0x1]
      %v3525 = vld [vmem:[%s3478 + $0xb0] sm:$0x1]
      %v3526 = vld [vmem:[%s3478 + $0xbc] sm:$0x1]
      %v3528 = vshrl.u32 %v3479, 16
      %v3530 = vrot.slane %v3528, 4
      %v3531 = vshll.u32 %v3479, 16
      %v3533 = vrot.slane %v3531, 5
      %v3534 = vor.u32 %v3530, %v3533
      %v3535 = vrot.slane %v3534, 4
      %v3537 = vshll.u32 %v3480, 16
      %v3539 = vrot.slane %v3537, 5
      %v3540 = vsel %vm2306, %v3535, %v3539
      %v3541 = vshrl.u32 %v3480, 16
      %v3543 = vrot.slane %v3541, 4
      %v3544 = vor.u32 %v3543, %v3539
      %v3545 = vrot.slane %v3544, 4
      %v3547 = vshll.u32 %v3511, 16
      %v3549 = vrot.slane %v3547, 5
      %v3550 = vsel %vm2306, %v3545, %v3549
      %v3552 = vshrl.u32 %v3481, 16
      %v3554 = vrot.slane %v3552, 4
      %v3555 = vshll.u32 %v3481, 16
      %v3557 = vrot.slane %v3555, 5
      %v3558 = vor.u32 %v3554, %v3557
      %v3559 = vrot.slane %v3558, 4
      %v3561 = vshll.u32 %v3482, 16
      %v3563 = vrot.slane %v3561, 5
      %v3564 = vsel %vm2306, %v3559, %v3563
      %v3565 = vshrl.u32 %v3482, 16
      %v3567 = vrot.slane %v3565, 4
      %v3568 = vor.u32 %v3567, %v3563
      %v3569 = vrot.slane %v3568, 4
      %v3571 = vshll.u32 %v3512, 16
      %v3573 = vrot.slane %v3571, 5
      %v3574 = vsel %vm2306, %v3569, %v3573
      %v3576 = vshrl.u32 %v3483, 16
      %v3578 = vrot.slane %v3576, 4
      %v3579 = vshll.u32 %v3483, 16
      %v3581 = vrot.slane %v3579, 5
      %v3582 = vor.u32 %v3578, %v3581
      %v3583 = vrot.slane %v3582, 4
      %v3585 = vshll.u32 %v3484, 16
      %v3587 = vrot.slane %v3585, 5
      %v3588 = vsel %vm2306, %v3583, %v3587
      %v3589 = vshrl.u32 %v3484, 16
      %v3591 = vrot.slane %v3589, 4
      %v3592 = vor.u32 %v3591, %v3587
      %v3593 = vrot.slane %v3592, 4
      %v3595 = vshll.u32 %v3513, 16
      %v3597 = vrot.slane %v3595, 5
      %v3598 = vsel %vm2306, %v3593, %v3597
      %v3600 = vshrl.u32 %v3485, 16
      %v3602 = vrot.slane %v3600, 4
      %v3603 = vshll.u32 %v3485, 16
      %v3605 = vrot.slane %v3603, 5
      %v3606 = vor.u32 %v3602, %v3605
      %v3607 = vrot.slane %v3606, 4
      %v3609 = vshll.u32 %v3486, 16
      %v3611 = vrot.slane %v3609, 5
      %v3612 = vsel %vm2306, %v3607, %v3611
      %v3613 = vshrl.u32 %v3486, 16
      %v3615 = vrot.slane %v3613, 4
      %v3616 = vor.u32 %v3615, %v3611
      %v3617 = vrot.slane %v3616, 4
      %v3619 = vshll.u32 %v3514, 16
      %v3621 = vrot.slane %v3619, 5
      %v3622 = vsel %vm2306, %v3617, %v3621
      %v3624 = vshrl.u32 %v3487, 16
      %v3626 = vrot.slane %v3624, 4
      %v3627 = vshll.u32 %v3487, 16
      %v3629 = vrot.slane %v3627, 5
      %v3630 = vor.u32 %v3626, %v3629
      %v3631 = vrot.slane %v3630, 4
      %v3633 = vshll.u32 %v3488, 16
      %v3635 = vrot.slane %v3633, 5
      %v3636 = vsel %vm2306, %v3631, %v3635
      %v3637 = vshrl.u32 %v3488, 16
      %v3639 = vrot.slane %v3637, 4
      %v3640 = vor.u32 %v3639, %v3635
      %v3641 = vrot.slane %v3640, 4
      %v3643 = vshll.u32 %v3515, 16
      %v3645 = vrot.slane %v3643, 5
      %v3646 = vsel %vm2306, %v3641, %v3645
      %v3648 = vshrl.u32 %v3489, 16
      %v3650 = vrot.slane %v3648, 4
      %v3651 = vshll.u32 %v3489, 16
      %v3653 = vrot.slane %v3651, 5
      %v3654 = vor.u32 %v3650, %v3653
      %v3655 = vrot.slane %v3654, 4
      %v3657 = vshll.u32 %v3490, 16
      %v3659 = vrot.slane %v3657, 5
      %v3660 = vsel %vm2306, %v3655, %v3659
      %v3661 = vshrl.u32 %v3490, 16
      %v3663 = vrot.slane %v3661, 4
      %v3664 = vor.u32 %v3663, %v3659
      %v3665 = vrot.slane %v3664, 4
      %v3667 = vshll.u32 %v3516, 16
      %v3669 = vrot.slane %v3667, 5
      %v3670 = vsel %vm2306, %v3665, %v3669
      %v3672 = vshrl.u32 %v3491, 16
      %v3674 = vrot.slane %v3672, 4
      %v3675 = vshll.u32 %v3491, 16
      %v3677 = vrot.slane %v3675, 5
      %v3678 = vor.u32 %v3674, %v3677
      %v3679 = vrot.slane %v3678, 4
      %v3681 = vshll.u32 %v3492, 16
      %v3683 = vrot.slane %v3681, 5
      %v3684 = vsel %vm2306, %v3679, %v3683
      %v3685 = vshrl.u32 %v3492, 16
      %v3687 = vrot.slane %v3685, 4
      %v3688 = vor.u32 %v3687, %v3683
      %v3689 = vrot.slane %v3688, 4
      %v3691 = vshll.u32 %v3517, 16
      %v3693 = vrot.slane %v3691, 5
      %v3694 = vsel %vm2306, %v3689, %v3693
      %v3696 = vshrl.u32 %v3493, 16
      %v3698 = vrot.slane %v3696, 4
      %v3699 = vshll.u32 %v3493, 16
      %v3701 = vrot.slane %v3699, 5
      %v3702 = vor.u32 %v3698, %v3701
      %v3703 = vrot.slane %v3702, 4
      %v3705 = vshll.u32 %v3494, 16
      %v3707 = vrot.slane %v3705, 5
      %v3708 = vsel %vm2306, %v3703, %v3707
      %v3709 = vshrl.u32 %v3494, 16
      %v3711 = vrot.slane %v3709, 4
      %v3712 = vor.u32 %v3711, %v3707
      %v3713 = vrot.slane %v3712, 4
      %v3715 = vshll.u32 %v3518, 16
      %v3717 = vrot.slane %v3715, 5
      %v3718 = vsel %vm2306, %v3713, %v3717
      %v3720 = vshrl.u32 %v3495, 16
      %v3722 = vrot.slane %v3720, 4
      %v3723 = vshll.u32 %v3495, 16
      %v3725 = vrot.slane %v3723, 5
      %v3726 = vor.u32 %v3722, %v3725
      %v3727 = vrot.slane %v3726, 4
      %v3729 = vshll.u32 %v3496, 16
      %v3731 = vrot.slane %v3729, 5
      %v3732 = vsel %vm2306, %v3727, %v3731
      %v3733 = vshrl.u32 %v3496, 16
      %v3735 = vrot.slane %v3733, 4
      %v3736 = vor.u32 %v3735, %v3731
      %v3737 = vrot.slane %v3736, 4
      %v3739 = vshll.u32 %v3519, 16
      %v3741 = vrot.slane %v3739, 5
      %v3742 = vsel %vm2306, %v3737, %v3741
      %v3744 = vshrl.u32 %v3497, 16
      %v3746 = vrot.slane %v3744, 4
      %v3747 = vshll.u32 %v3497, 16
      %v3749 = vrot.slane %v3747, 5
      %v3750 = vor.u32 %v3746, %v3749
      %v3751 = vrot.slane %v3750, 4
      %v3753 = vshll.u32 %v3498, 16
      %v3755 = vrot.slane %v3753, 5
      %v3756 = vsel %vm2306, %v3751, %v3755
      %v3757 = vshrl.u32 %v3498, 16
      %v3759 = vrot.slane %v3757, 4
      %v3760 = vor.u32 %v3759, %v3755
      %v3761 = vrot.slane %v3760, 4
      %v3763 = vshll.u32 %v3520, 16
      %v3765 = vrot.slane %v3763, 5
      %v3766 = vsel %vm2306, %v3761, %v3765
      %v3768 = vshrl.u32 %v3499, 16
      %v3770 = vrot.slane %v3768, 4
      %v3771 = vshll.u32 %v3499, 16
      %v3773 = vrot.slane %v3771, 5
      %v3774 = vor.u32 %v3770, %v3773
      %v3775 = vrot.slane %v3774, 4
      %v3777 = vshll.u32 %v3500, 16
      %v3779 = vrot.slane %v3777, 5
      %v3780 = vsel %vm2306, %v3775, %v3779
      %v3781 = vshrl.u32 %v3500, 16
      %v3783 = vrot.slane %v3781, 4
      %v3784 = vor.u32 %v3783, %v3779
      %v3785 = vrot.slane %v3784, 4
      %v3787 = vshll.u32 %v3521, 16
      %v3789 = vrot.slane %v3787, 5
      %v3790 = vsel %vm2306, %v3785, %v3789
      %v3792 = vshrl.u32 %v3501, 16
      %v3794 = vrot.slane %v3792, 4
      %v3795 = vshll.u32 %v3501, 16
      %v3797 = vrot.slane %v3795, 5
      %v3798 = vor.u32 %v3794, %v3797
      %v3799 = vrot.slane %v3798, 4
      %v3801 = vshll.u32 %v3502, 16
      %v3803 = vrot.slane %v3801, 5
      %v3804 = vsel %vm2306, %v3799, %v3803
      %v3805 = vshrl.u32 %v3502, 16
      %v3807 = vrot.slane %v3805, 4
      %v3808 = vor.u32 %v3807, %v3803
      %v3809 = vrot.slane %v3808, 4
      %v3811 = vshll.u32 %v3522, 16
      %v3813 = vrot.slane %v3811, 5
      %v3814 = vsel %vm2306, %v3809, %v3813
      %v3816 = vshrl.u32 %v3503, 16
      %v3818 = vrot.slane %v3816, 4
      %v3819 = vshll.u32 %v3503, 16
      %v3821 = vrot.slane %v3819, 5
      %v3822 = vor.u32 %v3818, %v3821
      %v3823 = vrot.slane %v3822, 4
      %v3825 = vshll.u32 %v3504, 16
      %v3827 = vrot.slane %v3825, 5
      %v3828 = vsel %vm2306, %v3823, %v3827
      %v3829 = vshrl.u32 %v3504, 16
      %v3831 = vrot.slane %v3829, 4
      %v3832 = vor.u32 %v3831, %v3827
      %v3833 = vrot.slane %v3832, 4
      %v3835 = vshll.u32 %v3523, 16
      %v3837 = vrot.slane %v3835, 5
      %v3838 = vsel %vm2306, %v3833, %v3837
      %v3840 = vshrl.u32 %v3505, 16
      %v3842 = vrot.slane %v3840, 4
      %v3843 = vshll.u32 %v3505, 16
      %v3845 = vrot.slane %v3843, 5
      %v3846 = vor.u32 %v3842, %v3845
      %v3847 = vrot.slane %v3846, 4
      %v3849 = vshll.u32 %v3506, 16
      %v3851 = vrot.slane %v3849, 5
      %v3852 = vsel %vm2306, %v3847, %v3851
      %v3853 = vshrl.u32 %v3506, 16
      %v3855 = vrot.slane %v3853, 4
      %v3856 = vor.u32 %v3855, %v3851
      %v3857 = vrot.slane %v3856, 4
      %v3859 = vshll.u32 %v3524, 16
      %v3861 = vrot.slane %v3859, 5
      %v3862 = vsel %vm2306, %v3857, %v3861
      %v3864 = vshrl.u32 %v3507, 16
      %v3866 = vrot.slane %v3864, 4
      %v3867 = vshll.u32 %v3507, 16
      %v3869 = vrot.slane %v3867, 5
      %v3870 = vor.u32 %v3866, %v3869
      %v3871 = vrot.slane %v3870, 4
      %v3873 = vshll.u32 %v3508, 16
      %v3875 = vrot.slane %v3873, 5
      %v3876 = vsel %vm2306, %v3871, %v3875
      %v3877 = vshrl.u32 %v3508, 16
      %v3879 = vrot.slane %v3877, 4
      %v3880 = vor.u32 %v3879, %v3875
      %v3881 = vrot.slane %v3880, 4
      %v3883 = vshll.u32 %v3525, 16
      %v3885 = vrot.slane %v3883, 5
      %v3886 = vsel %vm2306, %v3881, %v3885
      %v3888 = vshrl.u32 %v3509, 16
      %v3890 = vrot.slane %v3888, 4
      %v3891 = vshll.u32 %v3509, 16
      %v3893 = vrot.slane %v3891, 5
      %v3894 = vor.u32 %v3890, %v3893
      %v3895 = vrot.slane %v3894, 4
      %v3897 = vshll.u32 %v3510, 16
      %v3899 = vrot.slane %v3897, 5
      %v3900 = vsel %vm2306, %v3895, %v3899
      %v3901 = vshrl.u32 %v3510, 16
      %v3903 = vrot.slane %v3901, 4
      %v3904 = vor.u32 %v3903, %v3899
      %v3905 = vrot.slane %v3904, 4
      %v3907 = vshll.u32 %v3526, 16
      %v3909 = vrot.slane %v3907, 5
      %v3910 = vsel %vm2306, %v3905, %v3909
      %v3911 = vld [vmem:[%s3478] sm:$0xe]
      %v3912 = vld [vmem:[%s3478 + $0xc] sm:$0xe]
      %v3913 = vld [vmem:[%s3478 + $0x18] sm:$0xe]
      %v3914 = vld [vmem:[%s3478 + $0x24] sm:$0xe]
      %v3915 = vld [vmem:[%s3478 + $0x30] sm:$0xe]
      %v3916 = vld [vmem:[%s3478 + $0x3c] sm:$0xe]
      %v3917 = vld [vmem:[%s3478 + $0x48] sm:$0xe]
      %v3918 = vld [vmem:[%s3478 + $0x54] sm:$0xe]
      %v3919 = vld [vmem:[%s3478 + $0x60] sm:$0xe]
      %v3920 = vld [vmem:[%s3478 + $0x6c] sm:$0xe]
      %v3921 = vld [vmem:[%s3478 + $0x78] sm:$0xe]
      %v3922 = vld [vmem:[%s3478 + $0x84] sm:$0xe]
      %v3923 = vld [vmem:[%s3478 + $0x90] sm:$0xe]
      %v3924 = vld [vmem:[%s3478 + $0x9c] sm:$0xe]
      %v3925 = vld [vmem:[%s3478 + $0xa8] sm:$0xe]
      %v3926 = vld [vmem:[%s3478 + $0xb4] sm:$0xe]
      %v3975 = vrot.slane %v3911, 5
      %v3976 = vrot.slane %v3975, 4
      %v3977 = vrot.slane %v3480, 5
      %v3978 = vsel %vm2757, %v3976, %v3977
      %v3979 = vrot.slane %v3977, 4
      %v3980 = vrot.slane %v3511, 5
      %v3981 = vsel %vm2757, %v3979, %v3980
      %v3982 = vrot.slane %v3912, 5
      %v3983 = vrot.slane %v3982, 4
      %v3984 = vrot.slane %v3482, 5
      %v3985 = vsel %vm2757, %v3983, %v3984
      %v3986 = vrot.slane %v3984, 4
      %v3987 = vrot.slane %v3512, 5
      %v3988 = vsel %vm2757, %v3986, %v3987
      %v3989 = vrot.slane %v3913, 5
      %v3990 = vrot.slane %v3989, 4
      %v3991 = vrot.slane %v3484, 5
      %v3992 = vsel %vm2757, %v3990, %v3991
      %v3993 = vrot.slane %v3991, 4
      %v3994 = vrot.slane %v3513, 5
      %v3995 = vsel %vm2757, %v3993, %v3994
      %v3996 = vrot.slane %v3914, 5
      %v3997 = vrot.slane %v3996, 4
      %v3998 = vrot.slane %v3486, 5
      %v3999 = vsel %vm2757, %v3997, %v3998
      %v4000 = vrot.slane %v3998, 4
      %v4001 = vrot.slane %v3514, 5
      %v4002 = vsel %vm2757, %v4000, %v4001
      %v4003 = vrot.slane %v3915, 5
      %v4004 = vrot.slane %v4003, 4
      %v4005 = vrot.slane %v3488, 5
      %v4006 = vsel %vm2757, %v4004, %v4005
      %v4007 = vrot.slane %v4005, 4
      %v4008 = vrot.slane %v3515, 5
      %v4009 = vsel %vm2757, %v4007, %v4008
      %v4010 = vrot.slane %v3916, 5
      %v4011 = vrot.slane %v4010, 4
      %v4012 = vrot.slane %v3490, 5
      %v4013 = vsel %vm2757, %v4011, %v4012
      %v4014 = vrot.slane %v4012, 4
      %v4015 = vrot.slane %v3516, 5
      %v4016 = vsel %vm2757, %v4014, %v4015
      %v4017 = vrot.slane %v3917, 5
      %v4018 = vrot.slane %v4017, 4
      %v4019 = vrot.slane %v3492, 5
      %v4020 = vsel %vm2757, %v4018, %v4019
      %v4021 = vrot.slane %v4019, 4
      %v4022 = vrot.slane %v3517, 5
      %v4023 = vsel %vm2757, %v4021, %v4022
      %v4024 = vrot.slane %v3918, 5
      %v4025 = vrot.slane %v4024, 4
      %v4026 = vrot.slane %v3494, 5
      %v4027 = vsel %vm2757, %v4025, %v4026
      %v4028 = vrot.slane %v4026, 4
      %v4029 = vrot.slane %v3518, 5
      %v4030 = vsel %vm2757, %v4028, %v4029
      %v4031 = vrot.slane %v3919, 5
      %v4032 = vrot.slane %v4031, 4
      %v4033 = vrot.slane %v3496, 5
      %v4034 = vsel %vm2757, %v4032, %v4033
      %v4035 = vrot.slane %v4033, 4
      %v4036 = vrot.slane %v3519, 5
      %v4037 = vsel %vm2757, %v4035, %v4036
      %v4038 = vrot.slane %v3920, 5
      %v4039 = vrot.slane %v4038, 4
      %v4040 = vrot.slane %v3498, 5
      %v4041 = vsel %vm2757, %v4039, %v4040
      %v4042 = vrot.slane %v4040, 4
      %v4043 = vrot.slane %v3520, 5
      %v4044 = vsel %vm2757, %v4042, %v4043
      %v4045 = vrot.slane %v3921, 5
      %v4046 = vrot.slane %v4045, 4
      %v4047 = vrot.slane %v3500, 5
      %v4048 = vsel %vm2757, %v4046, %v4047
      %v4049 = vrot.slane %v4047, 4
      %v4050 = vrot.slane %v3521, 5
      %v4051 = vsel %vm2757, %v4049, %v4050
      %v4052 = vrot.slane %v3922, 5
      %v4053 = vrot.slane %v4052, 4
      %v4054 = vrot.slane %v3502, 5
      %v4055 = vsel %vm2757, %v4053, %v4054
      %v4056 = vrot.slane %v4054, 4
      %v4057 = vrot.slane %v3522, 5
      %v4058 = vsel %vm2757, %v4056, %v4057
      %v4059 = vrot.slane %v3923, 5
      %v4060 = vrot.slane %v4059, 4
      %v4061 = vrot.slane %v3504, 5
      %v4062 = vsel %vm2757, %v4060, %v4061
      %v4063 = vrot.slane %v4061, 4
      %v4064 = vrot.slane %v3523, 5
      %v4065 = vsel %vm2757, %v4063, %v4064
      %v4066 = vrot.slane %v3924, 5
      %v4067 = vrot.slane %v4066, 4
      %v4068 = vrot.slane %v3506, 5
      %v4069 = vsel %vm2757, %v4067, %v4068
      %v4070 = vrot.slane %v4068, 4
      %v4071 = vrot.slane %v3524, 5
      %v4072 = vsel %vm2757, %v4070, %v4071
      %v4073 = vrot.slane %v3925, 5
      %v4074 = vrot.slane %v4073, 4
      %v4075 = vrot.slane %v3508, 5
      %v4076 = vsel %vm2757, %v4074, %v4075
      %v4077 = vrot.slane %v4075, 4
      %v4078 = vrot.slane %v3525, 5
      %v4079 = vsel %vm2757, %v4077, %v4078
      %v4080 = vrot.slane %v3926, 5
      %v4081 = vrot.slane %v4080, 4
      %v4082 = vrot.slane %v3510, 5
      %v4083 = vsel %vm2757, %v4081, %v4082
      %v4084 = vrot.slane %v4082, 4
      %v4085 = vrot.slane %v3526, 5
      %v4086 = vsel %vm2757, %v4084, %v4085
      %v4103 = vunpack.c.l.b16 %v2256
      %v4104 = vunpack.c.l.b16 %v2257
      %v4105 = vunpack.c.l.b16 %v2258
      %v4106 = vunpack.c.l.b16 %v2259
      %v4107 = vunpack.c.l.b16 %v2260
      %v4108 = vunpack.c.l.b16 %v2261
      %v4109 = vunpack.c.l.b16 %v2262
      %v4110 = vunpack.c.l.b16 %v2263
      %v4111 = vunpack.c.l.b16 %v2264
      %v4112 = vunpack.c.l.b16 %v2265
      %v4113 = vunpack.c.l.b16 %v2266
      %v4114 = vunpack.c.l.b16 %v2267
      %v4115 = vunpack.c.l.b16 %v2268
      %v4116 = vunpack.c.l.b16 %v2269
      %v4117 = vunpack.c.l.b16 %v2270
      %v4118 = vunpack.c.l.b16 %v2271
      %v4119 = vunpack.c.l.b16 %v2272
      %v4120 = vunpack.c.l.b16 %v2273
      %v4121 = vunpack.c.l.b16 %v2274
      %v4122 = vunpack.c.l.b16 %v2275
      %v4123 = vunpack.c.l.b16 %v2276
      %v4124 = vunpack.c.l.b16 %v2277
      %v4125 = vunpack.c.l.b16 %v2278
      %v4126 = vunpack.c.l.b16 %v2279
      %v4127 = vunpack.c.l.b16 %v2280
      %v4128 = vunpack.c.l.b16 %v2281
      %v4129 = vunpack.c.l.b16 %v2282
      %v4130 = vunpack.c.l.b16 %v2283
      %v4131 = vunpack.c.l.b16 %v2284
      %v4132 = vunpack.c.l.b16 %v2285
      %v4133 = vunpack.c.l.b16 %v2286
      %v4134 = vunpack.c.l.b16 %v2287
      %v4135 = vpack.c.b16 %v4104, %v4103
      %v4136 = vpack.c.b16 %v4106, %v4105
      %v4137 = vpack.c.b16 %v4108, %v4107
      %v4138 = vpack.c.b16 %v4110, %v4109
      %v4139 = vpack.c.b16 %v4112, %v4111
      %v4140 = vpack.c.b16 %v4114, %v4113
      %v4141 = vpack.c.b16 %v4116, %v4115
      %v4142 = vpack.c.b16 %v4118, %v4117
      %v4143 = vpack.c.b16 %v4120, %v4119
      %v4144 = vpack.c.b16 %v4122, %v4121
      %v4145 = vpack.c.b16 %v4124, %v4123
      %v4146 = vpack.c.b16 %v4126, %v4125
      %v4147 = vpack.c.b16 %v4128, %v4127
      %v4148 = vpack.c.b16 %v4130, %v4129
      %v4149 = vpack.c.b16 %v4132, %v4131
      %v4150 = vpack.c.b16 %v4134, %v4133
      %v4151 = vunpack.c.l.b16 %v2320
      %v4152 = vunpack.c.l.b16 %v2330
      %v4153 = vunpack.c.l.b16 %v2344
      %v4154 = vunpack.c.l.b16 %v2354
      %v4155 = vunpack.c.l.b16 %v2368
      %v4156 = vunpack.c.l.b16 %v2378
      %v4157 = vunpack.c.l.b16 %v2392
      %v4158 = vunpack.c.l.b16 %v2402
      %v4159 = vunpack.c.l.b16 %v2416
      %v4160 = vunpack.c.l.b16 %v2426
      %v4161 = vunpack.c.l.b16 %v2440
      %v4162 = vunpack.c.l.b16 %v2450
      %v4163 = vunpack.c.l.b16 %v2464
      %v4164 = vunpack.c.l.b16 %v2474
      %v4165 = vunpack.c.l.b16 %v2488
      %v4166 = vunpack.c.l.b16 %v2498
      %v4167 = vunpack.c.l.b16 %v2512
      %v4168 = vunpack.c.l.b16 %v2522
      %v4169 = vunpack.c.l.b16 %v2536
      %v4170 = vunpack.c.l.b16 %v2546
      %v4171 = vunpack.c.l.b16 %v2560
      %v4172 = vunpack.c.l.b16 %v2570
      %v4173 = vunpack.c.l.b16 %v2584
      %v4174 = vunpack.c.l.b16 %v2594
      %v4175 = vunpack.c.l.b16 %v2608
      %v4176 = vunpack.c.l.b16 %v2618
      %v4177 = vunpack.c.l.b16 %v2632
      %v4178 = vunpack.c.l.b16 %v2642
      %v4179 = vunpack.c.l.b16 %v2656
      %v4180 = vunpack.c.l.b16 %v2666
      %v4181 = vunpack.c.l.b16 %v2680
      %v4182 = vunpack.c.l.b16 %v2690
      %v4183 = vpack.c.b16 %v4152, %v4151
      %v4184 = vpack.c.b16 %v4154, %v4153
      %v4185 = vpack.c.b16 %v4156, %v4155
      %v4186 = vpack.c.b16 %v4158, %v4157
      %v4187 = vpack.c.b16 %v4160, %v4159
      %v4188 = vpack.c.b16 %v4162, %v4161
      %v4189 = vpack.c.b16 %v4164, %v4163
      %v4190 = vpack.c.b16 %v4166, %v4165
      %v4191 = vpack.c.b16 %v4168, %v4167
      %v4192 = vpack.c.b16 %v4170, %v4169
      %v4193 = vpack.c.b16 %v4172, %v4171
      %v4194 = vpack.c.b16 %v4174, %v4173
      %v4195 = vpack.c.b16 %v4176, %v4175
      %v4196 = vpack.c.b16 %v4178, %v4177
      %v4197 = vpack.c.b16 %v4180, %v4179
      %v4198 = vpack.c.b16 %v4182, %v4181
      %4199 = vrot.lane.b32.xlu0 %v4183, 4
      %v4200 = vpop.permute.xlu0 %4199
      %4201 = vrot.lane.b32.xlu0 %v4184, 4
      %v4202 = vpop.permute.xlu0 %4201
      %4203 = vrot.lane.b32.xlu0 %v4185, 4
      %v4204 = vpop.permute.xlu0 %4203
      %4205 = vrot.lane.b32.xlu0 %v4186, 4
      %v4206 = vpop.permute.xlu0 %4205
      %4207 = vrot.lane.b32.xlu0 %v4187, 4
      %v4208 = vpop.permute.xlu0 %4207
      %4209 = vrot.lane.b32.xlu0 %v4188, 4
      %v4210 = vpop.permute.xlu0 %4209
      %4211 = vrot.lane.b32.xlu0 %v4189, 4
      %v4212 = vpop.permute.xlu0 %4211
      %4213 = vrot.lane.b32.xlu0 %v4190, 4
      %v4214 = vpop.permute.xlu0 %4213
      %4215 = vrot.lane.b32.xlu0 %v4191, 4
      %v4216 = vpop.permute.xlu0 %4215
      %4217 = vrot.lane.b32.xlu0 %v4192, 4
      %v4218 = vpop.permute.xlu0 %4217
      %4219 = vrot.lane.b32.xlu0 %v4193, 4
      %v4220 = vpop.permute.xlu0 %4219
      %4221 = vrot.lane.b32.xlu0 %v4194, 4
      %v4222 = vpop.permute.xlu0 %4221
      %4223 = vrot.lane.b32.xlu0 %v4195, 4
      %v4224 = vpop.permute.xlu0 %4223
      %4225 = vrot.lane.b32.xlu0 %v4196, 4
      %v4226 = vpop.permute.xlu0 %4225
      %4227 = vrot.lane.b32.xlu0 %v4197, 4
      %v4228 = vpop.permute.xlu0 %4227
      %4229 = vrot.lane.b32.xlu0 %v4198, 4
      %v4230 = vpop.permute.xlu0 %4229
      %v4231 = vunpack.c.l.b16 %v2761
      %v4232 = vunpack.c.l.b16 %v2764
      %v4233 = vunpack.c.l.b16 %v2768
      %v4234 = vunpack.c.l.b16 %v2771
      %v4235 = vunpack.c.l.b16 %v2775
      %v4236 = vunpack.c.l.b16 %v2778
      %v4237 = vunpack.c.l.b16 %v2782
      %v4238 = vunpack.c.l.b16 %v2785
      %v4239 = vunpack.c.l.b16 %v2789
      %v4240 = vunpack.c.l.b16 %v2792
      %v4241 = vunpack.c.l.b16 %v2796
      %v4242 = vunpack.c.l.b16 %v2799
      %v4243 = vunpack.c.l.b16 %v2803
      %v4244 = vunpack.c.l.b16 %v2806
      %v4245 = vunpack.c.l.b16 %v2810
      %v4246 = vunpack.c.l.b16 %v2813
      %v4247 = vunpack.c.l.b16 %v2817
      %v4248 = vunpack.c.l.b16 %v2820
      %v4249 = vunpack.c.l.b16 %v2824
      %v4250 = vunpack.c.l.b16 %v2827
      %v4251 = vunpack.c.l.b16 %v2831
      %v4252 = vunpack.c.l.b16 %v2834
      %v4253 = vunpack.c.l.b16 %v2838
      %v4254 = vunpack.c.l.b16 %v2841
      %v4255 = vunpack.c.l.b16 %v2845
      %v4256 = vunpack.c.l.b16 %v2848
      %v4257 = vunpack.c.l.b16 %v2852
      %v4258 = vunpack.c.l.b16 %v2855
      %v4259 = vunpack.c.l.b16 %v2859
      %v4260 = vunpack.c.l.b16 %v2862
      %v4261 = vunpack.c.l.b16 %v2866
      %v4262 = vunpack.c.l.b16 %v2869
      %v4263 = vpack.c.b16 %v4232, %v4231
      %v4264 = vpack.c.b16 %v4234, %v4233
      %v4265 = vpack.c.b16 %v4236, %v4235
      %v4266 = vpack.c.b16 %v4238, %v4237
      %v4267 = vpack.c.b16 %v4240, %v4239
      %v4268 = vpack.c.b16 %v4242, %v4241
      %v4269 = vpack.c.b16 %v4244, %v4243
      %v4270 = vpack.c.b16 %v4246, %v4245
      %v4271 = vpack.c.b16 %v4248, %v4247
      %v4272 = vpack.c.b16 %v4250, %v4249
      %v4273 = vpack.c.b16 %v4252, %v4251
      %v4274 = vpack.c.b16 %v4254, %v4253
      %v4275 = vpack.c.b16 %v4256, %v4255
      %v4276 = vpack.c.b16 %v4258, %v4257
      %v4277 = vpack.c.b16 %v4260, %v4259
      %v4278 = vpack.c.b16 %v4262, %v4261
      %4279 = vrot.lane.b32.xlu0 %v4263, 8
      %v4280 = vpop.permute.xlu0 %4279
      %4281 = vrot.lane.b32.xlu0 %v4264, 8
      %v4282 = vpop.permute.xlu0 %4281
      %4283 = vrot.lane.b32.xlu0 %v4265, 8
      %v4284 = vpop.permute.xlu0 %4283
      %4285 = vrot.lane.b32.xlu0 %v4266, 8
      %v4286 = vpop.permute.xlu0 %4285
      %4287 = vrot.lane.b32.xlu0 %v4267, 8
      %v4288 = vpop.permute.xlu0 %4287
      %4289 = vrot.lane.b32.xlu0 %v4268, 8
      %v4290 = vpop.permute.xlu0 %4289
      %4291 = vrot.lane.b32.xlu0 %v4269, 8
      %v4292 = vpop.permute.xlu0 %4291
      %4293 = vrot.lane.b32.xlu0 %v4270, 8
      %v4294 = vpop.permute.xlu0 %4293
      %4295 = vrot.lane.b32.xlu0 %v4271, 8
      %v4296 = vpop.permute.xlu0 %4295
      %4297 = vrot.lane.b32.xlu0 %v4272, 8
      %v4298 = vpop.permute.xlu0 %4297
      %4299 = vrot.lane.b32.xlu0 %v4273, 8
      %v4300 = vpop.permute.xlu0 %4299
      %4301 = vrot.lane.b32.xlu0 %v4274, 8
      %v4302 = vpop.permute.xlu0 %4301
      %4303 = vrot.lane.b32.xlu0 %v4275, 8
      %v4304 = vpop.permute.xlu0 %4303
      %4305 = vrot.lane.b32.xlu0 %v4276, 8
      %v4306 = vpop.permute.xlu0 %4305
      %4307 = vrot.lane.b32.xlu0 %v4277, 8
      %v4308 = vpop.permute.xlu0 %4307
      %4309 = vrot.lane.b32.xlu0 %v4278, 8
      %v4310 = vpop.permute.xlu0 %4309
      %v4327 = vunpack.c.l.b16 %v2870
      %v4328 = vunpack.c.l.b16 %v2871
      %v4329 = vunpack.c.l.b16 %v2872
      %v4330 = vunpack.c.l.b16 %v2873
      %v4331 = vunpack.c.l.b16 %v2874
      %v4332 = vunpack.c.l.b16 %v2875
      %v4333 = vunpack.c.l.b16 %v2876
      %v4334 = vunpack.c.l.b16 %v2877
      %v4335 = vunpack.c.l.b16 %v2878
      %v4336 = vunpack.c.l.b16 %v2879
      %v4337 = vunpack.c.l.b16 %v2880
      %v4338 = vunpack.c.l.b16 %v2881
      %v4339 = vunpack.c.l.b16 %v2882
      %v4340 = vunpack.c.l.b16 %v2883
      %v4341 = vunpack.c.l.b16 %v2884
      %v4342 = vunpack.c.l.b16 %v2885
      %v4343 = vunpack.c.l.b16 %v2886
      %v4344 = vunpack.c.l.b16 %v2887
      %v4345 = vunpack.c.l.b16 %v2888
      %v4346 = vunpack.c.l.b16 %v2889
      %v4347 = vunpack.c.l.b16 %v2890
      %v4348 = vunpack.c.l.b16 %v2891
      %v4349 = vunpack.c.l.b16 %v2892
      %v4350 = vunpack.c.l.b16 %v2893
      %v4351 = vunpack.c.l.b16 %v2894
      %v4352 = vunpack.c.l.b16 %v2895
      %v4353 = vunpack.c.l.b16 %v2896
      %v4354 = vunpack.c.l.b16 %v2897
      %v4355 = vunpack.c.l.b16 %v2898
      %v4356 = vunpack.c.l.b16 %v2899
      %v4357 = vunpack.c.l.b16 %v2900
      %v4358 = vunpack.c.l.b16 %v2901
      %v4359 = vpack.c.b16 %v4328, %v4327
      %v4360 = vpack.c.b16 %v4330, %v4329
      %v4361 = vpack.c.b16 %v4332, %v4331
      %v4362 = vpack.c.b16 %v4334, %v4333
      %v4363 = vpack.c.b16 %v4336, %v4335
      %v4364 = vpack.c.b16 %v4338, %v4337
      %v4365 = vpack.c.b16 %v4340, %v4339
      %v4366 = vpack.c.b16 %v4342, %v4341
      %v4367 = vpack.c.b16 %v4344, %v4343
      %v4368 = vpack.c.b16 %v4346, %v4345
      %v4369 = vpack.c.b16 %v4348, %v4347
      %v4370 = vpack.c.b16 %v4350, %v4349
      %v4371 = vpack.c.b16 %v4352, %v4351
      %v4372 = vpack.c.b16 %v4354, %v4353
      %v4373 = vpack.c.b16 %v4356, %v4355
      %v4374 = vpack.c.b16 %v4358, %v4357
      %4375 = vrot.lane.b32.xlu0 %v4359, 12
      %v4376 = vpop.permute.xlu0 %4375
      %4377 = vrot.lane.b32.xlu0 %v4360, 12
      %v4378 = vpop.permute.xlu0 %4377
      %4379 = vrot.lane.b32.xlu0 %v4361, 12
      %v4380 = vpop.permute.xlu0 %4379
      %4381 = vrot.lane.b32.xlu0 %v4362, 12
      %v4382 = vpop.permute.xlu0 %4381
      %4383 = vrot.lane.b32.xlu0 %v4363, 12
      %v4384 = vpop.permute.xlu0 %4383
      %4385 = vrot.lane.b32.xlu0 %v4364, 12
      %v4386 = vpop.permute.xlu0 %4385
      %4387 = vrot.lane.b32.xlu0 %v4365, 12
      %v4388 = vpop.permute.xlu0 %4387
      %4389 = vrot.lane.b32.xlu0 %v4366, 12
      %v4390 = vpop.permute.xlu0 %4389
      %4391 = vrot.lane.b32.xlu0 %v4367, 12
      %v4392 = vpop.permute.xlu0 %4391
      %4393 = vrot.lane.b32.xlu0 %v4368, 12
      %v4394 = vpop.permute.xlu0 %4393
      %4395 = vrot.lane.b32.xlu0 %v4369, 12
      %v4396 = vpop.permute.xlu0 %4395
      %4397 = vrot.lane.b32.xlu0 %v4370, 12
      %v4398 = vpop.permute.xlu0 %4397
      %4399 = vrot.lane.b32.xlu0 %v4371, 12
      %v4400 = vpop.permute.xlu0 %4399
      %4401 = vrot.lane.b32.xlu0 %v4372, 12
      %v4402 = vpop.permute.xlu0 %4401
      %4403 = vrot.lane.b32.xlu0 %v4373, 12
      %v4404 = vpop.permute.xlu0 %4403
      %4405 = vrot.lane.b32.xlu0 %v4374, 12
      %v4406 = vpop.permute.xlu0 %4405
      %v4407 = vunpack.c.l.b16 %v2931
      %v4408 = vunpack.c.l.b16 %v2941
      %v4409 = vunpack.c.l.b16 %v2955
      %v4410 = vunpack.c.l.b16 %v2965
      %v4411 = vunpack.c.l.b16 %v2979
      %v4412 = vunpack.c.l.b16 %v2989
      %v4413 = vunpack.c.l.b16 %v3003
      %v4414 = vunpack.c.l.b16 %v3013
      %v4415 = vunpack.c.l.b16 %v3027
      %v4416 = vunpack.c.l.b16 %v3037
      %v4417 = vunpack.c.l.b16 %v3051
      %v4418 = vunpack.c.l.b16 %v3061
      %v4419 = vunpack.c.l.b16 %v3075
      %v4420 = vunpack.c.l.b16 %v3085
      %v4421 = vunpack.c.l.b16 %v3099
      %v4422 = vunpack.c.l.b16 %v3109
      %v4423 = vunpack.c.l.b16 %v3123
      %v4424 = vunpack.c.l.b16 %v3133
      %v4425 = vunpack.c.l.b16 %v3147
      %v4426 = vunpack.c.l.b16 %v3157
      %v4427 = vunpack.c.l.b16 %v3171
      %v4428 = vunpack.c.l.b16 %v3181
      %v4429 = vunpack.c.l.b16 %v3195
      %v4430 = vunpack.c.l.b16 %v3205
      %v4431 = vunpack.c.l.b16 %v3219
      %v4432 = vunpack.c.l.b16 %v3229
      %v4433 = vunpack.c.l.b16 %v3243
      %v4434 = vunpack.c.l.b16 %v3253
      %v4435 = vunpack.c.l.b16 %v3267
      %v4436 = vunpack.c.l.b16 %v3277
      %v4437 = vunpack.c.l.b16 %v3291
      %v4438 = vunpack.c.l.b16 %v3301
      %v4439 = vpack.c.b16 %v4408, %v4407
      %v4440 = vpack.c.b16 %v4410, %v4409
      %v4441 = vpack.c.b16 %v4412, %v4411
      %v4442 = vpack.c.b16 %v4414, %v4413
      %v4443 = vpack.c.b16 %v4416, %v4415
      %v4444 = vpack.c.b16 %v4418, %v4417
      %v4445 = vpack.c.b16 %v4420, %v4419
      %v4446 = vpack.c.b16 %v4422, %v4421
      %v4447 = vpack.c.b16 %v4424, %v4423
      %v4448 = vpack.c.b16 %v4426, %v4425
      %v4449 = vpack.c.b16 %v4428, %v4427
      %v4450 = vpack.c.b16 %v4430, %v4429
      %v4451 = vpack.c.b16 %v4432, %v4431
      %v4452 = vpack.c.b16 %v4434, %v4433
      %v4453 = vpack.c.b16 %v4436, %v4435
      %v4454 = vpack.c.b16 %v4438, %v4437
      %4455 = vrot.lane.b32.xlu0 %v4439, 16
      %v4456 = vpop.permute.xlu0 %4455
      %4457 = vrot.lane.b32.xlu0 %v4440, 16
      %v4458 = vpop.permute.xlu0 %4457
      %4459 = vrot.lane.b32.xlu0 %v4441, 16
      %v4460 = vpop.permute.xlu0 %4459
      %4461 = vrot.lane.b32.xlu0 %v4442, 16
      %v4462 = vpop.permute.xlu0 %4461
      %4463 = vrot.lane.b32.xlu0 %v4443, 16
      %v4464 = vpop.permute.xlu0 %4463
      %4465 = vrot.lane.b32.xlu0 %v4444, 16
      %v4466 = vpop.permute.xlu0 %4465
      %4467 = vrot.lane.b32.xlu0 %v4445, 16
      %v4468 = vpop.permute.xlu0 %4467
      %4469 = vrot.lane.b32.xlu0 %v4446, 16
      %v4470 = vpop.permute.xlu0 %4469
      %4471 = vrot.lane.b32.xlu0 %v4447, 16
      %v4472 = vpop.permute.xlu0 %4471
      %4473 = vrot.lane.b32.xlu0 %v4448, 16
      %v4474 = vpop.permute.xlu0 %4473
      %4475 = vrot.lane.b32.xlu0 %v4449, 16
      %v4476 = vpop.permute.xlu0 %4475
      %4477 = vrot.lane.b32.xlu0 %v4450, 16
      %v4478 = vpop.permute.xlu0 %4477
      %4479 = vrot.lane.b32.xlu0 %v4451, 16
      %v4480 = vpop.permute.xlu0 %4479
      %4481 = vrot.lane.b32.xlu0 %v4452, 16
      %v4482 = vpop.permute.xlu0 %4481
      %4483 = vrot.lane.b32.xlu0 %v4453, 16
      %v4484 = vpop.permute.xlu0 %4483
      %4485 = vrot.lane.b32.xlu0 %v4454, 16
      %v4486 = vpop.permute.xlu0 %4485
      %v4487 = vunpack.c.l.b16 %v3369
      %v4488 = vunpack.c.l.b16 %v3372
      %v4489 = vunpack.c.l.b16 %v3376
      %v4490 = vunpack.c.l.b16 %v3379
      %v4491 = vunpack.c.l.b16 %v3383
      %v4492 = vunpack.c.l.b16 %v3386
      %v4493 = vunpack.c.l.b16 %v3390
      %v4494 = vunpack.c.l.b16 %v3393
      %v4495 = vunpack.c.l.b16 %v3397
      %v4496 = vunpack.c.l.b16 %v3400
      %v4497 = vunpack.c.l.b16 %v3404
      %v4498 = vunpack.c.l.b16 %v3407
      %v4499 = vunpack.c.l.b16 %v3411
      %v4500 = vunpack.c.l.b16 %v3414
      %v4501 = vunpack.c.l.b16 %v3418
      %v4502 = vunpack.c.l.b16 %v3421
      %v4503 = vunpack.c.l.b16 %v3425
      %v4504 = vunpack.c.l.b16 %v3428
      %v4505 = vunpack.c.l.b16 %v3432
      %v4506 = vunpack.c.l.b16 %v3435
      %v4507 = vunpack.c.l.b16 %v3439
      %v4508 = vunpack.c.l.b16 %v3442
      %v4509 = vunpack.c.l.b16 %v3446
      %v4510 = vunpack.c.l.b16 %v3449
      %v4511 = vunpack.c.l.b16 %v3453
      %v4512 = vunpack.c.l.b16 %v3456
      %v4513 = vunpack.c.l.b16 %v3460
      %v4514 = vunpack.c.l.b16 %v3463
      %v4515 = vunpack.c.l.b16 %v3467
      %v4516 = vunpack.c.l.b16 %v3470
      %v4517 = vunpack.c.l.b16 %v3474
      %v4518 = vunpack.c.l.b16 %v3477
      %v4519 = vpack.c.b16 %v4488, %v4487
      %v4520 = vpack.c.b16 %v4490, %v4489
      %v4521 = vpack.c.b16 %v4492, %v4491
      %v4522 = vpack.c.b16 %v4494, %v4493
      %v4523 = vpack.c.b16 %v4496, %v4495
      %v4524 = vpack.c.b16 %v4498, %v4497
      %v4525 = vpack.c.b16 %v4500, %v4499
      %v4526 = vpack.c.b16 %v4502, %v4501
      %v4527 = vpack.c.b16 %v4504, %v4503
      %v4528 = vpack.c.b16 %v4506, %v4505
      %v4529 = vpack.c.b16 %v4508, %v4507
      %v4530 = vpack.c.b16 %v4510, %v4509
      %v4531 = vpack.c.b16 %v4512, %v4511
      %v4532 = vpack.c.b16 %v4514, %v4513
      %v4533 = vpack.c.b16 %v4516, %v4515
      %v4534 = vpack.c.b16 %v4518, %v4517
      %4535 = vrot.lane.b32.xlu0 %v4519, 20
      %v4536 = vpop.permute.xlu0 %4535
      %4537 = vrot.lane.b32.xlu0 %v4520, 20
      %v4538 = vpop.permute.xlu0 %4537
      %4539 = vrot.lane.b32.xlu0 %v4521, 20
      %v4540 = vpop.permute.xlu0 %4539
      %4541 = vrot.lane.b32.xlu0 %v4522, 20
      %v4542 = vpop.permute.xlu0 %4541
      %4543 = vrot.lane.b32.xlu0 %v4523, 20
      %v4544 = vpop.permute.xlu0 %4543
      %4545 = vrot.lane.b32.xlu0 %v4524, 20
      %v4546 = vpop.permute.xlu0 %4545
      %4547 = vrot.lane.b32.xlu0 %v4525, 20
      %v4548 = vpop.permute.xlu0 %4547
      %4549 = vrot.lane.b32.xlu0 %v4526, 20
      %v4550 = vpop.permute.xlu0 %4549
      %4551 = vrot.lane.b32.xlu0 %v4527, 20
      %v4552 = vpop.permute.xlu0 %4551
      %4553 = vrot.lane.b32.xlu0 %v4528, 20
      %v4554 = vpop.permute.xlu0 %4553
      %4555 = vrot.lane.b32.xlu0 %v4529, 20
      %v4556 = vpop.permute.xlu0 %4555
      %4557 = vrot.lane.b32.xlu0 %v4530, 20
      %v4558 = vpop.permute.xlu0 %4557
      %4559 = vrot.lane.b32.xlu0 %v4531, 20
      %v4560 = vpop.permute.xlu0 %4559
      %4561 = vrot.lane.b32.xlu0 %v4532, 20
      %v4562 = vpop.permute.xlu0 %4561
      %4563 = vrot.lane.b32.xlu0 %v4533, 20
      %v4564 = vpop.permute.xlu0 %4563
      %4565 = vrot.lane.b32.xlu0 %v4534, 20
      %v4566 = vpop.permute.xlu0 %4565
      %v4583 = vunpack.c.l.b16 %v3479
      %v4584 = vunpack.c.l.b16 %v3480
      %v4585 = vunpack.c.l.b16 %v3481
      %v4586 = vunpack.c.l.b16 %v3482
      %v4587 = vunpack.c.l.b16 %v3483
      %v4588 = vunpack.c.l.b16 %v3484
      %v4589 = vunpack.c.l.b16 %v3485
      %v4590 = vunpack.c.l.b16 %v3486
      %v4591 = vunpack.c.l.b16 %v3487
      %v4592 = vunpack.c.l.b16 %v3488
      %v4593 = vunpack.c.l.b16 %v3489
      %v4594 = vunpack.c.l.b16 %v3490
      %v4595 = vunpack.c.l.b16 %v3491
      %v4596 = vunpack.c.l.b16 %v3492
      %v4597 = vunpack.c.l.b16 %v3493
      %v4598 = vunpack.c.l.b16 %v3494
      %v4599 = vunpack.c.l.b16 %v3495
      %v4600 = vunpack.c.l.b16 %v3496
      %v4601 = vunpack.c.l.b16 %v3497
      %v4602 = vunpack.c.l.b16 %v3498
      %v4603 = vunpack.c.l.b16 %v3499
      %v4604 = vunpack.c.l.b16 %v3500
      %v4605 = vunpack.c.l.b16 %v3501
      %v4606 = vunpack.c.l.b16 %v3502
      %v4607 = vunpack.c.l.b16 %v3503
      %v4608 = vunpack.c.l.b16 %v3504
      %v4609 = vunpack.c.l.b16 %v3505
      %v4610 = vunpack.c.l.b16 %v3506
      %v4611 = vunpack.c.l.b16 %v3507
      %v4612 = vunpack.c.l.b16 %v3508
      %v4613 = vunpack.c.l.b16 %v3509
      %v4614 = vunpack.c.l.b16 %v3510
      %v4615 = vpack.c.b16 %v4584, %v4583
      %v4616 = vpack.c.b16 %v4586, %v4585
      %v4617 = vpack.c.b16 %v4588, %v4587
      %v4618 = vpack.c.b16 %v4590, %v4589
      %v4619 = vpack.c.b16 %v4592, %v4591
      %v4620 = vpack.c.b16 %v4594, %v4593
      %v4621 = vpack.c.b16 %v4596, %v4595
      %v4622 = vpack.c.b16 %v4598, %v4597
      %v4623 = vpack.c.b16 %v4600, %v4599
      %v4624 = vpack.c.b16 %v4602, %v4601
      %v4625 = vpack.c.b16 %v4604, %v4603
      %v4626 = vpack.c.b16 %v4606, %v4605
      %v4627 = vpack.c.b16 %v4608, %v4607
      %v4628 = vpack.c.b16 %v4610, %v4609
      %v4629 = vpack.c.b16 %v4612, %v4611
      %v4630 = vpack.c.b16 %v4614, %v4613
      %4631 = vrot.lane.b32.xlu0 %v4615, 24
      %v4632 = vpop.permute.xlu0 %4631
      %4633 = vrot.lane.b32.xlu0 %v4616, 24
      %v4634 = vpop.permute.xlu0 %4633
      %4635 = vrot.lane.b32.xlu0 %v4617, 24
      %v4636 = vpop.permute.xlu0 %4635
      %4637 = vrot.lane.b32.xlu0 %v4618, 24
      %v4638 = vpop.permute.xlu0 %4637
      %4639 = vrot.lane.b32.xlu0 %v4619, 24
      %v4640 = vpop.permute.xlu0 %4639
      %4641 = vrot.lane.b32.xlu0 %v4620, 24
      %v4642 = vpop.permute.xlu0 %4641
      %4643 = vrot.lane.b32.xlu0 %v4621, 24
      %v4644 = vpop.permute.xlu0 %4643
      %4645 = vrot.lane.b32.xlu0 %v4622, 24
      %v4646 = vpop.permute.xlu0 %4645
      %4647 = vrot.lane.b32.xlu0 %v4623, 24
      %v4648 = vpop.permute.xlu0 %4647
      %4649 = vrot.lane.b32.xlu0 %v4624, 24
      %v4650 = vpop.permute.xlu0 %4649
      %4651 = vrot.lane.b32.xlu0 %v4625, 24
      %v4652 = vpop.permute.xlu0 %4651
      %4653 = vrot.lane.b32.xlu0 %v4626, 24
      %v4654 = vpop.permute.xlu0 %4653
      %4655 = vrot.lane.b32.xlu0 %v4627, 24
      %v4656 = vpop.permute.xlu0 %4655
      %4657 = vrot.lane.b32.xlu0 %v4628, 24
      %v4658 = vpop.permute.xlu0 %4657
      %4659 = vrot.lane.b32.xlu0 %v4629, 24
      %v4660 = vpop.permute.xlu0 %4659
      %4661 = vrot.lane.b32.xlu0 %v4630, 24
      %v4662 = vpop.permute.xlu0 %4661
      %v4663 = vunpack.c.l.b16 %v3540
      %v4664 = vunpack.c.l.b16 %v3550
      %v4665 = vunpack.c.l.b16 %v3564
      %v4666 = vunpack.c.l.b16 %v3574
      %v4667 = vunpack.c.l.b16 %v3588
      %v4668 = vunpack.c.l.b16 %v3598
      %v4669 = vunpack.c.l.b16 %v3612
      %v4670 = vunpack.c.l.b16 %v3622
      %v4671 = vunpack.c.l.b16 %v3636
      %v4672 = vunpack.c.l.b16 %v3646
      %v4673 = vunpack.c.l.b16 %v3660
      %v4674 = vunpack.c.l.b16 %v3670
      %v4675 = vunpack.c.l.b16 %v3684
      %v4676 = vunpack.c.l.b16 %v3694
      %v4677 = vunpack.c.l.b16 %v3708
      %v4678 = vunpack.c.l.b16 %v3718
      %v4679 = vunpack.c.l.b16 %v3732
      %v4680 = vunpack.c.l.b16 %v3742
      %v4681 = vunpack.c.l.b16 %v3756
      %v4682 = vunpack.c.l.b16 %v3766
      %v4683 = vunpack.c.l.b16 %v3780
      %v4684 = vunpack.c.l.b16 %v3790
      %v4685 = vunpack.c.l.b16 %v3804
      %v4686 = vunpack.c.l.b16 %v3814
      %v4687 = vunpack.c.l.b16 %v3828
      %v4688 = vunpack.c.l.b16 %v3838
      %v4689 = vunpack.c.l.b16 %v3852
      %v4690 = vunpack.c.l.b16 %v3862
      %v4691 = vunpack.c.l.b16 %v3876
      %v4692 = vunpack.c.l.b16 %v3886
      %v4693 = vunpack.c.l.b16 %v3900
      %v4694 = vunpack.c.l.b16 %v3910
      %v4695 = vpack.c.b16 %v4664, %v4663
      %v4696 = vpack.c.b16 %v4666, %v4665
      %v4697 = vpack.c.b16 %v4668, %v4667
      %v4698 = vpack.c.b16 %v4670, %v4669
      %v4699 = vpack.c.b16 %v4672, %v4671
      %v4700 = vpack.c.b16 %v4674, %v4673
      %v4701 = vpack.c.b16 %v4676, %v4675
      %v4702 = vpack.c.b16 %v4678, %v4677
      %v4703 = vpack.c.b16 %v4680, %v4679
      %v4704 = vpack.c.b16 %v4682, %v4681
      %v4705 = vpack.c.b16 %v4684, %v4683
      %v4706 = vpack.c.b16 %v4686, %v4685
      %v4707 = vpack.c.b16 %v4688, %v4687
      %v4708 = vpack.c.b16 %v4690, %v4689
      %v4709 = vpack.c.b16 %v4692, %v4691
      %v4710 = vpack.c.b16 %v4694, %v4693
      %4711 = vrot.lane.b32.xlu0 %v4695, 28
      %v4712 = vpop.permute.xlu0 %4711
      %4713 = vrot.lane.b32.xlu0 %v4696, 28
      %v4714 = vpop.permute.xlu0 %4713
      %4715 = vrot.lane.b32.xlu0 %v4697, 28
      %v4716 = vpop.permute.xlu0 %4715
      %4717 = vrot.lane.b32.xlu0 %v4698, 28
      %v4718 = vpop.permute.xlu0 %4717
      %4719 = vrot.lane.b32.xlu0 %v4699, 28
      %v4720 = vpop.permute.xlu0 %4719
      %4721 = vrot.lane.b32.xlu0 %v4700, 28
      %v4722 = vpop.permute.xlu0 %4721
      %4723 = vrot.lane.b32.xlu0 %v4701, 28
      %v4724 = vpop.permute.xlu0 %4723
      %4725 = vrot.lane.b32.xlu0 %v4702, 28
      %v4726 = vpop.permute.xlu0 %4725
      %4727 = vrot.lane.b32.xlu0 %v4703, 28
      %v4728 = vpop.permute.xlu0 %4727
      %4729 = vrot.lane.b32.xlu0 %v4704, 28
      %v4730 = vpop.permute.xlu0 %4729
      %4731 = vrot.lane.b32.xlu0 %v4705, 28
      %v4732 = vpop.permute.xlu0 %4731
      %4733 = vrot.lane.b32.xlu0 %v4706, 28
      %v4734 = vpop.permute.xlu0 %4733
      %4735 = vrot.lane.b32.xlu0 %v4707, 28
      %v4736 = vpop.permute.xlu0 %4735
      %4737 = vrot.lane.b32.xlu0 %v4708, 28
      %v4738 = vpop.permute.xlu0 %4737
      %4739 = vrot.lane.b32.xlu0 %v4709, 28
      %v4740 = vpop.permute.xlu0 %4739
      %4741 = vrot.lane.b32.xlu0 %v4710, 28
      %v4742 = vpop.permute.xlu0 %4741
      %v4743 = vunpack.c.l.b16 %v3978
      %v4744 = vunpack.c.l.b16 %v3981
      %v4745 = vunpack.c.l.b16 %v3985
      %v4746 = vunpack.c.l.b16 %v3988
      %v4747 = vunpack.c.l.b16 %v3992
      %v4748 = vunpack.c.l.b16 %v3995
      %v4749 = vunpack.c.l.b16 %v3999
      %v4750 = vunpack.c.l.b16 %v4002
      %v4751 = vunpack.c.l.b16 %v4006
      %v4752 = vunpack.c.l.b16 %v4009
      %v4753 = vunpack.c.l.b16 %v4013
      %v4754 = vunpack.c.l.b16 %v4016
      %v4755 = vunpack.c.l.b16 %v4020
      %v4756 = vunpack.c.l.b16 %v4023
      %v4757 = vunpack.c.l.b16 %v4027
      %v4758 = vunpack.c.l.b16 %v4030
      %v4759 = vunpack.c.l.b16 %v4034
      %v4760 = vunpack.c.l.b16 %v4037
      %v4761 = vunpack.c.l.b16 %v4041
      %v4762 = vunpack.c.l.b16 %v4044
      %v4763 = vunpack.c.l.b16 %v4048
      %v4764 = vunpack.c.l.b16 %v4051
      %v4765 = vunpack.c.l.b16 %v4055
      %v4766 = vunpack.c.l.b16 %v4058
      %v4767 = vunpack.c.l.b16 %v4062
      %v4768 = vunpack.c.l.b16 %v4065
      %v4769 = vunpack.c.l.b16 %v4069
      %v4770 = vunpack.c.l.b16 %v4072
      %v4771 = vunpack.c.l.b16 %v4076
      %v4772 = vunpack.c.l.b16 %v4079
      %v4773 = vunpack.c.l.b16 %v4083
      %v4774 = vunpack.c.l.b16 %v4086
      %v4775 = vpack.c.b16 %v4744, %v4743
      %v4776 = vpack.c.b16 %v4746, %v4745
      %v4777 = vpack.c.b16 %v4748, %v4747
      %v4778 = vpack.c.b16 %v4750, %v4749
      %v4779 = vpack.c.b16 %v4752, %v4751
      %v4780 = vpack.c.b16 %v4754, %v4753
      %v4781 = vpack.c.b16 %v4756, %v4755
      %v4782 = vpack.c.b16 %v4758, %v4757
      %v4783 = vpack.c.b16 %v4760, %v4759
      %v4784 = vpack.c.b16 %v4762, %v4761
      %v4785 = vpack.c.b16 %v4764, %v4763
      %v4786 = vpack.c.b16 %v4766, %v4765
      %v4787 = vpack.c.b16 %v4768, %v4767
      %v4788 = vpack.c.b16 %v4770, %v4769
      %v4789 = vpack.c.b16 %v4772, %v4771
      %v4790 = vpack.c.b16 %v4774, %v4773
      %4791 = vrot.lane.b32.xlu0 %v4775, 32
      %v4792 = vpop.permute.xlu0 %4791
      %4793 = vrot.lane.b32.xlu0 %v4776, 32
      %v4794 = vpop.permute.xlu0 %4793
      %4795 = vrot.lane.b32.xlu0 %v4777, 32
      %v4796 = vpop.permute.xlu0 %4795
      %4797 = vrot.lane.b32.xlu0 %v4778, 32
      %v4798 = vpop.permute.xlu0 %4797
      %4799 = vrot.lane.b32.xlu0 %v4779, 32
      %v4800 = vpop.permute.xlu0 %4799
      %4801 = vrot.lane.b32.xlu0 %v4780, 32
      %v4802 = vpop.permute.xlu0 %4801
      %4803 = vrot.lane.b32.xlu0 %v4781, 32
      %v4804 = vpop.permute.xlu0 %4803
      %4805 = vrot.lane.b32.xlu0 %v4782, 32
      %v4806 = vpop.permute.xlu0 %4805
      %4807 = vrot.lane.b32.xlu0 %v4783, 32
      %v4808 = vpop.permute.xlu0 %4807
      %4809 = vrot.lane.b32.xlu0 %v4784, 32
      %v4810 = vpop.permute.xlu0 %4809
      %4811 = vrot.lane.b32.xlu0 %v4785, 32
      %v4812 = vpop.permute.xlu0 %4811
      %4813 = vrot.lane.b32.xlu0 %v4786, 32
      %v4814 = vpop.permute.xlu0 %4813
      %4815 = vrot.lane.b32.xlu0 %v4787, 32
      %v4816 = vpop.permute.xlu0 %4815
      %4817 = vrot.lane.b32.xlu0 %v4788, 32
      %v4818 = vpop.permute.xlu0 %4817
      %4819 = vrot.lane.b32.xlu0 %v4789, 32
      %v4820 = vpop.permute.xlu0 %4819
      %4821 = vrot.lane.b32.xlu0 %v4790, 32
      %v4822 = vpop.permute.xlu0 %4821
      %v4825 = vsel %vm563, %v4135, %v4200
      %v4828 = vsel %vm563, %v4136, %v4202
      %v4831 = vsel %vm563, %v4137, %v4204
      %v4834 = vsel %vm563, %v4138, %v4206
      %v4837 = vsel %vm563, %v4139, %v4208
      %v4840 = vsel %vm563, %v4140, %v4210
      %v4843 = vsel %vm563, %v4141, %v4212
      %v4846 = vsel %vm563, %v4142, %v4214
      %v4849 = vsel %vm563, %v4143, %v4216
      %v4852 = vsel %vm563, %v4144, %v4218
      %v4855 = vsel %vm563, %v4145, %v4220
      %v4858 = vsel %vm563, %v4146, %v4222
      %v4861 = vsel %vm563, %v4147, %v4224
      %v4864 = vsel %vm563, %v4148, %v4226
      %v4867 = vsel %vm563, %v4149, %v4228
      %v4870 = vsel %vm563, %v4150, %v4230
      %vm4871 = vcmask 64512
      %v4873 = vsel %vm4871, %v4825, %v4280
      %v4875 = vsel %vm4871, %v4828, %v4282
      %v4877 = vsel %vm4871, %v4831, %v4284
      %v4879 = vsel %vm4871, %v4834, %v4286
      %v4881 = vsel %vm4871, %v4837, %v4288
      %v4883 = vsel %vm4871, %v4840, %v4290
      %v4885 = vsel %vm4871, %v4843, %v4292
      %v4887 = vsel %vm4871, %v4846, %v4294
      %v4889 = vsel %vm4871, %v4849, %v4296
      %v4891 = vsel %vm4871, %v4852, %v4298
      %v4893 = vsel %vm4871, %v4855, %v4300
      %v4895 = vsel %vm4871, %v4858, %v4302
      %v4897 = vsel %vm4871, %v4861, %v4304
      %v4899 = vsel %vm4871, %v4864, %v4306
      %v4901 = vsel %vm4871, %v4867, %v4308
      %v4903 = vsel %vm4871, %v4870, %v4310
      %vm4904 = vcmask 97280
      %v4906 = vsel %vm4904, %v4873, %v4376
      %v4908 = vsel %vm4904, %v4875, %v4378
      %v4910 = vsel %vm4904, %v4877, %v4380
      %v4912 = vsel %vm4904, %v4879, %v4382
      %v4914 = vsel %vm4904, %v4881, %v4384
      %v4916 = vsel %vm4904, %v4883, %v4386
      %v4918 = vsel %vm4904, %v4885, %v4388
      %v4920 = vsel %vm4904, %v4887, %v4390
      %v4922 = vsel %vm4904, %v4889, %v4392
      %v4924 = vsel %vm4904, %v4891, %v4394
      %v4926 = vsel %vm4904, %v4893, %v4396
      %v4928 = vsel %vm4904, %v4895, %v4398
      %v4930 = vsel %vm4904, %v4897, %v4400
      %v4932 = vsel %vm4904, %v4899, %v4402
      %v4934 = vsel %vm4904, %v4901, %v4404
      %v4936 = vsel %vm4904, %v4903, %v4406
      %vm4937 = vcmask 130048
      %v4939 = vsel %vm4937, %v4906, %v4456
      %v4941 = vsel %vm4937, %v4908, %v4458
      %v4943 = vsel %vm4937, %v4910, %v4460
      %v4945 = vsel %vm4937, %v4912, %v4462
      %v4947 = vsel %vm4937, %v4914, %v4464
      %v4949 = vsel %vm4937, %v4916, %v4466
      %v4951 = vsel %vm4937, %v4918, %v4468
      %v4953 = vsel %vm4937, %v4920, %v4470
      %v4955 = vsel %vm4937, %v4922, %v4472
      %v4957 = vsel %vm4937, %v4924, %v4474
      %v4959 = vsel %vm4937, %v4926, %v4476
      %v4961 = vsel %vm4937, %v4928, %v4478
      %v4963 = vsel %vm4937, %v4930, %v4480
      %v4965 = vsel %vm4937, %v4932, %v4482
      %v4967 = vsel %vm4937, %v4934, %v4484
      %v4969 = vsel %vm4937, %v4936, %v4486
      %vm4970 = vcmask 162816
      %v4972 = vsel %vm4970, %v4939, %v4536
      %v4974 = vsel %vm4970, %v4941, %v4538
      %v4976 = vsel %vm4970, %v4943, %v4540
      %v4978 = vsel %vm4970, %v4945, %v4542
      %v4980 = vsel %vm4970, %v4947, %v4544
      %v4982 = vsel %vm4970, %v4949, %v4546
      %v4984 = vsel %vm4970, %v4951, %v4548
      %v4986 = vsel %vm4970, %v4953, %v4550
      %v4988 = vsel %vm4970, %v4955, %v4552
      %v4990 = vsel %vm4970, %v4957, %v4554
      %v4992 = vsel %vm4970, %v4959, %v4556
      %v4994 = vsel %vm4970, %v4961, %v4558
      %v4996 = vsel %vm4970, %v4963, %v4560
      %v4998 = vsel %vm4970, %v4965, %v4562
      %v5000 = vsel %vm4970, %v4967, %v4564
      %v5002 = vsel %vm4970, %v4969, %v4566
      %vm5003 = vcmask 195584
      %v5005 = vsel %vm5003, %v4972, %v4632
      %v5007 = vsel %vm5003, %v4974, %v4634
      %v5009 = vsel %vm5003, %v4976, %v4636
      %v5011 = vsel %vm5003, %v4978, %v4638
      %v5013 = vsel %vm5003, %v4980, %v4640
      %v5015 = vsel %vm5003, %v4982, %v4642
      %v5017 = vsel %vm5003, %v4984, %v4644
      %v5019 = vsel %vm5003, %v4986, %v4646
      %v5021 = vsel %vm5003, %v4988, %v4648
      %v5023 = vsel %vm5003, %v4990, %v4650
      %v5025 = vsel %vm5003, %v4992, %v4652
      %v5027 = vsel %vm5003, %v4994, %v4654
      %v5029 = vsel %vm5003, %v4996, %v4656
      %v5031 = vsel %vm5003, %v4998, %v4658
      %v5033 = vsel %vm5003, %v5000, %v4660
      %v5035 = vsel %vm5003, %v5002, %v4662
      %vm5036 = vcmask 228352
      %v5038 = vsel %vm5036, %v5005, %v4712
      %v5040 = vsel %vm5036, %v5007, %v4714
      %v5042 = vsel %vm5036, %v5009, %v4716
      %v5044 = vsel %vm5036, %v5011, %v4718
      %v5046 = vsel %vm5036, %v5013, %v4720
      %v5048 = vsel %vm5036, %v5015, %v4722
      %v5050 = vsel %vm5036, %v5017, %v4724
      %v5052 = vsel %vm5036, %v5019, %v4726
      %v5054 = vsel %vm5036, %v5021, %v4728
      %v5056 = vsel %vm5036, %v5023, %v4730
      %v5058 = vsel %vm5036, %v5025, %v4732
      %v5060 = vsel %vm5036, %v5027, %v4734
      %v5062 = vsel %vm5036, %v5029, %v4736
      %v5064 = vsel %vm5036, %v5031, %v4738
      %v5066 = vsel %vm5036, %v5033, %v4740
      %v5068 = vsel %vm5036, %v5035, %v4742
      %vm5069 = vcmask 261120
      %v5071 = vsel %vm5069, %v5038, %v4792
      %v5073 = vsel %vm5069, %v5040, %v4794
      %v5075 = vsel %vm5069, %v5042, %v4796
      %v5077 = vsel %vm5069, %v5044, %v4798
      %v5079 = vsel %vm5069, %v5046, %v4800
      %v5081 = vsel %vm5069, %v5048, %v4802
      %v5083 = vsel %vm5069, %v5050, %v4804
      %v5085 = vsel %vm5069, %v5052, %v4806
      %v5087 = vsel %vm5069, %v5054, %v4808
      %v5089 = vsel %vm5069, %v5056, %v4810
      %v5091 = vsel %vm5069, %v5058, %v4812
      %v5093 = vsel %vm5069, %v5060, %v4814
      %v5095 = vsel %vm5069, %v5062, %v4816
      %v5097 = vsel %vm5069, %v5064, %v4818
      %v5099 = vsel %vm5069, %v5066, %v4820
      %v5101 = vsel %vm5069, %v5068, %v4822
      %v5102 = vld [vmem:[%s3] sm:$0xf]
      %v5103 = vld [vmem:[%s3 + $0x4] sm:$0xf]
      %v5104 = vld [vmem:[%s3 + $0x8] sm:$0xf]
      %v5105 = vld [vmem:[%s3 + $0xc] sm:$0xf]
      %v5106 = vld [vmem:[%s3 + $0x10] sm:$0x3]
      %v5107 = vld [vmem:[%s4] sm:$0x1]
      %v5109 = vperm.slane %v5107, 0
      %v5116 = vunpack.c.l.b16 %v5102
      %v5117 = vunpack.c.l.b16 %v5103
      %v5118 = vunpack.c.l.b16 %v5104
      %v5119 = vunpack.c.l.b16 %v5105
      %v5120 = vunpack.c.l.b16 %v5106
      %v5121 = vpack.c.b16 %v5117, %v5116
      %v5122 = vpack.c.b16 %v5119, %v5118
      %v5123 = vpack.c.b16 %v5120, %v5120
      %vm5126 = vcmask 293888
      %v5127 = vsel %vm5126, %v5071, 0
      %v5129 = vsel %vm5126, %v5073, 0
      %v5131 = vsel %vm5126, %v5075, 0
      %v5133 = vsel %vm5126, %v5077, 0
      %v5135 = vsel %vm5126, %v5079, 0
      %v5137 = vsel %vm5126, %v5081, 0
      %v5139 = vsel %vm5126, %v5083, 0
      %v5141 = vsel %vm5126, %v5085, 0
      %v5143 = vsel %vm5126, %v5087, 0
      %v5145 = vsel %vm5126, %v5089, 0
      %v5147 = vsel %vm5126, %v5091, 0
      %v5149 = vsel %vm5126, %v5093, 0
      %v5151 = vsel %vm5126, %v5095, 0
      %v5153 = vsel %vm5126, %v5097, 0
      %v5155 = vsel %vm5126, %v5099, 0
      %v5157 = vsel %vm5126, %v5101, 0
      %v5160 = vsel %vm612, %v5123, 0
      %5162 = vmatpush.bf16.msra.mxu0 0
      %5163 = vmatpush.bf16.msra.mxu0 0
      %5164 = vmatpush.bf16.msra.mxu0 0
      %5165 = vmatpush.bf16.msra.mxu0 0
      %5166 = vmatpush.bf16.msra.mxu0 0
      %5167 = vmatpush.bf16.msra.mxu0 %v5160
      %5168 = vmatpush.bf16.msra.mxu0 %v5122
      %5169 = vmatpush.bf16.msra.mxu0 %v5121
      %5170 = vmatmul.bf16.gmra.mxu0 %v5127
      %v5171 = vpop.f32.mrf.mxu0
      %v5172 = vadd.f32 %v5109, %v5171
      %v5173 = vpop.f32.mrf.mxu0
      %v5174 = vadd.f32 %v5109, %v5173
      %5175 = vmatmul.bf16.gmra.mxu0 %v5129
      %v5176 = vpop.f32.mrf.mxu0
      %v5177 = vadd.f32 %v5109, %v5176
      %v5178 = vpop.f32.mrf.mxu0
      %v5179 = vadd.f32 %v5109, %v5178
      %5180 = vmatmul.bf16.gmra.mxu0 %v5131
      %v5181 = vpop.f32.mrf.mxu0
      %v5182 = vadd.f32 %v5109, %v5181
      %v5183 = vpop.f32.mrf.mxu0
      %v5184 = vadd.f32 %v5109, %v5183
      %5185 = vmatmul.bf16.gmra.mxu0 %v5133
      %v5186 = vpop.f32.mrf.mxu0
      %v5187 = vadd.f32 %v5109, %v5186
      %v5188 = vpop.f32.mrf.mxu0
      %v5189 = vadd.f32 %v5109, %v5188
      %5190 = vmatmul.bf16.gmra.mxu0 %v5135
      %v5191 = vpop.f32.mrf.mxu0
      %v5192 = vadd.f32 %v5109, %v5191
      %v5193 = vpop.f32.mrf.mxu0
      %v5194 = vadd.f32 %v5109, %v5193
      %5195 = vmatmul.bf16.gmra.mxu0 %v5137
      %v5196 = vpop.f32.mrf.mxu0
      %v5197 = vadd.f32 %v5109, %v5196
      %v5198 = vpop.f32.mrf.mxu0
      %v5199 = vadd.f32 %v5109, %v5198
      %5200 = vmatmul.bf16.gmra.mxu0 %v5139
      %v5201 = vpop.f32.mrf.mxu0
      %v5202 = vadd.f32 %v5109, %v5201
      %v5203 = vpop.f32.mrf.mxu0
      %v5204 = vadd.f32 %v5109, %v5203
      %5205 = vmatmul.bf16.gmra.mxu0 %v5141
      %v5206 = vpop.f32.mrf.mxu0
      %v5207 = vadd.f32 %v5109, %v5206
      %v5208 = vpop.f32.mrf.mxu0
      %v5209 = vadd.f32 %v5109, %v5208
      %5210 = vmatmul.bf16.gmra.mxu0 %v5143
      %v5211 = vpop.f32.mrf.mxu0
      %v5212 = vadd.f32 %v5109, %v5211
      %v5213 = vpop.f32.mrf.mxu0
      %v5214 = vadd.f32 %v5109, %v5213
      %5215 = vmatmul.bf16.gmra.mxu0 %v5145
      %v5216 = vpop.f32.mrf.mxu0
      %v5217 = vadd.f32 %v5109, %v5216
      %v5218 = vpop.f32.mrf.mxu0
      %v5219 = vadd.f32 %v5109, %v5218
      %5220 = vmatmul.bf16.gmra.mxu0 %v5147
      %v5221 = vpop.f32.mrf.mxu0
      %v5222 = vadd.f32 %v5109, %v5221
      %v5223 = vpop.f32.mrf.mxu0
      %v5224 = vadd.f32 %v5109, %v5223
      %5225 = vmatmul.bf16.gmra.mxu0 %v5149
      %v5226 = vpop.f32.mrf.mxu0
      %v5227 = vadd.f32 %v5109, %v5226
      %v5228 = vpop.f32.mrf.mxu0
      %v5229 = vadd.f32 %v5109, %v5228
      %5230 = vmatmul.bf16.gmra.mxu0 %v5151
      %v5231 = vpop.f32.mrf.mxu0
      %v5232 = vadd.f32 %v5109, %v5231
      %v5233 = vpop.f32.mrf.mxu0
      %v5234 = vadd.f32 %v5109, %v5233
      %5235 = vmatmul.bf16.gmra.mxu0 %v5153
      %v5236 = vpop.f32.mrf.mxu0
      %v5237 = vadd.f32 %v5109, %v5236
      %v5238 = vpop.f32.mrf.mxu0
      %v5239 = vadd.f32 %v5109, %v5238
      %5240 = vmatmul.bf16.gmra.mxu0 %v5155
      %v5241 = vpop.f32.mrf.mxu0
      %v5242 = vadd.f32 %v5109, %v5241
      %v5243 = vpop.f32.mrf.mxu0
      %v5244 = vadd.f32 %v5109, %v5243
      %5245 = vmatmul.bf16.gmra.mxu0 %v5157
      %v5246 = vpop.f32.mrf.mxu0
      %v5247 = vadd.f32 %v5109, %v5246
      %v5248 = vpop.f32.mrf.mxu0
      %v5249 = vadd.f32 %v5109, %v5248
      %5250 = vdwg.mxu0
      %v5251 = vxor.u32 %v5172, 2147483648
      %v5252 = vxor.u32 %v5174, 2147483648
      %v5253 = vxor.u32 %v5177, 2147483648
      %v5254 = vxor.u32 %v5179, 2147483648
      %v5255 = vxor.u32 %v5182, 2147483648
      %v5256 = vxor.u32 %v5184, 2147483648
      %v5257 = vxor.u32 %v5187, 2147483648
      %v5258 = vxor.u32 %v5189, 2147483648
      %v5259 = vxor.u32 %v5192, 2147483648
      %v5260 = vxor.u32 %v5194, 2147483648
      %v5261 = vxor.u32 %v5197, 2147483648
      %v5262 = vxor.u32 %v5199, 2147483648
      %v5263 = vxor.u32 %v5202, 2147483648
      %v5264 = vxor.u32 %v5204, 2147483648
      %v5265 = vxor.u32 %v5207, 2147483648
      %v5266 = vxor.u32 %v5209, 2147483648
      %v5267 = vxor.u32 %v5212, 2147483648
      %v5268 = vxor.u32 %v5214, 2147483648
      %v5269 = vxor.u32 %v5217, 2147483648
      %v5270 = vxor.u32 %v5219, 2147483648
      %v5271 = vxor.u32 %v5222, 2147483648
      %v5272 = vxor.u32 %v5224, 2147483648
      %v5273 = vxor.u32 %v5227, 2147483648
      %v5274 = vxor.u32 %v5229, 2147483648
      %v5275 = vxor.u32 %v5232, 2147483648
      %v5276 = vxor.u32 %v5234, 2147483648
      %v5277 = vxor.u32 %v5237, 2147483648
      %v5278 = vxor.u32 %v5239, 2147483648
      %v5279 = vxor.u32 %v5242, 2147483648
      %v5280 = vxor.u32 %v5244, 2147483648
      %v5281 = vxor.u32 %v5247, 2147483648
      %v5282 = vxor.u32 %v5249, 2147483648
      %v5283 = vmul.f32 %v5251, 1.442695
      %v5284 = vpow.pop %v5283
      %v5285 = vmul.f32 %v5252, 1.442695
      %v5286 = vpow.pop %v5285
      %v5287 = vmul.f32 %v5253, 1.442695
      %v5288 = vpow.pop %v5287
      %v5289 = vmul.f32 %v5254, 1.442695
      %v5290 = vpow.pop %v5289
      %v5291 = vmul.f32 %v5255, 1.442695
      %v5292 = vpow.pop %v5291
      %v5293 = vmul.f32 %v5256, 1.442695
      %v5294 = vpow.pop %v5293
      %v5295 = vmul.f32 %v5257, 1.442695
      %v5296 = vpow.pop %v5295
      %v5297 = vmul.f32 %v5258, 1.442695
      %v5298 = vpow.pop %v5297
      %v5299 = vmul.f32 %v5259, 1.442695
      %v5300 = vpow.pop %v5299
      %v5301 = vmul.f32 %v5260, 1.442695
      %v5302 = vpow.pop %v5301
      %v5303 = vmul.f32 %v5261, 1.442695
      %v5304 = vpow.pop %v5303
      %v5305 = vmul.f32 %v5262, 1.442695
      %v5306 = vpow.pop %v5305
      %v5307 = vmul.f32 %v5263, 1.442695
      %v5308 = vpow.pop %v5307
      %v5309 = vmul.f32 %v5264, 1.442695
      %v5310 = vpow.pop %v5309
      %v5311 = vmul.f32 %v5265, 1.442695
      %v5312 = vpow.pop %v5311
      %v5313 = vmul.f32 %v5266, 1.442695
      %v5314 = vpow.pop %v5313
      %v5315 = vmul.f32 %v5267, 1.442695
      %v5316 = vpow.pop %v5315
      %v5317 = vmul.f32 %v5268, 1.442695
      %v5318 = vpow.pop %v5317
      %v5319 = vmul.f32 %v5269, 1.442695
      %v5320 = vpow.pop %v5319
      %v5321 = vmul.f32 %v5270, 1.442695
      %v5322 = vpow.pop %v5321
      %v5323 = vmul.f32 %v5271, 1.442695
      %v5324 = vpow.pop %v5323
      %v5325 = vmul.f32 %v5272, 1.442695
      %v5326 = vpow.pop %v5325
      %v5327 = vmul.f32 %v5273, 1.442695
      %v5328 = vpow.pop %v5327
      %v5329 = vmul.f32 %v5274, 1.442695
      %v5330 = vpow.pop %v5329
      %v5331 = vmul.f32 %v5275, 1.442695
      %v5332 = vpow.pop %v5331
      %v5333 = vmul.f32 %v5276, 1.442695
      %v5334 = vpow.pop %v5333
      %v5335 = vmul.f32 %v5277, 1.442695
      %v5336 = vpow.pop %v5335
      %v5337 = vmul.f32 %v5278, 1.442695
      %v5338 = vpow.pop %v5337
      %v5339 = vmul.f32 %v5279, 1.442695
      %v5340 = vpow.pop %v5339
      %v5341 = vmul.f32 %v5280, 1.442695
      %v5342 = vpow.pop %v5341
      %v5343 = vmul.f32 %v5281, 1.442695
      %v5344 = vpow.pop %v5343
      %v5345 = vmul.f32 %v5282, 1.442695
      %v5346 = vpow.pop %v5345
      %v5347 = vadd.f32 %v5284, 1.0
      %v5348 = vadd.f32 %v5286, 1.0
      %v5349 = vadd.f32 %v5288, 1.0
      %v5350 = vadd.f32 %v5290, 1.0
      %v5351 = vadd.f32 %v5292, 1.0
      %v5352 = vadd.f32 %v5294, 1.0
      %v5353 = vadd.f32 %v5296, 1.0
      %v5354 = vadd.f32 %v5298, 1.0
      %v5355 = vadd.f32 %v5300, 1.0
      %v5356 = vadd.f32 %v5302, 1.0
      %v5357 = vadd.f32 %v5304, 1.0
      %v5358 = vadd.f32 %v5306, 1.0
      %v5359 = vadd.f32 %v5308, 1.0
      %v5360 = vadd.f32 %v5310, 1.0
      %v5361 = vadd.f32 %v5312, 1.0
      %v5362 = vadd.f32 %v5314, 1.0
      %v5363 = vadd.f32 %v5316, 1.0
      %v5364 = vadd.f32 %v5318, 1.0
      %v5365 = vadd.f32 %v5320, 1.0
      %v5366 = vadd.f32 %v5322, 1.0
      %v5367 = vadd.f32 %v5324, 1.0
      %v5368 = vadd.f32 %v5326, 1.0
      %v5369 = vadd.f32 %v5328, 1.0
      %v5370 = vadd.f32 %v5330, 1.0
      %v5371 = vadd.f32 %v5332, 1.0
      %v5372 = vadd.f32 %v5334, 1.0
      %v5373 = vadd.f32 %v5336, 1.0
      %v5374 = vadd.f32 %v5338, 1.0
      %v5375 = vadd.f32 %v5340, 1.0
      %v5376 = vadd.f32 %v5342, 1.0
      %v5377 = vadd.f32 %v5344, 1.0
      %v5378 = vadd.f32 %v5346, 1.0
      %v5379 = vrcp.pop %v5347
      %v5380 = vmul.f32 %v5347, %v5379
      %v5381 = vsub.f32 1.0, %v5380
      %v5382 = vmul.f32 %v5379, %v5381
      %v5383 = vadd.f32 %v5379, %v5382
      %vm5384 = vweird.f32 %v5347
      %vm5385 = vweird.f32 %v5379
      %vm5386 = vmor %vm5384, %vm5385
      %v5387 = vsel %vm5386, %v5379, %v5383
      %v5388 = vand.u32 2147483647, %v5347
      %vm5389 = vcmp.eq.f32.partialorder %v5388, 8.507059e+37
      %v5390 = vand.u32 %v5347, 2147483648
      %v5391 = vor.u32 1.1754944e-38, %v5390
      %v5392 = vsel %vm5389, %v5391, %v5387
      %v5393 = vmul.f32 1.0, %v5392
      %v5394 = vrcp.pop %v5348
      %v5395 = vmul.f32 %v5348, %v5394
      %v5396 = vsub.f32 1.0, %v5395
      %v5397 = vmul.f32 %v5394, %v5396
      %v5398 = vadd.f32 %v5394, %v5397
      %vm5399 = vweird.f32 %v5348
      %vm5400 = vweird.f32 %v5394
      %vm5401 = vmor %vm5399, %vm5400
      %v5402 = vsel %vm5401, %v5394, %v5398
      %v5403 = vand.u32 2147483647, %v5348
      %vm5404 = vcmp.eq.f32.partialorder %v5403, 8.507059e+37
      %v5405 = vand.u32 %v5348, 2147483648
      %v5406 = vor.u32 1.1754944e-38, %v5405
      %v5407 = vsel %vm5404, %v5406, %v5402
      %v5408 = vmul.f32 1.0, %v5407
      %v5409 = vrcp.pop %v5349
      %v5410 = vmul.f32 %v5349, %v5409
      %v5411 = vsub.f32 1.0, %v5410
      %v5412 = vmul.f32 %v5409, %v5411
      %v5413 = vadd.f32 %v5409, %v5412
      %vm5414 = vweird.f32 %v5349
      %vm5415 = vweird.f32 %v5409
      %vm5416 = vmor %vm5414, %vm5415
      %v5417 = vsel %vm5416, %v5409, %v5413
      %v5418 = vand.u32 2147483647, %v5349
      %vm5419 = vcmp.eq.f32.partialorder %v5418, 8.507059e+37
      %v5420 = vand.u32 %v5349, 2147483648
      %v5421 = vor.u32 1.1754944e-38, %v5420
      %v5422 = vsel %vm5419, %v5421, %v5417
      %v5423 = vmul.f32 1.0, %v5422
      %v5424 = vrcp.pop %v5350
      %v5425 = vmul.f32 %v5350, %v5424
      %v5426 = vsub.f32 1.0, %v5425
      %v5427 = vmul.f32 %v5424, %v5426
      %v5428 = vadd.f32 %v5424, %v5427
      %vm5429 = vweird.f32 %v5350
      %vm5430 = vweird.f32 %v5424
      %vm5431 = vmor %vm5429, %vm5430
      %v5432 = vsel %vm5431, %v5424, %v5428
      %v5433 = vand.u32 2147483647, %v5350
      %vm5434 = vcmp.eq.f32.partialorder %v5433, 8.507059e+37
      %v5435 = vand.u32 %v5350, 2147483648
      %v5436 = vor.u32 1.1754944e-38, %v5435
      %v5437 = vsel %vm5434, %v5436, %v5432
      %v5438 = vmul.f32 1.0, %v5437
      %v5439 = vrcp.pop %v5351
      %v5440 = vmul.f32 %v5351, %v5439
      %v5441 = vsub.f32 1.0, %v5440
      %v5442 = vmul.f32 %v5439, %v5441
      %v5443 = vadd.f32 %v5439, %v5442
      %vm5444 = vweird.f32 %v5351
      %vm5445 = vweird.f32 %v5439
      %vm5446 = vmor %vm5444, %vm5445
      %v5447 = vsel %vm5446, %v5439, %v5443
      %v5448 = vand.u32 2147483647, %v5351
      %vm5449 = vcmp.eq.f32.partialorder %v5448, 8.507059e+37
      %v5450 = vand.u32 %v5351, 2147483648
      %v5451 = vor.u32 1.1754944e-38, %v5450
      %v5452 = vsel %vm5449, %v5451, %v5447
      %v5453 = vmul.f32 1.0, %v5452
      %v5454 = vrcp.pop %v5352
      %v5455 = vmul.f32 %v5352, %v5454
      %v5456 = vsub.f32 1.0, %v5455
      %v5457 = vmul.f32 %v5454, %v5456
      %v5458 = vadd.f32 %v5454, %v5457
      %vm5459 = vweird.f32 %v5352
      %vm5460 = vweird.f32 %v5454
      %vm5461 = vmor %vm5459, %vm5460
      %v5462 = vsel %vm5461, %v5454, %v5458
      %v5463 = vand.u32 2147483647, %v5352
      %vm5464 = vcmp.eq.f32.partialorder %v5463, 8.507059e+37
      %v5465 = vand.u32 %v5352, 2147483648
      %v5466 = vor.u32 1.1754944e-38, %v5465
      %v5467 = vsel %vm5464, %v5466, %v5462
      %v5468 = vmul.f32 1.0, %v5467
      %v5469 = vrcp.pop %v5353
      %v5470 = vmul.f32 %v5353, %v5469
      %v5471 = vsub.f32 1.0, %v5470
      %v5472 = vmul.f32 %v5469, %v5471
      %v5473 = vadd.f32 %v5469, %v5472
      %vm5474 = vweird.f32 %v5353
      %vm5475 = vweird.f32 %v5469
      %vm5476 = vmor %vm5474, %vm5475
      %v5477 = vsel %vm5476, %v5469, %v5473
      %v5478 = vand.u32 2147483647, %v5353
      %vm5479 = vcmp.eq.f32.partialorder %v5478, 8.507059e+37
      %v5480 = vand.u32 %v5353, 2147483648
      %v5481 = vor.u32 1.1754944e-38, %v5480
      %v5482 = vsel %vm5479, %v5481, %v5477
      %v5483 = vmul.f32 1.0, %v5482
      %v5484 = vrcp.pop %v5354
      %v5485 = vmul.f32 %v5354, %v5484
      %v5486 = vsub.f32 1.0, %v5485
      %v5487 = vmul.f32 %v5484, %v5486
      %v5488 = vadd.f32 %v5484, %v5487
      %vm5489 = vweird.f32 %v5354
      %vm5490 = vweird.f32 %v5484
      %vm5491 = vmor %vm5489, %vm5490
      %v5492 = vsel %vm5491, %v5484, %v5488
      %v5493 = vand.u32 2147483647, %v5354
      %vm5494 = vcmp.eq.f32.partialorder %v5493, 8.507059e+37
      %v5495 = vand.u32 %v5354, 2147483648
      %v5496 = vor.u32 1.1754944e-38, %v5495
      %v5497 = vsel %vm5494, %v5496, %v5492
      %v5498 = vmul.f32 1.0, %v5497
      %v5499 = vrcp.pop %v5355
      %v5500 = vmul.f32 %v5355, %v5499
      %v5501 = vsub.f32 1.0, %v5500
      %v5502 = vmul.f32 %v5499, %v5501
      %v5503 = vadd.f32 %v5499, %v5502
      %vm5504 = vweird.f32 %v5355
      %vm5505 = vweird.f32 %v5499
      %vm5506 = vmor %vm5504, %vm5505
      %v5507 = vsel %vm5506, %v5499, %v5503
      %v5508 = vand.u32 2147483647, %v5355
      %vm5509 = vcmp.eq.f32.partialorder %v5508, 8.507059e+37
      %v5510 = vand.u32 %v5355, 2147483648
      %v5511 = vor.u32 1.1754944e-38, %v5510
      %v5512 = vsel %vm5509, %v5511, %v5507
      %v5513 = vmul.f32 1.0, %v5512
      %v5514 = vrcp.pop %v5356
      %v5515 = vmul.f32 %v5356, %v5514
      %v5516 = vsub.f32 1.0, %v5515
      %v5517 = vmul.f32 %v5514, %v5516
      %v5518 = vadd.f32 %v5514, %v5517
      %vm5519 = vweird.f32 %v5356
      %vm5520 = vweird.f32 %v5514
      %vm5521 = vmor %vm5519, %vm5520
      %v5522 = vsel %vm5521, %v5514, %v5518
      %v5523 = vand.u32 2147483647, %v5356
      %vm5524 = vcmp.eq.f32.partialorder %v5523, 8.507059e+37
      %v5525 = vand.u32 %v5356, 2147483648
      %v5526 = vor.u32 1.1754944e-38, %v5525
      %v5527 = vsel %vm5524, %v5526, %v5522
      %v5528 = vmul.f32 1.0, %v5527
      %v5529 = vrcp.pop %v5357
      %v5530 = vmul.f32 %v5357, %v5529
      %v5531 = vsub.f32 1.0, %v5530
      %v5532 = vmul.f32 %v5529, %v5531
      %v5533 = vadd.f32 %v5529, %v5532
      %vm5534 = vweird.f32 %v5357
      %vm5535 = vweird.f32 %v5529
      %vm5536 = vmor %vm5534, %vm5535
      %v5537 = vsel %vm5536, %v5529, %v5533
      %v5538 = vand.u32 2147483647, %v5357
      %vm5539 = vcmp.eq.f32.partialorder %v5538, 8.507059e+37
      %v5540 = vand.u32 %v5357, 2147483648
      %v5541 = vor.u32 1.1754944e-38, %v5540
      %v5542 = vsel %vm5539, %v5541, %v5537
      %v5543 = vmul.f32 1.0, %v5542
      %v5544 = vrcp.pop %v5358
      %v5545 = vmul.f32 %v5358, %v5544
      %v5546 = vsub.f32 1.0, %v5545
      %v5547 = vmul.f32 %v5544, %v5546
      %v5548 = vadd.f32 %v5544, %v5547
      %vm5549 = vweird.f32 %v5358
      %vm5550 = vweird.f32 %v5544
      %vm5551 = vmor %vm5549, %vm5550
      %v5552 = vsel %vm5551, %v5544, %v5548
      %v5553 = vand.u32 2147483647, %v5358
      %vm5554 = vcmp.eq.f32.partialorder %v5553, 8.507059e+37
      %v5555 = vand.u32 %v5358, 2147483648
      %v5556 = vor.u32 1.1754944e-38, %v5555
      %v5557 = vsel %vm5554, %v5556, %v5552
      %v5558 = vmul.f32 1.0, %v5557
      %v5559 = vrcp.pop %v5359
      %v5560 = vmul.f32 %v5359, %v5559
      %v5561 = vsub.f32 1.0, %v5560
      %v5562 = vmul.f32 %v5559, %v5561
      %v5563 = vadd.f32 %v5559, %v5562
      %vm5564 = vweird.f32 %v5359
      %vm5565 = vweird.f32 %v5559
      %vm5566 = vmor %vm5564, %vm5565
      %v5567 = vsel %vm5566, %v5559, %v5563
      %v5568 = vand.u32 2147483647, %v5359
      %vm5569 = vcmp.eq.f32.partialorder %v5568, 8.507059e+37
      %v5570 = vand.u32 %v5359, 2147483648
      %v5571 = vor.u32 1.1754944e-38, %v5570
      %v5572 = vsel %vm5569, %v5571, %v5567
      %v5573 = vmul.f32 1.0, %v5572
      %v5574 = vrcp.pop %v5360
      %v5575 = vmul.f32 %v5360, %v5574
      %v5576 = vsub.f32 1.0, %v5575
      %v5577 = vmul.f32 %v5574, %v5576
      %v5578 = vadd.f32 %v5574, %v5577
      %vm5579 = vweird.f32 %v5360
      %vm5580 = vweird.f32 %v5574
      %vm5581 = vmor %vm5579, %vm5580
      %v5582 = vsel %vm5581, %v5574, %v5578
      %v5583 = vand.u32 2147483647, %v5360
      %vm5584 = vcmp.eq.f32.partialorder %v5583, 8.507059e+37
      %v5585 = vand.u32 %v5360, 2147483648
      %v5586 = vor.u32 1.1754944e-38, %v5585
      %v5587 = vsel %vm5584, %v5586, %v5582
      %v5588 = vmul.f32 1.0, %v5587
      %v5589 = vrcp.pop %v5361
      %v5590 = vmul.f32 %v5361, %v5589
      %v5591 = vsub.f32 1.0, %v5590
      %v5592 = vmul.f32 %v5589, %v5591
      %v5593 = vadd.f32 %v5589, %v5592
      %vm5594 = vweird.f32 %v5361
      %vm5595 = vweird.f32 %v5589
      %vm5596 = vmor %vm5594, %vm5595
      %v5597 = vsel %vm5596, %v5589, %v5593
      %v5598 = vand.u32 2147483647, %v5361
      %vm5599 = vcmp.eq.f32.partialorder %v5598, 8.507059e+37
      %v5600 = vand.u32 %v5361, 2147483648
      %v5601 = vor.u32 1.1754944e-38, %v5600
      %v5602 = vsel %vm5599, %v5601, %v5597
      %v5603 = vmul.f32 1.0, %v5602
      %v5604 = vrcp.pop %v5362
      %v5605 = vmul.f32 %v5362, %v5604
      %v5606 = vsub.f32 1.0, %v5605
      %v5607 = vmul.f32 %v5604, %v5606
      %v5608 = vadd.f32 %v5604, %v5607
      %vm5609 = vweird.f32 %v5362
      %vm5610 = vweird.f32 %v5604
      %vm5611 = vmor %vm5609, %vm5610
      %v5612 = vsel %vm5611, %v5604, %v5608
      %v5613 = vand.u32 2147483647, %v5362
      %vm5614 = vcmp.eq.f32.partialorder %v5613, 8.507059e+37
      %v5615 = vand.u32 %v5362, 2147483648
      %v5616 = vor.u32 1.1754944e-38, %v5615
      %v5617 = vsel %vm5614, %v5616, %v5612
      %v5618 = vmul.f32 1.0, %v5617
      %v5619 = vrcp.pop %v5363
      %v5620 = vmul.f32 %v5363, %v5619
      %v5621 = vsub.f32 1.0, %v5620
      %v5622 = vmul.f32 %v5619, %v5621
      %v5623 = vadd.f32 %v5619, %v5622
      %vm5624 = vweird.f32 %v5363
      %vm5625 = vweird.f32 %v5619
      %vm5626 = vmor %vm5624, %vm5625
      %v5627 = vsel %vm5626, %v5619, %v5623
      %v5628 = vand.u32 2147483647, %v5363
      %vm5629 = vcmp.eq.f32.partialorder %v5628, 8.507059e+37
      %v5630 = vand.u32 %v5363, 2147483648
      %v5631 = vor.u32 1.1754944e-38, %v5630
      %v5632 = vsel %vm5629, %v5631, %v5627
      %v5633 = vmul.f32 1.0, %v5632
      %v5634 = vrcp.pop %v5364
      %v5635 = vmul.f32 %v5364, %v5634
      %v5636 = vsub.f32 1.0, %v5635
      %v5637 = vmul.f32 %v5634, %v5636
      %v5638 = vadd.f32 %v5634, %v5637
      %vm5639 = vweird.f32 %v5364
      %vm5640 = vweird.f32 %v5634
      %vm5641 = vmor %vm5639, %vm5640
      %v5642 = vsel %vm5641, %v5634, %v5638
      %v5643 = vand.u32 2147483647, %v5364
      %vm5644 = vcmp.eq.f32.partialorder %v5643, 8.507059e+37
      %v5645 = vand.u32 %v5364, 2147483648
      %v5646 = vor.u32 1.1754944e-38, %v5645
      %v5647 = vsel %vm5644, %v5646, %v5642
      %v5648 = vmul.f32 1.0, %v5647
      %v5649 = vrcp.pop %v5365
      %v5650 = vmul.f32 %v5365, %v5649
      %v5651 = vsub.f32 1.0, %v5650
      %v5652 = vmul.f32 %v5649, %v5651
      %v5653 = vadd.f32 %v5649, %v5652
      %vm5654 = vweird.f32 %v5365
      %vm5655 = vweird.f32 %v5649
      %vm5656 = vmor %vm5654, %vm5655
      %v5657 = vsel %vm5656, %v5649, %v5653
      %v5658 = vand.u32 2147483647, %v5365
      %vm5659 = vcmp.eq.f32.partialorder %v5658, 8.507059e+37
      %v5660 = vand.u32 %v5365, 2147483648
      %v5661 = vor.u32 1.1754944e-38, %v5660
      %v5662 = vsel %vm5659, %v5661, %v5657
      %v5663 = vmul.f32 1.0, %v5662
      %v5664 = vrcp.pop %v5366
      %v5665 = vmul.f32 %v5366, %v5664
      %v5666 = vsub.f32 1.0, %v5665
      %v5667 = vmul.f32 %v5664, %v5666
      %v5668 = vadd.f32 %v5664, %v5667
      %vm5669 = vweird.f32 %v5366
      %vm5670 = vweird.f32 %v5664
      %vm5671 = vmor %vm5669, %vm5670
      %v5672 = vsel %vm5671, %v5664, %v5668
      %v5673 = vand.u32 2147483647, %v5366
      %vm5674 = vcmp.eq.f32.partialorder %v5673, 8.507059e+37
      %v5675 = vand.u32 %v5366, 2147483648
      %v5676 = vor.u32 1.1754944e-38, %v5675
      %v5677 = vsel %vm5674, %v5676, %v5672
      %v5678 = vmul.f32 1.0, %v5677
      %v5679 = vrcp.pop %v5367
      %v5680 = vmul.f32 %v5367, %v5679
      %v5681 = vsub.f32 1.0, %v5680
      %v5682 = vmul.f32 %v5679, %v5681
      %v5683 = vadd.f32 %v5679, %v5682
      %vm5684 = vweird.f32 %v5367
      %vm5685 = vweird.f32 %v5679
      %vm5686 = vmor %vm5684, %vm5685
      %v5687 = vsel %vm5686, %v5679, %v5683
      %v5688 = vand.u32 2147483647, %v5367
      %vm5689 = vcmp.eq.f32.partialorder %v5688, 8.507059e+37
      %v5690 = vand.u32 %v5367, 2147483648
      %v5691 = vor.u32 1.1754944e-38, %v5690
      %v5692 = vsel %vm5689, %v5691, %v5687
      %v5693 = vmul.f32 1.0, %v5692
      %v5694 = vrcp.pop %v5368
      %v5695 = vmul.f32 %v5368, %v5694
      %v5696 = vsub.f32 1.0, %v5695
      %v5697 = vmul.f32 %v5694, %v5696
      %v5698 = vadd.f32 %v5694, %v5697
      %vm5699 = vweird.f32 %v5368
      %vm5700 = vweird.f32 %v5694
      %vm5701 = vmor %vm5699, %vm5700
      %v5702 = vsel %vm5701, %v5694, %v5698
      %v5703 = vand.u32 2147483647, %v5368
      %vm5704 = vcmp.eq.f32.partialorder %v5703, 8.507059e+37
      %v5705 = vand.u32 %v5368, 2147483648
      %v5706 = vor.u32 1.1754944e-38, %v5705
      %v5707 = vsel %vm5704, %v5706, %v5702
      %v5708 = vmul.f32 1.0, %v5707
      %v5709 = vrcp.pop %v5369
      %v5710 = vmul.f32 %v5369, %v5709
      %v5711 = vsub.f32 1.0, %v5710
      %v5712 = vmul.f32 %v5709, %v5711
      %v5713 = vadd.f32 %v5709, %v5712
      %vm5714 = vweird.f32 %v5369
      %vm5715 = vweird.f32 %v5709
      %vm5716 = vmor %vm5714, %vm5715
      %v5717 = vsel %vm5716, %v5709, %v5713
      %v5718 = vand.u32 2147483647, %v5369
      %vm5719 = vcmp.eq.f32.partialorder %v5718, 8.507059e+37
      %v5720 = vand.u32 %v5369, 2147483648
      %v5721 = vor.u32 1.1754944e-38, %v5720
      %v5722 = vsel %vm5719, %v5721, %v5717
      %v5723 = vmul.f32 1.0, %v5722
      %v5724 = vrcp.pop %v5370
      %v5725 = vmul.f32 %v5370, %v5724
      %v5726 = vsub.f32 1.0, %v5725
      %v5727 = vmul.f32 %v5724, %v5726
      %v5728 = vadd.f32 %v5724, %v5727
      %vm5729 = vweird.f32 %v5370
      %vm5730 = vweird.f32 %v5724
      %vm5731 = vmor %vm5729, %vm5730
      %v5732 = vsel %vm5731, %v5724, %v5728
      %v5733 = vand.u32 2147483647, %v5370
      %vm5734 = vcmp.eq.f32.partialorder %v5733, 8.507059e+37
      %v5735 = vand.u32 %v5370, 2147483648
      %v5736 = vor.u32 1.1754944e-38, %v5735
      %v5737 = vsel %vm5734, %v5736, %v5732
      %v5738 = vmul.f32 1.0, %v5737
      %v5739 = vrcp.pop %v5371
      %v5740 = vmul.f32 %v5371, %v5739
      %v5741 = vsub.f32 1.0, %v5740
      %v5742 = vmul.f32 %v5739, %v5741
      %v5743 = vadd.f32 %v5739, %v5742
      %vm5744 = vweird.f32 %v5371
      %vm5745 = vweird.f32 %v5739
      %vm5746 = vmor %vm5744, %vm5745
      %v5747 = vsel %vm5746, %v5739, %v5743
      %v5748 = vand.u32 2147483647, %v5371
      %vm5749 = vcmp.eq.f32.partialorder %v5748, 8.507059e+37
      %v5750 = vand.u32 %v5371, 2147483648
      %v5751 = vor.u32 1.1754944e-38, %v5750
      %v5752 = vsel %vm5749, %v5751, %v5747
      %v5753 = vmul.f32 1.0, %v5752
      %v5754 = vrcp.pop %v5372
      %v5755 = vmul.f32 %v5372, %v5754
      %v5756 = vsub.f32 1.0, %v5755
      %v5757 = vmul.f32 %v5754, %v5756
      %v5758 = vadd.f32 %v5754, %v5757
      %vm5759 = vweird.f32 %v5372
      %vm5760 = vweird.f32 %v5754
      %vm5761 = vmor %vm5759, %vm5760
      %v5762 = vsel %vm5761, %v5754, %v5758
      %v5763 = vand.u32 2147483647, %v5372
      %vm5764 = vcmp.eq.f32.partialorder %v5763, 8.507059e+37
      %v5765 = vand.u32 %v5372, 2147483648
      %v5766 = vor.u32 1.1754944e-38, %v5765
      %v5767 = vsel %vm5764, %v5766, %v5762
      %v5768 = vmul.f32 1.0, %v5767
      %v5769 = vrcp.pop %v5373
      %v5770 = vmul.f32 %v5373, %v5769
      %v5771 = vsub.f32 1.0, %v5770
      %v5772 = vmul.f32 %v5769, %v5771
      %v5773 = vadd.f32 %v5769, %v5772
      %vm5774 = vweird.f32 %v5373
      %vm5775 = vweird.f32 %v5769
      %vm5776 = vmor %vm5774, %vm5775
      %v5777 = vsel %vm5776, %v5769, %v5773
      %v5778 = vand.u32 2147483647, %v5373
      %vm5779 = vcmp.eq.f32.partialorder %v5778, 8.507059e+37
      %v5780 = vand.u32 %v5373, 2147483648
      %v5781 = vor.u32 1.1754944e-38, %v5780
      %v5782 = vsel %vm5779, %v5781, %v5777
      %v5783 = vmul.f32 1.0, %v5782
      %v5784 = vrcp.pop %v5374
      %v5785 = vmul.f32 %v5374, %v5784
      %v5786 = vsub.f32 1.0, %v5785
      %v5787 = vmul.f32 %v5784, %v5786
      %v5788 = vadd.f32 %v5784, %v5787
      %vm5789 = vweird.f32 %v5374
      %vm5790 = vweird.f32 %v5784
      %vm5791 = vmor %vm5789, %vm5790
      %v5792 = vsel %vm5791, %v5784, %v5788
      %v5793 = vand.u32 2147483647, %v5374
      %vm5794 = vcmp.eq.f32.partialorder %v5793, 8.507059e+37
      %v5795 = vand.u32 %v5374, 2147483648
      %v5796 = vor.u32 1.1754944e-38, %v5795
      %v5797 = vsel %vm5794, %v5796, %v5792
      %v5798 = vmul.f32 1.0, %v5797
      %v5799 = vrcp.pop %v5375
      %v5800 = vmul.f32 %v5375, %v5799
      %v5801 = vsub.f32 1.0, %v5800
      %v5802 = vmul.f32 %v5799, %v5801
      %v5803 = vadd.f32 %v5799, %v5802
      %vm5804 = vweird.f32 %v5375
      %vm5805 = vweird.f32 %v5799
      %vm5806 = vmor %vm5804, %vm5805
      %v5807 = vsel %vm5806, %v5799, %v5803
      %v5808 = vand.u32 2147483647, %v5375
      %vm5809 = vcmp.eq.f32.partialorder %v5808, 8.507059e+37
      %v5810 = vand.u32 %v5375, 2147483648
      %v5811 = vor.u32 1.1754944e-38, %v5810
      %v5812 = vsel %vm5809, %v5811, %v5807
      %v5813 = vmul.f32 1.0, %v5812
      %v5814 = vrcp.pop %v5376
      %v5815 = vmul.f32 %v5376, %v5814
      %v5816 = vsub.f32 1.0, %v5815
      %v5817 = vmul.f32 %v5814, %v5816
      %v5818 = vadd.f32 %v5814, %v5817
      %vm5819 = vweird.f32 %v5376
      %vm5820 = vweird.f32 %v5814
      %vm5821 = vmor %vm5819, %vm5820
      %v5822 = vsel %vm5821, %v5814, %v5818
      %v5823 = vand.u32 2147483647, %v5376
      %vm5824 = vcmp.eq.f32.partialorder %v5823, 8.507059e+37
      %v5825 = vand.u32 %v5376, 2147483648
      %v5826 = vor.u32 1.1754944e-38, %v5825
      %v5827 = vsel %vm5824, %v5826, %v5822
      %v5828 = vmul.f32 1.0, %v5827
      %v5829 = vrcp.pop %v5377
      %v5830 = vmul.f32 %v5377, %v5829
      %v5831 = vsub.f32 1.0, %v5830
      %v5832 = vmul.f32 %v5829, %v5831
      %v5833 = vadd.f32 %v5829, %v5832
      %vm5834 = vweird.f32 %v5377
      %vm5835 = vweird.f32 %v5829
      %vm5836 = vmor %vm5834, %vm5835
      %v5837 = vsel %vm5836, %v5829, %v5833
      %v5838 = vand.u32 2147483647, %v5377
      %vm5839 = vcmp.eq.f32.partialorder %v5838, 8.507059e+37
      %v5840 = vand.u32 %v5377, 2147483648
      %v5841 = vor.u32 1.1754944e-38, %v5840
      %v5842 = vsel %vm5839, %v5841, %v5837
      %v5843 = vmul.f32 1.0, %v5842
      %v5844 = vrcp.pop %v5378
      %v5845 = vmul.f32 %v5378, %v5844
      %v5846 = vsub.f32 1.0, %v5845
      %v5847 = vmul.f32 %v5844, %v5846
      %v5848 = vadd.f32 %v5844, %v5847
      %vm5849 = vweird.f32 %v5378
      %vm5850 = vweird.f32 %v5844
      %vm5851 = vmor %vm5849, %vm5850
      %v5852 = vsel %vm5851, %v5844, %v5848
      %v5853 = vand.u32 2147483647, %v5378
      %vm5854 = vcmp.eq.f32.partialorder %v5853, 8.507059e+37
      %v5855 = vand.u32 %v5378, 2147483648
      %v5856 = vor.u32 1.1754944e-38, %v5855
      %v5857 = vsel %vm5854, %v5856, %v5852
      %v5858 = vmul.f32 1.0, %v5857
      %v5859 = vmul.f32 %v5172, %v5393
      %v5860 = vmul.f32 %v5174, %v5408
      %v5861 = vmul.f32 %v5177, %v5423
      %v5862 = vmul.f32 %v5179, %v5438
      %v5863 = vmul.f32 %v5182, %v5453
      %v5864 = vmul.f32 %v5184, %v5468
      %v5865 = vmul.f32 %v5187, %v5483
      %v5866 = vmul.f32 %v5189, %v5498
      %v5867 = vmul.f32 %v5192, %v5513
      %v5868 = vmul.f32 %v5194, %v5528
      %v5869 = vmul.f32 %v5197, %v5543
      %v5870 = vmul.f32 %v5199, %v5558
      %v5871 = vmul.f32 %v5202, %v5573
      %v5872 = vmul.f32 %v5204, %v5588
      %v5873 = vmul.f32 %v5207, %v5603
      %v5874 = vmul.f32 %v5209, %v5618
      %v5875 = vmul.f32 %v5212, %v5633
      %v5876 = vmul.f32 %v5214, %v5648
      %v5877 = vmul.f32 %v5217, %v5663
      %v5878 = vmul.f32 %v5219, %v5678
      %v5879 = vmul.f32 %v5222, %v5693
      %v5880 = vmul.f32 %v5224, %v5708
      %v5881 = vmul.f32 %v5227, %v5723
      %v5882 = vmul.f32 %v5229, %v5738
      %v5883 = vmul.f32 %v5232, %v5753
      %v5884 = vmul.f32 %v5234, %v5768
      %v5885 = vmul.f32 %v5237, %v5783
      %v5886 = vmul.f32 %v5239, %v5798
      %v5887 = vmul.f32 %v5242, %v5813
      %v5888 = vmul.f32 %v5244, %v5828
      %v5889 = vmul.f32 %v5247, %v5843
      %v5890 = vmul.f32 %v5249, %v5858
      %v5891 = vpack.c.bf16 %v5859, %v5859
      %v5892 = vpack.c.bf16 %v5860, %v5860
      %v5893 = vpack.c.bf16 %v5861, %v5861
      %v5894 = vpack.c.bf16 %v5862, %v5862
      %v5895 = vpack.c.bf16 %v5863, %v5863
      %v5896 = vpack.c.bf16 %v5864, %v5864
      %v5897 = vpack.c.bf16 %v5865, %v5865
      %v5898 = vpack.c.bf16 %v5866, %v5866
      %v5899 = vpack.c.bf16 %v5867, %v5867
      %v5900 = vpack.c.bf16 %v5868, %v5868
      %v5901 = vpack.c.bf16 %v5869, %v5869
      %v5902 = vpack.c.bf16 %v5870, %v5870
      %v5903 = vpack.c.bf16 %v5871, %v5871
      %v5904 = vpack.c.bf16 %v5872, %v5872
      %v5905 = vpack.c.bf16 %v5873, %v5873
      %v5906 = vpack.c.bf16 %v5874, %v5874
      %v5907 = vpack.c.bf16 %v5875, %v5875
      %v5908 = vpack.c.bf16 %v5876, %v5876
      %v5909 = vpack.c.bf16 %v5877, %v5877
      %v5910 = vpack.c.bf16 %v5878, %v5878
      %v5911 = vpack.c.bf16 %v5879, %v5879
      %v5912 = vpack.c.bf16 %v5880, %v5880
      %v5913 = vpack.c.bf16 %v5881, %v5881
      %v5914 = vpack.c.bf16 %v5882, %v5882
      %v5915 = vpack.c.bf16 %v5883, %v5883
      %v5916 = vpack.c.bf16 %v5884, %v5884
      %v5917 = vpack.c.bf16 %v5885, %v5885
      %v5918 = vpack.c.bf16 %v5886, %v5886
      %v5919 = vpack.c.bf16 %v5887, %v5887
      %v5920 = vpack.c.bf16 %v5888, %v5888
      %v5921 = vpack.c.bf16 %v5889, %v5889
      %v5922 = vpack.c.bf16 %v5890, %v5890
      %v5924 = vshrl.u32 %v5891, 16
      %v5926 = vrot.slane %v5924, 7
      %v5927 = vshll.u32 %v5891, 16
      %v5929 = vor.u32 %v5926, %v5927
      %v5930 = vrot.slane %v5926, 4
      %v5932 = vshrl.u32 %v5892, 16
      %v5934 = vrot.slane %v5932, 7
      %v5935 = vshll.u32 %v5892, 16
      %v5937 = vor.u32 %v5934, %v5935
      %v5938 = vsel %vm1724, %v5930, %v5937
      %v5939 = vrot.slane %v5934, 4
      %v5941 = vshrl.u32 %v5893, 16
      %v5943 = vrot.slane %v5941, 7
      %v5944 = vshll.u32 %v5893, 16
      %v5946 = vor.u32 %v5943, %v5944
      %v5947 = vrot.slane %v5943, 4
      %v5949 = vshrl.u32 %v5894, 16
      %v5951 = vrot.slane %v5949, 7
      %v5952 = vshll.u32 %v5894, 16
      %v5954 = vor.u32 %v5951, %v5952
      %v5955 = vsel %vm1724, %v5947, %v5954
      %v5956 = vrot.slane %v5951, 4
      %v5958 = vshrl.u32 %v5895, 16
      %v5960 = vrot.slane %v5958, 7
      %v5961 = vshll.u32 %v5895, 16
      %v5963 = vor.u32 %v5960, %v5961
      %v5964 = vrot.slane %v5960, 4
      %v5966 = vshrl.u32 %v5896, 16
      %v5968 = vrot.slane %v5966, 7
      %v5969 = vshll.u32 %v5896, 16
      %v5971 = vor.u32 %v5968, %v5969
      %v5972 = vsel %vm1724, %v5964, %v5971
      %v5973 = vrot.slane %v5968, 4
      %v5975 = vshrl.u32 %v5897, 16
      %v5977 = vrot.slane %v5975, 7
      %v5978 = vshll.u32 %v5897, 16
      %v5980 = vor.u32 %v5977, %v5978
      %v5981 = vrot.slane %v5977, 4
      %v5983 = vshrl.u32 %v5898, 16
      %v5985 = vrot.slane %v5983, 7
      %v5986 = vshll.u32 %v5898, 16
      %v5988 = vor.u32 %v5985, %v5986
      %v5989 = vsel %vm1724, %v5981, %v5988
      %v5990 = vrot.slane %v5985, 4
      %v5992 = vshrl.u32 %v5899, 16
      %v5994 = vrot.slane %v5992, 7
      %v5995 = vshll.u32 %v5899, 16
      %v5997 = vor.u32 %v5994, %v5995
      %v5998 = vrot.slane %v5994, 4
      %v6000 = vshrl.u32 %v5900, 16
      %v6002 = vrot.slane %v6000, 7
      %v6003 = vshll.u32 %v5900, 16
      %v6005 = vor.u32 %v6002, %v6003
      %v6006 = vsel %vm1724, %v5998, %v6005
      %v6007 = vrot.slane %v6002, 4
      %v6009 = vshrl.u32 %v5901, 16
      %v6011 = vrot.slane %v6009, 7
      %v6012 = vshll.u32 %v5901, 16
      %v6014 = vor.u32 %v6011, %v6012
      %v6015 = vrot.slane %v6011, 4
      %v6017 = vshrl.u32 %v5902, 16
      %v6019 = vrot.slane %v6017, 7
      %v6020 = vshll.u32 %v5902, 16
      %v6022 = vor.u32 %v6019, %v6020
      %v6023 = vsel %vm1724, %v6015, %v6022
      %v6024 = vrot.slane %v6019, 4
      %v6026 = vshrl.u32 %v5903, 16
      %v6028 = vrot.slane %v6026, 7
      %v6029 = vshll.u32 %v5903, 16
      %v6031 = vor.u32 %v6028, %v6029
      %v6032 = vrot.slane %v6028, 4
      %v6034 = vshrl.u32 %v5904, 16
      %v6036 = vrot.slane %v6034, 7
      %v6037 = vshll.u32 %v5904, 16
      %v6039 = vor.u32 %v6036, %v6037
      %v6040 = vsel %vm1724, %v6032, %v6039
      %v6041 = vrot.slane %v6036, 4
      %v6043 = vshrl.u32 %v5905, 16
      %v6045 = vrot.slane %v6043, 7
      %v6046 = vshll.u32 %v5905, 16
      %v6048 = vor.u32 %v6045, %v6046
      %v6049 = vrot.slane %v6045, 4
      %v6051 = vshrl.u32 %v5906, 16
      %v6053 = vrot.slane %v6051, 7
      %v6054 = vshll.u32 %v5906, 16
      %v6056 = vor.u32 %v6053, %v6054
      %v6057 = vsel %vm1724, %v6049, %v6056
      %v6058 = vrot.slane %v6053, 4
      %v6060 = vshrl.u32 %v5907, 16
      %v6062 = vrot.slane %v6060, 7
      %v6063 = vshll.u32 %v5907, 16
      %v6065 = vor.u32 %v6062, %v6063
      %v6066 = vrot.slane %v6062, 4
      %v6068 = vshrl.u32 %v5908, 16
      %v6070 = vrot.slane %v6068, 7
      %v6071 = vshll.u32 %v5908, 16
      %v6073 = vor.u32 %v6070, %v6071
      %v6074 = vsel %vm1724, %v6066, %v6073
      %v6075 = vrot.slane %v6070, 4
      %v6077 = vshrl.u32 %v5909, 16
      %v6079 = vrot.slane %v6077, 7
      %v6080 = vshll.u32 %v5909, 16
      %v6082 = vor.u32 %v6079, %v6080
      %v6083 = vrot.slane %v6079, 4
      %v6085 = vshrl.u32 %v5910, 16
      %v6087 = vrot.slane %v6085, 7
      %v6088 = vshll.u32 %v5910, 16
      %v6090 = vor.u32 %v6087, %v6088
      %v6091 = vsel %vm1724, %v6083, %v6090
      %v6092 = vrot.slane %v6087, 4
      %v6094 = vshrl.u32 %v5911, 16
      %v6096 = vrot.slane %v6094, 7
      %v6097 = vshll.u32 %v5911, 16
      %v6099 = vor.u32 %v6096, %v6097
      %v6100 = vrot.slane %v6096, 4
      %v6102 = vshrl.u32 %v5912, 16
      %v6104 = vrot.slane %v6102, 7
      %v6105 = vshll.u32 %v5912, 16
      %v6107 = vor.u32 %v6104, %v6105
      %v6108 = vsel %vm1724, %v6100, %v6107
      %v6109 = vrot.slane %v6104, 4
      %v6111 = vshrl.u32 %v5913, 16
      %v6113 = vrot.slane %v6111, 7
      %v6114 = vshll.u32 %v5913, 16
      %v6116 = vor.u32 %v6113, %v6114
      %v6117 = vrot.slane %v6113, 4
      %v6119 = vshrl.u32 %v5914, 16
      %v6121 = vrot.slane %v6119, 7
      %v6122 = vshll.u32 %v5914, 16
      %v6124 = vor.u32 %v6121, %v6122
      %v6125 = vsel %vm1724, %v6117, %v6124
      %v6126 = vrot.slane %v6121, 4
      %v6128 = vshrl.u32 %v5915, 16
      %v6130 = vrot.slane %v6128, 7
      %v6131 = vshll.u32 %v5915, 16
      %v6133 = vor.u32 %v6130, %v6131
      %v6134 = vrot.slane %v6130, 4
      %v6136 = vshrl.u32 %v5916, 16
      %v6138 = vrot.slane %v6136, 7
      %v6139 = vshll.u32 %v5916, 16
      %v6141 = vor.u32 %v6138, %v6139
      %v6142 = vsel %vm1724, %v6134, %v6141
      %v6143 = vrot.slane %v6138, 4
      %v6145 = vshrl.u32 %v5917, 16
      %v6147 = vrot.slane %v6145, 7
      %v6148 = vshll.u32 %v5917, 16
      %v6150 = vor.u32 %v6147, %v6148
      %v6151 = vrot.slane %v6147, 4
      %v6153 = vshrl.u32 %v5918, 16
      %v6155 = vrot.slane %v6153, 7
      %v6156 = vshll.u32 %v5918, 16
      %v6158 = vor.u32 %v6155, %v6156
      %v6159 = vsel %vm1724, %v6151, %v6158
      %v6160 = vrot.slane %v6155, 4
      %v6162 = vshrl.u32 %v5919, 16
      %v6164 = vrot.slane %v6162, 7
      %v6165 = vshll.u32 %v5919, 16
      %v6167 = vor.u32 %v6164, %v6165
      %v6168 = vrot.slane %v6164, 4
      %v6170 = vshrl.u32 %v5920, 16
      %v6172 = vrot.slane %v6170, 7
      %v6173 = vshll.u32 %v5920, 16
      %v6175 = vor.u32 %v6172, %v6173
      %v6176 = vsel %vm1724, %v6168, %v6175
      %v6177 = vrot.slane %v6172, 4
      %v6179 = vshrl.u32 %v5921, 16
      %v6181 = vrot.slane %v6179, 7
      %v6182 = vshll.u32 %v5921, 16
      %v6184 = vor.u32 %v6181, %v6182
      %v6185 = vrot.slane %v6181, 4
      %v6187 = vshrl.u32 %v5922, 16
      %v6189 = vrot.slane %v6187, 7
      %v6190 = vshll.u32 %v5922, 16
      %v6192 = vor.u32 %v6189, %v6190
      %v6193 = vsel %vm1724, %v6185, %v6192
      %v6194 = vrot.slane %v6189, 4
      %v6243 = vsel %vm2143, %v5929, %v2870
      %6244 = vst [vmem:[%s2141] sm:$0xf] %v6243
      %6245 = vst.msk [vmem:[%s2141 + $0x4] sm:$0xf] %vm388, %v5938
      %v6246 = vld [vmem:[%s2141 + $0x8] sm:$0x1]
      %v6247 = vsel %vm399, %v5939, %v6246
      %6248 = vst [vmem:[%s2141 + $0x8] sm:$0x1] %v6247
      %v6249 = vld [vmem:[%s2141 + $0xc] sm:$0xf]
      %v6250 = vsel %vm2143, %v5946, %v6249
      %6251 = vst [vmem:[%s2141 + $0xc] sm:$0xf] %v6250
      %6252 = vst.msk [vmem:[%s2141 + $0x10] sm:$0xf] %vm388, %v5955
      %v6253 = vld [vmem:[%s2141 + $0x14] sm:$0x1]
      %v6254 = vsel %vm399, %v5956, %v6253
      %6255 = vst [vmem:[%s2141 + $0x14] sm:$0x1] %v6254
      %v6256 = vld [vmem:[%s2141 + $0x18] sm:$0xf]
      %v6257 = vsel %vm2143, %v5963, %v6256
      %6258 = vst [vmem:[%s2141 + $0x18] sm:$0xf] %v6257
      %6259 = vst.msk [vmem:[%s2141 + $0x1c] sm:$0xf] %vm388, %v5972
      %v6260 = vld [vmem:[%s2141 + $0x20] sm:$0x1]
      %v6261 = vsel %vm399, %v5973, %v6260
      %6262 = vst [vmem:[%s2141 + $0x20] sm:$0x1] %v6261
      %v6263 = vld [vmem:[%s2141 + $0x24] sm:$0xf]
      %v6264 = vsel %vm2143, %v5980, %v6263
      %6265 = vst [vmem:[%s2141 + $0x24] sm:$0xf] %v6264
      %6266 = vst.msk [vmem:[%s2141 + $0x28] sm:$0xf] %vm388, %v5989
      %v6267 = vld [vmem:[%s2141 + $0x2c] sm:$0x1]
      %v6268 = vsel %vm399, %v5990, %v6267
      %6269 = vst [vmem:[%s2141 + $0x2c] sm:$0x1] %v6268
      %v6270 = vld [vmem:[%s2141 + $0x30] sm:$0xf]
      %v6271 = vsel %vm2143, %v5997, %v6270
      %6272 = vst [vmem:[%s2141 + $0x30] sm:$0xf] %v6271
      %6273 = vst.msk [vmem:[%s2141 + $0x34] sm:$0xf] %vm388, %v6006
      %v6274 = vld [vmem:[%s2141 + $0x38] sm:$0x1]
      %v6275 = vsel %vm399, %v6007, %v6274
      %6276 = vst [vmem:[%s2141 + $0x38] sm:$0x1] %v6275
      %v6277 = vld [vmem:[%s2141 + $0x3c] sm:$0xf]
      %v6278 = vsel %vm2143, %v6014, %v6277
      %6279 = vst [vmem:[%s2141 + $0x3c] sm:$0xf] %v6278
      %6280 = vst.msk [vmem:[%s2141 + $0x40] sm:$0xf] %vm388, %v6023
      %v6281 = vld [vmem:[%s2141 + $0x44] sm:$0x1]
      %v6282 = vsel %vm399, %v6024, %v6281
      %6283 = vst [vmem:[%s2141 + $0x44] sm:$0x1] %v6282
      %v6284 = vld [vmem:[%s2141 + $0x48] sm:$0xf]
      %v6285 = vsel %vm2143, %v6031, %v6284
      %6286 = vst [vmem:[%s2141 + $0x48] sm:$0xf] %v6285
      %6287 = vst.msk [vmem:[%s2141 + $0x4c] sm:$0xf] %vm388, %v6040
      %v6288 = vld [vmem:[%s2141 + $0x50] sm:$0x1]
      %v6289 = vsel %vm399, %v6041, %v6288
      %6290 = vst [vmem:[%s2141 + $0x50] sm:$0x1] %v6289
      %v6291 = vld [vmem:[%s2141 + $0x54] sm:$0xf]
      %v6292 = vsel %vm2143, %v6048, %v6291
      %6293 = vst [vmem:[%s2141 + $0x54] sm:$0xf] %v6292
      %6294 = vst.msk [vmem:[%s2141 + $0x58] sm:$0xf] %vm388, %v6057
      %v6295 = vld [vmem:[%s2141 + $0x5c] sm:$0x1]
      %v6296 = vsel %vm399, %v6058, %v6295
      %6297 = vst [vmem:[%s2141 + $0x5c] sm:$0x1] %v6296
      %v6298 = vld [vmem:[%s2141 + $0x60] sm:$0xf]
      %v6299 = vsel %vm2143, %v6065, %v6298
      %6300 = vst [vmem:[%s2141 + $0x60] sm:$0xf] %v6299
      %6301 = vst.msk [vmem:[%s2141 + $0x64] sm:$0xf] %vm388, %v6074
      %v6302 = vld [vmem:[%s2141 + $0x68] sm:$0x1]
      %v6303 = vsel %vm399, %v6075, %v6302
      %6304 = vst [vmem:[%s2141 + $0x68] sm:$0x1] %v6303
      %v6305 = vld [vmem:[%s2141 + $0x6c] sm:$0xf]
      %v6306 = vsel %vm2143, %v6082, %v6305
      %6307 = vst [vmem:[%s2141 + $0x6c] sm:$0xf] %v6306
      %6308 = vst.msk [vmem:[%s2141 + $0x70] sm:$0xf] %vm388, %v6091
      %v6309 = vld [vmem:[%s2141 + $0x74] sm:$0x1]
      %v6310 = vsel %vm399, %v6092, %v6309
      %6311 = vst [vmem:[%s2141 + $0x74] sm:$0x1] %v6310
      %v6312 = vld [vmem:[%s2141 + $0x78] sm:$0xf]
      %v6313 = vsel %vm2143, %v6099, %v6312
      %6314 = vst [vmem:[%s2141 + $0x78] sm:$0xf] %v6313
      %6315 = vst.msk [vmem:[%s2141 + $0x7c] sm:$0xf] %vm388, %v6108
      %v6316 = vld [vmem:[%s2141 + $0x80] sm:$0x1]
      %v6317 = vsel %vm399, %v6109, %v6316
      %6318 = vst [vmem:[%s2141 + $0x80] sm:$0x1] %v6317
      %v6319 = vld [vmem:[%s2141 + $0x84] sm:$0xf]
      %v6320 = vsel %vm2143, %v6116, %v6319
      %6321 = vst [vmem:[%s2141 + $0x84] sm:$0xf] %v6320
      %6322 = vst.msk [vmem:[%s2141 + $0x88] sm:$0xf] %vm388, %v6125
      %v6323 = vld [vmem:[%s2141 + $0x8c] sm:$0x1]
      %v6324 = vsel %vm399, %v6126, %v6323
      %6325 = vst [vmem:[%s2141 + $0x8c] sm:$0x1] %v6324
      %v6326 = vld [vmem:[%s2141 + $0x90] sm:$0xf]
      %v6327 = vsel %vm2143, %v6133, %v6326
      %6328 = vst [vmem:[%s2141 + $0x90] sm:$0xf] %v6327
      %6329 = vst.msk [vmem:[%s2141 + $0x94] sm:$0xf] %vm388, %v6142
      %v6330 = vld [vmem:[%s2141 + $0x98] sm:$0x1]
      %v6331 = vsel %vm399, %v6143, %v6330
      %6332 = vst [vmem:[%s2141 + $0x98] sm:$0x1] %v6331
      %v6333 = vld [vmem:[%s2141 + $0x9c] sm:$0xf]
      %v6334 = vsel %vm2143, %v6150, %v6333
      %6335 = vst [vmem:[%s2141 + $0x9c] sm:$0xf] %v6334
      %6336 = vst.msk [vmem:[%s2141 + $0xa0] sm:$0xf] %vm388, %v6159
      %v6337 = vld [vmem:[%s2141 + $0xa4] sm:$0x1]
      %v6338 = vsel %vm399, %v6160, %v6337
      %6339 = vst [vmem:[%s2141 + $0xa4] sm:$0x1] %v6338
      %v6340 = vld [vmem:[%s2141 + $0xa8] sm:$0xf]
      %v6341 = vsel %vm2143, %v6167, %v6340
      %6342 = vst [vmem:[%s2141 + $0xa8] sm:$0xf] %v6341
      %6343 = vst.msk [vmem:[%s2141 + $0xac] sm:$0xf] %vm388, %v6176
      %v6344 = vld [vmem:[%s2141 + $0xb0] sm:$0x1]
      %v6345 = vsel %vm399, %v6177, %v6344
      %6346 = vst [vmem:[%s2141 + $0xb0] sm:$0x1] %v6345
      %v6347 = vld [vmem:[%s2141 + $0xb4] sm:$0xf]
      %v6348 = vsel %vm2143, %v6184, %v6347
      %6349 = vst [vmem:[%s2141 + $0xb4] sm:$0xf] %v6348
      %6350 = vst.msk [vmem:[%s2141 + $0xb8] sm:$0xf] %vm388, %v6193
      %v6351 = vld [vmem:[%s2141 + $0xbc] sm:$0x1]
      %v6352 = vsel %vm399, %v6194, %v6351
      %6353 = vst [vmem:[%s2141 + $0xbc] sm:$0x1] %v6352
      %v6354 = vld [vmem:[#allocation2] sm:$0xf]
      %v6355 = vld [vmem:[#allocation2 + $0x4] sm:$0xf]
      %v6356 = vld [vmem:[#allocation2 + $0xc] sm:$0xf]
      %v6357 = vld [vmem:[#allocation2 + $0x10] sm:$0xf]
      %v6358 = vld [vmem:[#allocation2 + $0x18] sm:$0xf]
      %v6359 = vld [vmem:[#allocation2 + $0x1c] sm:$0xf]
      %v6360 = vld [vmem:[#allocation2 + $0x24] sm:$0xf]
      %v6361 = vld [vmem:[#allocation2 + $0x28] sm:$0xf]
      %v6362 = vld [vmem:[#allocation2 + $0x30] sm:$0xf]
      %v6363 = vld [vmem:[#allocation2 + $0x34] sm:$0xf]
      %v6364 = vld [vmem:[#allocation2 + $0x3c] sm:$0xf]
      %v6365 = vld [vmem:[#allocation2 + $0x40] sm:$0xf]
      %v6366 = vld [vmem:[#allocation2 + $0x48] sm:$0xf]
      %v6367 = vld [vmem:[#allocation2 + $0x4c] sm:$0xf]
      %v6368 = vld [vmem:[#allocation2 + $0x54] sm:$0xf]
      %v6369 = vld [vmem:[#allocation2 + $0x58] sm:$0xf]
      %v6370 = vld [vmem:[#allocation2 + $0x60] sm:$0xf]
      %v6371 = vld [vmem:[#allocation2 + $0x64] sm:$0xf]
      %v6372 = vld [vmem:[#allocation2 + $0x6c] sm:$0xf]
      %v6373 = vld [vmem:[#allocation2 + $0x70] sm:$0xf]
      %v6374 = vld [vmem:[#allocation2 + $0x78] sm:$0xf]
      %v6375 = vld [vmem:[#allocation2 + $0x7c] sm:$0xf]
      %v6376 = vld [vmem:[#allocation2 + $0x84] sm:$0xf]
      %v6377 = vld [vmem:[#allocation2 + $0x88] sm:$0xf]
      %v6378 = vld [vmem:[#allocation2 + $0x90] sm:$0xf]
      %v6379 = vld [vmem:[#allocation2 + $0x94] sm:$0xf]
      %v6380 = vld [vmem:[#allocation2 + $0x9c] sm:$0xf]
      %v6381 = vld [vmem:[#allocation2 + $0xa0] sm:$0xf]
      %v6382 = vld [vmem:[#allocation2 + $0xa8] sm:$0xf]
      %v6383 = vld [vmem:[#allocation2 + $0xac] sm:$0xf]
      %v6384 = vld [vmem:[#allocation2 + $0xb4] sm:$0xf]
      %v6385 = vld [vmem:[#allocation2 + $0xb8] sm:$0xf]
      %v6386 = vld [vmem:[#allocation2 + $0x8] sm:$0x1]
      %v6387 = vld [vmem:[#allocation2 + $0x14] sm:$0x1]
      %v6388 = vld [vmem:[#allocation2 + $0x20] sm:$0x1]
      %v6389 = vld [vmem:[#allocation2 + $0x2c] sm:$0x1]
      %v6390 = vld [vmem:[#allocation2 + $0x38] sm:$0x1]
      %v6391 = vld [vmem:[#allocation2 + $0x44] sm:$0x1]
      %v6392 = vld [vmem:[#allocation2 + $0x50] sm:$0x1]
      %v6393 = vld [vmem:[#allocation2 + $0x5c] sm:$0x1]
      %v6394 = vld [vmem:[#allocation2 + $0x68] sm:$0x1]
      %v6395 = vld [vmem:[#allocation2 + $0x74] sm:$0x1]
      %v6396 = vld [vmem:[#allocation2 + $0x80] sm:$0x1]
      %v6397 = vld [vmem:[#allocation2 + $0x8c] sm:$0x1]
      %v6398 = vld [vmem:[#allocation2 + $0x98] sm:$0x1]
      %v6399 = vld [vmem:[#allocation2 + $0xa4] sm:$0x1]
      %v6400 = vld [vmem:[#allocation2 + $0xb0] sm:$0x1]
      %v6401 = vld [vmem:[#allocation2 + $0xbc] sm:$0x1]
      %v6403 = vshrl.u32 %v6354, 16
      %v6405 = vrot.slane %v6403, 4
      %v6406 = vshll.u32 %v6354, 16
      %v6408 = vrot.slane %v6406, 5
      %v6409 = vor.u32 %v6405, %v6408
      %v6410 = vrot.slane %v6409, 4
      %v6412 = vshll.u32 %v6355, 16
      %v6414 = vrot.slane %v6412, 5
      %v6415 = vsel %vm2306, %v6410, %v6414
      %v6416 = vshrl.u32 %v6355, 16
      %v6418 = vrot.slane %v6416, 4
      %v6419 = vor.u32 %v6418, %v6414
      %v6420 = vrot.slane %v6419, 4
      %v6422 = vshll.u32 %v6386, 16
      %v6424 = vrot.slane %v6422, 5
      %v6425 = vsel %vm2306, %v6420, %v6424
      %v6427 = vshrl.u32 %v6356, 16
      %v6429 = vrot.slane %v6427, 4
      %v6430 = vshll.u32 %v6356, 16
      %v6432 = vrot.slane %v6430, 5
      %v6433 = vor.u32 %v6429, %v6432
      %v6434 = vrot.slane %v6433, 4
      %v6436 = vshll.u32 %v6357, 16
      %v6438 = vrot.slane %v6436, 5
      %v6439 = vsel %vm2306, %v6434, %v6438
      %v6440 = vshrl.u32 %v6357, 16
      %v6442 = vrot.slane %v6440, 4
      %v6443 = vor.u32 %v6442, %v6438
      %v6444 = vrot.slane %v6443, 4
      %v6446 = vshll.u32 %v6387, 16
      %v6448 = vrot.slane %v6446, 5
      %v6449 = vsel %vm2306, %v6444, %v6448
      %v6451 = vshrl.u32 %v6358, 16
      %v6453 = vrot.slane %v6451, 4
      %v6454 = vshll.u32 %v6358, 16
      %v6456 = vrot.slane %v6454, 5
      %v6457 = vor.u32 %v6453, %v6456
      %v6458 = vrot.slane %v6457, 4
      %v6460 = vshll.u32 %v6359, 16
      %v6462 = vrot.slane %v6460, 5
      %v6463 = vsel %vm2306, %v6458, %v6462
      %v6464 = vshrl.u32 %v6359, 16
      %v6466 = vrot.slane %v6464, 4
      %v6467 = vor.u32 %v6466, %v6462
      %v6468 = vrot.slane %v6467, 4
      %v6470 = vshll.u32 %v6388, 16
      %v6472 = vrot.slane %v6470, 5
      %v6473 = vsel %vm2306, %v6468, %v6472
      %v6475 = vshrl.u32 %v6360, 16
      %v6477 = vrot.slane %v6475, 4
      %v6478 = vshll.u32 %v6360, 16
      %v6480 = vrot.slane %v6478, 5
      %v6481 = vor.u32 %v6477, %v6480
      %v6482 = vrot.slane %v6481, 4
      %v6484 = vshll.u32 %v6361, 16
      %v6486 = vrot.slane %v6484, 5
      %v6487 = vsel %vm2306, %v6482, %v6486
      %v6488 = vshrl.u32 %v6361, 16
      %v6490 = vrot.slane %v6488, 4
      %v6491 = vor.u32 %v6490, %v6486
      %v6492 = vrot.slane %v6491, 4
      %v6494 = vshll.u32 %v6389, 16
      %v6496 = vrot.slane %v6494, 5
      %v6497 = vsel %vm2306, %v6492, %v6496
      %v6499 = vshrl.u32 %v6362, 16
      %v6501 = vrot.slane %v6499, 4
      %v6502 = vshll.u32 %v6362, 16
      %v6504 = vrot.slane %v6502, 5
      %v6505 = vor.u32 %v6501, %v6504
      %v6506 = vrot.slane %v6505, 4
      %v6508 = vshll.u32 %v6363, 16
      %v6510 = vrot.slane %v6508, 5
      %v6511 = vsel %vm2306, %v6506, %v6510
      %v6512 = vshrl.u32 %v6363, 16
      %v6514 = vrot.slane %v6512, 4
      %v6515 = vor.u32 %v6514, %v6510
      %v6516 = vrot.slane %v6515, 4
      %v6518 = vshll.u32 %v6390, 16
      %v6520 = vrot.slane %v6518, 5
      %v6521 = vsel %vm2306, %v6516, %v6520
      %v6523 = vshrl.u32 %v6364, 16
      %v6525 = vrot.slane %v6523, 4
      %v6526 = vshll.u32 %v6364, 16
      %v6528 = vrot.slane %v6526, 5
      %v6529 = vor.u32 %v6525, %v6528
      %v6530 = vrot.slane %v6529, 4
      %v6532 = vshll.u32 %v6365, 16
      %v6534 = vrot.slane %v6532, 5
      %v6535 = vsel %vm2306, %v6530, %v6534
      %v6536 = vshrl.u32 %v6365, 16
      %v6538 = vrot.slane %v6536, 4
      %v6539 = vor.u32 %v6538, %v6534
      %v6540 = vrot.slane %v6539, 4
      %v6542 = vshll.u32 %v6391, 16
      %v6544 = vrot.slane %v6542, 5
      %v6545 = vsel %vm2306, %v6540, %v6544
      %v6547 = vshrl.u32 %v6366, 16
      %v6549 = vrot.slane %v6547, 4
      %v6550 = vshll.u32 %v6366, 16
      %v6552 = vrot.slane %v6550, 5
      %v6553 = vor.u32 %v6549, %v6552
      %v6554 = vrot.slane %v6553, 4
      %v6556 = vshll.u32 %v6367, 16
      %v6558 = vrot.slane %v6556, 5
      %v6559 = vsel %vm2306, %v6554, %v6558
      %v6560 = vshrl.u32 %v6367, 16
      %v6562 = vrot.slane %v6560, 4
      %v6563 = vor.u32 %v6562, %v6558
      %v6564 = vrot.slane %v6563, 4
      %v6566 = vshll.u32 %v6392, 16
      %v6568 = vrot.slane %v6566, 5
      %v6569 = vsel %vm2306, %v6564, %v6568
      %v6571 = vshrl.u32 %v6368, 16
      %v6573 = vrot.slane %v6571, 4
      %v6574 = vshll.u32 %v6368, 16
      %v6576 = vrot.slane %v6574, 5
      %v6577 = vor.u32 %v6573, %v6576
      %v6578 = vrot.slane %v6577, 4
      %v6580 = vshll.u32 %v6369, 16
      %v6582 = vrot.slane %v6580, 5
      %v6583 = vsel %vm2306, %v6578, %v6582
      %v6584 = vshrl.u32 %v6369, 16
      %v6586 = vrot.slane %v6584, 4
      %v6587 = vor.u32 %v6586, %v6582
      %v6588 = vrot.slane %v6587, 4
      %v6590 = vshll.u32 %v6393, 16
      %v6592 = vrot.slane %v6590, 5
      %v6593 = vsel %vm2306, %v6588, %v6592
      %v6595 = vshrl.u32 %v6370, 16
      %v6597 = vrot.slane %v6595, 4
      %v6598 = vshll.u32 %v6370, 16
      %v6600 = vrot.slane %v6598, 5
      %v6601 = vor.u32 %v6597, %v6600
      %v6602 = vrot.slane %v6601, 4
      %v6604 = vshll.u32 %v6371, 16
      %v6606 = vrot.slane %v6604, 5
      %v6607 = vsel %vm2306, %v6602, %v6606
      %v6608 = vshrl.u32 %v6371, 16
      %v6610 = vrot.slane %v6608, 4
      %v6611 = vor.u32 %v6610, %v6606
      %v6612 = vrot.slane %v6611, 4
      %v6614 = vshll.u32 %v6394, 16
      %v6616 = vrot.slane %v6614, 5
      %v6617 = vsel %vm2306, %v6612, %v6616
      %v6619 = vshrl.u32 %v6372, 16
      %v6621 = vrot.slane %v6619, 4
      %v6622 = vshll.u32 %v6372, 16
      %v6624 = vrot.slane %v6622, 5
      %v6625 = vor.u32 %v6621, %v6624
      %v6626 = vrot.slane %v6625, 4
      %v6628 = vshll.u32 %v6373, 16
      %v6630 = vrot.slane %v6628, 5
      %v6631 = vsel %vm2306, %v6626, %v6630
      %v6632 = vshrl.u32 %v6373, 16
      %v6634 = vrot.slane %v6632, 4
      %v6635 = vor.u32 %v6634, %v6630
      %v6636 = vrot.slane %v6635, 4
      %v6638 = vshll.u32 %v6395, 16
      %v6640 = vrot.slane %v6638, 5
      %v6641 = vsel %vm2306, %v6636, %v6640
      %v6643 = vshrl.u32 %v6374, 16
      %v6645 = vrot.slane %v6643, 4
      %v6646 = vshll.u32 %v6374, 16
      %v6648 = vrot.slane %v6646, 5
      %v6649 = vor.u32 %v6645, %v6648
      %v6650 = vrot.slane %v6649, 4
      %v6652 = vshll.u32 %v6375, 16
      %v6654 = vrot.slane %v6652, 5
      %v6655 = vsel %vm2306, %v6650, %v6654
      %v6656 = vshrl.u32 %v6375, 16
      %v6658 = vrot.slane %v6656, 4
      %v6659 = vor.u32 %v6658, %v6654
      %v6660 = vrot.slane %v6659, 4
      %v6662 = vshll.u32 %v6396, 16
      %v6664 = vrot.slane %v6662, 5
      %v6665 = vsel %vm2306, %v6660, %v6664
      %v6667 = vshrl.u32 %v6376, 16
      %v6669 = vrot.slane %v6667, 4
      %v6670 = vshll.u32 %v6376, 16
      %v6672 = vrot.slane %v6670, 5
      %v6673 = vor.u32 %v6669, %v6672
      %v6674 = vrot.slane %v6673, 4
      %v6676 = vshll.u32 %v6377, 16
      %v6678 = vrot.slane %v6676, 5
      %v6679 = vsel %vm2306, %v6674, %v6678
      %v6680 = vshrl.u32 %v6377, 16
      %v6682 = vrot.slane %v6680, 4
      %v6683 = vor.u32 %v6682, %v6678
      %v6684 = vrot.slane %v6683, 4
      %v6686 = vshll.u32 %v6397, 16
      %v6688 = vrot.slane %v6686, 5
      %v6689 = vsel %vm2306, %v6684, %v6688
      %v6691 = vshrl.u32 %v6378, 16
      %v6693 = vrot.slane %v6691, 4
      %v6694 = vshll.u32 %v6378, 16
      %v6696 = vrot.slane %v6694, 5
      %v6697 = vor.u32 %v6693, %v6696
      %v6698 = vrot.slane %v6697, 4
      %v6700 = vshll.u32 %v6379, 16
      %v6702 = vrot.slane %v6700, 5
      %v6703 = vsel %vm2306, %v6698, %v6702
      %v6704 = vshrl.u32 %v6379, 16
      %v6706 = vrot.slane %v6704, 4
      %v6707 = vor.u32 %v6706, %v6702
      %v6708 = vrot.slane %v6707, 4
      %v6710 = vshll.u32 %v6398, 16
      %v6712 = vrot.slane %v6710, 5
      %v6713 = vsel %vm2306, %v6708, %v6712
      %v6715 = vshrl.u32 %v6380, 16
      %v6717 = vrot.slane %v6715, 4
      %v6718 = vshll.u32 %v6380, 16
      %v6720 = vrot.slane %v6718, 5
      %v6721 = vor.u32 %v6717, %v6720
      %v6722 = vrot.slane %v6721, 4
      %v6724 = vshll.u32 %v6381, 16
      %v6726 = vrot.slane %v6724, 5
      %v6727 = vsel %vm2306, %v6722, %v6726
      %v6728 = vshrl.u32 %v6381, 16
      %v6730 = vrot.slane %v6728, 4
      %v6731 = vor.u32 %v6730, %v6726
      %v6732 = vrot.slane %v6731, 4
      %v6734 = vshll.u32 %v6399, 16
      %v6736 = vrot.slane %v6734, 5
      %v6737 = vsel %vm2306, %v6732, %v6736
      %v6739 = vshrl.u32 %v6382, 16
      %v6741 = vrot.slane %v6739, 4
      %v6742 = vshll.u32 %v6382, 16
      %v6744 = vrot.slane %v6742, 5
      %v6745 = vor.u32 %v6741, %v6744
      %v6746 = vrot.slane %v6745, 4
      %v6748 = vshll.u32 %v6383, 16
      %v6750 = vrot.slane %v6748, 5
      %v6751 = vsel %vm2306, %v6746, %v6750
      %v6752 = vshrl.u32 %v6383, 16
      %v6754 = vrot.slane %v6752, 4
      %v6755 = vor.u32 %v6754, %v6750
      %v6756 = vrot.slane %v6755, 4
      %v6758 = vshll.u32 %v6400, 16
      %v6760 = vrot.slane %v6758, 5
      %v6761 = vsel %vm2306, %v6756, %v6760
      %v6763 = vshrl.u32 %v6384, 16
      %v6765 = vrot.slane %v6763, 4
      %v6766 = vshll.u32 %v6384, 16
      %v6768 = vrot.slane %v6766, 5
      %v6769 = vor.u32 %v6765, %v6768
      %v6770 = vrot.slane %v6769, 4
      %v6772 = vshll.u32 %v6385, 16
      %v6774 = vrot.slane %v6772, 5
      %v6775 = vsel %vm2306, %v6770, %v6774
      %v6776 = vshrl.u32 %v6385, 16
      %v6778 = vrot.slane %v6776, 4
      %v6779 = vor.u32 %v6778, %v6774
      %v6780 = vrot.slane %v6779, 4
      %v6782 = vshll.u32 %v6401, 16
      %v6784 = vrot.slane %v6782, 5
      %v6785 = vsel %vm2306, %v6780, %v6784
      %v6786 = vld [vmem:[#allocation2] sm:$0xe]
      %v6787 = vld [vmem:[#allocation2 + $0xc] sm:$0xe]
      %v6788 = vld [vmem:[#allocation2 + $0x18] sm:$0xe]
      %v6789 = vld [vmem:[#allocation2 + $0x24] sm:$0xe]
      %v6790 = vld [vmem:[#allocation2 + $0x30] sm:$0xe]
      %v6791 = vld [vmem:[#allocation2 + $0x3c] sm:$0xe]
      %v6792 = vld [vmem:[#allocation2 + $0x48] sm:$0xe]
      %v6793 = vld [vmem:[#allocation2 + $0x54] sm:$0xe]
      %v6794 = vld [vmem:[#allocation2 + $0x60] sm:$0xe]
      %v6795 = vld [vmem:[#allocation2 + $0x6c] sm:$0xe]
      %v6796 = vld [vmem:[#allocation2 + $0x78] sm:$0xe]
      %v6797 = vld [vmem:[#allocation2 + $0x84] sm:$0xe]
      %v6798 = vld [vmem:[#allocation2 + $0x90] sm:$0xe]
      %v6799 = vld [vmem:[#allocation2 + $0x9c] sm:$0xe]
      %v6800 = vld [vmem:[#allocation2 + $0xa8] sm:$0xe]
      %v6801 = vld [vmem:[#allocation2 + $0xb4] sm:$0xe]
      %v6850 = vrot.slane %v6786, 5
      %v6851 = vrot.slane %v6850, 4
      %v6852 = vrot.slane %v6355, 5
      %v6853 = vsel %vm2757, %v6851, %v6852
      %v6854 = vrot.slane %v6852, 4
      %v6855 = vrot.slane %v6386, 5
      %v6856 = vsel %vm2757, %v6854, %v6855
      %v6857 = vrot.slane %v6787, 5
      %v6858 = vrot.slane %v6857, 4
      %v6859 = vrot.slane %v6357, 5
      %v6860 = vsel %vm2757, %v6858, %v6859
      %v6861 = vrot.slane %v6859, 4
      %v6862 = vrot.slane %v6387, 5
      %v6863 = vsel %vm2757, %v6861, %v6862
      %v6864 = vrot.slane %v6788, 5
      %v6865 = vrot.slane %v6864, 4
      %v6866 = vrot.slane %v6359, 5
      %v6867 = vsel %vm2757, %v6865, %v6866
      %v6868 = vrot.slane %v6866, 4
      %v6869 = vrot.slane %v6388, 5
      %v6870 = vsel %vm2757, %v6868, %v6869
      %v6871 = vrot.slane %v6789, 5
      %v6872 = vrot.slane %v6871, 4
      %v6873 = vrot.slane %v6361, 5
      %v6874 = vsel %vm2757, %v6872, %v6873
      %v6875 = vrot.slane %v6873, 4
      %v6876 = vrot.slane %v6389, 5
      %v6877 = vsel %vm2757, %v6875, %v6876
      %v6878 = vrot.slane %v6790, 5
      %v6879 = vrot.slane %v6878, 4
      %v6880 = vrot.slane %v6363, 5
      %v6881 = vsel %vm2757, %v6879, %v6880
      %v6882 = vrot.slane %v6880, 4
      %v6883 = vrot.slane %v6390, 5
      %v6884 = vsel %vm2757, %v6882, %v6883
      %v6885 = vrot.slane %v6791, 5
      %v6886 = vrot.slane %v6885, 4
      %v6887 = vrot.slane %v6365, 5
      %v6888 = vsel %vm2757, %v6886, %v6887
      %v6889 = vrot.slane %v6887, 4
      %v6890 = vrot.slane %v6391, 5
      %v6891 = vsel %vm2757, %v6889, %v6890
      %v6892 = vrot.slane %v6792, 5
      %v6893 = vrot.slane %v6892, 4
      %v6894 = vrot.slane %v6367, 5
      %v6895 = vsel %vm2757, %v6893, %v6894
      %v6896 = vrot.slane %v6894, 4
      %v6897 = vrot.slane %v6392, 5
      %v6898 = vsel %vm2757, %v6896, %v6897
      %v6899 = vrot.slane %v6793, 5
      %v6900 = vrot.slane %v6899, 4
      %v6901 = vrot.slane %v6369, 5
      %v6902 = vsel %vm2757, %v6900, %v6901
      %v6903 = vrot.slane %v6901, 4
      %v6904 = vrot.slane %v6393, 5
      %v6905 = vsel %vm2757, %v6903, %v6904
      %v6906 = vrot.slane %v6794, 5
      %v6907 = vrot.slane %v6906, 4
      %v6908 = vrot.slane %v6371, 5
      %v6909 = vsel %vm2757, %v6907, %v6908
      %v6910 = vrot.slane %v6908, 4
      %v6911 = vrot.slane %v6394, 5
      %v6912 = vsel %vm2757, %v6910, %v6911
      %v6913 = vrot.slane %v6795, 5
      %v6914 = vrot.slane %v6913, 4
      %v6915 = vrot.slane %v6373, 5
      %v6916 = vsel %vm2757, %v6914, %v6915
      %v6917 = vrot.slane %v6915, 4
      %v6918 = vrot.slane %v6395, 5
      %v6919 = vsel %vm2757, %v6917, %v6918
      %v6920 = vrot.slane %v6796, 5
      %v6921 = vrot.slane %v6920, 4
      %v6922 = vrot.slane %v6375, 5
      %v6923 = vsel %vm2757, %v6921, %v6922
      %v6924 = vrot.slane %v6922, 4
      %v6925 = vrot.slane %v6396, 5
      %v6926 = vsel %vm2757, %v6924, %v6925
      %v6927 = vrot.slane %v6797, 5
      %v6928 = vrot.slane %v6927, 4
      %v6929 = vrot.slane %v6377, 5
      %v6930 = vsel %vm2757, %v6928, %v6929
      %v6931 = vrot.slane %v6929, 4
      %v6932 = vrot.slane %v6397, 5
      %v6933 = vsel %vm2757, %v6931, %v6932
      %v6934 = vrot.slane %v6798, 5
      %v6935 = vrot.slane %v6934, 4
      %v6936 = vrot.slane %v6379, 5
      %v6937 = vsel %vm2757, %v6935, %v6936
      %v6938 = vrot.slane %v6936, 4
      %v6939 = vrot.slane %v6398, 5
      %v6940 = vsel %vm2757, %v6938, %v6939
      %v6941 = vrot.slane %v6799, 5
      %v6942 = vrot.slane %v6941, 4
      %v6943 = vrot.slane %v6381, 5
      %v6944 = vsel %vm2757, %v6942, %v6943
      %v6945 = vrot.slane %v6943, 4
      %v6946 = vrot.slane %v6399, 5
      %v6947 = vsel %vm2757, %v6945, %v6946
      %v6948 = vrot.slane %v6800, 5
      %v6949 = vrot.slane %v6948, 4
      %v6950 = vrot.slane %v6383, 5
      %v6951 = vsel %vm2757, %v6949, %v6950
      %v6952 = vrot.slane %v6950, 4
      %v6953 = vrot.slane %v6400, 5
      %v6954 = vsel %vm2757, %v6952, %v6953
      %v6955 = vrot.slane %v6801, 5
      %v6956 = vrot.slane %v6955, 4
      %v6957 = vrot.slane %v6385, 5
      %v6958 = vsel %vm2757, %v6956, %v6957
      %v6959 = vrot.slane %v6957, 4
      %v6960 = vrot.slane %v6401, 5
      %v6961 = vsel %vm2757, %v6959, %v6960
      %v6962 = vld [vmem:[%s2141] sm:$0xf]
      %v6963 = vld [vmem:[%s2141 + $0x4] sm:$0xf]
      %v6964 = vld [vmem:[%s2141 + $0xc] sm:$0xf]
      %v6965 = vld [vmem:[%s2141 + $0x10] sm:$0xf]
      %v6966 = vld [vmem:[%s2141 + $0x18] sm:$0xf]
      %v6967 = vld [vmem:[%s2141 + $0x1c] sm:$0xf]
      %v6968 = vld [vmem:[%s2141 + $0x24] sm:$0xf]
      %v6969 = vld [vmem:[%s2141 + $0x28] sm:$0xf]
      %v6970 = vld [vmem:[%s2141 + $0x30] sm:$0xf]
      %v6971 = vld [vmem:[%s2141 + $0x34] sm:$0xf]
      %v6972 = vld [vmem:[%s2141 + $0x3c] sm:$0xf]
      %v6973 = vld [vmem:[%s2141 + $0x40] sm:$0xf]
      %v6974 = vld [vmem:[%s2141 + $0x48] sm:$0xf]
      %v6975 = vld [vmem:[%s2141 + $0x4c] sm:$0xf]
      %v6976 = vld [vmem:[%s2141 + $0x54] sm:$0xf]
      %v6977 = vld [vmem:[%s2141 + $0x58] sm:$0xf]
      %v6978 = vld [vmem:[%s2141 + $0x60] sm:$0xf]
      %v6979 = vld [vmem:[%s2141 + $0x64] sm:$0xf]
      %v6980 = vld [vmem:[%s2141 + $0x6c] sm:$0xf]
      %v6981 = vld [vmem:[%s2141 + $0x70] sm:$0xf]
      %v6982 = vld [vmem:[%s2141 + $0x78] sm:$0xf]
      %v6983 = vld [vmem:[%s2141 + $0x7c] sm:$0xf]
      %v6984 = vld [vmem:[%s2141 + $0x84] sm:$0xf]
      %v6985 = vld [vmem:[%s2141 + $0x88] sm:$0xf]
      %v6986 = vld [vmem:[%s2141 + $0x90] sm:$0xf]
      %v6987 = vld [vmem:[%s2141 + $0x94] sm:$0xf]
      %v6988 = vld [vmem:[%s2141 + $0x9c] sm:$0xf]
      %v6989 = vld [vmem:[%s2141 + $0xa0] sm:$0xf]
      %v6990 = vld [vmem:[%s2141 + $0xa8] sm:$0xf]
      %v6991 = vld [vmem:[%s2141 + $0xac] sm:$0xf]
      %v6992 = vld [vmem:[%s2141 + $0xb4] sm:$0xf]
      %v6993 = vld [vmem:[%s2141 + $0xb8] sm:$0xf]
      %v6994 = vld [vmem:[%s2141 + $0x8] sm:$0x1]
      %v6995 = vld [vmem:[%s2141 + $0x14] sm:$0x1]
      %v6996 = vld [vmem:[%s2141 + $0x20] sm:$0x1]
      %v6997 = vld [vmem:[%s2141 + $0x2c] sm:$0x1]
      %v6998 = vld [vmem:[%s2141 + $0x38] sm:$0x1]
      %v6999 = vld [vmem:[%s2141 + $0x44] sm:$0x1]
      %v7000 = vld [vmem:[%s2141 + $0x50] sm:$0x1]
      %v7001 = vld [vmem:[%s2141 + $0x5c] sm:$0x1]
      %v7002 = vld [vmem:[%s2141 + $0x68] sm:$0x1]
      %v7003 = vld [vmem:[%s2141 + $0x74] sm:$0x1]
      %v7004 = vld [vmem:[%s2141 + $0x80] sm:$0x1]
      %v7005 = vld [vmem:[%s2141 + $0x8c] sm:$0x1]
      %v7006 = vld [vmem:[%s2141 + $0x98] sm:$0x1]
      %v7007 = vld [vmem:[%s2141 + $0xa4] sm:$0x1]
      %v7008 = vld [vmem:[%s2141 + $0xb0] sm:$0x1]
      %v7009 = vld [vmem:[%s2141 + $0xbc] sm:$0x1]
      %v7011 = vshrl.u32 %v6962, 16
      %v7013 = vrot.slane %v7011, 4
      %v7014 = vshll.u32 %v6962, 16
      %v7016 = vrot.slane %v7014, 5
      %v7017 = vor.u32 %v7013, %v7016
      %v7018 = vrot.slane %v7017, 4
      %v7020 = vshll.u32 %v6963, 16
      %v7022 = vrot.slane %v7020, 5
      %v7023 = vsel %vm2306, %v7018, %v7022
      %v7024 = vshrl.u32 %v6963, 16
      %v7026 = vrot.slane %v7024, 4
      %v7027 = vor.u32 %v7026, %v7022
      %v7028 = vrot.slane %v7027, 4
      %v7030 = vshll.u32 %v6994, 16
      %v7032 = vrot.slane %v7030, 5
      %v7033 = vsel %vm2306, %v7028, %v7032
      %v7035 = vshrl.u32 %v6964, 16
      %v7037 = vrot.slane %v7035, 4
      %v7038 = vshll.u32 %v6964, 16
      %v7040 = vrot.slane %v7038, 5
      %v7041 = vor.u32 %v7037, %v7040
      %v7042 = vrot.slane %v7041, 4
      %v7044 = vshll.u32 %v6965, 16
      %v7046 = vrot.slane %v7044, 5
      %v7047 = vsel %vm2306, %v7042, %v7046
      %v7048 = vshrl.u32 %v6965, 16
      %v7050 = vrot.slane %v7048, 4
      %v7051 = vor.u32 %v7050, %v7046
      %v7052 = vrot.slane %v7051, 4
      %v7054 = vshll.u32 %v6995, 16
      %v7056 = vrot.slane %v7054, 5
      %v7057 = vsel %vm2306, %v7052, %v7056
      %v7059 = vshrl.u32 %v6966, 16
      %v7061 = vrot.slane %v7059, 4
      %v7062 = vshll.u32 %v6966, 16
      %v7064 = vrot.slane %v7062, 5
      %v7065 = vor.u32 %v7061, %v7064
      %v7066 = vrot.slane %v7065, 4
      %v7068 = vshll.u32 %v6967, 16
      %v7070 = vrot.slane %v7068, 5
      %v7071 = vsel %vm2306, %v7066, %v7070
      %v7072 = vshrl.u32 %v6967, 16
      %v7074 = vrot.slane %v7072, 4
      %v7075 = vor.u32 %v7074, %v7070
      %v7076 = vrot.slane %v7075, 4
      %v7078 = vshll.u32 %v6996, 16
      %v7080 = vrot.slane %v7078, 5
      %v7081 = vsel %vm2306, %v7076, %v7080
      %v7083 = vshrl.u32 %v6968, 16
      %v7085 = vrot.slane %v7083, 4
      %v7086 = vshll.u32 %v6968, 16
      %v7088 = vrot.slane %v7086, 5
      %v7089 = vor.u32 %v7085, %v7088
      %v7090 = vrot.slane %v7089, 4
      %v7092 = vshll.u32 %v6969, 16
      %v7094 = vrot.slane %v7092, 5
      %v7095 = vsel %vm2306, %v7090, %v7094
      %v7096 = vshrl.u32 %v6969, 16
      %v7098 = vrot.slane %v7096, 4
      %v7099 = vor.u32 %v7098, %v7094
      %v7100 = vrot.slane %v7099, 4
      %v7102 = vshll.u32 %v6997, 16
      %v7104 = vrot.slane %v7102, 5
      %v7105 = vsel %vm2306, %v7100, %v7104
      %v7107 = vshrl.u32 %v6970, 16
      %v7109 = vrot.slane %v7107, 4
      %v7110 = vshll.u32 %v6970, 16
      %v7112 = vrot.slane %v7110, 5
      %v7113 = vor.u32 %v7109, %v7112
      %v7114 = vrot.slane %v7113, 4
      %v7116 = vshll.u32 %v6971, 16
      %v7118 = vrot.slane %v7116, 5
      %v7119 = vsel %vm2306, %v7114, %v7118
      %v7120 = vshrl.u32 %v6971, 16
      %v7122 = vrot.slane %v7120, 4
      %v7123 = vor.u32 %v7122, %v7118
      %v7124 = vrot.slane %v7123, 4
      %v7126 = vshll.u32 %v6998, 16
      %v7128 = vrot.slane %v7126, 5
      %v7129 = vsel %vm2306, %v7124, %v7128
      %v7131 = vshrl.u32 %v6972, 16
      %v7133 = vrot.slane %v7131, 4
      %v7134 = vshll.u32 %v6972, 16
      %v7136 = vrot.slane %v7134, 5
      %v7137 = vor.u32 %v7133, %v7136
      %v7138 = vrot.slane %v7137, 4
      %v7140 = vshll.u32 %v6973, 16
      %v7142 = vrot.slane %v7140, 5
      %v7143 = vsel %vm2306, %v7138, %v7142
      %v7144 = vshrl.u32 %v6973, 16
      %v7146 = vrot.slane %v7144, 4
      %v7147 = vor.u32 %v7146, %v7142
      %v7148 = vrot.slane %v7147, 4
      %v7150 = vshll.u32 %v6999, 16
      %v7152 = vrot.slane %v7150, 5
      %v7153 = vsel %vm2306, %v7148, %v7152
      %v7155 = vshrl.u32 %v6974, 16
      %v7157 = vrot.slane %v7155, 4
      %v7158 = vshll.u32 %v6974, 16
      %v7160 = vrot.slane %v7158, 5
      %v7161 = vor.u32 %v7157, %v7160
      %v7162 = vrot.slane %v7161, 4
      %v7164 = vshll.u32 %v6975, 16
      %v7166 = vrot.slane %v7164, 5
      %v7167 = vsel %vm2306, %v7162, %v7166
      %v7168 = vshrl.u32 %v6975, 16
      %v7170 = vrot.slane %v7168, 4
      %v7171 = vor.u32 %v7170, %v7166
      %v7172 = vrot.slane %v7171, 4
      %v7174 = vshll.u32 %v7000, 16
      %v7176 = vrot.slane %v7174, 5
      %v7177 = vsel %vm2306, %v7172, %v7176
      %v7179 = vshrl.u32 %v6976, 16
      %v7181 = vrot.slane %v7179, 4
      %v7182 = vshll.u32 %v6976, 16
      %v7184 = vrot.slane %v7182, 5
      %v7185 = vor.u32 %v7181, %v7184
      %v7186 = vrot.slane %v7185, 4
      %v7188 = vshll.u32 %v6977, 16
      %v7190 = vrot.slane %v7188, 5
      %v7191 = vsel %vm2306, %v7186, %v7190
      %v7192 = vshrl.u32 %v6977, 16
      %v7194 = vrot.slane %v7192, 4
      %v7195 = vor.u32 %v7194, %v7190
      %v7196 = vrot.slane %v7195, 4
      %v7198 = vshll.u32 %v7001, 16
      %v7200 = vrot.slane %v7198, 5
      %v7201 = vsel %vm2306, %v7196, %v7200
      %v7203 = vshrl.u32 %v6978, 16
      %v7205 = vrot.slane %v7203, 4
      %v7206 = vshll.u32 %v6978, 16
      %v7208 = vrot.slane %v7206, 5
      %v7209 = vor.u32 %v7205, %v7208
      %v7210 = vrot.slane %v7209, 4
      %v7212 = vshll.u32 %v6979, 16
      %v7214 = vrot.slane %v7212, 5
      %v7215 = vsel %vm2306, %v7210, %v7214
      %v7216 = vshrl.u32 %v6979, 16
      %v7218 = vrot.slane %v7216, 4
      %v7219 = vor.u32 %v7218, %v7214
      %v7220 = vrot.slane %v7219, 4
      %v7222 = vshll.u32 %v7002, 16
      %v7224 = vrot.slane %v7222, 5
      %v7225 = vsel %vm2306, %v7220, %v7224
      %v7227 = vshrl.u32 %v6980, 16
      %v7229 = vrot.slane %v7227, 4
      %v7230 = vshll.u32 %v6980, 16
      %v7232 = vrot.slane %v7230, 5
      %v7233 = vor.u32 %v7229, %v7232
      %v7234 = vrot.slane %v7233, 4
      %v7236 = vshll.u32 %v6981, 16
      %v7238 = vrot.slane %v7236, 5
      %v7239 = vsel %vm2306, %v7234, %v7238
      %v7240 = vshrl.u32 %v6981, 16
      %v7242 = vrot.slane %v7240, 4
      %v7243 = vor.u32 %v7242, %v7238
      %v7244 = vrot.slane %v7243, 4
      %v7246 = vshll.u32 %v7003, 16
      %v7248 = vrot.slane %v7246, 5
      %v7249 = vsel %vm2306, %v7244, %v7248
      %v7251 = vshrl.u32 %v6982, 16
      %v7253 = vrot.slane %v7251, 4
      %v7254 = vshll.u32 %v6982, 16
      %v7256 = vrot.slane %v7254, 5
      %v7257 = vor.u32 %v7253, %v7256
      %v7258 = vrot.slane %v7257, 4
      %v7260 = vshll.u32 %v6983, 16
      %v7262 = vrot.slane %v7260, 5
      %v7263 = vsel %vm2306, %v7258, %v7262
      %v7264 = vshrl.u32 %v6983, 16
      %v7266 = vrot.slane %v7264, 4
      %v7267 = vor.u32 %v7266, %v7262
      %v7268 = vrot.slane %v7267, 4
      %v7270 = vshll.u32 %v7004, 16
      %v7272 = vrot.slane %v7270, 5
      %v7273 = vsel %vm2306, %v7268, %v7272
      %v7275 = vshrl.u32 %v6984, 16
      %v7277 = vrot.slane %v7275, 4
      %v7278 = vshll.u32 %v6984, 16
      %v7280 = vrot.slane %v7278, 5
      %v7281 = vor.u32 %v7277, %v7280
      %v7282 = vrot.slane %v7281, 4
      %v7284 = vshll.u32 %v6985, 16
      %v7286 = vrot.slane %v7284, 5
      %v7287 = vsel %vm2306, %v7282, %v7286
      %v7288 = vshrl.u32 %v6985, 16
      %v7290 = vrot.slane %v7288, 4
      %v7291 = vor.u32 %v7290, %v7286
      %v7292 = vrot.slane %v7291, 4
      %v7294 = vshll.u32 %v7005, 16
      %v7296 = vrot.slane %v7294, 5
      %v7297 = vsel %vm2306, %v7292, %v7296
      %v7299 = vshrl.u32 %v6986, 16
      %v7301 = vrot.slane %v7299, 4
      %v7302 = vshll.u32 %v6986, 16
      %v7304 = vrot.slane %v7302, 5
      %v7305 = vor.u32 %v7301, %v7304
      %v7306 = vrot.slane %v7305, 4
      %v7308 = vshll.u32 %v6987, 16
      %v7310 = vrot.slane %v7308, 5
      %v7311 = vsel %vm2306, %v7306, %v7310
      %v7312 = vshrl.u32 %v6987, 16
      %v7314 = vrot.slane %v7312, 4
      %v7315 = vor.u32 %v7314, %v7310
      %v7316 = vrot.slane %v7315, 4
      %v7318 = vshll.u32 %v7006, 16
      %v7320 = vrot.slane %v7318, 5
      %v7321 = vsel %vm2306, %v7316, %v7320
      %v7323 = vshrl.u32 %v6988, 16
      %v7325 = vrot.slane %v7323, 4
      %v7326 = vshll.u32 %v6988, 16
      %v7328 = vrot.slane %v7326, 5
      %v7329 = vor.u32 %v7325, %v7328
      %v7330 = vrot.slane %v7329, 4
      %v7332 = vshll.u32 %v6989, 16
      %v7334 = vrot.slane %v7332, 5
      %v7335 = vsel %vm2306, %v7330, %v7334
      %v7336 = vshrl.u32 %v6989, 16
      %v7338 = vrot.slane %v7336, 4
      %v7339 = vor.u32 %v7338, %v7334
      %v7340 = vrot.slane %v7339, 4
      %v7342 = vshll.u32 %v7007, 16
      %v7344 = vrot.slane %v7342, 5
      %v7345 = vsel %vm2306, %v7340, %v7344
      %v7347 = vshrl.u32 %v6990, 16
      %v7349 = vrot.slane %v7347, 4
      %v7350 = vshll.u32 %v6990, 16
      %v7352 = vrot.slane %v7350, 5
      %v7353 = vor.u32 %v7349, %v7352
      %v7354 = vrot.slane %v7353, 4
      %v7356 = vshll.u32 %v6991, 16
      %v7358 = vrot.slane %v7356, 5
      %v7359 = vsel %vm2306, %v7354, %v7358
      %v7360 = vshrl.u32 %v6991, 16
      %v7362 = vrot.slane %v7360, 4
      %v7363 = vor.u32 %v7362, %v7358
      %v7364 = vrot.slane %v7363, 4
      %v7366 = vshll.u32 %v7008, 16
      %v7368 = vrot.slane %v7366, 5
      %v7369 = vsel %vm2306, %v7364, %v7368
      %v7371 = vshrl.u32 %v6992, 16
      %v7373 = vrot.slane %v7371, 4
      %v7374 = vshll.u32 %v6992, 16
      %v7376 = vrot.slane %v7374, 5
      %v7377 = vor.u32 %v7373, %v7376
      %v7378 = vrot.slane %v7377, 4
      %v7380 = vshll.u32 %v6993, 16
      %v7382 = vrot.slane %v7380, 5
      %v7383 = vsel %vm2306, %v7378, %v7382
      %v7384 = vshrl.u32 %v6993, 16
      %v7386 = vrot.slane %v7384, 4
      %v7387 = vor.u32 %v7386, %v7382
      %v7388 = vrot.slane %v7387, 4
      %v7390 = vshll.u32 %v7009, 16
      %v7392 = vrot.slane %v7390, 5
      %v7393 = vsel %vm2306, %v7388, %v7392
      %v7394 = vld [vmem:[%s2141] sm:$0xe]
      %v7395 = vld [vmem:[%s2141 + $0xc] sm:$0xe]
      %v7396 = vld [vmem:[%s2141 + $0x18] sm:$0xe]
      %v7397 = vld [vmem:[%s2141 + $0x24] sm:$0xe]
      %v7398 = vld [vmem:[%s2141 + $0x30] sm:$0xe]
      %v7399 = vld [vmem:[%s2141 + $0x3c] sm:$0xe]
      %v7400 = vld [vmem:[%s2141 + $0x48] sm:$0xe]
      %v7401 = vld [vmem:[%s2141 + $0x54] sm:$0xe]
      %v7402 = vld [vmem:[%s2141 + $0x60] sm:$0xe]
      %v7403 = vld [vmem:[%s2141 + $0x6c] sm:$0xe]
      %v7404 = vld [vmem:[%s2141 + $0x78] sm:$0xe]
      %v7405 = vld [vmem:[%s2141 + $0x84] sm:$0xe]
      %v7406 = vld [vmem:[%s2141 + $0x90] sm:$0xe]
      %v7407 = vld [vmem:[%s2141 + $0x9c] sm:$0xe]
      %v7408 = vld [vmem:[%s2141 + $0xa8] sm:$0xe]
      %v7409 = vld [vmem:[%s2141 + $0xb4] sm:$0xe]
      %v7458 = vrot.slane %v7394, 5
      %v7459 = vrot.slane %v7458, 4
      %v7460 = vrot.slane %v6963, 5
      %v7461 = vsel %vm2757, %v7459, %v7460
      %v7462 = vrot.slane %v7460, 4
      %v7463 = vrot.slane %v6994, 5
      %v7464 = vsel %vm2757, %v7462, %v7463
      %v7465 = vrot.slane %v7395, 5
      %v7466 = vrot.slane %v7465, 4
      %v7467 = vrot.slane %v6965, 5
      %v7468 = vsel %vm2757, %v7466, %v7467
      %v7469 = vrot.slane %v7467, 4
      %v7470 = vrot.slane %v6995, 5
      %v7471 = vsel %vm2757, %v7469, %v7470
      %v7472 = vrot.slane %v7396, 5
      %v7473 = vrot.slane %v7472, 4
      %v7474 = vrot.slane %v6967, 5
      %v7475 = vsel %vm2757, %v7473, %v7474
      %v7476 = vrot.slane %v7474, 4
      %v7477 = vrot.slane %v6996, 5
      %v7478 = vsel %vm2757, %v7476, %v7477
      %v7479 = vrot.slane %v7397, 5
      %v7480 = vrot.slane %v7479, 4
      %v7481 = vrot.slane %v6969, 5
      %v7482 = vsel %vm2757, %v7480, %v7481
      %v7483 = vrot.slane %v7481, 4
      %v7484 = vrot.slane %v6997, 5
      %v7485 = vsel %vm2757, %v7483, %v7484
      %v7486 = vrot.slane %v7398, 5
      %v7487 = vrot.slane %v7486, 4
      %v7488 = vrot.slane %v6971, 5
      %v7489 = vsel %vm2757, %v7487, %v7488
      %v7490 = vrot.slane %v7488, 4
      %v7491 = vrot.slane %v6998, 5
      %v7492 = vsel %vm2757, %v7490, %v7491
      %v7493 = vrot.slane %v7399, 5
      %v7494 = vrot.slane %v7493, 4
      %v7495 = vrot.slane %v6973, 5
      %v7496 = vsel %vm2757, %v7494, %v7495
      %v7497 = vrot.slane %v7495, 4
      %v7498 = vrot.slane %v6999, 5
      %v7499 = vsel %vm2757, %v7497, %v7498
      %v7500 = vrot.slane %v7400, 5
      %v7501 = vrot.slane %v7500, 4
      %v7502 = vrot.slane %v6975, 5
      %v7503 = vsel %vm2757, %v7501, %v7502
      %v7504 = vrot.slane %v7502, 4
      %v7505 = vrot.slane %v7000, 5
      %v7506 = vsel %vm2757, %v7504, %v7505
      %v7507 = vrot.slane %v7401, 5
      %v7508 = vrot.slane %v7507, 4
      %v7509 = vrot.slane %v6977, 5
      %v7510 = vsel %vm2757, %v7508, %v7509
      %v7511 = vrot.slane %v7509, 4
      %v7512 = vrot.slane %v7001, 5
      %v7513 = vsel %vm2757, %v7511, %v7512
      %v7514 = vrot.slane %v7402, 5
      %v7515 = vrot.slane %v7514, 4
      %v7516 = vrot.slane %v6979, 5
      %v7517 = vsel %vm2757, %v7515, %v7516
      %v7518 = vrot.slane %v7516, 4
      %v7519 = vrot.slane %v7002, 5
      %v7520 = vsel %vm2757, %v7518, %v7519
      %v7521 = vrot.slane %v7403, 5
      %v7522 = vrot.slane %v7521, 4
      %v7523 = vrot.slane %v6981, 5
      %v7524 = vsel %vm2757, %v7522, %v7523
      %v7525 = vrot.slane %v7523, 4
      %v7526 = vrot.slane %v7003, 5
      %v7527 = vsel %vm2757, %v7525, %v7526
      %v7528 = vrot.slane %v7404, 5
      %v7529 = vrot.slane %v7528, 4
      %v7530 = vrot.slane %v6983, 5
      %v7531 = vsel %vm2757, %v7529, %v7530
      %v7532 = vrot.slane %v7530, 4
      %v7533 = vrot.slane %v7004, 5
      %v7534 = vsel %vm2757, %v7532, %v7533
      %v7535 = vrot.slane %v7405, 5
      %v7536 = vrot.slane %v7535, 4
      %v7537 = vrot.slane %v6985, 5
      %v7538 = vsel %vm2757, %v7536, %v7537
      %v7539 = vrot.slane %v7537, 4
      %v7540 = vrot.slane %v7005, 5
      %v7541 = vsel %vm2757, %v7539, %v7540
      %v7542 = vrot.slane %v7406, 5
      %v7543 = vrot.slane %v7542, 4
      %v7544 = vrot.slane %v6987, 5
      %v7545 = vsel %vm2757, %v7543, %v7544
      %v7546 = vrot.slane %v7544, 4
      %v7547 = vrot.slane %v7006, 5
      %v7548 = vsel %vm2757, %v7546, %v7547
      %v7549 = vrot.slane %v7407, 5
      %v7550 = vrot.slane %v7549, 4
      %v7551 = vrot.slane %v6989, 5
      %v7552 = vsel %vm2757, %v7550, %v7551
      %v7553 = vrot.slane %v7551, 4
      %v7554 = vrot.slane %v7007, 5
      %v7555 = vsel %vm2757, %v7553, %v7554
      %v7556 = vrot.slane %v7408, 5
      %v7557 = vrot.slane %v7556, 4
      %v7558 = vrot.slane %v6991, 5
      %v7559 = vsel %vm2757, %v7557, %v7558
      %v7560 = vrot.slane %v7558, 4
      %v7561 = vrot.slane %v7008, 5
      %v7562 = vsel %vm2757, %v7560, %v7561
      %v7563 = vrot.slane %v7409, 5
      %v7564 = vrot.slane %v7563, 4
      %v7565 = vrot.slane %v6993, 5
      %v7566 = vsel %vm2757, %v7564, %v7565
      %v7567 = vrot.slane %v7565, 4
      %v7568 = vrot.slane %v7009, 5
      %v7569 = vsel %vm2757, %v7567, %v7568
      %v7570 = vld [vmem:[%s3478] sm:$0xf]
      %v7571 = vld [vmem:[%s3478 + $0x4] sm:$0xf]
      %v7572 = vld [vmem:[%s3478 + $0xc] sm:$0xf]
      %v7573 = vld [vmem:[%s3478 + $0x10] sm:$0xf]
      %v7574 = vld [vmem:[%s3478 + $0x18] sm:$0xf]
      %v7575 = vld [vmem:[%s3478 + $0x1c] sm:$0xf]
      %v7576 = vld [vmem:[%s3478 + $0x24] sm:$0xf]
      %v7577 = vld [vmem:[%s3478 + $0x28] sm:$0xf]
      %v7578 = vld [vmem:[%s3478 + $0x30] sm:$0xf]
      %v7579 = vld [vmem:[%s3478 + $0x34] sm:$0xf]
      %v7580 = vld [vmem:[%s3478 + $0x3c] sm:$0xf]
      %v7581 = vld [vmem:[%s3478 + $0x40] sm:$0xf]
      %v7582 = vld [vmem:[%s3478 + $0x48] sm:$0xf]
      %v7583 = vld [vmem:[%s3478 + $0x4c] sm:$0xf]
      %v7584 = vld [vmem:[%s3478 + $0x54] sm:$0xf]
      %v7585 = vld [vmem:[%s3478 + $0x58] sm:$0xf]
      %v7586 = vld [vmem:[%s3478 + $0x60] sm:$0xf]
      %v7587 = vld [vmem:[%s3478 + $0x64] sm:$0xf]
      %v7588 = vld [vmem:[%s3478 + $0x6c] sm:$0xf]
      %v7589 = vld [vmem:[%s3478 + $0x70] sm:$0xf]
      %v7590 = vld [vmem:[%s3478 + $0x78] sm:$0xf]
      %v7591 = vld [vmem:[%s3478 + $0x7c] sm:$0xf]
      %v7592 = vld [vmem:[%s3478 + $0x84] sm:$0xf]
      %v7593 = vld [vmem:[%s3478 + $0x88] sm:$0xf]
      %v7594 = vld [vmem:[%s3478 + $0x90] sm:$0xf]
      %v7595 = vld [vmem:[%s3478 + $0x94] sm:$0xf]
      %v7596 = vld [vmem:[%s3478 + $0x9c] sm:$0xf]
      %v7597 = vld [vmem:[%s3478 + $0xa0] sm:$0xf]
      %v7598 = vld [vmem:[%s3478 + $0xa8] sm:$0xf]
      %v7599 = vld [vmem:[%s3478 + $0xac] sm:$0xf]
      %v7600 = vld [vmem:[%s3478 + $0xb4] sm:$0xf]
      %v7601 = vld [vmem:[%s3478 + $0xb8] sm:$0xf]
      %v7602 = vld [vmem:[%s3478 + $0x8] sm:$0x1]
      %v7603 = vld [vmem:[%s3478 + $0x14] sm:$0x1]
      %v7604 = vld [vmem:[%s3478 + $0x20] sm:$0x1]
      %v7605 = vld [vmem:[%s3478 + $0x2c] sm:$0x1]
      %v7606 = vld [vmem:[%s3478 + $0x38] sm:$0x1]
      %v7607 = vld [vmem:[%s3478 + $0x44] sm:$0x1]
      %v7608 = vld [vmem:[%s3478 + $0x50] sm:$0x1]
      %v7609 = vld [vmem:[%s3478 + $0x5c] sm:$0x1]
      %v7610 = vld [vmem:[%s3478 + $0x68] sm:$0x1]
      %v7611 = vld [vmem:[%s3478 + $0x74] sm:$0x1]
      %v7612 = vld [vmem:[%s3478 + $0x80] sm:$0x1]
      %v7613 = vld [vmem:[%s3478 + $0x8c] sm:$0x1]
      %v7614 = vld [vmem:[%s3478 + $0x98] sm:$0x1]
      %v7615 = vld [vmem:[%s3478 + $0xa4] sm:$0x1]
      %v7616 = vld [vmem:[%s3478 + $0xb0] sm:$0x1]
      %v7617 = vld [vmem:[%s3478 + $0xbc] sm:$0x1]
      %v7619 = vshrl.u32 %v7570, 16
      %v7621 = vrot.slane %v7619, 4
      %v7622 = vshll.u32 %v7570, 16
      %v7624 = vrot.slane %v7622, 5
      %v7625 = vor.u32 %v7621, %v7624
      %v7626 = vrot.slane %v7625, 4
      %v7628 = vshll.u32 %v7571, 16
      %v7630 = vrot.slane %v7628, 5
      %v7631 = vsel %vm2306, %v7626, %v7630
      %v7632 = vshrl.u32 %v7571, 16
      %v7634 = vrot.slane %v7632, 4
      %v7635 = vor.u32 %v7634, %v7630
      %v7636 = vrot.slane %v7635, 4
      %v7638 = vshll.u32 %v7602, 16
      %v7640 = vrot.slane %v7638, 5
      %v7641 = vsel %vm2306, %v7636, %v7640
      %v7643 = vshrl.u32 %v7572, 16
      %v7645 = vrot.slane %v7643, 4
      %v7646 = vshll.u32 %v7572, 16
      %v7648 = vrot.slane %v7646, 5
      %v7649 = vor.u32 %v7645, %v7648
      %v7650 = vrot.slane %v7649, 4
      %v7652 = vshll.u32 %v7573, 16
      %v7654 = vrot.slane %v7652, 5
      %v7655 = vsel %vm2306, %v7650, %v7654
      %v7656 = vshrl.u32 %v7573, 16
      %v7658 = vrot.slane %v7656, 4
      %v7659 = vor.u32 %v7658, %v7654
      %v7660 = vrot.slane %v7659, 4
      %v7662 = vshll.u32 %v7603, 16
      %v7664 = vrot.slane %v7662, 5
      %v7665 = vsel %vm2306, %v7660, %v7664
      %v7667 = vshrl.u32 %v7574, 16
      %v7669 = vrot.slane %v7667, 4
      %v7670 = vshll.u32 %v7574, 16
      %v7672 = vrot.slane %v7670, 5
      %v7673 = vor.u32 %v7669, %v7672
      %v7674 = vrot.slane %v7673, 4
      %v7676 = vshll.u32 %v7575, 16
      %v7678 = vrot.slane %v7676, 5
      %v7679 = vsel %vm2306, %v7674, %v7678
      %v7680 = vshrl.u32 %v7575, 16
      %v7682 = vrot.slane %v7680, 4
      %v7683 = vor.u32 %v7682, %v7678
      %v7684 = vrot.slane %v7683, 4
      %v7686 = vshll.u32 %v7604, 16
      %v7688 = vrot.slane %v7686, 5
      %v7689 = vsel %vm2306, %v7684, %v7688
      %v7691 = vshrl.u32 %v7576, 16
      %v7693 = vrot.slane %v7691, 4
      %v7694 = vshll.u32 %v7576, 16
      %v7696 = vrot.slane %v7694, 5
      %v7697 = vor.u32 %v7693, %v7696
      %v7698 = vrot.slane %v7697, 4
      %v7700 = vshll.u32 %v7577, 16
      %v7702 = vrot.slane %v7700, 5
      %v7703 = vsel %vm2306, %v7698, %v7702
      %v7704 = vshrl.u32 %v7577, 16
      %v7706 = vrot.slane %v7704, 4
      %v7707 = vor.u32 %v7706, %v7702
      %v7708 = vrot.slane %v7707, 4
      %v7710 = vshll.u32 %v7605, 16
      %v7712 = vrot.slane %v7710, 5
      %v7713 = vsel %vm2306, %v7708, %v7712
      %v7715 = vshrl.u32 %v7578, 16
      %v7717 = vrot.slane %v7715, 4
      %v7718 = vshll.u32 %v7578, 16
      %v7720 = vrot.slane %v7718, 5
      %v7721 = vor.u32 %v7717, %v7720
      %v7722 = vrot.slane %v7721, 4
      %v7724 = vshll.u32 %v7579, 16
      %v7726 = vrot.slane %v7724, 5
      %v7727 = vsel %vm2306, %v7722, %v7726
      %v7728 = vshrl.u32 %v7579, 16
      %v7730 = vrot.slane %v7728, 4
      %v7731 = vor.u32 %v7730, %v7726
      %v7732 = vrot.slane %v7731, 4
      %v7734 = vshll.u32 %v7606, 16
      %v7736 = vrot.slane %v7734, 5
      %v7737 = vsel %vm2306, %v7732, %v7736
      %v7739 = vshrl.u32 %v7580, 16
      %v7741 = vrot.slane %v7739, 4
      %v7742 = vshll.u32 %v7580, 16
      %v7744 = vrot.slane %v7742, 5
      %v7745 = vor.u32 %v7741, %v7744
      %v7746 = vrot.slane %v7745, 4
      %v7748 = vshll.u32 %v7581, 16
      %v7750 = vrot.slane %v7748, 5
      %v7751 = vsel %vm2306, %v7746, %v7750
      %v7752 = vshrl.u32 %v7581, 16
      %v7754 = vrot.slane %v7752, 4
      %v7755 = vor.u32 %v7754, %v7750
      %v7756 = vrot.slane %v7755, 4
      %v7758 = vshll.u32 %v7607, 16
      %v7760 = vrot.slane %v7758, 5
      %v7761 = vsel %vm2306, %v7756, %v7760
      %v7763 = vshrl.u32 %v7582, 16
      %v7765 = vrot.slane %v7763, 4
      %v7766 = vshll.u32 %v7582, 16
      %v7768 = vrot.slane %v7766, 5
      %v7769 = vor.u32 %v7765, %v7768
      %v7770 = vrot.slane %v7769, 4
      %v7772 = vshll.u32 %v7583, 16
      %v7774 = vrot.slane %v7772, 5
      %v7775 = vsel %vm2306, %v7770, %v7774
      %v7776 = vshrl.u32 %v7583, 16
      %v7778 = vrot.slane %v7776, 4
      %v7779 = vor.u32 %v7778, %v7774
      %v7780 = vrot.slane %v7779, 4
      %v7782 = vshll.u32 %v7608, 16
      %v7784 = vrot.slane %v7782, 5
      %v7785 = vsel %vm2306, %v7780, %v7784
      %v7787 = vshrl.u32 %v7584, 16
      %v7789 = vrot.slane %v7787, 4
      %v7790 = vshll.u32 %v7584, 16
      %v7792 = vrot.slane %v7790, 5
      %v7793 = vor.u32 %v7789, %v7792
      %v7794 = vrot.slane %v7793, 4
      %v7796 = vshll.u32 %v7585, 16
      %v7798 = vrot.slane %v7796, 5
      %v7799 = vsel %vm2306, %v7794, %v7798
      %v7800 = vshrl.u32 %v7585, 16
      %v7802 = vrot.slane %v7800, 4
      %v7803 = vor.u32 %v7802, %v7798
      %v7804 = vrot.slane %v7803, 4
      %v7806 = vshll.u32 %v7609, 16
      %v7808 = vrot.slane %v7806, 5
      %v7809 = vsel %vm2306, %v7804, %v7808
      %v7811 = vshrl.u32 %v7586, 16
      %v7813 = vrot.slane %v7811, 4
      %v7814 = vshll.u32 %v7586, 16
      %v7816 = vrot.slane %v7814, 5
      %v7817 = vor.u32 %v7813, %v7816
      %v7818 = vrot.slane %v7817, 4
      %v7820 = vshll.u32 %v7587, 16
      %v7822 = vrot.slane %v7820, 5
      %v7823 = vsel %vm2306, %v7818, %v7822
      %v7824 = vshrl.u32 %v7587, 16
      %v7826 = vrot.slane %v7824, 4
      %v7827 = vor.u32 %v7826, %v7822
      %v7828 = vrot.slane %v7827, 4
      %v7830 = vshll.u32 %v7610, 16
      %v7832 = vrot.slane %v7830, 5
      %v7833 = vsel %vm2306, %v7828, %v7832
      %v7835 = vshrl.u32 %v7588, 16
      %v7837 = vrot.slane %v7835, 4
      %v7838 = vshll.u32 %v7588, 16
      %v7840 = vrot.slane %v7838, 5
      %v7841 = vor.u32 %v7837, %v7840
      %v7842 = vrot.slane %v7841, 4
      %v7844 = vshll.u32 %v7589, 16
      %v7846 = vrot.slane %v7844, 5
      %v7847 = vsel %vm2306, %v7842, %v7846
      %v7848 = vshrl.u32 %v7589, 16
      %v7850 = vrot.slane %v7848, 4
      %v7851 = vor.u32 %v7850, %v7846
      %v7852 = vrot.slane %v7851, 4
      %v7854 = vshll.u32 %v7611, 16
      %v7856 = vrot.slane %v7854, 5
      %v7857 = vsel %vm2306, %v7852, %v7856
      %v7859 = vshrl.u32 %v7590, 16
      %v7861 = vrot.slane %v7859, 4
      %v7862 = vshll.u32 %v7590, 16
      %v7864 = vrot.slane %v7862, 5
      %v7865 = vor.u32 %v7861, %v7864
      %v7866 = vrot.slane %v7865, 4
      %v7868 = vshll.u32 %v7591, 16
      %v7870 = vrot.slane %v7868, 5
      %v7871 = vsel %vm2306, %v7866, %v7870
      %v7872 = vshrl.u32 %v7591, 16
      %v7874 = vrot.slane %v7872, 4
      %v7875 = vor.u32 %v7874, %v7870
      %v7876 = vrot.slane %v7875, 4
      %v7878 = vshll.u32 %v7612, 16
      %v7880 = vrot.slane %v7878, 5
      %v7881 = vsel %vm2306, %v7876, %v7880
      %v7883 = vshrl.u32 %v7592, 16
      %v7885 = vrot.slane %v7883, 4
      %v7886 = vshll.u32 %v7592, 16
      %v7888 = vrot.slane %v7886, 5
      %v7889 = vor.u32 %v7885, %v7888
      %v7890 = vrot.slane %v7889, 4
      %v7892 = vshll.u32 %v7593, 16
      %v7894 = vrot.slane %v7892, 5
      %v7895 = vsel %vm2306, %v7890, %v7894
      %v7896 = vshrl.u32 %v7593, 16
      %v7898 = vrot.slane %v7896, 4
      %v7899 = vor.u32 %v7898, %v7894
      %v7900 = vrot.slane %v7899, 4
      %v7902 = vshll.u32 %v7613, 16
      %v7904 = vrot.slane %v7902, 5
      %v7905 = vsel %vm2306, %v7900, %v7904
      %v7907 = vshrl.u32 %v7594, 16
      %v7909 = vrot.slane %v7907, 4
      %v7910 = vshll.u32 %v7594, 16
      %v7912 = vrot.slane %v7910, 5
      %v7913 = vor.u32 %v7909, %v7912
      %v7914 = vrot.slane %v7913, 4
      %v7916 = vshll.u32 %v7595, 16
      %v7918 = vrot.slane %v7916, 5
      %v7919 = vsel %vm2306, %v7914, %v7918
      %v7920 = vshrl.u32 %v7595, 16
      %v7922 = vrot.slane %v7920, 4
      %v7923 = vor.u32 %v7922, %v7918
      %v7924 = vrot.slane %v7923, 4
      %v7926 = vshll.u32 %v7614, 16
      %v7928 = vrot.slane %v7926, 5
      %v7929 = vsel %vm2306, %v7924, %v7928
      %v7931 = vshrl.u32 %v7596, 16
      %v7933 = vrot.slane %v7931, 4
      %v7934 = vshll.u32 %v7596, 16
      %v7936 = vrot.slane %v7934, 5
      %v7937 = vor.u32 %v7933, %v7936
      %v7938 = vrot.slane %v7937, 4
      %v7940 = vshll.u32 %v7597, 16
      %v7942 = vrot.slane %v7940, 5
      %v7943 = vsel %vm2306, %v7938, %v7942
      %v7944 = vshrl.u32 %v7597, 16
      %v7946 = vrot.slane %v7944, 4
      %v7947 = vor.u32 %v7946, %v7942
      %v7948 = vrot.slane %v7947, 4
      %v7950 = vshll.u32 %v7615, 16
      %v7952 = vrot.slane %v7950, 5
      %v7953 = vsel %vm2306, %v7948, %v7952
      %v7955 = vshrl.u32 %v7598, 16
      %v7957 = vrot.slane %v7955, 4
      %v7958 = vshll.u32 %v7598, 16
      %v7960 = vrot.slane %v7958, 5
      %v7961 = vor.u32 %v7957, %v7960
      %v7962 = vrot.slane %v7961, 4
      %v7964 = vshll.u32 %v7599, 16
      %v7966 = vrot.slane %v7964, 5
      %v7967 = vsel %vm2306, %v7962, %v7966
      %v7968 = vshrl.u32 %v7599, 16
      %v7970 = vrot.slane %v7968, 4
      %v7971 = vor.u32 %v7970, %v7966
      %v7972 = vrot.slane %v7971, 4
      %v7974 = vshll.u32 %v7616, 16
      %v7976 = vrot.slane %v7974, 5
      %v7977 = vsel %vm2306, %v7972, %v7976
      %v7979 = vshrl.u32 %v7600, 16
      %v7981 = vrot.slane %v7979, 4
      %v7982 = vshll.u32 %v7600, 16
      %v7984 = vrot.slane %v7982, 5
      %v7985 = vor.u32 %v7981, %v7984
      %v7986 = vrot.slane %v7985, 4
      %v7988 = vshll.u32 %v7601, 16
      %v7990 = vrot.slane %v7988, 5
      %v7991 = vsel %vm2306, %v7986, %v7990
      %v7992 = vshrl.u32 %v7601, 16
      %v7994 = vrot.slane %v7992, 4
      %v7995 = vor.u32 %v7994, %v7990
      %v7996 = vrot.slane %v7995, 4
      %v7998 = vshll.u32 %v7617, 16
      %v8000 = vrot.slane %v7998, 5
      %v8001 = vsel %vm2306, %v7996, %v8000
      %v8002 = vld [vmem:[%s3478] sm:$0xe]
      %v8003 = vld [vmem:[%s3478 + $0xc] sm:$0xe]
      %v8004 = vld [vmem:[%s3478 + $0x18] sm:$0xe]
      %v8005 = vld [vmem:[%s3478 + $0x24] sm:$0xe]
      %v8006 = vld [vmem:[%s3478 + $0x30] sm:$0xe]
      %v8007 = vld [vmem:[%s3478 + $0x3c] sm:$0xe]
      %v8008 = vld [vmem:[%s3478 + $0x48] sm:$0xe]
      %v8009 = vld [vmem:[%s3478 + $0x54] sm:$0xe]
      %v8010 = vld [vmem:[%s3478 + $0x60] sm:$0xe]
      %v8011 = vld [vmem:[%s3478 + $0x6c] sm:$0xe]
      %v8012 = vld [vmem:[%s3478 + $0x78] sm:$0xe]
      %v8013 = vld [vmem:[%s3478 + $0x84] sm:$0xe]
      %v8014 = vld [vmem:[%s3478 + $0x90] sm:$0xe]
      %v8015 = vld [vmem:[%s3478 + $0x9c] sm:$0xe]
      %v8016 = vld [vmem:[%s3478 + $0xa8] sm:$0xe]
      %v8017 = vld [vmem:[%s3478 + $0xb4] sm:$0xe]
      %v8066 = vrot.slane %v8002, 5
      %v8067 = vrot.slane %v8066, 4
      %v8068 = vrot.slane %v7571, 5
      %v8069 = vsel %vm2757, %v8067, %v8068
      %v8070 = vrot.slane %v8068, 4
      %v8071 = vrot.slane %v7602, 5
      %v8072 = vsel %vm2757, %v8070, %v8071
      %v8073 = vrot.slane %v8003, 5
      %v8074 = vrot.slane %v8073, 4
      %v8075 = vrot.slane %v7573, 5
      %v8076 = vsel %vm2757, %v8074, %v8075
      %v8077 = vrot.slane %v8075, 4
      %v8078 = vrot.slane %v7603, 5
      %v8079 = vsel %vm2757, %v8077, %v8078
      %v8080 = vrot.slane %v8004, 5
      %v8081 = vrot.slane %v8080, 4
      %v8082 = vrot.slane %v7575, 5
      %v8083 = vsel %vm2757, %v8081, %v8082
      %v8084 = vrot.slane %v8082, 4
      %v8085 = vrot.slane %v7604, 5
      %v8086 = vsel %vm2757, %v8084, %v8085
      %v8087 = vrot.slane %v8005, 5
      %v8088 = vrot.slane %v8087, 4
      %v8089 = vrot.slane %v7577, 5
      %v8090 = vsel %vm2757, %v8088, %v8089
      %v8091 = vrot.slane %v8089, 4
      %v8092 = vrot.slane %v7605, 5
      %v8093 = vsel %vm2757, %v8091, %v8092
      %v8094 = vrot.slane %v8006, 5
      %v8095 = vrot.slane %v8094, 4
      %v8096 = vrot.slane %v7579, 5
      %v8097 = vsel %vm2757, %v8095, %v8096
      %v8098 = vrot.slane %v8096, 4
      %v8099 = vrot.slane %v7606, 5
      %v8100 = vsel %vm2757, %v8098, %v8099
      %v8101 = vrot.slane %v8007, 5
      %v8102 = vrot.slane %v8101, 4
      %v8103 = vrot.slane %v7581, 5
      %v8104 = vsel %vm2757, %v8102, %v8103
      %v8105 = vrot.slane %v8103, 4
      %v8106 = vrot.slane %v7607, 5
      %v8107 = vsel %vm2757, %v8105, %v8106
      %v8108 = vrot.slane %v8008, 5
      %v8109 = vrot.slane %v8108, 4
      %v8110 = vrot.slane %v7583, 5
      %v8111 = vsel %vm2757, %v8109, %v8110
      %v8112 = vrot.slane %v8110, 4
      %v8113 = vrot.slane %v7608, 5
      %v8114 = vsel %vm2757, %v8112, %v8113
      %v8115 = vrot.slane %v8009, 5
      %v8116 = vrot.slane %v8115, 4
      %v8117 = vrot.slane %v7585, 5
      %v8118 = vsel %vm2757, %v8116, %v8117
      %v8119 = vrot.slane %v8117, 4
      %v8120 = vrot.slane %v7609, 5
      %v8121 = vsel %vm2757, %v8119, %v8120
      %v8122 = vrot.slane %v8010, 5
      %v8123 = vrot.slane %v8122, 4
      %v8124 = vrot.slane %v7587, 5
      %v8125 = vsel %vm2757, %v8123, %v8124
      %v8126 = vrot.slane %v8124, 4
      %v8127 = vrot.slane %v7610, 5
      %v8128 = vsel %vm2757, %v8126, %v8127
      %v8129 = vrot.slane %v8011, 5
      %v8130 = vrot.slane %v8129, 4
      %v8131 = vrot.slane %v7589, 5
      %v8132 = vsel %vm2757, %v8130, %v8131
      %v8133 = vrot.slane %v8131, 4
      %v8134 = vrot.slane %v7611, 5
      %v8135 = vsel %vm2757, %v8133, %v8134
      %v8136 = vrot.slane %v8012, 5
      %v8137 = vrot.slane %v8136, 4
      %v8138 = vrot.slane %v7591, 5
      %v8139 = vsel %vm2757, %v8137, %v8138
      %v8140 = vrot.slane %v8138, 4
      %v8141 = vrot.slane %v7612, 5
      %v8142 = vsel %vm2757, %v8140, %v8141
      %v8143 = vrot.slane %v8013, 5
      %v8144 = vrot.slane %v8143, 4
      %v8145 = vrot.slane %v7593, 5
      %v8146 = vsel %vm2757, %v8144, %v8145
      %v8147 = vrot.slane %v8145, 4
      %v8148 = vrot.slane %v7613, 5
      %v8149 = vsel %vm2757, %v8147, %v8148
      %v8150 = vrot.slane %v8014, 5
      %v8151 = vrot.slane %v8150, 4
      %v8152 = vrot.slane %v7595, 5
      %v8153 = vsel %vm2757, %v8151, %v8152
      %v8154 = vrot.slane %v8152, 4
      %v8155 = vrot.slane %v7614, 5
      %v8156 = vsel %vm2757, %v8154, %v8155
      %v8157 = vrot.slane %v8015, 5
      %v8158 = vrot.slane %v8157, 4
      %v8159 = vrot.slane %v7597, 5
      %v8160 = vsel %vm2757, %v8158, %v8159
      %v8161 = vrot.slane %v8159, 4
      %v8162 = vrot.slane %v7615, 5
      %v8163 = vsel %vm2757, %v8161, %v8162
      %v8164 = vrot.slane %v8016, 5
      %v8165 = vrot.slane %v8164, 4
      %v8166 = vrot.slane %v7599, 5
      %v8167 = vsel %vm2757, %v8165, %v8166
      %v8168 = vrot.slane %v8166, 4
      %v8169 = vrot.slane %v7616, 5
      %v8170 = vsel %vm2757, %v8168, %v8169
      %v8171 = vrot.slane %v8017, 5
      %v8172 = vrot.slane %v8171, 4
      %v8173 = vrot.slane %v7601, 5
      %v8174 = vsel %vm2757, %v8172, %v8173
      %v8175 = vrot.slane %v8173, 4
      %v8176 = vrot.slane %v7617, 5
      %v8177 = vsel %vm2757, %v8175, %v8176
      %v8194 = vunpack.c.l.b16 %v6354
      %v8195 = vunpack.c.l.b16 %v6355
      %v8196 = vunpack.c.l.b16 %v6356
      %v8197 = vunpack.c.l.b16 %v6357
      %v8198 = vunpack.c.l.b16 %v6358
      %v8199 = vunpack.c.l.b16 %v6359
      %v8200 = vunpack.c.l.b16 %v6360
      %v8201 = vunpack.c.l.b16 %v6361
      %v8202 = vunpack.c.l.b16 %v6362
      %v8203 = vunpack.c.l.b16 %v6363
      %v8204 = vunpack.c.l.b16 %v6364
      %v8205 = vunpack.c.l.b16 %v6365
      %v8206 = vunpack.c.l.b16 %v6366
      %v8207 = vunpack.c.l.b16 %v6367
      %v8208 = vunpack.c.l.b16 %v6368
      %v8209 = vunpack.c.l.b16 %v6369
      %v8210 = vunpack.c.l.b16 %v6370
      %v8211 = vunpack.c.l.b16 %v6371
      %v8212 = vunpack.c.l.b16 %v6372
      %v8213 = vunpack.c.l.b16 %v6373
      %v8214 = vunpack.c.l.b16 %v6374
      %v8215 = vunpack.c.l.b16 %v6375
      %v8216 = vunpack.c.l.b16 %v6376
      %v8217 = vunpack.c.l.b16 %v6377
      %v8218 = vunpack.c.l.b16 %v6378
      %v8219 = vunpack.c.l.b16 %v6379
      %v8220 = vunpack.c.l.b16 %v6380
      %v8221 = vunpack.c.l.b16 %v6381
      %v8222 = vunpack.c.l.b16 %v6382
      %v8223 = vunpack.c.l.b16 %v6383
      %v8224 = vunpack.c.l.b16 %v6384
      %v8225 = vunpack.c.l.b16 %v6385
      %v8226 = vpack.c.b16 %v8195, %v8194
      %v8227 = vpack.c.b16 %v8197, %v8196
      %v8228 = vpack.c.b16 %v8199, %v8198
      %v8229 = vpack.c.b16 %v8201, %v8200
      %v8230 = vpack.c.b16 %v8203, %v8202
      %v8231 = vpack.c.b16 %v8205, %v8204
      %v8232 = vpack.c.b16 %v8207, %v8206
      %v8233 = vpack.c.b16 %v8209, %v8208
      %v8234 = vpack.c.b16 %v8211, %v8210
      %v8235 = vpack.c.b16 %v8213, %v8212
      %v8236 = vpack.c.b16 %v8215, %v8214
      %v8237 = vpack.c.b16 %v8217, %v8216
      %v8238 = vpack.c.b16 %v8219, %v8218
      %v8239 = vpack.c.b16 %v8221, %v8220
      %v8240 = vpack.c.b16 %v8223, %v8222
      %v8241 = vpack.c.b16 %v8225, %v8224
      %v8242 = vunpack.c.l.b16 %v6415
      %v8243 = vunpack.c.l.b16 %v6425
      %v8244 = vunpack.c.l.b16 %v6439
      %v8245 = vunpack.c.l.b16 %v6449
      %v8246 = vunpack.c.l.b16 %v6463
      %v8247 = vunpack.c.l.b16 %v6473
      %v8248 = vunpack.c.l.b16 %v6487
      %v8249 = vunpack.c.l.b16 %v6497
      %v8250 = vunpack.c.l.b16 %v6511
      %v8251 = vunpack.c.l.b16 %v6521
      %v8252 = vunpack.c.l.b16 %v6535
      %v8253 = vunpack.c.l.b16 %v6545
      %v8254 = vunpack.c.l.b16 %v6559
      %v8255 = vunpack.c.l.b16 %v6569
      %v8256 = vunpack.c.l.b16 %v6583
      %v8257 = vunpack.c.l.b16 %v6593
      %v8258 = vunpack.c.l.b16 %v6607
      %v8259 = vunpack.c.l.b16 %v6617
      %v8260 = vunpack.c.l.b16 %v6631
      %v8261 = vunpack.c.l.b16 %v6641
      %v8262 = vunpack.c.l.b16 %v6655
      %v8263 = vunpack.c.l.b16 %v6665
      %v8264 = vunpack.c.l.b16 %v6679
      %v8265 = vunpack.c.l.b16 %v6689
      %v8266 = vunpack.c.l.b16 %v6703
      %v8267 = vunpack.c.l.b16 %v6713
      %v8268 = vunpack.c.l.b16 %v6727
      %v8269 = vunpack.c.l.b16 %v6737
      %v8270 = vunpack.c.l.b16 %v6751
      %v8271 = vunpack.c.l.b16 %v6761
      %v8272 = vunpack.c.l.b16 %v6775
      %v8273 = vunpack.c.l.b16 %v6785
      %v8274 = vpack.c.b16 %v8243, %v8242
      %v8275 = vpack.c.b16 %v8245, %v8244
      %v8276 = vpack.c.b16 %v8247, %v8246
      %v8277 = vpack.c.b16 %v8249, %v8248
      %v8278 = vpack.c.b16 %v8251, %v8250
      %v8279 = vpack.c.b16 %v8253, %v8252
      %v8280 = vpack.c.b16 %v8255, %v8254
      %v8281 = vpack.c.b16 %v8257, %v8256
      %v8282 = vpack.c.b16 %v8259, %v8258
      %v8283 = vpack.c.b16 %v8261, %v8260
      %v8284 = vpack.c.b16 %v8263, %v8262
      %v8285 = vpack.c.b16 %v8265, %v8264
      %v8286 = vpack.c.b16 %v8267, %v8266
      %v8287 = vpack.c.b16 %v8269, %v8268
      %v8288 = vpack.c.b16 %v8271, %v8270
      %v8289 = vpack.c.b16 %v8273, %v8272
      %8290 = vrot.lane.b32.xlu0 %v8274, 4
      %v8291 = vpop.permute.xlu0 %8290
      %8292 = vrot.lane.b32.xlu0 %v8275, 4
      %v8293 = vpop.permute.xlu0 %8292
      %8294 = vrot.lane.b32.xlu0 %v8276, 4
      %v8295 = vpop.permute.xlu0 %8294
      %8296 = vrot.lane.b32.xlu0 %v8277, 4
      %v8297 = vpop.permute.xlu0 %8296
      %8298 = vrot.lane.b32.xlu0 %v8278, 4
      %v8299 = vpop.permute.xlu0 %8298
      %8300 = vrot.lane.b32.xlu0 %v8279, 4
      %v8301 = vpop.permute.xlu0 %8300
      %8302 = vrot.lane.b32.xlu0 %v8280, 4
      %v8303 = vpop.permute.xlu0 %8302
      %8304 = vrot.lane.b32.xlu0 %v8281, 4
      %v8305 = vpop.permute.xlu0 %8304
      %8306 = vrot.lane.b32.xlu0 %v8282, 4
      %v8307 = vpop.permute.xlu0 %8306
      %8308 = vrot.lane.b32.xlu0 %v8283, 4
      %v8309 = vpop.permute.xlu0 %8308
      %8310 = vrot.lane.b32.xlu0 %v8284, 4
      %v8311 = vpop.permute.xlu0 %8310
      %8312 = vrot.lane.b32.xlu0 %v8285, 4
      %v8313 = vpop.permute.xlu0 %8312
      %8314 = vrot.lane.b32.xlu0 %v8286, 4
      %v8315 = vpop.permute.xlu0 %8314
      %8316 = vrot.lane.b32.xlu0 %v8287, 4
      %v8317 = vpop.permute.xlu0 %8316
      %8318 = vrot.lane.b32.xlu0 %v8288, 4
      %v8319 = vpop.permute.xlu0 %8318
      %8320 = vrot.lane.b32.xlu0 %v8289, 4
      %v8321 = vpop.permute.xlu0 %8320
      %v8322 = vunpack.c.l.b16 %v6853
      %v8323 = vunpack.c.l.b16 %v6856
      %v8324 = vunpack.c.l.b16 %v6860
      %v8325 = vunpack.c.l.b16 %v6863
      %v8326 = vunpack.c.l.b16 %v6867
      %v8327 = vunpack.c.l.b16 %v6870
      %v8328 = vunpack.c.l.b16 %v6874
      %v8329 = vunpack.c.l.b16 %v6877
      %v8330 = vunpack.c.l.b16 %v6881
      %v8331 = vunpack.c.l.b16 %v6884
      %v8332 = vunpack.c.l.b16 %v6888
      %v8333 = vunpack.c.l.b16 %v6891
      %v8334 = vunpack.c.l.b16 %v6895
      %v8335 = vunpack.c.l.b16 %v6898
      %v8336 = vunpack.c.l.b16 %v6902
      %v8337 = vunpack.c.l.b16 %v6905
      %v8338 = vunpack.c.l.b16 %v6909
      %v8339 = vunpack.c.l.b16 %v6912
      %v8340 = vunpack.c.l.b16 %v6916
      %v8341 = vunpack.c.l.b16 %v6919
      %v8342 = vunpack.c.l.b16 %v6923
      %v8343 = vunpack.c.l.b16 %v6926
      %v8344 = vunpack.c.l.b16 %v6930
      %v8345 = vunpack.c.l.b16 %v6933
      %v8346 = vunpack.c.l.b16 %v6937
      %v8347 = vunpack.c.l.b16 %v6940
      %v8348 = vunpack.c.l.b16 %v6944
      %v8349 = vunpack.c.l.b16 %v6947
      %v8350 = vunpack.c.l.b16 %v6951
      %v8351 = vunpack.c.l.b16 %v6954
      %v8352 = vunpack.c.l.b16 %v6958
      %v8353 = vunpack.c.l.b16 %v6961
      %v8354 = vpack.c.b16 %v8323, %v8322
      %v8355 = vpack.c.b16 %v8325, %v8324
      %v8356 = vpack.c.b16 %v8327, %v8326
      %v8357 = vpack.c.b16 %v8329, %v8328
      %v8358 = vpack.c.b16 %v8331, %v8330
      %v8359 = vpack.c.b16 %v8333, %v8332
      %v8360 = vpack.c.b16 %v8335, %v8334
      %v8361 = vpack.c.b16 %v8337, %v8336
      %v8362 = vpack.c.b16 %v8339, %v8338
      %v8363 = vpack.c.b16 %v8341, %v8340
      %v8364 = vpack.c.b16 %v8343, %v8342
      %v8365 = vpack.c.b16 %v8345, %v8344
      %v8366 = vpack.c.b16 %v8347, %v8346
      %v8367 = vpack.c.b16 %v8349, %v8348
      %v8368 = vpack.c.b16 %v8351, %v8350
      %v8369 = vpack.c.b16 %v8353, %v8352
      %8370 = vrot.lane.b32.xlu0 %v8354, 8
      %v8371 = vpop.permute.xlu0 %8370
      %8372 = vrot.lane.b32.xlu0 %v8355, 8
      %v8373 = vpop.permute.xlu0 %8372
      %8374 = vrot.lane.b32.xlu0 %v8356, 8
      %v8375 = vpop.permute.xlu0 %8374
      %8376 = vrot.lane.b32.xlu0 %v8357, 8
      %v8377 = vpop.permute.xlu0 %8376
      %8378 = vrot.lane.b32.xlu0 %v8358, 8
      %v8379 = vpop.permute.xlu0 %8378
      %8380 = vrot.lane.b32.xlu0 %v8359, 8
      %v8381 = vpop.permute.xlu0 %8380
      %8382 = vrot.lane.b32.xlu0 %v8360, 8
      %v8383 = vpop.permute.xlu0 %8382
      %8384 = vrot.lane.b32.xlu0 %v8361, 8
      %v8385 = vpop.permute.xlu0 %8384
      %8386 = vrot.lane.b32.xlu0 %v8362, 8
      %v8387 = vpop.permute.xlu0 %8386
      %8388 = vrot.lane.b32.xlu0 %v8363, 8
      %v8389 = vpop.permute.xlu0 %8388
      %8390 = vrot.lane.b32.xlu0 %v8364, 8
      %v8391 = vpop.permute.xlu0 %8390
      %8392 = vrot.lane.b32.xlu0 %v8365, 8
      %v8393 = vpop.permute.xlu0 %8392
      %8394 = vrot.lane.b32.xlu0 %v8366, 8
      %v8395 = vpop.permute.xlu0 %8394
      %8396 = vrot.lane.b32.xlu0 %v8367, 8
      %v8397 = vpop.permute.xlu0 %8396
      %8398 = vrot.lane.b32.xlu0 %v8368, 8
      %v8399 = vpop.permute.xlu0 %8398
      %8400 = vrot.lane.b32.xlu0 %v8369, 8
      %v8401 = vpop.permute.xlu0 %8400
      %v8418 = vunpack.c.l.b16 %v6962
      %v8419 = vunpack.c.l.b16 %v6963
      %v8420 = vunpack.c.l.b16 %v6964
      %v8421 = vunpack.c.l.b16 %v6965
      %v8422 = vunpack.c.l.b16 %v6966
      %v8423 = vunpack.c.l.b16 %v6967
      %v8424 = vunpack.c.l.b16 %v6968
      %v8425 = vunpack.c.l.b16 %v6969
      %v8426 = vunpack.c.l.b16 %v6970
      %v8427 = vunpack.c.l.b16 %v6971
      %v8428 = vunpack.c.l.b16 %v6972
      %v8429 = vunpack.c.l.b16 %v6973
      %v8430 = vunpack.c.l.b16 %v6974
      %v8431 = vunpack.c.l.b16 %v6975
      %v8432 = vunpack.c.l.b16 %v6976
      %v8433 = vunpack.c.l.b16 %v6977
      %v8434 = vunpack.c.l.b16 %v6978
      %v8435 = vunpack.c.l.b16 %v6979
      %v8436 = vunpack.c.l.b16 %v6980
      %v8437 = vunpack.c.l.b16 %v6981
      %v8438 = vunpack.c.l.b16 %v6982
      %v8439 = vunpack.c.l.b16 %v6983
      %v8440 = vunpack.c.l.b16 %v6984
      %v8441 = vunpack.c.l.b16 %v6985
      %v8442 = vunpack.c.l.b16 %v6986
      %v8443 = vunpack.c.l.b16 %v6987
      %v8444 = vunpack.c.l.b16 %v6988
      %v8445 = vunpack.c.l.b16 %v6989
      %v8446 = vunpack.c.l.b16 %v6990
      %v8447 = vunpack.c.l.b16 %v6991
      %v8448 = vunpack.c.l.b16 %v6992
      %v8449 = vunpack.c.l.b16 %v6993
      %v8450 = vpack.c.b16 %v8419, %v8418
      %v8451 = vpack.c.b16 %v8421, %v8420
      %v8452 = vpack.c.b16 %v8423, %v8422
      %v8453 = vpack.c.b16 %v8425, %v8424
      %v8454 = vpack.c.b16 %v8427, %v8426
      %v8455 = vpack.c.b16 %v8429, %v8428
      %v8456 = vpack.c.b16 %v8431, %v8430
      %v8457 = vpack.c.b16 %v8433, %v8432
      %v8458 = vpack.c.b16 %v8435, %v8434
      %v8459 = vpack.c.b16 %v8437, %v8436
      %v8460 = vpack.c.b16 %v8439, %v8438
      %v8461 = vpack.c.b16 %v8441, %v8440
      %v8462 = vpack.c.b16 %v8443, %v8442
      %v8463 = vpack.c.b16 %v8445, %v8444
      %v8464 = vpack.c.b16 %v8447, %v8446
      %v8465 = vpack.c.b16 %v8449, %v8448
      %8466 = vrot.lane.b32.xlu0 %v8450, 12
      %v8467 = vpop.permute.xlu0 %8466
      %8468 = vrot.lane.b32.xlu0 %v8451, 12
      %v8469 = vpop.permute.xlu0 %8468
      %8470 = vrot.lane.b32.xlu0 %v8452, 12
      %v8471 = vpop.permute.xlu0 %8470
      %8472 = vrot.lane.b32.xlu0 %v8453, 12
      %v8473 = vpop.permute.xlu0 %8472
      %8474 = vrot.lane.b32.xlu0 %v8454, 12
      %v8475 = vpop.permute.xlu0 %8474
      %8476 = vrot.lane.b32.xlu0 %v8455, 12
      %v8477 = vpop.permute.xlu0 %8476
      %8478 = vrot.lane.b32.xlu0 %v8456, 12
      %v8479 = vpop.permute.xlu0 %8478
      %8480 = vrot.lane.b32.xlu0 %v8457, 12
      %v8481 = vpop.permute.xlu0 %8480
      %8482 = vrot.lane.b32.xlu0 %v8458, 12
      %v8483 = vpop.permute.xlu0 %8482
      %8484 = vrot.lane.b32.xlu0 %v8459, 12
      %v8485 = vpop.permute.xlu0 %8484
      %8486 = vrot.lane.b32.xlu0 %v8460, 12
      %v8487 = vpop.permute.xlu0 %8486
      %8488 = vrot.lane.b32.xlu0 %v8461, 12
      %v8489 = vpop.permute.xlu0 %8488
      %8490 = vrot.lane.b32.xlu0 %v8462, 12
      %v8491 = vpop.permute.xlu0 %8490
      %8492 = vrot.lane.b32.xlu0 %v8463, 12
      %v8493 = vpop.permute.xlu0 %8492
      %8494 = vrot.lane.b32.xlu0 %v8464, 12
      %v8495 = vpop.permute.xlu0 %8494
      %8496 = vrot.lane.b32.xlu0 %v8465, 12
      %v8497 = vpop.permute.xlu0 %8496
      %v8498 = vunpack.c.l.b16 %v7023
      %v8499 = vunpack.c.l.b16 %v7033
      %v8500 = vunpack.c.l.b16 %v7047
      %v8501 = vunpack.c.l.b16 %v7057
      %v8502 = vunpack.c.l.b16 %v7071
      %v8503 = vunpack.c.l.b16 %v7081
      %v8504 = vunpack.c.l.b16 %v7095
      %v8505 = vunpack.c.l.b16 %v7105
      %v8506 = vunpack.c.l.b16 %v7119
      %v8507 = vunpack.c.l.b16 %v7129
      %v8508 = vunpack.c.l.b16 %v7143
      %v8509 = vunpack.c.l.b16 %v7153
      %v8510 = vunpack.c.l.b16 %v7167
      %v8511 = vunpack.c.l.b16 %v7177
      %v8512 = vunpack.c.l.b16 %v7191
      %v8513 = vunpack.c.l.b16 %v7201
      %v8514 = vunpack.c.l.b16 %v7215
      %v8515 = vunpack.c.l.b16 %v7225
      %v8516 = vunpack.c.l.b16 %v7239
      %v8517 = vunpack.c.l.b16 %v7249
      %v8518 = vunpack.c.l.b16 %v7263
      %v8519 = vunpack.c.l.b16 %v7273
      %v8520 = vunpack.c.l.b16 %v7287
      %v8521 = vunpack.c.l.b16 %v7297
      %v8522 = vunpack.c.l.b16 %v7311
      %v8523 = vunpack.c.l.b16 %v7321
      %v8524 = vunpack.c.l.b16 %v7335
      %v8525 = vunpack.c.l.b16 %v7345
      %v8526 = vunpack.c.l.b16 %v7359
      %v8527 = vunpack.c.l.b16 %v7369
      %v8528 = vunpack.c.l.b16 %v7383
      %v8529 = vunpack.c.l.b16 %v7393
      %v8530 = vpack.c.b16 %v8499, %v8498
      %v8531 = vpack.c.b16 %v8501, %v8500
      %v8532 = vpack.c.b16 %v8503, %v8502
      %v8533 = vpack.c.b16 %v8505, %v8504
      %v8534 = vpack.c.b16 %v8507, %v8506
      %v8535 = vpack.c.b16 %v8509, %v8508
      %v8536 = vpack.c.b16 %v8511, %v8510
      %v8537 = vpack.c.b16 %v8513, %v8512
      %v8538 = vpack.c.b16 %v8515, %v8514
      %v8539 = vpack.c.b16 %v8517, %v8516
      %v8540 = vpack.c.b16 %v8519, %v8518
      %v8541 = vpack.c.b16 %v8521, %v8520
      %v8542 = vpack.c.b16 %v8523, %v8522
      %v8543 = vpack.c.b16 %v8525, %v8524
      %v8544 = vpack.c.b16 %v8527, %v8526
      %v8545 = vpack.c.b16 %v8529, %v8528
      %8546 = vrot.lane.b32.xlu0 %v8530, 16
      %v8547 = vpop.permute.xlu0 %8546
      %8548 = vrot.lane.b32.xlu0 %v8531, 16
      %v8549 = vpop.permute.xlu0 %8548
      %8550 = vrot.lane.b32.xlu0 %v8532, 16
      %v8551 = vpop.permute.xlu0 %8550
      %8552 = vrot.lane.b32.xlu0 %v8533, 16
      %v8553 = vpop.permute.xlu0 %8552
      %8554 = vrot.lane.b32.xlu0 %v8534, 16
      %v8555 = vpop.permute.xlu0 %8554
      %8556 = vrot.lane.b32.xlu0 %v8535, 16
      %v8557 = vpop.permute.xlu0 %8556
      %8558 = vrot.lane.b32.xlu0 %v8536, 16
      %v8559 = vpop.permute.xlu0 %8558
      %8560 = vrot.lane.b32.xlu0 %v8537, 16
      %v8561 = vpop.permute.xlu0 %8560
      %8562 = vrot.lane.b32.xlu0 %v8538, 16
      %v8563 = vpop.permute.xlu0 %8562
      %8564 = vrot.lane.b32.xlu0 %v8539, 16
      %v8565 = vpop.permute.xlu0 %8564
      %8566 = vrot.lane.b32.xlu0 %v8540, 16
      %v8567 = vpop.permute.xlu0 %8566
      %8568 = vrot.lane.b32.xlu0 %v8541, 16
      %v8569 = vpop.permute.xlu0 %8568
      %8570 = vrot.lane.b32.xlu0 %v8542, 16
      %v8571 = vpop.permute.xlu0 %8570
      %8572 = vrot.lane.b32.xlu0 %v8543, 16
      %v8573 = vpop.permute.xlu0 %8572
      %8574 = vrot.lane.b32.xlu0 %v8544, 16
      %v8575 = vpop.permute.xlu0 %8574
      %8576 = vrot.lane.b32.xlu0 %v8545, 16
      %v8577 = vpop.permute.xlu0 %8576
      %v8578 = vunpack.c.l.b16 %v7461
      %v8579 = vunpack.c.l.b16 %v7464
      %v8580 = vunpack.c.l.b16 %v7468
      %v8581 = vunpack.c.l.b16 %v7471
      %v8582 = vunpack.c.l.b16 %v7475
      %v8583 = vunpack.c.l.b16 %v7478
      %v8584 = vunpack.c.l.b16 %v7482
      %v8585 = vunpack.c.l.b16 %v7485
      %v8586 = vunpack.c.l.b16 %v7489
      %v8587 = vunpack.c.l.b16 %v7492
      %v8588 = vunpack.c.l.b16 %v7496
      %v8589 = vunpack.c.l.b16 %v7499
      %v8590 = vunpack.c.l.b16 %v7503
      %v8591 = vunpack.c.l.b16 %v7506
      %v8592 = vunpack.c.l.b16 %v7510
      %v8593 = vunpack.c.l.b16 %v7513
      %v8594 = vunpack.c.l.b16 %v7517
      %v8595 = vunpack.c.l.b16 %v7520
      %v8596 = vunpack.c.l.b16 %v7524
      %v8597 = vunpack.c.l.b16 %v7527
      %v8598 = vunpack.c.l.b16 %v7531
      %v8599 = vunpack.c.l.b16 %v7534
      %v8600 = vunpack.c.l.b16 %v7538
      %v8601 = vunpack.c.l.b16 %v7541
      %v8602 = vunpack.c.l.b16 %v7545
      %v8603 = vunpack.c.l.b16 %v7548
      %v8604 = vunpack.c.l.b16 %v7552
      %v8605 = vunpack.c.l.b16 %v7555
      %v8606 = vunpack.c.l.b16 %v7559
      %v8607 = vunpack.c.l.b16 %v7562
      %v8608 = vunpack.c.l.b16 %v7566
      %v8609 = vunpack.c.l.b16 %v7569
      %v8610 = vpack.c.b16 %v8579, %v8578
      %v8611 = vpack.c.b16 %v8581, %v8580
      %v8612 = vpack.c.b16 %v8583, %v8582
      %v8613 = vpack.c.b16 %v8585, %v8584
      %v8614 = vpack.c.b16 %v8587, %v8586
      %v8615 = vpack.c.b16 %v8589, %v8588
      %v8616 = vpack.c.b16 %v8591, %v8590
      %v8617 = vpack.c.b16 %v8593, %v8592
      %v8618 = vpack.c.b16 %v8595, %v8594
      %v8619 = vpack.c.b16 %v8597, %v8596
      %v8620 = vpack.c.b16 %v8599, %v8598
      %v8621 = vpack.c.b16 %v8601, %v8600
      %v8622 = vpack.c.b16 %v8603, %v8602
      %v8623 = vpack.c.b16 %v8605, %v8604
      %v8624 = vpack.c.b16 %v8607, %v8606
      %v8625 = vpack.c.b16 %v8609, %v8608
      %8626 = vrot.lane.b32.xlu0 %v8610, 20
      %v8627 = vpop.permute.xlu0 %8626
      %8628 = vrot.lane.b32.xlu0 %v8611, 20
      %v8629 = vpop.permute.xlu0 %8628
      %8630 = vrot.lane.b32.xlu0 %v8612, 20
      %v8631 = vpop.permute.xlu0 %8630
      %8632 = vrot.lane.b32.xlu0 %v8613, 20
      %v8633 = vpop.permute.xlu0 %8632
      %8634 = vrot.lane.b32.xlu0 %v8614, 20
      %v8635 = vpop.permute.xlu0 %8634
      %8636 = vrot.lane.b32.xlu0 %v8615, 20
      %v8637 = vpop.permute.xlu0 %8636
      %8638 = vrot.lane.b32.xlu0 %v8616, 20
      %v8639 = vpop.permute.xlu0 %8638
      %8640 = vrot.lane.b32.xlu0 %v8617, 20
      %v8641 = vpop.permute.xlu0 %8640
      %8642 = vrot.lane.b32.xlu0 %v8618, 20
      %v8643 = vpop.permute.xlu0 %8642
      %8644 = vrot.lane.b32.xlu0 %v8619, 20
      %v8645 = vpop.permute.xlu0 %8644
      %8646 = vrot.lane.b32.xlu0 %v8620, 20
      %v8647 = vpop.permute.xlu0 %8646
      %8648 = vrot.lane.b32.xlu0 %v8621, 20
      %v8649 = vpop.permute.xlu0 %8648
      %8650 = vrot.lane.b32.xlu0 %v8622, 20
      %v8651 = vpop.permute.xlu0 %8650
      %8652 = vrot.lane.b32.xlu0 %v8623, 20
      %v8653 = vpop.permute.xlu0 %8652
      %8654 = vrot.lane.b32.xlu0 %v8624, 20
      %v8655 = vpop.permute.xlu0 %8654
      %8656 = vrot.lane.b32.xlu0 %v8625, 20
      %v8657 = vpop.permute.xlu0 %8656
      %v8674 = vunpack.c.l.b16 %v7570
      %v8675 = vunpack.c.l.b16 %v7571
      %v8676 = vunpack.c.l.b16 %v7572
      %v8677 = vunpack.c.l.b16 %v7573
      %v8678 = vunpack.c.l.b16 %v7574
      %v8679 = vunpack.c.l.b16 %v7575
      %v8680 = vunpack.c.l.b16 %v7576
      %v8681 = vunpack.c.l.b16 %v7577
      %v8682 = vunpack.c.l.b16 %v7578
      %v8683 = vunpack.c.l.b16 %v7579
      %v8684 = vunpack.c.l.b16 %v7580
      %v8685 = vunpack.c.l.b16 %v7581
      %v8686 = vunpack.c.l.b16 %v7582
      %v8687 = vunpack.c.l.b16 %v7583
      %v8688 = vunpack.c.l.b16 %v7584
      %v8689 = vunpack.c.l.b16 %v7585
      %v8690 = vunpack.c.l.b16 %v7586
      %v8691 = vunpack.c.l.b16 %v7587
      %v8692 = vunpack.c.l.b16 %v7588
      %v8693 = vunpack.c.l.b16 %v7589
      %v8694 = vunpack.c.l.b16 %v7590
      %v8695 = vunpack.c.l.b16 %v7591
      %v8696 = vunpack.c.l.b16 %v7592
      %v8697 = vunpack.c.l.b16 %v7593
      %v8698 = vunpack.c.l.b16 %v7594
      %v8699 = vunpack.c.l.b16 %v7595
      %v8700 = vunpack.c.l.b16 %v7596
      %v8701 = vunpack.c.l.b16 %v7597
      %v8702 = vunpack.c.l.b16 %v7598
      %v8703 = vunpack.c.l.b16 %v7599
      %v8704 = vunpack.c.l.b16 %v7600
      %v8705 = vunpack.c.l.b16 %v7601
      %v8706 = vpack.c.b16 %v8675, %v8674
      %v8707 = vpack.c.b16 %v8677, %v8676
      %v8708 = vpack.c.b16 %v8679, %v8678
      %v8709 = vpack.c.b16 %v8681, %v8680
      %v8710 = vpack.c.b16 %v8683, %v8682
      %v8711 = vpack.c.b16 %v8685, %v8684
      %v8712 = vpack.c.b16 %v8687, %v8686
      %v8713 = vpack.c.b16 %v8689, %v8688
      %v8714 = vpack.c.b16 %v8691, %v8690
      %v8715 = vpack.c.b16 %v8693, %v8692
      %v8716 = vpack.c.b16 %v8695, %v8694
      %v8717 = vpack.c.b16 %v8697, %v8696
      %v8718 = vpack.c.b16 %v8699, %v8698
      %v8719 = vpack.c.b16 %v8701, %v8700
      %v8720 = vpack.c.b16 %v8703, %v8702
      %v8721 = vpack.c.b16 %v8705, %v8704
      %8722 = vrot.lane.b32.xlu0 %v8706, 24
      %v8723 = vpop.permute.xlu0 %8722
      %8724 = vrot.lane.b32.xlu0 %v8707, 24
      %v8725 = vpop.permute.xlu0 %8724
      %8726 = vrot.lane.b32.xlu0 %v8708, 24
      %v8727 = vpop.permute.xlu0 %8726
      %8728 = vrot.lane.b32.xlu0 %v8709, 24
      %v8729 = vpop.permute.xlu0 %8728
      %8730 = vrot.lane.b32.xlu0 %v8710, 24
      %v8731 = vpop.permute.xlu0 %8730
      %8732 = vrot.lane.b32.xlu0 %v8711, 24
      %v8733 = vpop.permute.xlu0 %8732
      %8734 = vrot.lane.b32.xlu0 %v8712, 24
      %v8735 = vpop.permute.xlu0 %8734
      %8736 = vrot.lane.b32.xlu0 %v8713, 24
      %v8737 = vpop.permute.xlu0 %8736
      %8738 = vrot.lane.b32.xlu0 %v8714, 24
      %v8739 = vpop.permute.xlu0 %8738
      %8740 = vrot.lane.b32.xlu0 %v8715, 24
      %v8741 = vpop.permute.xlu0 %8740
      %8742 = vrot.lane.b32.xlu0 %v8716, 24
      %v8743 = vpop.permute.xlu0 %8742
      %8744 = vrot.lane.b32.xlu0 %v8717, 24
      %v8745 = vpop.permute.xlu0 %8744
      %8746 = vrot.lane.b32.xlu0 %v8718, 24
      %v8747 = vpop.permute.xlu0 %8746
      %8748 = vrot.lane.b32.xlu0 %v8719, 24
      %v8749 = vpop.permute.xlu0 %8748
      %8750 = vrot.lane.b32.xlu0 %v8720, 24
      %v8751 = vpop.permute.xlu0 %8750
      %8752 = vrot.lane.b32.xlu0 %v8721, 24
      %v8753 = vpop.permute.xlu0 %8752
      %v8754 = vunpack.c.l.b16 %v7631
      %v8755 = vunpack.c.l.b16 %v7641
      %v8756 = vunpack.c.l.b16 %v7655
      %v8757 = vunpack.c.l.b16 %v7665
      %v8758 = vunpack.c.l.b16 %v7679
      %v8759 = vunpack.c.l.b16 %v7689
      %v8760 = vunpack.c.l.b16 %v7703
      %v8761 = vunpack.c.l.b16 %v7713
      %v8762 = vunpack.c.l.b16 %v7727
      %v8763 = vunpack.c.l.b16 %v7737
      %v8764 = vunpack.c.l.b16 %v7751
      %v8765 = vunpack.c.l.b16 %v7761
      %v8766 = vunpack.c.l.b16 %v7775
      %v8767 = vunpack.c.l.b16 %v7785
      %v8768 = vunpack.c.l.b16 %v7799
      %v8769 = vunpack.c.l.b16 %v7809
      %v8770 = vunpack.c.l.b16 %v7823
      %v8771 = vunpack.c.l.b16 %v7833
      %v8772 = vunpack.c.l.b16 %v7847
      %v8773 = vunpack.c.l.b16 %v7857
      %v8774 = vunpack.c.l.b16 %v7871
      %v8775 = vunpack.c.l.b16 %v7881
      %v8776 = vunpack.c.l.b16 %v7895
      %v8777 = vunpack.c.l.b16 %v7905
      %v8778 = vunpack.c.l.b16 %v7919
      %v8779 = vunpack.c.l.b16 %v7929
      %v8780 = vunpack.c.l.b16 %v7943
      %v8781 = vunpack.c.l.b16 %v7953
      %v8782 = vunpack.c.l.b16 %v7967
      %v8783 = vunpack.c.l.b16 %v7977
      %v8784 = vunpack.c.l.b16 %v7991
      %v8785 = vunpack.c.l.b16 %v8001
      %v8786 = vpack.c.b16 %v8755, %v8754
      %v8787 = vpack.c.b16 %v8757, %v8756
      %v8788 = vpack.c.b16 %v8759, %v8758
      %v8789 = vpack.c.b16 %v8761, %v8760
      %v8790 = vpack.c.b16 %v8763, %v8762
      %v8791 = vpack.c.b16 %v8765, %v8764
      %v8792 = vpack.c.b16 %v8767, %v8766
      %v8793 = vpack.c.b16 %v8769, %v8768
      %v8794 = vpack.c.b16 %v8771, %v8770
      %v8795 = vpack.c.b16 %v8773, %v8772
      %v8796 = vpack.c.b16 %v8775, %v8774
      %v8797 = vpack.c.b16 %v8777, %v8776
      %v8798 = vpack.c.b16 %v8779, %v8778
      %v8799 = vpack.c.b16 %v8781, %v8780
      %v8800 = vpack.c.b16 %v8783, %v8782
      %v8801 = vpack.c.b16 %v8785, %v8784
      %8802 = vrot.lane.b32.xlu0 %v8786, 28
      %v8803 = vpop.permute.xlu0 %8802
      %8804 = vrot.lane.b32.xlu0 %v8787, 28
      %v8805 = vpop.permute.xlu0 %8804
      %8806 = vrot.lane.b32.xlu0 %v8788, 28
      %v8807 = vpop.permute.xlu0 %8806
      %8808 = vrot.lane.b32.xlu0 %v8789, 28
      %v8809 = vpop.permute.xlu0 %8808
      %8810 = vrot.lane.b32.xlu0 %v8790, 28
      %v8811 = vpop.permute.xlu0 %8810
      %8812 = vrot.lane.b32.xlu0 %v8791, 28
      %v8813 = vpop.permute.xlu0 %8812
      %8814 = vrot.lane.b32.xlu0 %v8792, 28
      %v8815 = vpop.permute.xlu0 %8814
      %8816 = vrot.lane.b32.xlu0 %v8793, 28
      %v8817 = vpop.permute.xlu0 %8816
      %8818 = vrot.lane.b32.xlu0 %v8794, 28
      %v8819 = vpop.permute.xlu0 %8818
      %8820 = vrot.lane.b32.xlu0 %v8795, 28
      %v8821 = vpop.permute.xlu0 %8820
      %8822 = vrot.lane.b32.xlu0 %v8796, 28
      %v8823 = vpop.permute.xlu0 %8822
      %8824 = vrot.lane.b32.xlu0 %v8797, 28
      %v8825 = vpop.permute.xlu0 %8824
      %8826 = vrot.lane.b32.xlu0 %v8798, 28
      %v8827 = vpop.permute.xlu0 %8826
      %8828 = vrot.lane.b32.xlu0 %v8799, 28
      %v8829 = vpop.permute.xlu0 %8828
      %8830 = vrot.lane.b32.xlu0 %v8800, 28
      %v8831 = vpop.permute.xlu0 %8830
      %8832 = vrot.lane.b32.xlu0 %v8801, 28
      %v8833 = vpop.permute.xlu0 %8832
      %v8834 = vunpack.c.l.b16 %v8069
      %v8835 = vunpack.c.l.b16 %v8072
      %v8836 = vunpack.c.l.b16 %v8076
      %v8837 = vunpack.c.l.b16 %v8079
      %v8838 = vunpack.c.l.b16 %v8083
      %v8839 = vunpack.c.l.b16 %v8086
      %v8840 = vunpack.c.l.b16 %v8090
      %v8841 = vunpack.c.l.b16 %v8093
      %v8842 = vunpack.c.l.b16 %v8097
      %v8843 = vunpack.c.l.b16 %v8100
      %v8844 = vunpack.c.l.b16 %v8104
      %v8845 = vunpack.c.l.b16 %v8107
      %v8846 = vunpack.c.l.b16 %v8111
      %v8847 = vunpack.c.l.b16 %v8114
      %v8848 = vunpack.c.l.b16 %v8118
      %v8849 = vunpack.c.l.b16 %v8121
      %v8850 = vunpack.c.l.b16 %v8125
      %v8851 = vunpack.c.l.b16 %v8128
      %v8852 = vunpack.c.l.b16 %v8132
      %v8853 = vunpack.c.l.b16 %v8135
      %v8854 = vunpack.c.l.b16 %v8139
      %v8855 = vunpack.c.l.b16 %v8142
      %v8856 = vunpack.c.l.b16 %v8146
      %v8857 = vunpack.c.l.b16 %v8149
      %v8858 = vunpack.c.l.b16 %v8153
      %v8859 = vunpack.c.l.b16 %v8156
      %v8860 = vunpack.c.l.b16 %v8160
      %v8861 = vunpack.c.l.b16 %v8163
      %v8862 = vunpack.c.l.b16 %v8167
      %v8863 = vunpack.c.l.b16 %v8170
      %v8864 = vunpack.c.l.b16 %v8174
      %v8865 = vunpack.c.l.b16 %v8177
      %v8866 = vpack.c.b16 %v8835, %v8834
      %v8867 = vpack.c.b16 %v8837, %v8836
      %v8868 = vpack.c.b16 %v8839, %v8838
      %v8869 = vpack.c.b16 %v8841, %v8840
      %v8870 = vpack.c.b16 %v8843, %v8842
      %v8871 = vpack.c.b16 %v8845, %v8844
      %v8872 = vpack.c.b16 %v8847, %v8846
      %v8873 = vpack.c.b16 %v8849, %v8848
      %v8874 = vpack.c.b16 %v8851, %v8850
      %v8875 = vpack.c.b16 %v8853, %v8852
      %v8876 = vpack.c.b16 %v8855, %v8854
      %v8877 = vpack.c.b16 %v8857, %v8856
      %v8878 = vpack.c.b16 %v8859, %v8858
      %v8879 = vpack.c.b16 %v8861, %v8860
      %v8880 = vpack.c.b16 %v8863, %v8862
      %v8881 = vpack.c.b16 %v8865, %v8864
      %8882 = vrot.lane.b32.xlu0 %v8866, 32
      %v8883 = vpop.permute.xlu0 %8882
      %8884 = vrot.lane.b32.xlu0 %v8867, 32
      %v8885 = vpop.permute.xlu0 %8884
      %8886 = vrot.lane.b32.xlu0 %v8868, 32
      %v8887 = vpop.permute.xlu0 %8886
      %8888 = vrot.lane.b32.xlu0 %v8869, 32
      %v8889 = vpop.permute.xlu0 %8888
      %8890 = vrot.lane.b32.xlu0 %v8870, 32
      %v8891 = vpop.permute.xlu0 %8890
      %8892 = vrot.lane.b32.xlu0 %v8871, 32
      %v8893 = vpop.permute.xlu0 %8892
      %8894 = vrot.lane.b32.xlu0 %v8872, 32
      %v8895 = vpop.permute.xlu0 %8894
      %8896 = vrot.lane.b32.xlu0 %v8873, 32
      %v8897 = vpop.permute.xlu0 %8896
      %8898 = vrot.lane.b32.xlu0 %v8874, 32
      %v8899 = vpop.permute.xlu0 %8898
      %8900 = vrot.lane.b32.xlu0 %v8875, 32
      %v8901 = vpop.permute.xlu0 %8900
      %8902 = vrot.lane.b32.xlu0 %v8876, 32
      %v8903 = vpop.permute.xlu0 %8902
      %8904 = vrot.lane.b32.xlu0 %v8877, 32
      %v8905 = vpop.permute.xlu0 %8904
      %8906 = vrot.lane.b32.xlu0 %v8878, 32
      %v8907 = vpop.permute.xlu0 %8906
      %8908 = vrot.lane.b32.xlu0 %v8879, 32
      %v8909 = vpop.permute.xlu0 %8908
      %8910 = vrot.lane.b32.xlu0 %v8880, 32
      %v8911 = vpop.permute.xlu0 %8910
      %8912 = vrot.lane.b32.xlu0 %v8881, 32
      %v8913 = vpop.permute.xlu0 %8912
      %v8916 = vsel %vm563, %v8226, %v8291
      %v8919 = vsel %vm563, %v8227, %v8293
      %v8922 = vsel %vm563, %v8228, %v8295
      %v8925 = vsel %vm563, %v8229, %v8297
      %v8928 = vsel %vm563, %v8230, %v8299
      %v8931 = vsel %vm563, %v8231, %v8301
      %v8934 = vsel %vm563, %v8232, %v8303
      %v8937 = vsel %vm563, %v8233, %v8305
      %v8940 = vsel %vm563, %v8234, %v8307
      %v8943 = vsel %vm563, %v8235, %v8309
      %v8946 = vsel %vm563, %v8236, %v8311
      %v8949 = vsel %vm563, %v8237, %v8313
      %v8952 = vsel %vm563, %v8238, %v8315
      %v8955 = vsel %vm563, %v8239, %v8317
      %v8958 = vsel %vm563, %v8240, %v8319
      %v8961 = vsel %vm563, %v8241, %v8321
      %v8963 = vsel %vm4871, %v8916, %v8371
      %v8965 = vsel %vm4871, %v8919, %v8373
      %v8967 = vsel %vm4871, %v8922, %v8375
      %v8969 = vsel %vm4871, %v8925, %v8377
      %v8971 = vsel %vm4871, %v8928, %v8379
      %v8973 = vsel %vm4871, %v8931, %v8381
      %v8975 = vsel %vm4871, %v8934, %v8383
      %v8977 = vsel %vm4871, %v8937, %v8385
      %v8979 = vsel %vm4871, %v8940, %v8387
      %v8981 = vsel %vm4871, %v8943, %v8389
      %v8983 = vsel %vm4871, %v8946, %v8391
      %v8985 = vsel %vm4871, %v8949, %v8393
      %v8987 = vsel %vm4871, %v8952, %v8395
      %v8989 = vsel %vm4871, %v8955, %v8397
      %v8991 = vsel %vm4871, %v8958, %v8399
      %v8993 = vsel %vm4871, %v8961, %v8401
      %v8995 = vsel %vm4904, %v8963, %v8467
      %v8997 = vsel %vm4904, %v8965, %v8469
      %v8999 = vsel %vm4904, %v8967, %v8471
      %v9001 = vsel %vm4904, %v8969, %v8473
      %v9003 = vsel %vm4904, %v8971, %v8475
      %v9005 = vsel %vm4904, %v8973, %v8477
      %v9007 = vsel %vm4904, %v8975, %v8479
      %v9009 = vsel %vm4904, %v8977, %v8481
      %v9011 = vsel %vm4904, %v8979, %v8483
      %v9013 = vsel %vm4904, %v8981, %v8485
      %v9015 = vsel %vm4904, %v8983, %v8487
      %v9017 = vsel %vm4904, %v8985, %v8489
      %v9019 = vsel %vm4904, %v8987, %v8491
      %v9021 = vsel %vm4904, %v8989, %v8493
      %v9023 = vsel %vm4904, %v8991, %v8495
      %v9025 = vsel %vm4904, %v8993, %v8497
      %v9027 = vsel %vm4937, %v8995, %v8547
      %v9029 = vsel %vm4937, %v8997, %v8549
      %v9031 = vsel %vm4937, %v8999, %v8551
      %v9033 = vsel %vm4937, %v9001, %v8553
      %v9035 = vsel %vm4937, %v9003, %v8555
      %v9037 = vsel %vm4937, %v9005, %v8557
      %v9039 = vsel %vm4937, %v9007, %v8559
      %v9041 = vsel %vm4937, %v9009, %v8561
      %v9043 = vsel %vm4937, %v9011, %v8563
      %v9045 = vsel %vm4937, %v9013, %v8565
      %v9047 = vsel %vm4937, %v9015, %v8567
      %v9049 = vsel %vm4937, %v9017, %v8569
      %v9051 = vsel %vm4937, %v9019, %v8571
      %v9053 = vsel %vm4937, %v9021, %v8573
      %v9055 = vsel %vm4937, %v9023, %v8575
      %v9057 = vsel %vm4937, %v9025, %v8577
      %v9059 = vsel %vm4970, %v9027, %v8627
      %v9061 = vsel %vm4970, %v9029, %v8629
      %v9063 = vsel %vm4970, %v9031, %v8631
      %v9065 = vsel %vm4970, %v9033, %v8633
      %v9067 = vsel %vm4970, %v9035, %v8635
      %v9069 = vsel %vm4970, %v9037, %v8637
      %v9071 = vsel %vm4970, %v9039, %v8639
      %v9073 = vsel %vm4970, %v9041, %v8641
      %v9075 = vsel %vm4970, %v9043, %v8643
      %v9077 = vsel %vm4970, %v9045, %v8645
      %v9079 = vsel %vm4970, %v9047, %v8647
      %v9081 = vsel %vm4970, %v9049, %v8649
      %v9083 = vsel %vm4970, %v9051, %v8651
      %v9085 = vsel %vm4970, %v9053, %v8653
      %v9087 = vsel %vm4970, %v9055, %v8655
      %v9089 = vsel %vm4970, %v9057, %v8657
      %v9091 = vsel %vm5003, %v9059, %v8723
      %v9093 = vsel %vm5003, %v9061, %v8725
      %v9095 = vsel %vm5003, %v9063, %v8727
      %v9097 = vsel %vm5003, %v9065, %v8729
      %v9099 = vsel %vm5003, %v9067, %v8731
      %v9101 = vsel %vm5003, %v9069, %v8733
      %v9103 = vsel %vm5003, %v9071, %v8735
      %v9105 = vsel %vm5003, %v9073, %v8737
      %v9107 = vsel %vm5003, %v9075, %v8739
      %v9109 = vsel %vm5003, %v9077, %v8741
      %v9111 = vsel %vm5003, %v9079, %v8743
      %v9113 = vsel %vm5003, %v9081, %v8745
      %v9115 = vsel %vm5003, %v9083, %v8747
      %v9117 = vsel %vm5003, %v9085, %v8749
      %v9119 = vsel %vm5003, %v9087, %v8751
      %v9121 = vsel %vm5003, %v9089, %v8753
      %v9123 = vsel %vm5036, %v9091, %v8803
      %v9125 = vsel %vm5036, %v9093, %v8805
      %v9127 = vsel %vm5036, %v9095, %v8807
      %v9129 = vsel %vm5036, %v9097, %v8809
      %v9131 = vsel %vm5036, %v9099, %v8811
      %v9133 = vsel %vm5036, %v9101, %v8813
      %v9135 = vsel %vm5036, %v9103, %v8815
      %v9137 = vsel %vm5036, %v9105, %v8817
      %v9139 = vsel %vm5036, %v9107, %v8819
      %v9141 = vsel %vm5036, %v9109, %v8821
      %v9143 = vsel %vm5036, %v9111, %v8823
      %v9145 = vsel %vm5036, %v9113, %v8825
      %v9147 = vsel %vm5036, %v9115, %v8827
      %v9149 = vsel %vm5036, %v9117, %v8829
      %v9151 = vsel %vm5036, %v9119, %v8831
      %v9153 = vsel %vm5036, %v9121, %v8833
      %v9155 = vsel %vm5069, %v9123, %v8883
      %v9157 = vsel %vm5069, %v9125, %v8885
      %v9159 = vsel %vm5069, %v9127, %v8887
      %v9161 = vsel %vm5069, %v9129, %v8889
      %v9163 = vsel %vm5069, %v9131, %v8891
      %v9165 = vsel %vm5069, %v9133, %v8893
      %v9167 = vsel %vm5069, %v9135, %v8895
      %v9169 = vsel %vm5069, %v9137, %v8897
      %v9171 = vsel %vm5069, %v9139, %v8899
      %v9173 = vsel %vm5069, %v9141, %v8901
      %v9175 = vsel %vm5069, %v9143, %v8903
      %v9177 = vsel %vm5069, %v9145, %v8905
      %v9179 = vsel %vm5069, %v9147, %v8907
      %v9181 = vsel %vm5069, %v9149, %v8909
      %v9183 = vsel %vm5069, %v9151, %v8911
      %v9185 = vsel %vm5069, %v9153, %v8913
      %v9186 = vld [vmem:[%s5] sm:$0xf]
      %v9187 = vld [vmem:[%s5 + $0x4] sm:$0xf]
      %v9188 = vld [vmem:[%s5 + $0x8] sm:$0xf]
      %v9189 = vld [vmem:[%s5 + $0xc] sm:$0xf]
      %v9190 = vld [vmem:[%s5 + $0x10] sm:$0x3]
      %v9191 = vld [vmem:[%s6] sm:$0x1]
      %v9193 = vperm.slane %v9191, 0
      %v9200 = vunpack.c.l.b16 %v9186
      %v9201 = vunpack.c.l.b16 %v9187
      %v9202 = vunpack.c.l.b16 %v9188
      %v9203 = vunpack.c.l.b16 %v9189
      %v9204 = vunpack.c.l.b16 %v9190
      %v9205 = vpack.c.b16 %v9201, %v9200
      %v9206 = vpack.c.b16 %v9203, %v9202
      %v9207 = vpack.c.b16 %v9204, %v9204
      %v9210 = vsel %vm5126, %v9155, 0
      %v9212 = vsel %vm5126, %v9157, 0
      %v9214 = vsel %vm5126, %v9159, 0
      %v9216 = vsel %vm5126, %v9161, 0
      %v9218 = vsel %vm5126, %v9163, 0
      %v9220 = vsel %vm5126, %v9165, 0
      %v9222 = vsel %vm5126, %v9167, 0
      %v9224 = vsel %vm5126, %v9169, 0
      %v9226 = vsel %vm5126, %v9171, 0
      %v9228 = vsel %vm5126, %v9173, 0
      %v9230 = vsel %vm5126, %v9175, 0
      %v9232 = vsel %vm5126, %v9177, 0
      %v9234 = vsel %vm5126, %v9179, 0
      %v9236 = vsel %vm5126, %v9181, 0
      %v9238 = vsel %vm5126, %v9183, 0
      %v9240 = vsel %vm5126, %v9185, 0
      %v9243 = vsel %vm612, %v9207, 0
      %9245 = vmatpush.bf16.msra.mxu0 0
      %9246 = vmatpush.bf16.msra.mxu0 0
      %9247 = vmatpush.bf16.msra.mxu0 0
      %9248 = vmatpush.bf16.msra.mxu0 0
      %9249 = vmatpush.bf16.msra.mxu0 0
      %9250 = vmatpush.bf16.msra.mxu0 %v9243
      %9251 = vmatpush.bf16.msra.mxu0 %v9206
      %9252 = vmatpush.bf16.msra.mxu0 %v9205
      %9253 = vmatmul.bf16.gmra.mxu0 %v9210
      %v9254 = vpop.f32.mrf.mxu0
      %v9255 = vadd.f32 %v9193, %v9254
      %v9256 = vpop.f32.mrf.mxu0
      %v9257 = vadd.f32 %v9193, %v9256
      %9258 = vmatmul.bf16.gmra.mxu0 %v9212
      %v9259 = vpop.f32.mrf.mxu0
      %v9260 = vadd.f32 %v9193, %v9259
      %v9261 = vpop.f32.mrf.mxu0
      %v9262 = vadd.f32 %v9193, %v9261
      %9263 = vmatmul.bf16.gmra.mxu0 %v9214
      %v9264 = vpop.f32.mrf.mxu0
      %v9265 = vadd.f32 %v9193, %v9264
      %v9266 = vpop.f32.mrf.mxu0
      %v9267 = vadd.f32 %v9193, %v9266
      %9268 = vmatmul.bf16.gmra.mxu0 %v9216
      %v9269 = vpop.f32.mrf.mxu0
      %v9270 = vadd.f32 %v9193, %v9269
      %v9271 = vpop.f32.mrf.mxu0
      %v9272 = vadd.f32 %v9193, %v9271
      %9273 = vmatmul.bf16.gmra.mxu0 %v9218
      %v9274 = vpop.f32.mrf.mxu0
      %v9275 = vadd.f32 %v9193, %v9274
      %v9276 = vpop.f32.mrf.mxu0
      %v9277 = vadd.f32 %v9193, %v9276
      %9278 = vmatmul.bf16.gmra.mxu0 %v9220
      %v9279 = vpop.f32.mrf.mxu0
      %v9280 = vadd.f32 %v9193, %v9279
      %v9281 = vpop.f32.mrf.mxu0
      %v9282 = vadd.f32 %v9193, %v9281
      %9283 = vmatmul.bf16.gmra.mxu0 %v9222
      %v9284 = vpop.f32.mrf.mxu0
      %v9285 = vadd.f32 %v9193, %v9284
      %v9286 = vpop.f32.mrf.mxu0
      %v9287 = vadd.f32 %v9193, %v9286
      %9288 = vmatmul.bf16.gmra.mxu0 %v9224
      %v9289 = vpop.f32.mrf.mxu0
      %v9290 = vadd.f32 %v9193, %v9289
      %v9291 = vpop.f32.mrf.mxu0
      %v9292 = vadd.f32 %v9193, %v9291
      %9293 = vmatmul.bf16.gmra.mxu0 %v9226
      %v9294 = vpop.f32.mrf.mxu0
      %v9295 = vadd.f32 %v9193, %v9294
      %v9296 = vpop.f32.mrf.mxu0
      %v9297 = vadd.f32 %v9193, %v9296
      %9298 = vmatmul.bf16.gmra.mxu0 %v9228
      %v9299 = vpop.f32.mrf.mxu0
      %v9300 = vadd.f32 %v9193, %v9299
      %v9301 = vpop.f32.mrf.mxu0
      %v9302 = vadd.f32 %v9193, %v9301
      %9303 = vmatmul.bf16.gmra.mxu0 %v9230
      %v9304 = vpop.f32.mrf.mxu0
      %v9305 = vadd.f32 %v9193, %v9304
      %v9306 = vpop.f32.mrf.mxu0
      %v9307 = vadd.f32 %v9193, %v9306
      %9308 = vmatmul.bf16.gmra.mxu0 %v9232
      %v9309 = vpop.f32.mrf.mxu0
      %v9310 = vadd.f32 %v9193, %v9309
      %v9311 = vpop.f32.mrf.mxu0
      %v9312 = vadd.f32 %v9193, %v9311
      %9313 = vmatmul.bf16.gmra.mxu0 %v9234
      %v9314 = vpop.f32.mrf.mxu0
      %v9315 = vadd.f32 %v9193, %v9314
      %v9316 = vpop.f32.mrf.mxu0
      %v9317 = vadd.f32 %v9193, %v9316
      %9318 = vmatmul.bf16.gmra.mxu0 %v9236
      %v9319 = vpop.f32.mrf.mxu0
      %v9320 = vadd.f32 %v9193, %v9319
      %v9321 = vpop.f32.mrf.mxu0
      %v9322 = vadd.f32 %v9193, %v9321
      %9323 = vmatmul.bf16.gmra.mxu0 %v9238
      %v9324 = vpop.f32.mrf.mxu0
      %v9325 = vadd.f32 %v9193, %v9324
      %v9326 = vpop.f32.mrf.mxu0
      %v9327 = vadd.f32 %v9193, %v9326
      %9328 = vmatmul.bf16.gmra.mxu0 %v9240
      %v9329 = vpop.f32.mrf.mxu0
      %v9330 = vadd.f32 %v9193, %v9329
      %v9331 = vpop.f32.mrf.mxu0
      %v9332 = vadd.f32 %v9193, %v9331
      %9333 = vdwg.mxu0
      %v9334 = vxor.u32 %v9255, 2147483648
      %v9335 = vxor.u32 %v9257, 2147483648
      %v9336 = vxor.u32 %v9260, 2147483648
      %v9337 = vxor.u32 %v9262, 2147483648
      %v9338 = vxor.u32 %v9265, 2147483648
      %v9339 = vxor.u32 %v9267, 2147483648
      %v9340 = vxor.u32 %v9270, 2147483648
      %v9341 = vxor.u32 %v9272, 2147483648
      %v9342 = vxor.u32 %v9275, 2147483648
      %v9343 = vxor.u32 %v9277, 2147483648
      %v9344 = vxor.u32 %v9280, 2147483648
      %v9345 = vxor.u32 %v9282, 2147483648
      %v9346 = vxor.u32 %v9285, 2147483648
      %v9347 = vxor.u32 %v9287, 2147483648
      %v9348 = vxor.u32 %v9290, 2147483648
      %v9349 = vxor.u32 %v9292, 2147483648
      %v9350 = vxor.u32 %v9295, 2147483648
      %v9351 = vxor.u32 %v9297, 2147483648
      %v9352 = vxor.u32 %v9300, 2147483648
      %v9353 = vxor.u32 %v9302, 2147483648
      %v9354 = vxor.u32 %v9305, 2147483648
      %v9355 = vxor.u32 %v9307, 2147483648
      %v9356 = vxor.u32 %v9310, 2147483648
      %v9357 = vxor.u32 %v9312, 2147483648
      %v9358 = vxor.u32 %v9315, 2147483648
      %v9359 = vxor.u32 %v9317, 2147483648
      %v9360 = vxor.u32 %v9320, 2147483648
      %v9361 = vxor.u32 %v9322, 2147483648
      %v9362 = vxor.u32 %v9325, 2147483648
      %v9363 = vxor.u32 %v9327, 2147483648
      %v9364 = vxor.u32 %v9330, 2147483648
      %v9365 = vxor.u32 %v9332, 2147483648
      %v9366 = vmul.f32 %v9334, 1.442695
      %v9367 = vpow.pop %v9366
      %v9368 = vmul.f32 %v9335, 1.442695
      %v9369 = vpow.pop %v9368
      %v9370 = vmul.f32 %v9336, 1.442695
      %v9371 = vpow.pop %v9370
      %v9372 = vmul.f32 %v9337, 1.442695
      %v9373 = vpow.pop %v9372
      %v9374 = vmul.f32 %v9338, 1.442695
      %v9375 = vpow.pop %v9374
      %v9376 = vmul.f32 %v9339, 1.442695
      %v9377 = vpow.pop %v9376
      %v9378 = vmul.f32 %v9340, 1.442695
      %v9379 = vpow.pop %v9378
      %v9380 = vmul.f32 %v9341, 1.442695
      %v9381 = vpow.pop %v9380
      %v9382 = vmul.f32 %v9342, 1.442695
      %v9383 = vpow.pop %v9382
      %v9384 = vmul.f32 %v9343, 1.442695
      %v9385 = vpow.pop %v9384
      %v9386 = vmul.f32 %v9344, 1.442695
      %v9387 = vpow.pop %v9386
      %v9388 = vmul.f32 %v9345, 1.442695
      %v9389 = vpow.pop %v9388
      %v9390 = vmul.f32 %v9346, 1.442695
      %v9391 = vpow.pop %v9390
      %v9392 = vmul.f32 %v9347, 1.442695
      %v9393 = vpow.pop %v9392
      %v9394 = vmul.f32 %v9348, 1.442695
      %v9395 = vpow.pop %v9394
      %v9396 = vmul.f32 %v9349, 1.442695
      %v9397 = vpow.pop %v9396
      %v9398 = vmul.f32 %v9350, 1.442695
      %v9399 = vpow.pop %v9398
      %v9400 = vmul.f32 %v9351, 1.442695
      %v9401 = vpow.pop %v9400
      %v9402 = vmul.f32 %v9352, 1.442695
      %v9403 = vpow.pop %v9402
      %v9404 = vmul.f32 %v9353, 1.442695
      %v9405 = vpow.pop %v9404
      %v9406 = vmul.f32 %v9354, 1.442695
      %v9407 = vpow.pop %v9406
      %v9408 = vmul.f32 %v9355, 1.442695
      %v9409 = vpow.pop %v9408
      %v9410 = vmul.f32 %v9356, 1.442695
      %v9411 = vpow.pop %v9410
      %v9412 = vmul.f32 %v9357, 1.442695
      %v9413 = vpow.pop %v9412
      %v9414 = vmul.f32 %v9358, 1.442695
      %v9415 = vpow.pop %v9414
      %v9416 = vmul.f32 %v9359, 1.442695
      %v9417 = vpow.pop %v9416
      %v9418 = vmul.f32 %v9360, 1.442695
      %v9419 = vpow.pop %v9418
      %v9420 = vmul.f32 %v9361, 1.442695
      %v9421 = vpow.pop %v9420
      %v9422 = vmul.f32 %v9362, 1.442695
      %v9423 = vpow.pop %v9422
      %v9424 = vmul.f32 %v9363, 1.442695
      %v9425 = vpow.pop %v9424
      %v9426 = vmul.f32 %v9364, 1.442695
      %v9427 = vpow.pop %v9426
      %v9428 = vmul.f32 %v9365, 1.442695
      %v9429 = vpow.pop %v9428
      %v9430 = vadd.f32 %v9367, 1.0
      %v9431 = vadd.f32 %v9369, 1.0
      %v9432 = vadd.f32 %v9371, 1.0
      %v9433 = vadd.f32 %v9373, 1.0
      %v9434 = vadd.f32 %v9375, 1.0
      %v9435 = vadd.f32 %v9377, 1.0
      %v9436 = vadd.f32 %v9379, 1.0
      %v9437 = vadd.f32 %v9381, 1.0
      %v9438 = vadd.f32 %v9383, 1.0
      %v9439 = vadd.f32 %v9385, 1.0
      %v9440 = vadd.f32 %v9387, 1.0
      %v9441 = vadd.f32 %v9389, 1.0
      %v9442 = vadd.f32 %v9391, 1.0
      %v9443 = vadd.f32 %v9393, 1.0
      %v9444 = vadd.f32 %v9395, 1.0
      %v9445 = vadd.f32 %v9397, 1.0
      %v9446 = vadd.f32 %v9399, 1.0
      %v9447 = vadd.f32 %v9401, 1.0
      %v9448 = vadd.f32 %v9403, 1.0
      %v9449 = vadd.f32 %v9405, 1.0
      %v9450 = vadd.f32 %v9407, 1.0
      %v9451 = vadd.f32 %v9409, 1.0
      %v9452 = vadd.f32 %v9411, 1.0
      %v9453 = vadd.f32 %v9413, 1.0
      %v9454 = vadd.f32 %v9415, 1.0
      %v9455 = vadd.f32 %v9417, 1.0
      %v9456 = vadd.f32 %v9419, 1.0
      %v9457 = vadd.f32 %v9421, 1.0
      %v9458 = vadd.f32 %v9423, 1.0
      %v9459 = vadd.f32 %v9425, 1.0
      %v9460 = vadd.f32 %v9427, 1.0
      %v9461 = vadd.f32 %v9429, 1.0
      %v9462 = vrcp.pop %v9430
      %v9463 = vmul.f32 %v9430, %v9462
      %v9464 = vsub.f32 1.0, %v9463
      %v9465 = vmul.f32 %v9462, %v9464
      %v9466 = vadd.f32 %v9462, %v9465
      %vm9467 = vweird.f32 %v9430
      %vm9468 = vweird.f32 %v9462
      %vm9469 = vmor %vm9467, %vm9468
      %v9470 = vsel %vm9469, %v9462, %v9466
      %v9471 = vand.u32 2147483647, %v9430
      %vm9472 = vcmp.eq.f32.partialorder %v9471, 8.507059e+37
      %v9473 = vand.u32 %v9430, 2147483648
      %v9474 = vor.u32 1.1754944e-38, %v9473
      %v9475 = vsel %vm9472, %v9474, %v9470
      %v9476 = vmul.f32 1.0, %v9475
      %v9477 = vrcp.pop %v9431
      %v9478 = vmul.f32 %v9431, %v9477
      %v9479 = vsub.f32 1.0, %v9478
      %v9480 = vmul.f32 %v9477, %v9479
      %v9481 = vadd.f32 %v9477, %v9480
      %vm9482 = vweird.f32 %v9431
      %vm9483 = vweird.f32 %v9477
      %vm9484 = vmor %vm9482, %vm9483
      %v9485 = vsel %vm9484, %v9477, %v9481
      %v9486 = vand.u32 2147483647, %v9431
      %vm9487 = vcmp.eq.f32.partialorder %v9486, 8.507059e+37
      %v9488 = vand.u32 %v9431, 2147483648
      %v9489 = vor.u32 1.1754944e-38, %v9488
      %v9490 = vsel %vm9487, %v9489, %v9485
      %v9491 = vmul.f32 1.0, %v9490
      %v9492 = vrcp.pop %v9432
      %v9493 = vmul.f32 %v9432, %v9492
      %v9494 = vsub.f32 1.0, %v9493
      %v9495 = vmul.f32 %v9492, %v9494
      %v9496 = vadd.f32 %v9492, %v9495
      %vm9497 = vweird.f32 %v9432
      %vm9498 = vweird.f32 %v9492
      %vm9499 = vmor %vm9497, %vm9498
      %v9500 = vsel %vm9499, %v9492, %v9496
      %v9501 = vand.u32 2147483647, %v9432
      %vm9502 = vcmp.eq.f32.partialorder %v9501, 8.507059e+37
      %v9503 = vand.u32 %v9432, 2147483648
      %v9504 = vor.u32 1.1754944e-38, %v9503
      %v9505 = vsel %vm9502, %v9504, %v9500
      %v9506 = vmul.f32 1.0, %v9505
      %v9507 = vrcp.pop %v9433
      %v9508 = vmul.f32 %v9433, %v9507
      %v9509 = vsub.f32 1.0, %v9508
      %v9510 = vmul.f32 %v9507, %v9509
      %v9511 = vadd.f32 %v9507, %v9510
      %vm9512 = vweird.f32 %v9433
      %vm9513 = vweird.f32 %v9507
      %vm9514 = vmor %vm9512, %vm9513
      %v9515 = vsel %vm9514, %v9507, %v9511
      %v9516 = vand.u32 2147483647, %v9433
      %vm9517 = vcmp.eq.f32.partialorder %v9516, 8.507059e+37
      %v9518 = vand.u32 %v9433, 2147483648
      %v9519 = vor.u32 1.1754944e-38, %v9518
      %v9520 = vsel %vm9517, %v9519, %v9515
      %v9521 = vmul.f32 1.0, %v9520
      %v9522 = vrcp.pop %v9434
      %v9523 = vmul.f32 %v9434, %v9522
      %v9524 = vsub.f32 1.0, %v9523
      %v9525 = vmul.f32 %v9522, %v9524
      %v9526 = vadd.f32 %v9522, %v9525
      %vm9527 = vweird.f32 %v9434
      %vm9528 = vweird.f32 %v9522
      %vm9529 = vmor %vm9527, %vm9528
      %v9530 = vsel %vm9529, %v9522, %v9526
      %v9531 = vand.u32 2147483647, %v9434
      %vm9532 = vcmp.eq.f32.partialorder %v9531, 8.507059e+37
      %v9533 = vand.u32 %v9434, 2147483648
      %v9534 = vor.u32 1.1754944e-38, %v9533
      %v9535 = vsel %vm9532, %v9534, %v9530
      %v9536 = vmul.f32 1.0, %v9535
      %v9537 = vrcp.pop %v9435
      %v9538 = vmul.f32 %v9435, %v9537
      %v9539 = vsub.f32 1.0, %v9538
      %v9540 = vmul.f32 %v9537, %v9539
      %v9541 = vadd.f32 %v9537, %v9540
      %vm9542 = vweird.f32 %v9435
      %vm9543 = vweird.f32 %v9537
      %vm9544 = vmor %vm9542, %vm9543
      %v9545 = vsel %vm9544, %v9537, %v9541
      %v9546 = vand.u32 2147483647, %v9435
      %vm9547 = vcmp.eq.f32.partialorder %v9546, 8.507059e+37
      %v9548 = vand.u32 %v9435, 2147483648
      %v9549 = vor.u32 1.1754944e-38, %v9548
      %v9550 = vsel %vm9547, %v9549, %v9545
      %v9551 = vmul.f32 1.0, %v9550
      %v9552 = vrcp.pop %v9436
      %v9553 = vmul.f32 %v9436, %v9552
      %v9554 = vsub.f32 1.0, %v9553
      %v9555 = vmul.f32 %v9552, %v9554
      %v9556 = vadd.f32 %v9552, %v9555
      %vm9557 = vweird.f32 %v9436
      %vm9558 = vweird.f32 %v9552
      %vm9559 = vmor %vm9557, %vm9558
      %v9560 = vsel %vm9559, %v9552, %v9556
      %v9561 = vand.u32 2147483647, %v9436
      %vm9562 = vcmp.eq.f32.partialorder %v9561, 8.507059e+37
      %v9563 = vand.u32 %v9436, 2147483648
      %v9564 = vor.u32 1.1754944e-38, %v9563
      %v9565 = vsel %vm9562, %v9564, %v9560
      %v9566 = vmul.f32 1.0, %v9565
      %v9567 = vrcp.pop %v9437
      %v9568 = vmul.f32 %v9437, %v9567
      %v9569 = vsub.f32 1.0, %v9568
      %v9570 = vmul.f32 %v9567, %v9569
      %v9571 = vadd.f32 %v9567, %v9570
      %vm9572 = vweird.f32 %v9437
      %vm9573 = vweird.f32 %v9567
      %vm9574 = vmor %vm9572, %vm9573
      %v9575 = vsel %vm9574, %v9567, %v9571
      %v9576 = vand.u32 2147483647, %v9437
      %vm9577 = vcmp.eq.f32.partialorder %v9576, 8.507059e+37
      %v9578 = vand.u32 %v9437, 2147483648
      %v9579 = vor.u32 1.1754944e-38, %v9578
      %v9580 = vsel %vm9577, %v9579, %v9575
      %v9581 = vmul.f32 1.0, %v9580
      %v9582 = vrcp.pop %v9438
      %v9583 = vmul.f32 %v9438, %v9582
      %v9584 = vsub.f32 1.0, %v9583
      %v9585 = vmul.f32 %v9582, %v9584
      %v9586 = vadd.f32 %v9582, %v9585
      %vm9587 = vweird.f32 %v9438
      %vm9588 = vweird.f32 %v9582
      %vm9589 = vmor %vm9587, %vm9588
      %v9590 = vsel %vm9589, %v9582, %v9586
      %v9591 = vand.u32 2147483647, %v9438
      %vm9592 = vcmp.eq.f32.partialorder %v9591, 8.507059e+37
      %v9593 = vand.u32 %v9438, 2147483648
      %v9594 = vor.u32 1.1754944e-38, %v9593
      %v9595 = vsel %vm9592, %v9594, %v9590
      %v9596 = vmul.f32 1.0, %v9595
      %v9597 = vrcp.pop %v9439
      %v9598 = vmul.f32 %v9439, %v9597
      %v9599 = vsub.f32 1.0, %v9598
      %v9600 = vmul.f32 %v9597, %v9599
      %v9601 = vadd.f32 %v9597, %v9600
      %vm9602 = vweird.f32 %v9439
      %vm9603 = vweird.f32 %v9597
      %vm9604 = vmor %vm9602, %vm9603
      %v9605 = vsel %vm9604, %v9597, %v9601
      %v9606 = vand.u32 2147483647, %v9439
      %vm9607 = vcmp.eq.f32.partialorder %v9606, 8.507059e+37
      %v9608 = vand.u32 %v9439, 2147483648
      %v9609 = vor.u32 1.1754944e-38, %v9608
      %v9610 = vsel %vm9607, %v9609, %v9605
      %v9611 = vmul.f32 1.0, %v9610
      %v9612 = vrcp.pop %v9440
      %v9613 = vmul.f32 %v9440, %v9612
      %v9614 = vsub.f32 1.0, %v9613
      %v9615 = vmul.f32 %v9612, %v9614
      %v9616 = vadd.f32 %v9612, %v9615
      %vm9617 = vweird.f32 %v9440
      %vm9618 = vweird.f32 %v9612
      %vm9619 = vmor %vm9617, %vm9618
      %v9620 = vsel %vm9619, %v9612, %v9616
      %v9621 = vand.u32 2147483647, %v9440
      %vm9622 = vcmp.eq.f32.partialorder %v9621, 8.507059e+37
      %v9623 = vand.u32 %v9440, 2147483648
      %v9624 = vor.u32 1.1754944e-38, %v9623
      %v9625 = vsel %vm9622, %v9624, %v9620
      %v9626 = vmul.f32 1.0, %v9625
      %v9627 = vrcp.pop %v9441
      %v9628 = vmul.f32 %v9441, %v9627
      %v9629 = vsub.f32 1.0, %v9628
      %v9630 = vmul.f32 %v9627, %v9629
      %v9631 = vadd.f32 %v9627, %v9630
      %vm9632 = vweird.f32 %v9441
      %vm9633 = vweird.f32 %v9627
      %vm9634 = vmor %vm9632, %vm9633
      %v9635 = vsel %vm9634, %v9627, %v9631
      %v9636 = vand.u32 2147483647, %v9441
      %vm9637 = vcmp.eq.f32.partialorder %v9636, 8.507059e+37
      %v9638 = vand.u32 %v9441, 2147483648
      %v9639 = vor.u32 1.1754944e-38, %v9638
      %v9640 = vsel %vm9637, %v9639, %v9635
      %v9641 = vmul.f32 1.0, %v9640
      %v9642 = vrcp.pop %v9442
      %v9643 = vmul.f32 %v9442, %v9642
      %v9644 = vsub.f32 1.0, %v9643
      %v9645 = vmul.f32 %v9642, %v9644
      %v9646 = vadd.f32 %v9642, %v9645
      %vm9647 = vweird.f32 %v9442
      %vm9648 = vweird.f32 %v9642
      %vm9649 = vmor %vm9647, %vm9648
      %v9650 = vsel %vm9649, %v9642, %v9646
      %v9651 = vand.u32 2147483647, %v9442
      %vm9652 = vcmp.eq.f32.partialorder %v9651, 8.507059e+37
      %v9653 = vand.u32 %v9442, 2147483648
      %v9654 = vor.u32 1.1754944e-38, %v9653
      %v9655 = vsel %vm9652, %v9654, %v9650
      %v9656 = vmul.f32 1.0, %v9655
      %v9657 = vrcp.pop %v9443
      %v9658 = vmul.f32 %v9443, %v9657
      %v9659 = vsub.f32 1.0, %v9658
      %v9660 = vmul.f32 %v9657, %v9659
      %v9661 = vadd.f32 %v9657, %v9660
      %vm9662 = vweird.f32 %v9443
      %vm9663 = vweird.f32 %v9657
      %vm9664 = vmor %vm9662, %vm9663
      %v9665 = vsel %vm9664, %v9657, %v9661
      %v9666 = vand.u32 2147483647, %v9443
      %vm9667 = vcmp.eq.f32.partialorder %v9666, 8.507059e+37
      %v9668 = vand.u32 %v9443, 2147483648
      %v9669 = vor.u32 1.1754944e-38, %v9668
      %v9670 = vsel %vm9667, %v9669, %v9665
      %v9671 = vmul.f32 1.0, %v9670
      %v9672 = vrcp.pop %v9444
      %v9673 = vmul.f32 %v9444, %v9672
      %v9674 = vsub.f32 1.0, %v9673
      %v9675 = vmul.f32 %v9672, %v9674
      %v9676 = vadd.f32 %v9672, %v9675
      %vm9677 = vweird.f32 %v9444
      %vm9678 = vweird.f32 %v9672
      %vm9679 = vmor %vm9677, %vm9678
      %v9680 = vsel %vm9679, %v9672, %v9676
      %v9681 = vand.u32 2147483647, %v9444
      %vm9682 = vcmp.eq.f32.partialorder %v9681, 8.507059e+37
      %v9683 = vand.u32 %v9444, 2147483648
      %v9684 = vor.u32 1.1754944e-38, %v9683
      %v9685 = vsel %vm9682, %v9684, %v9680
      %v9686 = vmul.f32 1.0, %v9685
      %v9687 = vrcp.pop %v9445
      %v9688 = vmul.f32 %v9445, %v9687
      %v9689 = vsub.f32 1.0, %v9688
      %v9690 = vmul.f32 %v9687, %v9689
      %v9691 = vadd.f32 %v9687, %v9690
      %vm9692 = vweird.f32 %v9445
      %vm9693 = vweird.f32 %v9687
      %vm9694 = vmor %vm9692, %vm9693
      %v9695 = vsel %vm9694, %v9687, %v9691
      %v9696 = vand.u32 2147483647, %v9445
      %vm9697 = vcmp.eq.f32.partialorder %v9696, 8.507059e+37
      %v9698 = vand.u32 %v9445, 2147483648
      %v9699 = vor.u32 1.1754944e-38, %v9698
      %v9700 = vsel %vm9697, %v9699, %v9695
      %v9701 = vmul.f32 1.0, %v9700
      %v9702 = vrcp.pop %v9446
      %v9703 = vmul.f32 %v9446, %v9702
      %v9704 = vsub.f32 1.0, %v9703
      %v9705 = vmul.f32 %v9702, %v9704
      %v9706 = vadd.f32 %v9702, %v9705
      %vm9707 = vweird.f32 %v9446
      %vm9708 = vweird.f32 %v9702
      %vm9709 = vmor %vm9707, %vm9708
      %v9710 = vsel %vm9709, %v9702, %v9706
      %v9711 = vand.u32 2147483647, %v9446
      %vm9712 = vcmp.eq.f32.partialorder %v9711, 8.507059e+37
      %v9713 = vand.u32 %v9446, 2147483648
      %v9714 = vor.u32 1.1754944e-38, %v9713
      %v9715 = vsel %vm9712, %v9714, %v9710
      %v9716 = vmul.f32 1.0, %v9715
      %v9717 = vrcp.pop %v9447
      %v9718 = vmul.f32 %v9447, %v9717
      %v9719 = vsub.f32 1.0, %v9718
      %v9720 = vmul.f32 %v9717, %v9719
      %v9721 = vadd.f32 %v9717, %v9720
      %vm9722 = vweird.f32 %v9447
      %vm9723 = vweird.f32 %v9717
      %vm9724 = vmor %vm9722, %vm9723
      %v9725 = vsel %vm9724, %v9717, %v9721
      %v9726 = vand.u32 2147483647, %v9447
      %vm9727 = vcmp.eq.f32.partialorder %v9726, 8.507059e+37
      %v9728 = vand.u32 %v9447, 2147483648
      %v9729 = vor.u32 1.1754944e-38, %v9728
      %v9730 = vsel %vm9727, %v9729, %v9725
      %v9731 = vmul.f32 1.0, %v9730
      %v9732 = vrcp.pop %v9448
      %v9733 = vmul.f32 %v9448, %v9732
      %v9734 = vsub.f32 1.0, %v9733
      %v9735 = vmul.f32 %v9732, %v9734
      %v9736 = vadd.f32 %v9732, %v9735
      %vm9737 = vweird.f32 %v9448
      %vm9738 = vweird.f32 %v9732
      %vm9739 = vmor %vm9737, %vm9738
      %v9740 = vsel %vm9739, %v9732, %v9736
      %v9741 = vand.u32 2147483647, %v9448
      %vm9742 = vcmp.eq.f32.partialorder %v9741, 8.507059e+37
      %v9743 = vand.u32 %v9448, 2147483648
      %v9744 = vor.u32 1.1754944e-38, %v9743
      %v9745 = vsel %vm9742, %v9744, %v9740
      %v9746 = vmul.f32 1.0, %v9745
      %v9747 = vrcp.pop %v9449
      %v9748 = vmul.f32 %v9449, %v9747
      %v9749 = vsub.f32 1.0, %v9748
      %v9750 = vmul.f32 %v9747, %v9749
      %v9751 = vadd.f32 %v9747, %v9750
      %vm9752 = vweird.f32 %v9449
      %vm9753 = vweird.f32 %v9747
      %vm9754 = vmor %vm9752, %vm9753
      %v9755 = vsel %vm9754, %v9747, %v9751
      %v9756 = vand.u32 2147483647, %v9449
      %vm9757 = vcmp.eq.f32.partialorder %v9756, 8.507059e+37
      %v9758 = vand.u32 %v9449, 2147483648
      %v9759 = vor.u32 1.1754944e-38, %v9758
      %v9760 = vsel %vm9757, %v9759, %v9755
      %v9761 = vmul.f32 1.0, %v9760
      %v9762 = vrcp.pop %v9450
      %v9763 = vmul.f32 %v9450, %v9762
      %v9764 = vsub.f32 1.0, %v9763
      %v9765 = vmul.f32 %v9762, %v9764
      %v9766 = vadd.f32 %v9762, %v9765
      %vm9767 = vweird.f32 %v9450
      %vm9768 = vweird.f32 %v9762
      %vm9769 = vmor %vm9767, %vm9768
      %v9770 = vsel %vm9769, %v9762, %v9766
      %v9771 = vand.u32 2147483647, %v9450
      %vm9772 = vcmp.eq.f32.partialorder %v9771, 8.507059e+37
      %v9773 = vand.u32 %v9450, 2147483648
      %v9774 = vor.u32 1.1754944e-38, %v9773
      %v9775 = vsel %vm9772, %v9774, %v9770
      %v9776 = vmul.f32 1.0, %v9775
      %v9777 = vrcp.pop %v9451
      %v9778 = vmul.f32 %v9451, %v9777
      %v9779 = vsub.f32 1.0, %v9778
      %v9780 = vmul.f32 %v9777, %v9779
      %v9781 = vadd.f32 %v9777, %v9780
      %vm9782 = vweird.f32 %v9451
      %vm9783 = vweird.f32 %v9777
      %vm9784 = vmor %vm9782, %vm9783
      %v9785 = vsel %vm9784, %v9777, %v9781
      %v9786 = vand.u32 2147483647, %v9451
      %vm9787 = vcmp.eq.f32.partialorder %v9786, 8.507059e+37
      %v9788 = vand.u32 %v9451, 2147483648
      %v9789 = vor.u32 1.1754944e-38, %v9788
      %v9790 = vsel %vm9787, %v9789, %v9785
      %v9791 = vmul.f32 1.0, %v9790
      %v9792 = vrcp.pop %v9452
      %v9793 = vmul.f32 %v9452, %v9792
      %v9794 = vsub.f32 1.0, %v9793
      %v9795 = vmul.f32 %v9792, %v9794
      %v9796 = vadd.f32 %v9792, %v9795
      %vm9797 = vweird.f32 %v9452
      %vm9798 = vweird.f32 %v9792
      %vm9799 = vmor %vm9797, %vm9798
      %v9800 = vsel %vm9799, %v9792, %v9796
      %v9801 = vand.u32 2147483647, %v9452
      %vm9802 = vcmp.eq.f32.partialorder %v9801, 8.507059e+37
      %v9803 = vand.u32 %v9452, 2147483648
      %v9804 = vor.u32 1.1754944e-38, %v9803
      %v9805 = vsel %vm9802, %v9804, %v9800
      %v9806 = vmul.f32 1.0, %v9805
      %v9807 = vrcp.pop %v9453
      %v9808 = vmul.f32 %v9453, %v9807
      %v9809 = vsub.f32 1.0, %v9808
      %v9810 = vmul.f32 %v9807, %v9809
      %v9811 = vadd.f32 %v9807, %v9810
      %vm9812 = vweird.f32 %v9453
      %vm9813 = vweird.f32 %v9807
      %vm9814 = vmor %vm9812, %vm9813
      %v9815 = vsel %vm9814, %v9807, %v9811
      %v9816 = vand.u32 2147483647, %v9453
      %vm9817 = vcmp.eq.f32.partialorder %v9816, 8.507059e+37
      %v9818 = vand.u32 %v9453, 2147483648
      %v9819 = vor.u32 1.1754944e-38, %v9818
      %v9820 = vsel %vm9817, %v9819, %v9815
      %v9821 = vmul.f32 1.0, %v9820
      %v9822 = vrcp.pop %v9454
      %v9823 = vmul.f32 %v9454, %v9822
      %v9824 = vsub.f32 1.0, %v9823
      %v9825 = vmul.f32 %v9822, %v9824
      %v9826 = vadd.f32 %v9822, %v9825
      %vm9827 = vweird.f32 %v9454
      %vm9828 = vweird.f32 %v9822
      %vm9829 = vmor %vm9827, %vm9828
      %v9830 = vsel %vm9829, %v9822, %v9826
      %v9831 = vand.u32 2147483647, %v9454
      %vm9832 = vcmp.eq.f32.partialorder %v9831, 8.507059e+37
      %v9833 = vand.u32 %v9454, 2147483648
      %v9834 = vor.u32 1.1754944e-38, %v9833
      %v9835 = vsel %vm9832, %v9834, %v9830
      %v9836 = vmul.f32 1.0, %v9835
      %v9837 = vrcp.pop %v9455
      %v9838 = vmul.f32 %v9455, %v9837
      %v9839 = vsub.f32 1.0, %v9838
      %v9840 = vmul.f32 %v9837, %v9839
      %v9841 = vadd.f32 %v9837, %v9840
      %vm9842 = vweird.f32 %v9455
      %vm9843 = vweird.f32 %v9837
      %vm9844 = vmor %vm9842, %vm9843
      %v9845 = vsel %vm9844, %v9837, %v9841
      %v9846 = vand.u32 2147483647, %v9455
      %vm9847 = vcmp.eq.f32.partialorder %v9846, 8.507059e+37
      %v9848 = vand.u32 %v9455, 2147483648
      %v9849 = vor.u32 1.1754944e-38, %v9848
      %v9850 = vsel %vm9847, %v9849, %v9845
      %v9851 = vmul.f32 1.0, %v9850
      %v9852 = vrcp.pop %v9456
      %v9853 = vmul.f32 %v9456, %v9852
      %v9854 = vsub.f32 1.0, %v9853
      %v9855 = vmul.f32 %v9852, %v9854
      %v9856 = vadd.f32 %v9852, %v9855
      %vm9857 = vweird.f32 %v9456
      %vm9858 = vweird.f32 %v9852
      %vm9859 = vmor %vm9857, %vm9858
      %v9860 = vsel %vm9859, %v9852, %v9856
      %v9861 = vand.u32 2147483647, %v9456
      %vm9862 = vcmp.eq.f32.partialorder %v9861, 8.507059e+37
      %v9863 = vand.u32 %v9456, 2147483648
      %v9864 = vor.u32 1.1754944e-38, %v9863
      %v9865 = vsel %vm9862, %v9864, %v9860
      %v9866 = vmul.f32 1.0, %v9865
      %v9867 = vrcp.pop %v9457
      %v9868 = vmul.f32 %v9457, %v9867
      %v9869 = vsub.f32 1.0, %v9868
      %v9870 = vmul.f32 %v9867, %v9869
      %v9871 = vadd.f32 %v9867, %v9870
      %vm9872 = vweird.f32 %v9457
      %vm9873 = vweird.f32 %v9867
      %vm9874 = vmor %vm9872, %vm9873
      %v9875 = vsel %vm9874, %v9867, %v9871
      %v9876 = vand.u32 2147483647, %v9457
      %vm9877 = vcmp.eq.f32.partialorder %v9876, 8.507059e+37
      %v9878 = vand.u32 %v9457, 2147483648
      %v9879 = vor.u32 1.1754944e-38, %v9878
      %v9880 = vsel %vm9877, %v9879, %v9875
      %v9881 = vmul.f32 1.0, %v9880
      %v9882 = vrcp.pop %v9458
      %v9883 = vmul.f32 %v9458, %v9882
      %v9884 = vsub.f32 1.0, %v9883
      %v9885 = vmul.f32 %v9882, %v9884
      %v9886 = vadd.f32 %v9882, %v9885
      %vm9887 = vweird.f32 %v9458
      %vm9888 = vweird.f32 %v9882
      %vm9889 = vmor %vm9887, %vm9888
      %v9890 = vsel %vm9889, %v9882, %v9886
      %v9891 = vand.u32 2147483647, %v9458
      %vm9892 = vcmp.eq.f32.partialorder %v9891, 8.507059e+37
      %v9893 = vand.u32 %v9458, 2147483648
      %v9894 = vor.u32 1.1754944e-38, %v9893
      %v9895 = vsel %vm9892, %v9894, %v9890
      %v9896 = vmul.f32 1.0, %v9895
      %v9897 = vrcp.pop %v9459
      %v9898 = vmul.f32 %v9459, %v9897
      %v9899 = vsub.f32 1.0, %v9898
      %v9900 = vmul.f32 %v9897, %v9899
      %v9901 = vadd.f32 %v9897, %v9900
      %vm9902 = vweird.f32 %v9459
      %vm9903 = vweird.f32 %v9897
      %vm9904 = vmor %vm9902, %vm9903
      %v9905 = vsel %vm9904, %v9897, %v9901
      %v9906 = vand.u32 2147483647, %v9459
      %vm9907 = vcmp.eq.f32.partialorder %v9906, 8.507059e+37
      %v9908 = vand.u32 %v9459, 2147483648
      %v9909 = vor.u32 1.1754944e-38, %v9908
      %v9910 = vsel %vm9907, %v9909, %v9905
      %v9911 = vmul.f32 1.0, %v9910
      %v9912 = vrcp.pop %v9460
      %v9913 = vmul.f32 %v9460, %v9912
      %v9914 = vsub.f32 1.0, %v9913
      %v9915 = vmul.f32 %v9912, %v9914
      %v9916 = vadd.f32 %v9912, %v9915
      %vm9917 = vweird.f32 %v9460
      %vm9918 = vweird.f32 %v9912
      %vm9919 = vmor %vm9917, %vm9918
      %v9920 = vsel %vm9919, %v9912, %v9916
      %v9921 = vand.u32 2147483647, %v9460
      %vm9922 = vcmp.eq.f32.partialorder %v9921, 8.507059e+37
      %v9923 = vand.u32 %v9460, 2147483648
      %v9924 = vor.u32 1.1754944e-38, %v9923
      %v9925 = vsel %vm9922, %v9924, %v9920
      %v9926 = vmul.f32 1.0, %v9925
      %v9927 = vrcp.pop %v9461
      %v9928 = vmul.f32 %v9461, %v9927
      %v9929 = vsub.f32 1.0, %v9928
      %v9930 = vmul.f32 %v9927, %v9929
      %v9931 = vadd.f32 %v9927, %v9930
      %vm9932 = vweird.f32 %v9461
      %vm9933 = vweird.f32 %v9927
      %vm9934 = vmor %vm9932, %vm9933
      %v9935 = vsel %vm9934, %v9927, %v9931
      %v9936 = vand.u32 2147483647, %v9461
      %vm9937 = vcmp.eq.f32.partialorder %v9936, 8.507059e+37
      %v9938 = vand.u32 %v9461, 2147483648
      %v9939 = vor.u32 1.1754944e-38, %v9938
      %v9940 = vsel %vm9937, %v9939, %v9935
      %v9941 = vmul.f32 1.0, %v9940
      %v9942 = vmul.f32 %v9255, %v9476
      %v9943 = vmul.f32 %v9257, %v9491
      %v9944 = vmul.f32 %v9260, %v9506
      %v9945 = vmul.f32 %v9262, %v9521
      %v9946 = vmul.f32 %v9265, %v9536
      %v9947 = vmul.f32 %v9267, %v9551
      %v9948 = vmul.f32 %v9270, %v9566
      %v9949 = vmul.f32 %v9272, %v9581
      %v9950 = vmul.f32 %v9275, %v9596
      %v9951 = vmul.f32 %v9277, %v9611
      %v9952 = vmul.f32 %v9280, %v9626
      %v9953 = vmul.f32 %v9282, %v9641
      %v9954 = vmul.f32 %v9285, %v9656
      %v9955 = vmul.f32 %v9287, %v9671
      %v9956 = vmul.f32 %v9290, %v9686
      %v9957 = vmul.f32 %v9292, %v9701
      %v9958 = vmul.f32 %v9295, %v9716
      %v9959 = vmul.f32 %v9297, %v9731
      %v9960 = vmul.f32 %v9300, %v9746
      %v9961 = vmul.f32 %v9302, %v9761
      %v9962 = vmul.f32 %v9305, %v9776
      %v9963 = vmul.f32 %v9307, %v9791
      %v9964 = vmul.f32 %v9310, %v9806
      %v9965 = vmul.f32 %v9312, %v9821
      %v9966 = vmul.f32 %v9315, %v9836
      %v9967 = vmul.f32 %v9317, %v9851
      %v9968 = vmul.f32 %v9320, %v9866
      %v9969 = vmul.f32 %v9322, %v9881
      %v9970 = vmul.f32 %v9325, %v9896
      %v9971 = vmul.f32 %v9327, %v9911
      %v9972 = vmul.f32 %v9330, %v9926
      %v9973 = vmul.f32 %v9332, %v9941
      %10006 = vrot.lane.b32.xlu0 %v9942, 4
      %v10007 = vpop.permute.xlu0 %10006
      %10008 = vrot.lane.b32.xlu0 %v9943, 4
      %v10009 = vpop.permute.xlu0 %10008
      %10010 = vrot.lane.b32.xlu0 %v9944, 4
      %v10011 = vpop.permute.xlu0 %10010
      %10012 = vrot.lane.b32.xlu0 %v9945, 4
      %v10013 = vpop.permute.xlu0 %10012
      %10014 = vrot.lane.b32.xlu0 %v9946, 4
      %v10015 = vpop.permute.xlu0 %10014
      %10016 = vrot.lane.b32.xlu0 %v9947, 4
      %v10017 = vpop.permute.xlu0 %10016
      %10018 = vrot.lane.b32.xlu0 %v9948, 4
      %v10019 = vpop.permute.xlu0 %10018
      %10020 = vrot.lane.b32.xlu0 %v9949, 4
      %v10021 = vpop.permute.xlu0 %10020
      %10022 = vrot.lane.b32.xlu0 %v9950, 4
      %v10023 = vpop.permute.xlu0 %10022
      %10024 = vrot.lane.b32.xlu0 %v9951, 4
      %v10025 = vpop.permute.xlu0 %10024
      %10026 = vrot.lane.b32.xlu0 %v9952, 4
      %v10027 = vpop.permute.xlu0 %10026
      %10028 = vrot.lane.b32.xlu0 %v9953, 4
      %v10029 = vpop.permute.xlu0 %10028
      %10030 = vrot.lane.b32.xlu0 %v9954, 4
      %v10031 = vpop.permute.xlu0 %10030
      %10032 = vrot.lane.b32.xlu0 %v9955, 4
      %v10033 = vpop.permute.xlu0 %10032
      %10034 = vrot.lane.b32.xlu0 %v9956, 4
      %v10035 = vpop.permute.xlu0 %10034
      %10036 = vrot.lane.b32.xlu0 %v9957, 4
      %v10037 = vpop.permute.xlu0 %10036
      %10038 = vrot.lane.b32.xlu0 %v9958, 4
      %v10039 = vpop.permute.xlu0 %10038
      %10040 = vrot.lane.b32.xlu0 %v9959, 4
      %v10041 = vpop.permute.xlu0 %10040
      %10042 = vrot.lane.b32.xlu0 %v9960, 4
      %v10043 = vpop.permute.xlu0 %10042
      %10044 = vrot.lane.b32.xlu0 %v9961, 4
      %v10045 = vpop.permute.xlu0 %10044
      %10046 = vrot.lane.b32.xlu0 %v9962, 4
      %v10047 = vpop.permute.xlu0 %10046
      %10048 = vrot.lane.b32.xlu0 %v9963, 4
      %v10049 = vpop.permute.xlu0 %10048
      %10050 = vrot.lane.b32.xlu0 %v9964, 4
      %v10051 = vpop.permute.xlu0 %10050
      %10052 = vrot.lane.b32.xlu0 %v9965, 4
      %v10053 = vpop.permute.xlu0 %10052
      %10054 = vrot.lane.b32.xlu0 %v9966, 4
      %v10055 = vpop.permute.xlu0 %10054
      %10056 = vrot.lane.b32.xlu0 %v9967, 4
      %v10057 = vpop.permute.xlu0 %10056
      %10058 = vrot.lane.b32.xlu0 %v9968, 4
      %v10059 = vpop.permute.xlu0 %10058
      %10060 = vrot.lane.b32.xlu0 %v9969, 4
      %v10061 = vpop.permute.xlu0 %10060
      %10062 = vrot.lane.b32.xlu0 %v9970, 4
      %v10063 = vpop.permute.xlu0 %10062
      %10064 = vrot.lane.b32.xlu0 %v9971, 4
      %v10065 = vpop.permute.xlu0 %10064
      %10066 = vrot.lane.b32.xlu0 %v9972, 4
      %v10067 = vpop.permute.xlu0 %10066
      %10068 = vrot.lane.b32.xlu0 %v9973, 4
      %v10069 = vpop.permute.xlu0 %10068
      %v10102 = vadd.f32 %v1313, %v10007
      %v10103 = vadd.f32 %v1314, %v10009
      %v10104 = vadd.f32 %v1315, %v10011
      %v10105 = vadd.f32 %v1316, %v10013
      %v10106 = vadd.f32 %v1317, %v10015
      %v10107 = vadd.f32 %v1318, %v10017
      %v10108 = vadd.f32 %v1319, %v10019
      %v10109 = vadd.f32 %v1320, %v10021
      %v10110 = vadd.f32 %v1321, %v10023
      %v10111 = vadd.f32 %v1322, %v10025
      %v10112 = vadd.f32 %v1323, %v10027
      %v10113 = vadd.f32 %v1324, %v10029
      %v10114 = vadd.f32 %v1325, %v10031
      %v10115 = vadd.f32 %v1326, %v10033
      %v10116 = vadd.f32 %v1327, %v10035
      %v10117 = vadd.f32 %v1328, %v10037
      %v10118 = vadd.f32 %v1329, %v10039
      %v10119 = vadd.f32 %v1330, %v10041
      %v10120 = vadd.f32 %v1331, %v10043
      %v10121 = vadd.f32 %v1332, %v10045
      %v10122 = vadd.f32 %v1333, %v10047
      %v10123 = vadd.f32 %v1334, %v10049
      %v10124 = vadd.f32 %v1335, %v10051
      %v10125 = vadd.f32 %v1336, %v10053
      %v10126 = vadd.f32 %v1337, %v10055
      %v10127 = vadd.f32 %v1338, %v10057
      %v10128 = vadd.f32 %v1339, %v10059
      %v10129 = vadd.f32 %v1340, %v10061
      %v10130 = vadd.f32 %v1341, %v10063
      %v10131 = vadd.f32 %v1342, %v10065
      %v10132 = vadd.f32 %v1343, %v10067
      %v10133 = vadd.f32 %v1344, %v10069
      %v10134 = vpack.c.bf16 %v10103, %v10102
      %v10135 = vpack.c.bf16 %v10105, %v10104
      %v10136 = vpack.c.bf16 %v10107, %v10106
      %v10137 = vpack.c.bf16 %v10109, %v10108
      %v10138 = vpack.c.bf16 %v10111, %v10110
      %v10139 = vpack.c.bf16 %v10113, %v10112
      %v10140 = vpack.c.bf16 %v10115, %v10114
      %v10141 = vpack.c.bf16 %v10117, %v10116
      %v10142 = vpack.c.bf16 %v10119, %v10118
      %v10143 = vpack.c.bf16 %v10121, %v10120
      %v10144 = vpack.c.bf16 %v10123, %v10122
      %v10145 = vpack.c.bf16 %v10125, %v10124
      %v10146 = vpack.c.bf16 %v10127, %v10126
      %v10147 = vpack.c.bf16 %v10129, %v10128
      %v10148 = vpack.c.bf16 %v10131, %v10130
      %v10149 = vpack.c.bf16 %v10133, %v10132
      %v10150 = vld [vmem:[%s9] sm:$0x3]
      %10167 = vrot.lane.b32.xlu0 %v10134, 124
      %v10168 = vpop.permute.xlu0 %10167
      %10169 = vrot.lane.b32.xlu0 %v10135, 124
      %v10170 = vpop.permute.xlu0 %10169
      %10171 = vrot.lane.b32.xlu0 %v10136, 124
      %v10172 = vpop.permute.xlu0 %10171
      %10173 = vrot.lane.b32.xlu0 %v10137, 124
      %v10174 = vpop.permute.xlu0 %10173
      %10175 = vrot.lane.b32.xlu0 %v10138, 124
      %v10176 = vpop.permute.xlu0 %10175
      %10177 = vrot.lane.b32.xlu0 %v10139, 124
      %v10178 = vpop.permute.xlu0 %10177
      %10179 = vrot.lane.b32.xlu0 %v10140, 124
      %v10180 = vpop.permute.xlu0 %10179
      %10181 = vrot.lane.b32.xlu0 %v10141, 124
      %v10182 = vpop.permute.xlu0 %10181
      %10183 = vrot.lane.b32.xlu0 %v10142, 124
      %v10184 = vpop.permute.xlu0 %10183
      %10185 = vrot.lane.b32.xlu0 %v10143, 124
      %v10186 = vpop.permute.xlu0 %10185
      %10187 = vrot.lane.b32.xlu0 %v10144, 124
      %v10188 = vpop.permute.xlu0 %10187
      %10189 = vrot.lane.b32.xlu0 %v10145, 124
      %v10190 = vpop.permute.xlu0 %10189
      %10191 = vrot.lane.b32.xlu0 %v10146, 124
      %v10192 = vpop.permute.xlu0 %10191
      %10193 = vrot.lane.b32.xlu0 %v10147, 124
      %v10194 = vpop.permute.xlu0 %10193
      %10195 = vrot.lane.b32.xlu0 %v10148, 124
      %v10196 = vpop.permute.xlu0 %10195
      %10197 = vrot.lane.b32.xlu0 %v10149, 124
      %v10198 = vpop.permute.xlu0 %10197
      %v10200 = vsel %vm563, %v10168, 0
      %v10203 = vsel %vm563, %v10170, 0
      %v10206 = vsel %vm563, %v10172, 0
      %v10209 = vsel %vm563, %v10174, 0
      %v10212 = vsel %vm563, %v10176, 0
      %v10215 = vsel %vm563, %v10178, 0
      %v10218 = vsel %vm563, %v10180, 0
      %v10221 = vsel %vm563, %v10182, 0
      %v10224 = vsel %vm563, %v10184, 0
      %v10227 = vsel %vm563, %v10186, 0
      %v10230 = vsel %vm563, %v10188, 0
      %v10233 = vsel %vm563, %v10190, 0
      %v10236 = vsel %vm563, %v10192, 0
      %v10239 = vsel %vm563, %v10194, 0
      %v10242 = vsel %vm563, %v10196, 0
      %v10245 = vsel %vm563, %v10198, 0
      %v10248 = vsel %vm612, %v10150, 0
      %10250 = vmatpush.bf16.msra.mxu0 0
      %10251 = vmatpush.bf16.msra.mxu0 0
      %10252 = vmatpush.bf16.msra.mxu0 0
      %10253 = vmatpush.bf16.msra.mxu0 0
      %10254 = vmatpush.bf16.msra.mxu0 0
      %10255 = vmatpush.bf16.msra.mxu0 0
      %10256 = vmatpush.bf16.msra.mxu0 0
      %10257 = vmatpush.bf16.msra.mxu0 %v10248
      %10258 = vmatmul.bf16.gmra.mxu0 %v10200
      %v10259 = vpop.f32.mrf.mxu0
      %v10260 = vadd.f32 0.0, %v10259
      %v10261 = vpop.f32.mrf.mxu0
      %v10262 = vadd.f32 0.0, %v10261
      %10263 = vmatmul.bf16.gmra.mxu0 %v10203
      %v10264 = vpop.f32.mrf.mxu0
      %v10265 = vadd.f32 0.0, %v10264
      %v10266 = vpop.f32.mrf.mxu0
      %v10267 = vadd.f32 0.0, %v10266
      %10268 = vmatmul.bf16.gmra.mxu0 %v10206
      %v10269 = vpop.f32.mrf.mxu0
      %v10270 = vadd.f32 0.0, %v10269
      %v10271 = vpop.f32.mrf.mxu0
      %v10272 = vadd.f32 0.0, %v10271
      %10273 = vmatmul.bf16.gmra.mxu0 %v10209
      %v10274 = vpop.f32.mrf.mxu0
      %v10275 = vadd.f32 0.0, %v10274
      %v10276 = vpop.f32.mrf.mxu0
      %v10277 = vadd.f32 0.0, %v10276
      %10278 = vmatmul.bf16.gmra.mxu0 %v10212
      %v10279 = vpop.f32.mrf.mxu0
      %v10280 = vadd.f32 0.0, %v10279
      %v10281 = vpop.f32.mrf.mxu0
      %v10282 = vadd.f32 0.0, %v10281
      %10283 = vmatmul.bf16.gmra.mxu0 %v10215
      %v10284 = vpop.f32.mrf.mxu0
      %v10285 = vadd.f32 0.0, %v10284
      %v10286 = vpop.f32.mrf.mxu0
      %v10287 = vadd.f32 0.0, %v10286
      %10288 = vmatmul.bf16.gmra.mxu0 %v10218
      %v10289 = vpop.f32.mrf.mxu0
      %v10290 = vadd.f32 0.0, %v10289
      %v10291 = vpop.f32.mrf.mxu0
      %v10292 = vadd.f32 0.0, %v10291
      %10293 = vmatmul.bf16.gmra.mxu0 %v10221
      %v10294 = vpop.f32.mrf.mxu0
      %v10295 = vadd.f32 0.0, %v10294
      %v10296 = vpop.f32.mrf.mxu0
      %v10297 = vadd.f32 0.0, %v10296
      %10298 = vmatmul.bf16.gmra.mxu0 %v10224
      %v10299 = vpop.f32.mrf.mxu0
      %v10300 = vadd.f32 0.0, %v10299
      %v10301 = vpop.f32.mrf.mxu0
      %v10302 = vadd.f32 0.0, %v10301
      %10303 = vmatmul.bf16.gmra.mxu0 %v10227
      %v10304 = vpop.f32.mrf.mxu0
      %v10305 = vadd.f32 0.0, %v10304
      %v10306 = vpop.f32.mrf.mxu0
      %v10307 = vadd.f32 0.0, %v10306
      %10308 = vmatmul.bf16.gmra.mxu0 %v10230
      %v10309 = vpop.f32.mrf.mxu0
      %v10310 = vadd.f32 0.0, %v10309
      %v10311 = vpop.f32.mrf.mxu0
      %v10312 = vadd.f32 0.0, %v10311
      %10313 = vmatmul.bf16.gmra.mxu0 %v10233
      %v10314 = vpop.f32.mrf.mxu0
      %v10315 = vadd.f32 0.0, %v10314
      %v10316 = vpop.f32.mrf.mxu0
      %v10317 = vadd.f32 0.0, %v10316
      %10318 = vmatmul.bf16.gmra.mxu0 %v10236
      %v10319 = vpop.f32.mrf.mxu0
      %v10320 = vadd.f32 0.0, %v10319
      %v10321 = vpop.f32.mrf.mxu0
      %v10322 = vadd.f32 0.0, %v10321
      %10323 = vmatmul.bf16.gmra.mxu0 %v10239
      %v10324 = vpop.f32.mrf.mxu0
      %v10325 = vadd.f32 0.0, %v10324
      %v10326 = vpop.f32.mrf.mxu0
      %v10327 = vadd.f32 0.0, %v10326
      %10328 = vmatmul.bf16.gmra.mxu0 %v10242
      %v10329 = vpop.f32.mrf.mxu0
      %v10330 = vadd.f32 0.0, %v10329
      %v10331 = vpop.f32.mrf.mxu0
      %v10332 = vadd.f32 0.0, %v10331
      %10333 = vmatmul.bf16.gmra.mxu0 %v10245
      %v10334 = vpop.f32.mrf.mxu0
      %v10335 = vadd.f32 0.0, %v10334
      %v10336 = vpop.f32.mrf.mxu0
      %v10337 = vadd.f32 0.0, %v10336
      %10338 = vdwg.mxu0
      %v10339 = vadd.f32 %v1612, %v10260
      %v10340 = vadd.f32 %v1614, %v10262
      %v10341 = vadd.f32 %v1617, %v10265
      %v10342 = vadd.f32 %v1619, %v10267
      %v10343 = vadd.f32 %v1622, %v10270
      %v10344 = vadd.f32 %v1624, %v10272
      %v10345 = vadd.f32 %v1627, %v10275
      %v10346 = vadd.f32 %v1629, %v10277
      %v10347 = vadd.f32 %v1632, %v10280
      %v10348 = vadd.f32 %v1634, %v10282
      %v10349 = vadd.f32 %v1637, %v10285
      %v10350 = vadd.f32 %v1639, %v10287
      %v10351 = vadd.f32 %v1642, %v10290
      %v10352 = vadd.f32 %v1644, %v10292
      %v10353 = vadd.f32 %v1647, %v10295
      %v10354 = vadd.f32 %v1649, %v10297
      %v10355 = vadd.f32 %v1652, %v10300
      %v10356 = vadd.f32 %v1654, %v10302
      %v10357 = vadd.f32 %v1657, %v10305
      %v10358 = vadd.f32 %v1659, %v10307
      %v10359 = vadd.f32 %v1662, %v10310
      %v10360 = vadd.f32 %v1664, %v10312
      %v10361 = vadd.f32 %v1667, %v10315
      %v10362 = vadd.f32 %v1669, %v10317
      %v10363 = vadd.f32 %v1672, %v10320
      %v10364 = vadd.f32 %v1674, %v10322
      %v10365 = vadd.f32 %v1677, %v10325
      %v10366 = vadd.f32 %v1679, %v10327
      %v10367 = vadd.f32 %v1682, %v10330
      %v10368 = vadd.f32 %v1684, %v10332
      %v10369 = vadd.f32 %v1687, %v10335
      %v10370 = vadd.f32 %v1689, %v10337
      %v10371 = vld [vmem:[%s10] sm:$0x1]
      %v10373 = vperm.slane %v10371, 0
      %v10375 = vadd.f32 %v10339, %v10373
      %v10376 = vadd.f32 %v10340, %v10373
      %v10377 = vadd.f32 %v10341, %v10373
      %v10378 = vadd.f32 %v10342, %v10373
      %v10379 = vadd.f32 %v10343, %v10373
      %v10380 = vadd.f32 %v10344, %v10373
      %v10381 = vadd.f32 %v10345, %v10373
      %v10382 = vadd.f32 %v10346, %v10373
      %v10383 = vadd.f32 %v10347, %v10373
      %v10384 = vadd.f32 %v10348, %v10373
      %v10385 = vadd.f32 %v10349, %v10373
      %v10386 = vadd.f32 %v10350, %v10373
      %v10387 = vadd.f32 %v10351, %v10373
      %v10388 = vadd.f32 %v10352, %v10373
      %v10389 = vadd.f32 %v10353, %v10373
      %v10390 = vadd.f32 %v10354, %v10373
      %v10391 = vadd.f32 %v10355, %v10373
      %v10392 = vadd.f32 %v10356, %v10373
      %v10393 = vadd.f32 %v10357, %v10373
      %v10394 = vadd.f32 %v10358, %v10373
      %v10395 = vadd.f32 %v10359, %v10373
      %v10396 = vadd.f32 %v10360, %v10373
      %v10397 = vadd.f32 %v10361, %v10373
      %v10398 = vadd.f32 %v10362, %v10373
      %v10399 = vadd.f32 %v10363, %v10373
      %v10400 = vadd.f32 %v10364, %v10373
      %v10401 = vadd.f32 %v10365, %v10373
      %v10402 = vadd.f32 %v10366, %v10373
      %v10403 = vadd.f32 %v10367, %v10373
      %v10404 = vadd.f32 %v10368, %v10373
      %v10405 = vadd.f32 %v10369, %v10373
      %v10406 = vadd.f32 %v10370, %v10373
      %v10407 = vxor.u32 %v10375, 2147483648
      %v10408 = vxor.u32 %v10376, 2147483648
      %v10409 = vxor.u32 %v10377, 2147483648
      %v10410 = vxor.u32 %v10378, 2147483648
      %v10411 = vxor.u32 %v10379, 2147483648
      %v10412 = vxor.u32 %v10380, 2147483648
      %v10413 = vxor.u32 %v10381, 2147483648
      %v10414 = vxor.u32 %v10382, 2147483648
      %v10415 = vxor.u32 %v10383, 2147483648
      %v10416 = vxor.u32 %v10384, 2147483648
      %v10417 = vxor.u32 %v10385, 2147483648
      %v10418 = vxor.u32 %v10386, 2147483648
      %v10419 = vxor.u32 %v10387, 2147483648
      %v10420 = vxor.u32 %v10388, 2147483648
      %v10421 = vxor.u32 %v10389, 2147483648
      %v10422 = vxor.u32 %v10390, 2147483648
      %v10423 = vxor.u32 %v10391, 2147483648
      %v10424 = vxor.u32 %v10392, 2147483648
      %v10425 = vxor.u32 %v10393, 2147483648
      %v10426 = vxor.u32 %v10394, 2147483648
      %v10427 = vxor.u32 %v10395, 2147483648
      %v10428 = vxor.u32 %v10396, 2147483648
      %v10429 = vxor.u32 %v10397, 2147483648
      %v10430 = vxor.u32 %v10398, 2147483648
      %v10431 = vxor.u32 %v10399, 2147483648
      %v10432 = vxor.u32 %v10400, 2147483648
      %v10433 = vxor.u32 %v10401, 2147483648
      %v10434 = vxor.u32 %v10402, 2147483648
      %v10435 = vxor.u32 %v10403, 2147483648
      %v10436 = vxor.u32 %v10404, 2147483648
      %v10437 = vxor.u32 %v10405, 2147483648
      %v10438 = vxor.u32 %v10406, 2147483648
      %v10439 = vmul.f32 %v10407, 1.442695
      %v10440 = vpow.pop %v10439
      %v10441 = vmul.f32 %v10408, 1.442695
      %v10442 = vpow.pop %v10441
      %v10443 = vmul.f32 %v10409, 1.442695
      %v10444 = vpow.pop %v10443
      %v10445 = vmul.f32 %v10410, 1.442695
      %v10446 = vpow.pop %v10445
      %v10447 = vmul.f32 %v10411, 1.442695
      %v10448 = vpow.pop %v10447
      %v10449 = vmul.f32 %v10412, 1.442695
      %v10450 = vpow.pop %v10449
      %v10451 = vmul.f32 %v10413, 1.442695
      %v10452 = vpow.pop %v10451
      %v10453 = vmul.f32 %v10414, 1.442695
      %v10454 = vpow.pop %v10453
      %v10455 = vmul.f32 %v10415, 1.442695
      %v10456 = vpow.pop %v10455
      %v10457 = vmul.f32 %v10416, 1.442695
      %v10458 = vpow.pop %v10457
      %v10459 = vmul.f32 %v10417, 1.442695
      %v10460 = vpow.pop %v10459
      %v10461 = vmul.f32 %v10418, 1.442695
      %v10462 = vpow.pop %v10461
      %v10463 = vmul.f32 %v10419, 1.442695
      %v10464 = vpow.pop %v10463
      %v10465 = vmul.f32 %v10420, 1.442695
      %v10466 = vpow.pop %v10465
      %v10467 = vmul.f32 %v10421, 1.442695
      %v10468 = vpow.pop %v10467
      %v10469 = vmul.f32 %v10422, 1.442695
      %v10470 = vpow.pop %v10469
      %v10471 = vmul.f32 %v10423, 1.442695
      %v10472 = vpow.pop %v10471
      %v10473 = vmul.f32 %v10424, 1.442695
      %v10474 = vpow.pop %v10473
      %v10475 = vmul.f32 %v10425, 1.442695
      %v10476 = vpow.pop %v10475
      %v10477 = vmul.f32 %v10426, 1.442695
      %v10478 = vpow.pop %v10477
      %v10479 = vmul.f32 %v10427, 1.442695
      %v10480 = vpow.pop %v10479
      %v10481 = vmul.f32 %v10428, 1.442695
      %v10482 = vpow.pop %v10481
      %v10483 = vmul.f32 %v10429, 1.442695
      %v10484 = vpow.pop %v10483
      %v10485 = vmul.f32 %v10430, 1.442695
      %v10486 = vpow.pop %v10485
      %v10487 = vmul.f32 %v10431, 1.442695
      %v10488 = vpow.pop %v10487
      %v10489 = vmul.f32 %v10432, 1.442695
      %v10490 = vpow.pop %v10489
      %v10491 = vmul.f32 %v10433, 1.442695
      %v10492 = vpow.pop %v10491
      %v10493 = vmul.f32 %v10434, 1.442695
      %v10494 = vpow.pop %v10493
      %v10495 = vmul.f32 %v10435, 1.442695
      %v10496 = vpow.pop %v10495
      %v10497 = vmul.f32 %v10436, 1.442695
      %v10498 = vpow.pop %v10497
      %v10499 = vmul.f32 %v10437, 1.442695
      %v10500 = vpow.pop %v10499
      %v10501 = vmul.f32 %v10438, 1.442695
      %v10502 = vpow.pop %v10501
      %v10503 = vadd.f32 %v10440, 1.0
      %v10504 = vadd.f32 %v10442, 1.0
      %v10505 = vadd.f32 %v10444, 1.0
      %v10506 = vadd.f32 %v10446, 1.0
      %v10507 = vadd.f32 %v10448, 1.0
      %v10508 = vadd.f32 %v10450, 1.0
      %v10509 = vadd.f32 %v10452, 1.0
      %v10510 = vadd.f32 %v10454, 1.0
      %v10511 = vadd.f32 %v10456, 1.0
      %v10512 = vadd.f32 %v10458, 1.0
      %v10513 = vadd.f32 %v10460, 1.0
      %v10514 = vadd.f32 %v10462, 1.0
      %v10515 = vadd.f32 %v10464, 1.0
      %v10516 = vadd.f32 %v10466, 1.0
      %v10517 = vadd.f32 %v10468, 1.0
      %v10518 = vadd.f32 %v10470, 1.0
      %v10519 = vadd.f32 %v10472, 1.0
      %v10520 = vadd.f32 %v10474, 1.0
      %v10521 = vadd.f32 %v10476, 1.0
      %v10522 = vadd.f32 %v10478, 1.0
      %v10523 = vadd.f32 %v10480, 1.0
      %v10524 = vadd.f32 %v10482, 1.0
      %v10525 = vadd.f32 %v10484, 1.0
      %v10526 = vadd.f32 %v10486, 1.0
      %v10527 = vadd.f32 %v10488, 1.0
      %v10528 = vadd.f32 %v10490, 1.0
      %v10529 = vadd.f32 %v10492, 1.0
      %v10530 = vadd.f32 %v10494, 1.0
      %v10531 = vadd.f32 %v10496, 1.0
      %v10532 = vadd.f32 %v10498, 1.0
      %v10533 = vadd.f32 %v10500, 1.0
      %v10534 = vadd.f32 %v10502, 1.0
      %v10535 = vrcp.pop %v10503
      %v10536 = vmul.f32 %v10503, %v10535
      %v10537 = vsub.f32 1.0, %v10536
      %v10538 = vmul.f32 %v10535, %v10537
      %v10539 = vadd.f32 %v10535, %v10538
      %vm10540 = vweird.f32 %v10503
      %vm10541 = vweird.f32 %v10535
      %vm10542 = vmor %vm10540, %vm10541
      %v10543 = vsel %vm10542, %v10535, %v10539
      %v10544 = vand.u32 2147483647, %v10503
      %vm10545 = vcmp.eq.f32.partialorder %v10544, 8.507059e+37
      %v10546 = vand.u32 %v10503, 2147483648
      %v10547 = vor.u32 1.1754944e-38, %v10546
      %v10548 = vsel %vm10545, %v10547, %v10543
      %v10549 = vmul.f32 1.0, %v10548
      %v10550 = vrcp.pop %v10504
      %v10551 = vmul.f32 %v10504, %v10550
      %v10552 = vsub.f32 1.0, %v10551
      %v10553 = vmul.f32 %v10550, %v10552
      %v10554 = vadd.f32 %v10550, %v10553
      %vm10555 = vweird.f32 %v10504
      %vm10556 = vweird.f32 %v10550
      %vm10557 = vmor %vm10555, %vm10556
      %v10558 = vsel %vm10557, %v10550, %v10554
      %v10559 = vand.u32 2147483647, %v10504
      %vm10560 = vcmp.eq.f32.partialorder %v10559, 8.507059e+37
      %v10561 = vand.u32 %v10504, 2147483648
      %v10562 = vor.u32 1.1754944e-38, %v10561
      %v10563 = vsel %vm10560, %v10562, %v10558
      %v10564 = vmul.f32 1.0, %v10563
      %v10565 = vrcp.pop %v10505
      %v10566 = vmul.f32 %v10505, %v10565
      %v10567 = vsub.f32 1.0, %v10566
      %v10568 = vmul.f32 %v10565, %v10567
      %v10569 = vadd.f32 %v10565, %v10568
      %vm10570 = vweird.f32 %v10505
      %vm10571 = vweird.f32 %v10565
      %vm10572 = vmor %vm10570, %vm10571
      %v10573 = vsel %vm10572, %v10565, %v10569
      %v10574 = vand.u32 2147483647, %v10505
      %vm10575 = vcmp.eq.f32.partialorder %v10574, 8.507059e+37
      %v10576 = vand.u32 %v10505, 2147483648
      %v10577 = vor.u32 1.1754944e-38, %v10576
      %v10578 = vsel %vm10575, %v10577, %v10573
      %v10579 = vmul.f32 1.0, %v10578
      %v10580 = vrcp.pop %v10506
      %v10581 = vmul.f32 %v10506, %v10580
      %v10582 = vsub.f32 1.0, %v10581
      %v10583 = vmul.f32 %v10580, %v10582
      %v10584 = vadd.f32 %v10580, %v10583
      %vm10585 = vweird.f32 %v10506
      %vm10586 = vweird.f32 %v10580
      %vm10587 = vmor %vm10585, %vm10586
      %v10588 = vsel %vm10587, %v10580, %v10584
      %v10589 = vand.u32 2147483647, %v10506
      %vm10590 = vcmp.eq.f32.partialorder %v10589, 8.507059e+37
      %v10591 = vand.u32 %v10506, 2147483648
      %v10592 = vor.u32 1.1754944e-38, %v10591
      %v10593 = vsel %vm10590, %v10592, %v10588
      %v10594 = vmul.f32 1.0, %v10593
      %v10595 = vrcp.pop %v10507
      %v10596 = vmul.f32 %v10507, %v10595
      %v10597 = vsub.f32 1.0, %v10596
      %v10598 = vmul.f32 %v10595, %v10597
      %v10599 = vadd.f32 %v10595, %v10598
      %vm10600 = vweird.f32 %v10507
      %vm10601 = vweird.f32 %v10595
      %vm10602 = vmor %vm10600, %vm10601
      %v10603 = vsel %vm10602, %v10595, %v10599
      %v10604 = vand.u32 2147483647, %v10507
      %vm10605 = vcmp.eq.f32.partialorder %v10604, 8.507059e+37
      %v10606 = vand.u32 %v10507, 2147483648
      %v10607 = vor.u32 1.1754944e-38, %v10606
      %v10608 = vsel %vm10605, %v10607, %v10603
      %v10609 = vmul.f32 1.0, %v10608
      %v10610 = vrcp.pop %v10508
      %v10611 = vmul.f32 %v10508, %v10610
      %v10612 = vsub.f32 1.0, %v10611
      %v10613 = vmul.f32 %v10610, %v10612
      %v10614 = vadd.f32 %v10610, %v10613
      %vm10615 = vweird.f32 %v10508
      %vm10616 = vweird.f32 %v10610
      %vm10617 = vmor %vm10615, %vm10616
      %v10618 = vsel %vm10617, %v10610, %v10614
      %v10619 = vand.u32 2147483647, %v10508
      %vm10620 = vcmp.eq.f32.partialorder %v10619, 8.507059e+37
      %v10621 = vand.u32 %v10508, 2147483648
      %v10622 = vor.u32 1.1754944e-38, %v10621
      %v10623 = vsel %vm10620, %v10622, %v10618
      %v10624 = vmul.f32 1.0, %v10623
      %v10625 = vrcp.pop %v10509
      %v10626 = vmul.f32 %v10509, %v10625
      %v10627 = vsub.f32 1.0, %v10626
      %v10628 = vmul.f32 %v10625, %v10627
      %v10629 = vadd.f32 %v10625, %v10628
      %vm10630 = vweird.f32 %v10509
      %vm10631 = vweird.f32 %v10625
      %vm10632 = vmor %vm10630, %vm10631
      %v10633 = vsel %vm10632, %v10625, %v10629
      %v10634 = vand.u32 2147483647, %v10509
      %vm10635 = vcmp.eq.f32.partialorder %v10634, 8.507059e+37
      %v10636 = vand.u32 %v10509, 2147483648
      %v10637 = vor.u32 1.1754944e-38, %v10636
      %v10638 = vsel %vm10635, %v10637, %v10633
      %v10639 = vmul.f32 1.0, %v10638
      %v10640 = vrcp.pop %v10510
      %v10641 = vmul.f32 %v10510, %v10640
      %v10642 = vsub.f32 1.0, %v10641
      %v10643 = vmul.f32 %v10640, %v10642
      %v10644 = vadd.f32 %v10640, %v10643
      %vm10645 = vweird.f32 %v10510
      %vm10646 = vweird.f32 %v10640
      %vm10647 = vmor %vm10645, %vm10646
      %v10648 = vsel %vm10647, %v10640, %v10644
      %v10649 = vand.u32 2147483647, %v10510
      %vm10650 = vcmp.eq.f32.partialorder %v10649, 8.507059e+37
      %v10651 = vand.u32 %v10510, 2147483648
      %v10652 = vor.u32 1.1754944e-38, %v10651
      %v10653 = vsel %vm10650, %v10652, %v10648
      %v10654 = vmul.f32 1.0, %v10653
      %v10655 = vrcp.pop %v10511
      %v10656 = vmul.f32 %v10511, %v10655
      %v10657 = vsub.f32 1.0, %v10656
      %v10658 = vmul.f32 %v10655, %v10657
      %v10659 = vadd.f32 %v10655, %v10658
      %vm10660 = vweird.f32 %v10511
      %vm10661 = vweird.f32 %v10655
      %vm10662 = vmor %vm10660, %vm10661
      %v10663 = vsel %vm10662, %v10655, %v10659
      %v10664 = vand.u32 2147483647, %v10511
      %vm10665 = vcmp.eq.f32.partialorder %v10664, 8.507059e+37
      %v10666 = vand.u32 %v10511, 2147483648
      %v10667 = vor.u32 1.1754944e-38, %v10666
      %v10668 = vsel %vm10665, %v10667, %v10663
      %v10669 = vmul.f32 1.0, %v10668
      %v10670 = vrcp.pop %v10512
      %v10671 = vmul.f32 %v10512, %v10670
      %v10672 = vsub.f32 1.0, %v10671
      %v10673 = vmul.f32 %v10670, %v10672
      %v10674 = vadd.f32 %v10670, %v10673
      %vm10675 = vweird.f32 %v10512
      %vm10676 = vweird.f32 %v10670
      %vm10677 = vmor %vm10675, %vm10676
      %v10678 = vsel %vm10677, %v10670, %v10674
      %v10679 = vand.u32 2147483647, %v10512
      %vm10680 = vcmp.eq.f32.partialorder %v10679, 8.507059e+37
      %v10681 = vand.u32 %v10512, 2147483648
      %v10682 = vor.u32 1.1754944e-38, %v10681
      %v10683 = vsel %vm10680, %v10682, %v10678
      %v10684 = vmul.f32 1.0, %v10683
      %v10685 = vrcp.pop %v10513
      %v10686 = vmul.f32 %v10513, %v10685
      %v10687 = vsub.f32 1.0, %v10686
      %v10688 = vmul.f32 %v10685, %v10687
      %v10689 = vadd.f32 %v10685, %v10688
      %vm10690 = vweird.f32 %v10513
      %vm10691 = vweird.f32 %v10685
      %vm10692 = vmor %vm10690, %vm10691
      %v10693 = vsel %vm10692, %v10685, %v10689
      %v10694 = vand.u32 2147483647, %v10513
      %vm10695 = vcmp.eq.f32.partialorder %v10694, 8.507059e+37
      %v10696 = vand.u32 %v10513, 2147483648
      %v10697 = vor.u32 1.1754944e-38, %v10696
      %v10698 = vsel %vm10695, %v10697, %v10693
      %v10699 = vmul.f32 1.0, %v10698
      %v10700 = vrcp.pop %v10514
      %v10701 = vmul.f32 %v10514, %v10700
      %v10702 = vsub.f32 1.0, %v10701
      %v10703 = vmul.f32 %v10700, %v10702
      %v10704 = vadd.f32 %v10700, %v10703
      %vm10705 = vweird.f32 %v10514
      %vm10706 = vweird.f32 %v10700
      %vm10707 = vmor %vm10705, %vm10706
      %v10708 = vsel %vm10707, %v10700, %v10704
      %v10709 = vand.u32 2147483647, %v10514
      %vm10710 = vcmp.eq.f32.partialorder %v10709, 8.507059e+37
      %v10711 = vand.u32 %v10514, 2147483648
      %v10712 = vor.u32 1.1754944e-38, %v10711
      %v10713 = vsel %vm10710, %v10712, %v10708
      %v10714 = vmul.f32 1.0, %v10713
      %v10715 = vrcp.pop %v10515
      %v10716 = vmul.f32 %v10515, %v10715
      %v10717 = vsub.f32 1.0, %v10716
      %v10718 = vmul.f32 %v10715, %v10717
      %v10719 = vadd.f32 %v10715, %v10718
      %vm10720 = vweird.f32 %v10515
      %vm10721 = vweird.f32 %v10715
      %vm10722 = vmor %vm10720, %vm10721
      %v10723 = vsel %vm10722, %v10715, %v10719
      %v10724 = vand.u32 2147483647, %v10515
      %vm10725 = vcmp.eq.f32.partialorder %v10724, 8.507059e+37
      %v10726 = vand.u32 %v10515, 2147483648
      %v10727 = vor.u32 1.1754944e-38, %v10726
      %v10728 = vsel %vm10725, %v10727, %v10723
      %v10729 = vmul.f32 1.0, %v10728
      %v10730 = vrcp.pop %v10516
      %v10731 = vmul.f32 %v10516, %v10730
      %v10732 = vsub.f32 1.0, %v10731
      %v10733 = vmul.f32 %v10730, %v10732
      %v10734 = vadd.f32 %v10730, %v10733
      %vm10735 = vweird.f32 %v10516
      %vm10736 = vweird.f32 %v10730
      %vm10737 = vmor %vm10735, %vm10736
      %v10738 = vsel %vm10737, %v10730, %v10734
      %v10739 = vand.u32 2147483647, %v10516
      %vm10740 = vcmp.eq.f32.partialorder %v10739, 8.507059e+37
      %v10741 = vand.u32 %v10516, 2147483648
      %v10742 = vor.u32 1.1754944e-38, %v10741
      %v10743 = vsel %vm10740, %v10742, %v10738
      %v10744 = vmul.f32 1.0, %v10743
      %v10745 = vrcp.pop %v10517
      %v10746 = vmul.f32 %v10517, %v10745
      %v10747 = vsub.f32 1.0, %v10746
      %v10748 = vmul.f32 %v10745, %v10747
      %v10749 = vadd.f32 %v10745, %v10748
      %vm10750 = vweird.f32 %v10517
      %vm10751 = vweird.f32 %v10745
      %vm10752 = vmor %vm10750, %vm10751
      %v10753 = vsel %vm10752, %v10745, %v10749
      %v10754 = vand.u32 2147483647, %v10517
      %vm10755 = vcmp.eq.f32.partialorder %v10754, 8.507059e+37
      %v10756 = vand.u32 %v10517, 2147483648
      %v10757 = vor.u32 1.1754944e-38, %v10756
      %v10758 = vsel %vm10755, %v10757, %v10753
      %v10759 = vmul.f32 1.0, %v10758
      %v10760 = vrcp.pop %v10518
      %v10761 = vmul.f32 %v10518, %v10760
      %v10762 = vsub.f32 1.0, %v10761
      %v10763 = vmul.f32 %v10760, %v10762
      %v10764 = vadd.f32 %v10760, %v10763
      %vm10765 = vweird.f32 %v10518
      %vm10766 = vweird.f32 %v10760
      %vm10767 = vmor %vm10765, %vm10766
      %v10768 = vsel %vm10767, %v10760, %v10764
      %v10769 = vand.u32 2147483647, %v10518
      %vm10770 = vcmp.eq.f32.partialorder %v10769, 8.507059e+37
      %v10771 = vand.u32 %v10518, 2147483648
      %v10772 = vor.u32 1.1754944e-38, %v10771
      %v10773 = vsel %vm10770, %v10772, %v10768
      %v10774 = vmul.f32 1.0, %v10773
      %v10775 = vrcp.pop %v10519
      %v10776 = vmul.f32 %v10519, %v10775
      %v10777 = vsub.f32 1.0, %v10776
      %v10778 = vmul.f32 %v10775, %v10777
      %v10779 = vadd.f32 %v10775, %v10778
      %vm10780 = vweird.f32 %v10519
      %vm10781 = vweird.f32 %v10775
      %vm10782 = vmor %vm10780, %vm10781
      %v10783 = vsel %vm10782, %v10775, %v10779
      %v10784 = vand.u32 2147483647, %v10519
      %vm10785 = vcmp.eq.f32.partialorder %v10784, 8.507059e+37
      %v10786 = vand.u32 %v10519, 2147483648
      %v10787 = vor.u32 1.1754944e-38, %v10786
      %v10788 = vsel %vm10785, %v10787, %v10783
      %v10789 = vmul.f32 1.0, %v10788
      %v10790 = vrcp.pop %v10520
      %v10791 = vmul.f32 %v10520, %v10790
      %v10792 = vsub.f32 1.0, %v10791
      %v10793 = vmul.f32 %v10790, %v10792
      %v10794 = vadd.f32 %v10790, %v10793
      %vm10795 = vweird.f32 %v10520
      %vm10796 = vweird.f32 %v10790
      %vm10797 = vmor %vm10795, %vm10796
      %v10798 = vsel %vm10797, %v10790, %v10794
      %v10799 = vand.u32 2147483647, %v10520
      %vm10800 = vcmp.eq.f32.partialorder %v10799, 8.507059e+37
      %v10801 = vand.u32 %v10520, 2147483648
      %v10802 = vor.u32 1.1754944e-38, %v10801
      %v10803 = vsel %vm10800, %v10802, %v10798
      %v10804 = vmul.f32 1.0, %v10803
      %v10805 = vrcp.pop %v10521
      %v10806 = vmul.f32 %v10521, %v10805
      %v10807 = vsub.f32 1.0, %v10806
      %v10808 = vmul.f32 %v10805, %v10807
      %v10809 = vadd.f32 %v10805, %v10808
      %vm10810 = vweird.f32 %v10521
      %vm10811 = vweird.f32 %v10805
      %vm10812 = vmor %vm10810, %vm10811
      %v10813 = vsel %vm10812, %v10805, %v10809
      %v10814 = vand.u32 2147483647, %v10521
      %vm10815 = vcmp.eq.f32.partialorder %v10814, 8.507059e+37
      %v10816 = vand.u32 %v10521, 2147483648
      %v10817 = vor.u32 1.1754944e-38, %v10816
      %v10818 = vsel %vm10815, %v10817, %v10813
      %v10819 = vmul.f32 1.0, %v10818
      %v10820 = vrcp.pop %v10522
      %v10821 = vmul.f32 %v10522, %v10820
      %v10822 = vsub.f32 1.0, %v10821
      %v10823 = vmul.f32 %v10820, %v10822
      %v10824 = vadd.f32 %v10820, %v10823
      %vm10825 = vweird.f32 %v10522
      %vm10826 = vweird.f32 %v10820
      %vm10827 = vmor %vm10825, %vm10826
      %v10828 = vsel %vm10827, %v10820, %v10824
      %v10829 = vand.u32 2147483647, %v10522
      %vm10830 = vcmp.eq.f32.partialorder %v10829, 8.507059e+37
      %v10831 = vand.u32 %v10522, 2147483648
      %v10832 = vor.u32 1.1754944e-38, %v10831
      %v10833 = vsel %vm10830, %v10832, %v10828
      %v10834 = vmul.f32 1.0, %v10833
      %v10835 = vrcp.pop %v10523
      %v10836 = vmul.f32 %v10523, %v10835
      %v10837 = vsub.f32 1.0, %v10836
      %v10838 = vmul.f32 %v10835, %v10837
      %v10839 = vadd.f32 %v10835, %v10838
      %vm10840 = vweird.f32 %v10523
      %vm10841 = vweird.f32 %v10835
      %vm10842 = vmor %vm10840, %vm10841
      %v10843 = vsel %vm10842, %v10835, %v10839
      %v10844 = vand.u32 2147483647, %v10523
      %vm10845 = vcmp.eq.f32.partialorder %v10844, 8.507059e+37
      %v10846 = vand.u32 %v10523, 2147483648
      %v10847 = vor.u32 1.1754944e-38, %v10846
      %v10848 = vsel %vm10845, %v10847, %v10843
      %v10849 = vmul.f32 1.0, %v10848
      %v10850 = vrcp.pop %v10524
      %v10851 = vmul.f32 %v10524, %v10850
      %v10852 = vsub.f32 1.0, %v10851
      %v10853 = vmul.f32 %v10850, %v10852
      %v10854 = vadd.f32 %v10850, %v10853
      %vm10855 = vweird.f32 %v10524
      %vm10856 = vweird.f32 %v10850
      %vm10857 = vmor %vm10855, %vm10856
      %v10858 = vsel %vm10857, %v10850, %v10854
      %v10859 = vand.u32 2147483647, %v10524
      %vm10860 = vcmp.eq.f32.partialorder %v10859, 8.507059e+37
      %v10861 = vand.u32 %v10524, 2147483648
      %v10862 = vor.u32 1.1754944e-38, %v10861
      %v10863 = vsel %vm10860, %v10862, %v10858
      %v10864 = vmul.f32 1.0, %v10863
      %v10865 = vrcp.pop %v10525
      %v10866 = vmul.f32 %v10525, %v10865
      %v10867 = vsub.f32 1.0, %v10866
      %v10868 = vmul.f32 %v10865, %v10867
      %v10869 = vadd.f32 %v10865, %v10868
      %vm10870 = vweird.f32 %v10525
      %vm10871 = vweird.f32 %v10865
      %vm10872 = vmor %vm10870, %vm10871
      %v10873 = vsel %vm10872, %v10865, %v10869
      %v10874 = vand.u32 2147483647, %v10525
      %vm10875 = vcmp.eq.f32.partialorder %v10874, 8.507059e+37
      %v10876 = vand.u32 %v10525, 2147483648
      %v10877 = vor.u32 1.1754944e-38, %v10876
      %v10878 = vsel %vm10875, %v10877, %v10873
      %v10879 = vmul.f32 1.0, %v10878
      %v10880 = vrcp.pop %v10526
      %v10881 = vmul.f32 %v10526, %v10880
      %v10882 = vsub.f32 1.0, %v10881
      %v10883 = vmul.f32 %v10880, %v10882
      %v10884 = vadd.f32 %v10880, %v10883
      %vm10885 = vweird.f32 %v10526
      %vm10886 = vweird.f32 %v10880
      %vm10887 = vmor %vm10885, %vm10886
      %v10888 = vsel %vm10887, %v10880, %v10884
      %v10889 = vand.u32 2147483647, %v10526
      %vm10890 = vcmp.eq.f32.partialorder %v10889, 8.507059e+37
      %v10891 = vand.u32 %v10526, 2147483648
      %v10892 = vor.u32 1.1754944e-38, %v10891
      %v10893 = vsel %vm10890, %v10892, %v10888
      %v10894 = vmul.f32 1.0, %v10893
      %v10895 = vrcp.pop %v10527
      %v10896 = vmul.f32 %v10527, %v10895
      %v10897 = vsub.f32 1.0, %v10896
      %v10898 = vmul.f32 %v10895, %v10897
      %v10899 = vadd.f32 %v10895, %v10898
      %vm10900 = vweird.f32 %v10527
      %vm10901 = vweird.f32 %v10895
      %vm10902 = vmor %vm10900, %vm10901
      %v10903 = vsel %vm10902, %v10895, %v10899
      %v10904 = vand.u32 2147483647, %v10527
      %vm10905 = vcmp.eq.f32.partialorder %v10904, 8.507059e+37
      %v10906 = vand.u32 %v10527, 2147483648
      %v10907 = vor.u32 1.1754944e-38, %v10906
      %v10908 = vsel %vm10905, %v10907, %v10903
      %v10909 = vmul.f32 1.0, %v10908
      %v10910 = vrcp.pop %v10528
      %v10911 = vmul.f32 %v10528, %v10910
      %v10912 = vsub.f32 1.0, %v10911
      %v10913 = vmul.f32 %v10910, %v10912
      %v10914 = vadd.f32 %v10910, %v10913
      %vm10915 = vweird.f32 %v10528
      %vm10916 = vweird.f32 %v10910
      %vm10917 = vmor %vm10915, %vm10916
      %v10918 = vsel %vm10917, %v10910, %v10914
      %v10919 = vand.u32 2147483647, %v10528
      %vm10920 = vcmp.eq.f32.partialorder %v10919, 8.507059e+37
      %v10921 = vand.u32 %v10528, 2147483648
      %v10922 = vor.u32 1.1754944e-38, %v10921
      %v10923 = vsel %vm10920, %v10922, %v10918
      %v10924 = vmul.f32 1.0, %v10923
      %v10925 = vrcp.pop %v10529
      %v10926 = vmul.f32 %v10529, %v10925
      %v10927 = vsub.f32 1.0, %v10926
      %v10928 = vmul.f32 %v10925, %v10927
      %v10929 = vadd.f32 %v10925, %v10928
      %vm10930 = vweird.f32 %v10529
      %vm10931 = vweird.f32 %v10925
      %vm10932 = vmor %vm10930, %vm10931
      %v10933 = vsel %vm10932, %v10925, %v10929
      %v10934 = vand.u32 2147483647, %v10529
      %vm10935 = vcmp.eq.f32.partialorder %v10934, 8.507059e+37
      %v10936 = vand.u32 %v10529, 2147483648
      %v10937 = vor.u32 1.1754944e-38, %v10936
      %v10938 = vsel %vm10935, %v10937, %v10933
      %v10939 = vmul.f32 1.0, %v10938
      %v10940 = vrcp.pop %v10530
      %v10941 = vmul.f32 %v10530, %v10940
      %v10942 = vsub.f32 1.0, %v10941
      %v10943 = vmul.f32 %v10940, %v10942
      %v10944 = vadd.f32 %v10940, %v10943
      %vm10945 = vweird.f32 %v10530
      %vm10946 = vweird.f32 %v10940
      %vm10947 = vmor %vm10945, %vm10946
      %v10948 = vsel %vm10947, %v10940, %v10944
      %v10949 = vand.u32 2147483647, %v10530
      %vm10950 = vcmp.eq.f32.partialorder %v10949, 8.507059e+37
      %v10951 = vand.u32 %v10530, 2147483648
      %v10952 = vor.u32 1.1754944e-38, %v10951
      %v10953 = vsel %vm10950, %v10952, %v10948
      %v10954 = vmul.f32 1.0, %v10953
      %v10955 = vrcp.pop %v10531
      %v10956 = vmul.f32 %v10531, %v10955
      %v10957 = vsub.f32 1.0, %v10956
      %v10958 = vmul.f32 %v10955, %v10957
      %v10959 = vadd.f32 %v10955, %v10958
      %vm10960 = vweird.f32 %v10531
      %vm10961 = vweird.f32 %v10955
      %vm10962 = vmor %vm10960, %vm10961
      %v10963 = vsel %vm10962, %v10955, %v10959
      %v10964 = vand.u32 2147483647, %v10531
      %vm10965 = vcmp.eq.f32.partialorder %v10964, 8.507059e+37
      %v10966 = vand.u32 %v10531, 2147483648
      %v10967 = vor.u32 1.1754944e-38, %v10966
      %v10968 = vsel %vm10965, %v10967, %v10963
      %v10969 = vmul.f32 1.0, %v10968
      %v10970 = vrcp.pop %v10532
      %v10971 = vmul.f32 %v10532, %v10970
      %v10972 = vsub.f32 1.0, %v10971
      %v10973 = vmul.f32 %v10970, %v10972
      %v10974 = vadd.f32 %v10970, %v10973
      %vm10975 = vweird.f32 %v10532
      %vm10976 = vweird.f32 %v10970
      %vm10977 = vmor %vm10975, %vm10976
      %v10978 = vsel %vm10977, %v10970, %v10974
      %v10979 = vand.u32 2147483647, %v10532
      %vm10980 = vcmp.eq.f32.partialorder %v10979, 8.507059e+37
      %v10981 = vand.u32 %v10532, 2147483648
      %v10982 = vor.u32 1.1754944e-38, %v10981
      %v10983 = vsel %vm10980, %v10982, %v10978
      %v10984 = vmul.f32 1.0, %v10983
      %v10985 = vrcp.pop %v10533
      %v10986 = vmul.f32 %v10533, %v10985
      %v10987 = vsub.f32 1.0, %v10986
      %v10988 = vmul.f32 %v10985, %v10987
      %v10989 = vadd.f32 %v10985, %v10988
      %vm10990 = vweird.f32 %v10533
      %vm10991 = vweird.f32 %v10985
      %vm10992 = vmor %vm10990, %vm10991
      %v10993 = vsel %vm10992, %v10985, %v10989
      %v10994 = vand.u32 2147483647, %v10533
      %vm10995 = vcmp.eq.f32.partialorder %v10994, 8.507059e+37
      %v10996 = vand.u32 %v10533, 2147483648
      %v10997 = vor.u32 1.1754944e-38, %v10996
      %v10998 = vsel %vm10995, %v10997, %v10993
      %v10999 = vmul.f32 1.0, %v10998
      %v11000 = vrcp.pop %v10534
      %v11001 = vmul.f32 %v10534, %v11000
      %v11002 = vsub.f32 1.0, %v11001
      %v11003 = vmul.f32 %v11000, %v11002
      %v11004 = vadd.f32 %v11000, %v11003
      %vm11005 = vweird.f32 %v10534
      %vm11006 = vweird.f32 %v11000
      %vm11007 = vmor %vm11005, %vm11006
      %v11008 = vsel %vm11007, %v11000, %v11004
      %v11009 = vand.u32 2147483647, %v10534
      %vm11010 = vcmp.eq.f32.partialorder %v11009, 8.507059e+37
      %v11011 = vand.u32 %v10534, 2147483648
      %v11012 = vor.u32 1.1754944e-38, %v11011
      %v11013 = vsel %vm11010, %v11012, %v11008
      %v11014 = vmul.f32 1.0, %v11013
      %v11015 = vmul.f32 %v10375, %v10549
      %v11016 = vmul.f32 %v10376, %v10564
      %v11017 = vmul.f32 %v10377, %v10579
      %v11018 = vmul.f32 %v10378, %v10594
      %v11019 = vmul.f32 %v10379, %v10609
      %v11020 = vmul.f32 %v10380, %v10624
      %v11021 = vmul.f32 %v10381, %v10639
      %v11022 = vmul.f32 %v10382, %v10654
      %v11023 = vmul.f32 %v10383, %v10669
      %v11024 = vmul.f32 %v10384, %v10684
      %v11025 = vmul.f32 %v10385, %v10699
      %v11026 = vmul.f32 %v10386, %v10714
      %v11027 = vmul.f32 %v10387, %v10729
      %v11028 = vmul.f32 %v10388, %v10744
      %v11029 = vmul.f32 %v10389, %v10759
      %v11030 = vmul.f32 %v10390, %v10774
      %v11031 = vmul.f32 %v10391, %v10789
      %v11032 = vmul.f32 %v10392, %v10804
      %v11033 = vmul.f32 %v10393, %v10819
      %v11034 = vmul.f32 %v10394, %v10834
      %v11035 = vmul.f32 %v10395, %v10849
      %v11036 = vmul.f32 %v10396, %v10864
      %v11037 = vmul.f32 %v10397, %v10879
      %v11038 = vmul.f32 %v10398, %v10894
      %v11039 = vmul.f32 %v10399, %v10909
      %v11040 = vmul.f32 %v10400, %v10924
      %v11041 = vmul.f32 %v10401, %v10939
      %v11042 = vmul.f32 %v10402, %v10954
      %v11043 = vmul.f32 %v10403, %v10969
      %v11044 = vmul.f32 %v10404, %v10984
      %v11045 = vmul.f32 %v10405, %v10999
      %v11046 = vmul.f32 %v10406, %v11014
      %11047 = vst.msk [vmem:[%s386] sm:$0xff] %vm4871, %v11015
      %11048 = vst.msk [vmem:[%s386 + $0x8] sm:$0xff] %vm4871, %v11016
      %11049 = vst.msk [vmem:[%s386 + $0x10] sm:$0xff] %vm4871, %v11017
      %11050 = vst.msk [vmem:[%s386 + $0x18] sm:$0xff] %vm4871, %v11018
      %11051 = vst.msk [vmem:[%s386 + $0x20] sm:$0xff] %vm4871, %v11019
      %11052 = vst.msk [vmem:[%s386 + $0x28] sm:$0xff] %vm4871, %v11020
      %11053 = vst.msk [vmem:[%s386 + $0x30] sm:$0xff] %vm4871, %v11021
      %11054 = vst.msk [vmem:[%s386 + $0x38] sm:$0xff] %vm4871, %v11022
      %11055 = vst.msk [vmem:[%s386 + $0x40] sm:$0xff] %vm4871, %v11023
      %11056 = vst.msk [vmem:[%s386 + $0x48] sm:$0xff] %vm4871, %v11024
      %11057 = vst.msk [vmem:[%s386 + $0x50] sm:$0xff] %vm4871, %v11025
      %11058 = vst.msk [vmem:[%s386 + $0x58] sm:$0xff] %vm4871, %v11026
      %11059 = vst.msk [vmem:[%s386 + $0x60] sm:$0xff] %vm4871, %v11027
      %11060 = vst.msk [vmem:[%s386 + $0x68] sm:$0xff] %vm4871, %v11028
      %11061 = vst.msk [vmem:[%s386 + $0x70] sm:$0xff] %vm4871, %v11029
      %11062 = vst.msk [vmem:[%s386 + $0x78] sm:$0xff] %vm4871, %v11030
      %11063 = vst.msk [vmem:[%s386 + $0x80] sm:$0xff] %vm4871, %v11031
      %11064 = vst.msk [vmem:[%s386 + $0x88] sm:$0xff] %vm4871, %v11032
      %11065 = vst.msk [vmem:[%s386 + $0x90] sm:$0xff] %vm4871, %v11033
      %11066 = vst.msk [vmem:[%s386 + $0x98] sm:$0xff] %vm4871, %v11034
      %11067 = vst.msk [vmem:[%s386 + $0xa0] sm:$0xff] %vm4871, %v11035
      %11068 = vst.msk [vmem:[%s386 + $0xa8] sm:$0xff] %vm4871, %v11036
      %11069 = vst.msk [vmem:[%s386 + $0xb0] sm:$0xff] %vm4871, %v11037
      %11070 = vst.msk [vmem:[%s386 + $0xb8] sm:$0xff] %vm4871, %v11038
      %11071 = vst.msk [vmem:[%s386 + $0xc0] sm:$0xff] %vm4871, %v11039
      %11072 = vst.msk [vmem:[%s386 + $0xc8] sm:$0xff] %vm4871, %v11040
      %11073 = vst.msk [vmem:[%s386 + $0xd0] sm:$0xff] %vm4871, %v11041
      %11074 = vst.msk [vmem:[%s386 + $0xd8] sm:$0xff] %vm4871, %v11042
      %11075 = vst.msk [vmem:[%s386 + $0xe0] sm:$0xff] %vm4871, %v11043
      %11076 = vst.msk [vmem:[%s386 + $0xe8] sm:$0xff] %vm4871, %v11044
      %11077 = vst.msk [vmem:[%s386 + $0xf0] sm:$0xff] %vm4871, %v11045
      %11078 = vst.msk [vmem:[%s386 + $0xf8] sm:$0xff] %vm4871, %v11046
      %p11079 = scmp.lt.s32.totalorder %s22, 1
      %s11080 = scalar_select %p11079, %s22, 1
      %s11081 = smul.addr %s11080, 32
      %s11082 = smul.addr %s11081, 8
      %s11083 = scalar_lea.vmem %s11, %s11082
      // Predicated region
      $region65: #{tpu_custom_call.1} parent=63 // pred_check
        %p11084 = pneg %p276
      $region66: #{tpu_custom_call.1} parent=63 // pred_check_branch
        %11086 = sbr.rel (%p11084) target = $region68
      $region67: #{tpu_custom_call.1} parent=63 // pred_region
        _
      $region68: #{tpu_custom_call.1} parent=63 // pred_fallthru
        _
    $region64: #{tpu_custom_call.1} parent=5 // pred_fallthru
      _
    %p11087 = scmp.le.s32.totalorder 2, %s17
    // Predicated region
    $region69: #{tpu_custom_call.1} parent=5 // pred_check
      %p11088 = pneg %p11087
    $region70: #{tpu_custom_call.1} parent=5 // pred_check_branch
      %11090 = sbr.rel (%p11088) target = $region72
    $region71: #{tpu_custom_call.1} parent=5 // pred_region
      %s11091 = ssub.s32 %s17, 2
      // Predicated region
      $region73: #{tpu_custom_call.1} parent=71 // pred_check
        %p11092 = pneg %p282
      $region74: #{tpu_custom_call.1} parent=71 // pred_check_branch
        %11094 = sbr.rel (%p11092) target = $region76
      $region75: #{tpu_custom_call.1} parent=71 // pred_region
        %p11095 = scmp.lt.s32.totalorder %s23, 1
        %s11096 = scalar_select %p11095, %s23, 1
        %s11097 = smul.addr %s11096, 32
        %s11098 = smul.addr %s11097, 8
        %s11099 = scalar_lea.vmem %s11, %s11098
      $region76: #{tpu_custom_call.1} parent=71 // pred_fallthru
        _
    $region72: #{tpu_custom_call.1} parent=5 // pred_fallthru
      _
  $region6: #{tpu_custom_call.1} parent=0 // loop_footer
    %s21 = sadd.s32 1, %s17
  $region7: #{tpu_custom_call.1} parent=0 // loop_footer_branch
    %16 = sbr.rel target = $region3
  $region8: #{tpu_custom_call.1} parent=0 // loop_exit
    _

</llo_original>
